<compile_context>
chip_gen: v5e
topology: v5e:2x2
jax: 0.10.0
libtpu: 0.0.40
codegen_flags: <defaults>
</compile_context>

<pallas_src>
import functools

import jax
import jax.numpy as jnp
from jax.experimental import pallas as pl
from jax.experimental.pallas import tpu as pltpu


# ------------------------------------------------------------------------
# Single fused kernel:
#   h      = (sum_r A_r @ (x @ W_r)) * norm + x @ root + bias
#   m_all  = mot14 @ h                         ([14N, C], block 0 is identity -> h)
#   cw     = sum_j m_all[jN:(j+1)N] @ wcomb[jC:(j+1)C] + bcomb     ([N, 2P])
#   c_all  = cw[:, :P]   (per-motif compression, padded 13D -> P lanes)
#   mw_all = cw[:, P:]   (per-motif wa projection)
#   s      = (mw_all * c_all) @ blk_thin       ([N, 13] per-motif attention sums)
#   out    = (sigmoid(s) @ bcast) * (mw_all - c_all)               ([N, P])
# ------------------------------------------------------------------------
def motif_conv_kernel(x_ref, adj_ref, norm_ref, mot_ref, wrel_ref, root_ref,
                      bias_ref, wcomb_ref, bcomb_ref, blk_ref, bcast_ref,
                      out_ref):
    n = x_ref.shape[0]
    num_rel = adj_ref.shape[0]
    c = root_ref.shape[1]
    nm1 = mot_ref.shape[0] // n          # 14 = identity block + 13 motifs
    p = out_ref.shape[1]                 # lane-padded 13*D

    x = x_ref[...]                       # bf16

    # ---- hetero GCN aggregation (aggr='mean') + root + bias ----------------
    agg = jnp.zeros((n, c), jnp.float32)
    for r in range(num_rel):             # static unroll; per-relation weights,
        xw_r = jnp.dot(x, wrel_ref[r],   # no sub-tile column slicing
                       preferred_element_type=jnp.float32)
        agg = agg + jnp.dot(adj_ref[r], xw_r.astype(jnp.bfloat16),
                            preferred_element_type=jnp.float32)
    h = agg * norm_ref[...]
    h = h + jnp.dot(x, root_ref[...], preferred_element_type=jnp.float32)
    h = h + bias_ref[...]

    # ---- motif propagation: ONE matmul [14N, N] @ [N, C] -------------------
    m_all = jnp.dot(mot_ref[...], h.astype(jnp.bfloat16),
                    preferred_element_type=jnp.float32)          # [14N, C] f32
    m_all = m_all.astype(jnp.bfloat16)

    # ---- fused per-motif compression + attention projections ---------------
    # m_flat ([N, 14C]) is never formed: accumulate 14 sublane-aligned row-block
    # matmuls into one lane-dense [N, 2P] slab ( [c_all | mw_all] ).
    cw = jnp.zeros((n, 2 * p), jnp.float32)
    for j in range(nm1):                 # static unroll
        cw = cw + jnp.dot(m_all[j * n:(j + 1) * n, :],
                          wcomb_ref[j * c:(j + 1) * c, :],
                          preferred_element_type=jnp.float32)
    cw = cw + bcomb_ref[...]
    c_all = cw[:, :p]                    # tile-aligned lane slices (P = k*128)
    mw_all = cw[:, p:]

    # ---- attention: thin per-motif reduce -> sigmoid [N,13] -> broadcast ----
    # Elementwise math kept in f32 (v5e has no bf16 VPU/EUP); these two matmuls
    # are tiny, so f32 operands are fine.
    s = jnp.dot(mw_all * c_all, blk_ref[...],
                preferred_element_type=jnp.float32)               # [N, 13]
    att = jax.nn.sigmoid(s)
    att_full = jnp.dot(att, bcast_ref[...],
                       preferred_element_type=jnp.float32)        # [N, P]

    out_ref[...] = (att_full * (mw_all - c_all)).astype(out_ref.dtype)


# ------------------------------------------------------------------------
# One-time parameter packing (pure JAX, outside the kernel).
# ------------------------------------------------------------------------
def pack_params(w_rel, root, bias, wa, ba, motif_w, motif_b):
    r, c_in, c_out = w_rel.shape
    nm = motif_w.shape[0]                              # 13
    d = wa.shape[1]
    nm_d = nm * d                                      # 416
    p = ((nm_d + 127) // 128) * 128                    # lane-padded -> 512
    padc = p - nm_d

    # Expand each motif weight [13*C, D] to [14*C, D] with a zero block at the
    # own-motif slot (g+1); concat over motifs along columns -> [14*C, 13*D].
    def expand(g, w):
        blocks = list(jnp.split(w, nm, axis=0))
        blocks = blocks[:g + 1] + [jnp.zeros((c_out, d), w.dtype)] + blocks[g + 1:]
        return jnp.concatenate(blocks, axis=0)

    wall = jnp.concatenate([expand(g, motif_w[g]) for g in range(nm)], axis=1)
    # Block-diagonal wa acting on motif blocks 1..13 (zero rows for the h block).
    wabd = jnp.concatenate(
        [jnp.zeros((c_out, nm_d), wa.dtype),
         jnp.kron(jnp.eye(nm, dtype=wa.dtype), wa)], axis=0)

    wall_p = jnp.pad(wall, ((0, 0), (0, padc)))
    wabd_p = jnp.pad(wabd, ((0, 0), (0, padc)))
    wcomb = jnp.concatenate([wall_p, wabd_p], axis=1).astype(jnp.bfloat16)  # [14C, 2P]

    bcat = jnp.pad(motif_b.reshape(1, nm_d), ((0, 0), (0, padc)))
    batile = jnp.pad(jnp.tile(ba.reshape(1, d), (1, nm)), ((0, 0), (0, padc)))
    bcomb = jnp.concatenate([bcat, batile], axis=1).astype(jnp.float32)     # [1, 2P]

    # Thin per-motif reduce and broadcast matrices (kron form), row/col padded.
    blk_thin = jnp.pad(
        jnp.kron(jnp.eye(nm, dtype=jnp.float32), jnp.ones((d, 1), jnp.float32)),
        ((0, padc), (0, 0)))                                                 # [P, 13]
    bcast = jnp.pad(
        jnp.kron(jnp.eye(nm, dtype=jnp.float32), jnp.ones((1, d), jnp.float32)),
        ((0, 0), (0, padc)))                                                 # [13, P]

    return dict(wrel=w_rel.astype(jnp.bfloat16),
                root=root.astype(jnp.bfloat16),
                bias=bias.reshape(1, c_out).astype(jnp.float32),
                wcomb=wcomb, bcomb=bcomb, blk=blk_thin, bcast=bcast,
                dims=dict(c=c_out, d=d, nm=nm, p=p))


def motif_conv_forward(x, adj, norm, motif_mats, params):
    n, c_in = x.shape
    r = adj.shape[0]
    dims = params["dims"]
    c, d, nm, p = dims["c"], dims["d"], dims["nm"], dims["p"]

    # Guard the packing contract (motif row-block order must match wcomb rows).
    assert motif_mats.shape == (nm, n, n), motif_mats.shape
    assert params["wcomb"].shape == ((nm + 1) * c, 2 * p), params["wcomb"].shape

    # Prepend an identity block so one matmul yields all 14 propagation results.
    mot14 = jnp.concatenate(
        [jnp.eye(n, dtype=motif_mats.dtype)[None], motif_mats],
        axis=0).reshape((nm + 1) * n, n).astype(jnp.bfloat16)

    args = (x.astype(jnp.bfloat16), adj.astype(jnp.bfloat16),
            norm.reshape(n, 1).astype(jnp.float32), mot14,
            params["wrel"], params["root"], params["bias"],
            params["wcomb"], params["bcomb"], params["blk"], params["bcast"])

    flops = 2 * (r * n * c_in * c                 # x @ W_r
                 + r * n * n * c                  # A_r @ (x W_r)
                 + n * c_in * c                   # x @ root
                 + (nm + 1) * n * n * c           # motif propagation (incl. identity)
                 + (nm + 1) * n * c * 2 * p       # row-block compression/attention matmuls
                 + n * p * nm                     # thin per-motif reduce
                 + n * nm * p)                    # attention broadcast
    bytes_accessed = int(sum(int(a.size) * a.dtype.itemsize for a in args)
                         + n * p * 4)

    vmem = functools.partial(pl.BlockSpec, memory_space=pltpu.MemorySpace.VMEM)
    out = pl.pallas_call(
        motif_conv_kernel,
        out_shape=jax.ShapeDtypeStruct((n, p), jnp.float32),
        in_specs=[vmem()] * len(args),
        out_specs=vmem(),
        # Right-sized: working set is ~1.5 MB (+ f32 intermediates); 8 MiB is ample.
        compiler_params=pltpu.CompilerParams(vmem_limit_bytes=8 * 1024 * 1024),
        cost_estimate=pl.CostEstimate(flops=flops,
                                      transcendentals=n * nm,
                                      bytes_accessed=bytes_accessed),
    )(*args)
    return out[:, :nm * d]                        # drop the lane padding


if __name__ == "__main__":
    N, C_IN, C_OUT, D = 64, 32, 32, 32    # nodes, in/out channels, compress_dim
    R, NM = 3, 13                         # relations, motif matrices

    key = jax.random.PRNGKey(0)
    keys = jax.random.split(key, 10)

    x = jax.random.normal(keys[0], (N, C_IN), jnp.float32) * 0.1

    # Dense per-relation adjacency: A_r[dst, src] = edge weight.
    # TODO(synk): sparse edge_index / torch.spmm has no Pallas equivalent here;
    # dense [N, N] stand-ins are used for both adjacency and motif matrices.
    mask = (jax.random.uniform(keys[1], (R, N, N)) < 0.1).astype(jnp.float32)
    ew = jax.random.uniform(keys[2], (R, N, N), minval=0.1, maxval=1.0)
    adj = mask * ew

    # aggr='mean': 1 / in-degree (edges over all relations), 0 where deg==0.
    deg = jnp.sum(mask, axis=(0, 2))
    norm = jnp.where(deg > 0, 1.0 / deg, 0.0).reshape(N, 1).astype(jnp.float32)

    # Dense stand-ins for the 13 sparse motif matrices.
    mot_mask = (jax.random.uniform(keys[3], (NM, N, N)) < 0.1).astype(jnp.float32)
    motif_mats = mot_mask * jax.random.uniform(keys[4], (NM, N, N),
                                               minval=0.0, maxval=1.0)

    def kaiming_uniform(k, shape):
        bound = (6.0 / shape[-1]) ** 0.5
        return jax.random.uniform(k, shape, jnp.float32, -bound, bound)

    w_rel = kaiming_uniform(keys[5], (R, C_IN, C_OUT))        # GCNConv weights
    root = kaiming_uniform(keys[6], (C_IN, C_OUT))            # self.root
    bias = jnp.zeros((C_OUT,), jnp.float32)                   # self.bias -> zeros()
    wa = kaiming_uniform(keys[7], (C_OUT, D))                  # self.wa
    ba = jnp.zeros((D,), jnp.float32)                          # self.ba -> zeros()
    motif_w = kaiming_uniform(keys[8], (NM, NM * C_OUT, D))    # motif_weights
    motif_b = jnp.zeros((NM, D), jnp.float32)                  # motif_biases -> zeros()
    # NOTE: self.weight and self.wb are declared in __init__ but never used in forward.
    # TODO(synk): motif_dropout / att_dropout are training-only; eval mode => identity.

    params = pack_params(w_rel, root, bias, wa, ba, motif_w, motif_b)

    out = jax.block_until_ready(motif_conv_forward(x, adj, norm, motif_mats, params))
    assert out.shape == (N, NM * D), out.shape

    # Pure-JAX f32 reference (eval mode: dropout = identity, att_act = sigmoid).
    h_ref = sum(adj[r] @ x @ w_rel[r] for r in range(R)) * norm + x @ root + bias
    rsts = [h_ref] + [motif_mats[i] @ h_ref for i in range(NM)]
    embeds = []
    for i in range(1, NM + 1):
        comp = jnp.concatenate(rsts[:i] + rsts[i + 1:], axis=1)
        mw = rsts[i] @ wa + ba
        cc = comp @ motif_w[i - 1] + motif_b[i - 1]
        att = jax.nn.sigmoid(jnp.sum(mw * cc, axis=1, keepdims=True))
        embeds.append(att * (mw - cc))
    ref = jnp.concatenate(embeds, axis=1)

    # Tolerance widened vs the all-f32 v2 because MXU operands are now bf16
    # (f32 accumulation); elementwise math stays f32.
    assert jnp.allclose(out, ref, rtol=5e-2, atol=5e-2), \
        float(jnp.max(jnp.abs(out - ref)))
    print("KERNEL_OK")
</pallas_src>

<mosaic_0001>
module attributes {stable_mosaic.version = 11 : i64} {
  func.func @motif_conv_kernel(%arg0: memref<64x32xbf16, #tpu.memory_space<vmem>>, %arg1: memref<3x64x64xbf16, #tpu.memory_space<vmem>>, %arg2: memref<64x1xf32, #tpu.memory_space<vmem>>, %arg3: memref<896x64xbf16, #tpu.memory_space<vmem>>, %arg4: memref<3x32x32xbf16, #tpu.memory_space<vmem>>, %arg5: memref<32x32xbf16, #tpu.memory_space<vmem>>, %arg6: memref<1x32xf32, #tpu.memory_space<vmem>>, %arg7: memref<448x1024xbf16, #tpu.memory_space<vmem>>, %arg8: memref<1x1024xf32, #tpu.memory_space<vmem>>, %arg9: memref<512x13xf32, #tpu.memory_space<vmem>>, %arg10: memref<13x512xf32, #tpu.memory_space<vmem>>, %arg11: memref<64x512xf32, #tpu.memory_space<vmem>>) attributes {dimension_semantics = [], scalar_prefetch = 0 : i64, scratch_operands = 0 : i64, tpu.core_type = #tpu.core_type<tc>} {
    %c0 = arith.constant 0 : index
    %c0_0 = arith.constant 0 : index
    %0 = vector.load %arg0[%c0, %c0_0] : memref<64x32xbf16, #tpu.memory_space<vmem>>, vector<64x32xbf16>
    %cst = arith.constant 0.000000e+00 : f32
    %1 = vector.broadcast %cst : f32 to vector<64x32xf32>
    %c0_1 = arith.constant 0 : index
    %c0_2 = arith.constant 0 : index
    %c0_3 = arith.constant 0 : index
    %2 = vector.load %arg4[%c0_1, %c0_2, %c0_3] : memref<3x32x32xbf16, #tpu.memory_space<vmem>>, vector<1x32x32xbf16>
    %3 = vector.shape_cast %2 : vector<1x32x32xbf16> to vector<32x32xbf16>
    %cst_4 = arith.constant dense<0.000000e+00> : vector<64x32xf32>
    %4 = tpu.matmul %0, %3, %cst_4 {dimension_numbers = #tpu.dot_dimension_numbers<[1], [0], [0], [1], [0, 0, 1, 1], [], []>} : vector<64x32xbf16>, vector<32x32xbf16>, vector<64x32xf32> -> vector<64x32xf32>
    %c0_5 = arith.constant 0 : index
    %c0_6 = arith.constant 0 : index
    %c0_7 = arith.constant 0 : index
    %5 = vector.load %arg1[%c0_5, %c0_6, %c0_7] : memref<3x64x64xbf16, #tpu.memory_space<vmem>>, vector<1x64x64xbf16>
    %6 = vector.shape_cast %5 : vector<1x64x64xbf16> to vector<64x64xbf16>
    %7 = arith.truncf %4 : vector<64x32xf32> to vector<64x32xbf16>
    %cst_8 = arith.constant dense<0.000000e+00> : vector<64x32xf32>
    %8 = tpu.matmul %6, %7, %cst_8 {dimension_numbers = #tpu.dot_dimension_numbers<[1], [0], [0], [1], [0, 0, 1, 1], [], []>} : vector<64x64xbf16>, vector<64x32xbf16>, vector<64x32xf32> -> vector<64x32xf32>
    %9 = arith.addf %1, %8 : vector<64x32xf32>
    %c1 = arith.constant 1 : index
    %c0_9 = arith.constant 0 : index
    %c0_10 = arith.constant 0 : index
    %10 = vector.load %arg4[%c1, %c0_9, %c0_10] : memref<3x32x32xbf16, #tpu.memory_space<vmem>>, vector<1x32x32xbf16>
    %11 = vector.shape_cast %10 : vector<1x32x32xbf16> to vector<32x32xbf16>
    %cst_11 = arith.constant dense<0.000000e+00> : vector<64x32xf32>
    %12 = tpu.matmul %0, %11, %cst_11 {dimension_numbers = #tpu.dot_dimension_numbers<[1], [0], [0], [1], [0, 0, 1, 1], [], []>} : vector<64x32xbf16>, vector<32x32xbf16>, vector<64x32xf32> -> vector<64x32xf32>
    %c1_12 = arith.constant 1 : index
    %c0_13 = arith.constant 0 : index
    %c0_14 = arith.constant 0 : index
    %13 = vector.load %arg1[%c1_12, %c0_13, %c0_14] : memref<3x64x64xbf16, #tpu.memory_space<vmem>>, vector<1x64x64xbf16>
    %14 = vector.shape_cast %13 : vector<1x64x64xbf16> to vector<64x64xbf16>
    %15 = arith.truncf %12 : vector<64x32xf32> to vector<64x32xbf16>
    %cst_15 = arith.constant dense<0.000000e+00> : vector<64x32xf32>
    %16 = tpu.matmul %14, %15, %cst_15 {dimension_numbers = #tpu.dot_dimension_numbers<[1], [0], [0], [1], [0, 0, 1, 1], [], []>} : vector<64x64xbf16>, vector<64x32xbf16>, vector<64x32xf32> -> vector<64x32xf32>
    %17 = arith.addf %9, %16 : vector<64x32xf32>
    %c2 = arith.constant 2 : index
    %c0_16 = arith.constant 0 : index
    %c0_17 = arith.constant 0 : index
    %18 = vector.load %arg4[%c2, %c0_16, %c0_17] : memref<3x32x32xbf16, #tpu.memory_space<vmem>>, vector<1x32x32xbf16>
    %19 = vector.shape_cast %18 : vector<1x32x32xbf16> to vector<32x32xbf16>
    %cst_18 = arith.constant dense<0.000000e+00> : vector<64x32xf32>
    %20 = tpu.matmul %0, %19, %cst_18 {dimension_numbers = #tpu.dot_dimension_numbers<[1], [0], [0], [1], [0, 0, 1, 1], [], []>} : vector<64x32xbf16>, vector<32x32xbf16>, vector<64x32xf32> -> vector<64x32xf32>
    %c2_19 = arith.constant 2 : index
    %c0_20 = arith.constant 0 : index
    %c0_21 = arith.constant 0 : index
    %21 = vector.load %arg1[%c2_19, %c0_20, %c0_21] : memref<3x64x64xbf16, #tpu.memory_space<vmem>>, vector<1x64x64xbf16>
    %22 = vector.shape_cast %21 : vector<1x64x64xbf16> to vector<64x64xbf16>
    %23 = arith.truncf %20 : vector<64x32xf32> to vector<64x32xbf16>
    %cst_22 = arith.constant dense<0.000000e+00> : vector<64x32xf32>
    %24 = tpu.matmul %22, %23, %cst_22 {dimension_numbers = #tpu.dot_dimension_numbers<[1], [0], [0], [1], [0, 0, 1, 1], [], []>} : vector<64x64xbf16>, vector<64x32xbf16>, vector<64x32xf32> -> vector<64x32xf32>
    %25 = arith.addf %17, %24 : vector<64x32xf32>
    %c0_23 = arith.constant 0 : index
    %c0_24 = arith.constant 0 : index
    %26 = vector.load %arg2[%c0_23, %c0_24] : memref<64x1xf32, #tpu.memory_space<vmem>>, vector<64x1xf32>
    %27 = vector.broadcast %26 : vector<64x1xf32> to vector<64x32xf32>
    %28 = arith.mulf %25, %27 : vector<64x32xf32>
    %c0_25 = arith.constant 0 : index
    %c0_26 = arith.constant 0 : index
    %29 = vector.load %arg5[%c0_25, %c0_26] : memref<32x32xbf16, #tpu.memory_space<vmem>>, vector<32x32xbf16>
    %cst_27 = arith.constant dense<0.000000e+00> : vector<64x32xf32>
    %30 = tpu.matmul %0, %29, %cst_27 {dimension_numbers = #tpu.dot_dimension_numbers<[1], [0], [0], [1], [0, 0, 1, 1], [], []>} : vector<64x32xbf16>, vector<32x32xbf16>, vector<64x32xf32> -> vector<64x32xf32>
    %31 = arith.addf %28, %30 : vector<64x32xf32>
    %c0_28 = arith.constant 0 : index
    %c0_29 = arith.constant 0 : index
    %32 = vector.load %arg6[%c0_28, %c0_29] : memref<1x32xf32, #tpu.memory_space<vmem>>, vector<1x32xf32>
    %33 = vector.broadcast %32 : vector<1x32xf32> to vector<64x32xf32>
    %34 = arith.addf %31, %33 : vector<64x32xf32>
    %c0_30 = arith.constant 0 : index
    %c0_31 = arith.constant 0 : index
    %35 = vector.load %arg3[%c0_30, %c0_31] : memref<896x64xbf16, #tpu.memory_space<vmem>>, vector<896x64xbf16>
    %36 = arith.truncf %34 : vector<64x32xf32> to vector<64x32xbf16>
    %cst_32 = arith.constant dense<0.000000e+00> : vector<896x32xf32>
    %37 = tpu.matmul %35, %36, %cst_32 {dimension_numbers = #tpu.dot_dimension_numbers<[1], [0], [0], [1], [0, 0, 1, 1], [], []>} : vector<896x64xbf16>, vector<64x32xbf16>, vector<896x32xf32> -> vector<896x32xf32>
    %38 = arith.truncf %37 : vector<896x32xf32> to vector<896x32xbf16>
    %cst_33 = arith.constant 0.000000e+00 : f32
    %39 = vector.broadcast %cst_33 : f32 to vector<64x1024xf32>
    %40 = vector.extract_strided_slice %38 {offsets = [0, 0], sizes = [64, 32], strides = [1, 1]} : vector<896x32xbf16> to vector<64x32xbf16>
    %c0_34 = arith.constant 0 : index
    %c0_35 = arith.constant 0 : index
    %41 = vector.load %arg7[%c0_34, %c0_35] : memref<448x1024xbf16, #tpu.memory_space<vmem>>, vector<32x1024xbf16>
    %cst_36 = arith.constant dense<0.000000e+00> : vector<64x1024xf32>
    %42 = tpu.matmul %40, %41, %cst_36 {dimension_numbers = #tpu.dot_dimension_numbers<[1], [0], [0], [1], [0, 0, 1, 1], [], []>} : vector<64x32xbf16>, vector<32x1024xbf16>, vector<64x1024xf32> -> vector<64x1024xf32>
    %43 = arith.addf %39, %42 : vector<64x1024xf32>
    %44 = vector.extract_strided_slice %38 {offsets = [64, 0], sizes = [64, 32], strides = [1, 1]} : vector<896x32xbf16> to vector<64x32xbf16>
    %c32 = arith.constant 32 : index
    %c0_37 = arith.constant 0 : index
    %45 = vector.load %arg7[%c32, %c0_37] : memref<448x1024xbf16, #tpu.memory_space<vmem>>, vector<32x1024xbf16>
    %cst_38 = arith.constant dense<0.000000e+00> : vector<64x1024xf32>
    %46 = tpu.matmul %44, %45, %cst_38 {dimension_numbers = #tpu.dot_dimension_numbers<[1], [0], [0], [1], [0, 0, 1, 1], [], []>} : vector<64x32xbf16>, vector<32x1024xbf16>, vector<64x1024xf32> -> vector<64x1024xf32>
    %47 = arith.addf %43, %46 : vector<64x1024xf32>
    %48 = vector.extract_strided_slice %38 {offsets = [128, 0], sizes = [64, 32], strides = [1, 1]} : vector<896x32xbf16> to vector<64x32xbf16>
    %c64 = arith.constant 64 : index
    %c0_39 = arith.constant 0 : index
    %49 = vector.load %arg7[%c64, %c0_39] : memref<448x1024xbf16, #tpu.memory_space<vmem>>, vector<32x1024xbf16>
    %cst_40 = arith.constant dense<0.000000e+00> : vector<64x1024xf32>
    %50 = tpu.matmul %48, %49, %cst_40 {dimension_numbers = #tpu.dot_dimension_numbers<[1], [0], [0], [1], [0, 0, 1, 1], [], []>} : vector<64x32xbf16>, vector<32x1024xbf16>, vector<64x1024xf32> -> vector<64x1024xf32>
    %51 = arith.addf %47, %50 : vector<64x1024xf32>
    %52 = vector.extract_strided_slice %38 {offsets = [192, 0], sizes = [64, 32], strides = [1, 1]} : vector<896x32xbf16> to vector<64x32xbf16>
    %c96 = arith.constant 96 : index
    %c0_41 = arith.constant 0 : index
    %53 = vector.load %arg7[%c96, %c0_41] : memref<448x1024xbf16, #tpu.memory_space<vmem>>, vector<32x1024xbf16>
    %cst_42 = arith.constant dense<0.000000e+00> : vector<64x1024xf32>
    %54 = tpu.matmul %52, %53, %cst_42 {dimension_numbers = #tpu.dot_dimension_numbers<[1], [0], [0], [1], [0, 0, 1, 1], [], []>} : vector<64x32xbf16>, vector<32x1024xbf16>, vector<64x1024xf32> -> vector<64x1024xf32>
    %55 = arith.addf %51, %54 : vector<64x1024xf32>
    %56 = vector.extract_strided_slice %38 {offsets = [256, 0], sizes = [64, 32], strides = [1, 1]} : vector<896x32xbf16> to vector<64x32xbf16>
    %c128 = arith.constant 128 : index
    %c0_43 = arith.constant 0 : index
    %57 = vector.load %arg7[%c128, %c0_43] : memref<448x1024xbf16, #tpu.memory_space<vmem>>, vector<32x1024xbf16>
    %cst_44 = arith.constant dense<0.000000e+00> : vector<64x1024xf32>
    %58 = tpu.matmul %56, %57, %cst_44 {dimension_numbers = #tpu.dot_dimension_numbers<[1], [0], [0], [1], [0, 0, 1, 1], [], []>} : vector<64x32xbf16>, vector<32x1024xbf16>, vector<64x1024xf32> -> vector<64x1024xf32>
    %59 = arith.addf %55, %58 : vector<64x1024xf32>
    %60 = vector.extract_strided_slice %38 {offsets = [320, 0], sizes = [64, 32], strides = [1, 1]} : vector<896x32xbf16> to vector<64x32xbf16>
    %c160 = arith.constant 160 : index
    %c0_45 = arith.constant 0 : index
    %61 = vector.load %arg7[%c160, %c0_45] : memref<448x1024xbf16, #tpu.memory_space<vmem>>, vector<32x1024xbf16>
    %cst_46 = arith.constant dense<0.000000e+00> : vector<64x1024xf32>
    %62 = tpu.matmul %60, %61, %cst_46 {dimension_numbers = #tpu.dot_dimension_numbers<[1], [0], [0], [1], [0, 0, 1, 1], [], []>} : vector<64x32xbf16>, vector<32x1024xbf16>, vector<64x1024xf32> -> vector<64x1024xf32>
    %63 = arith.addf %59, %62 : vector<64x1024xf32>
    %64 = vector.extract_strided_slice %38 {offsets = [384, 0], sizes = [64, 32], strides = [1, 1]} : vector<896x32xbf16> to vector<64x32xbf16>
    %c192 = arith.constant 192 : index
    %c0_47 = arith.constant 0 : index
    %65 = vector.load %arg7[%c192, %c0_47] : memref<448x1024xbf16, #tpu.memory_space<vmem>>, vector<32x1024xbf16>
    %cst_48 = arith.constant dense<0.000000e+00> : vector<64x1024xf32>
    %66 = tpu.matmul %64, %65, %cst_48 {dimension_numbers = #tpu.dot_dimension_numbers<[1], [0], [0], [1], [0, 0, 1, 1], [], []>} : vector<64x32xbf16>, vector<32x1024xbf16>, vector<64x1024xf32> -> vector<64x1024xf32>
    %67 = arith.addf %63, %66 : vector<64x1024xf32>
    %68 = vector.extract_strided_slice %38 {offsets = [448, 0], sizes = [64, 32], strides = [1, 1]} : vector<896x32xbf16> to vector<64x32xbf16>
    %c224 = arith.constant 224 : index
    %c0_49 = arith.constant 0 : index
    %69 = vector.load %arg7[%c224, %c0_49] : memref<448x1024xbf16, #tpu.memory_space<vmem>>, vector<32x1024xbf16>
    %cst_50 = arith.constant dense<0.000000e+00> : vector<64x1024xf32>
    %70 = tpu.matmul %68, %69, %cst_50 {dimension_numbers = #tpu.dot_dimension_numbers<[1], [0], [0], [1], [0, 0, 1, 1], [], []>} : vector<64x32xbf16>, vector<32x1024xbf16>, vector<64x1024xf32> -> vector<64x1024xf32>
    %71 = arith.addf %67, %70 : vector<64x1024xf32>
    %72 = vector.extract_strided_slice %38 {offsets = [512, 0], sizes = [64, 32], strides = [1, 1]} : vector<896x32xbf16> to vector<64x32xbf16>
    %c256 = arith.constant 256 : index
    %c0_51 = arith.constant 0 : index
    %73 = vector.load %arg7[%c256, %c0_51] : memref<448x1024xbf16, #tpu.memory_space<vmem>>, vector<32x1024xbf16>
    %cst_52 = arith.constant dense<0.000000e+00> : vector<64x1024xf32>
    %74 = tpu.matmul %72, %73, %cst_52 {dimension_numbers = #tpu.dot_dimension_numbers<[1], [0], [0], [1], [0, 0, 1, 1], [], []>} : vector<64x32xbf16>, vector<32x1024xbf16>, vector<64x1024xf32> -> vector<64x1024xf32>
    %75 = arith.addf %71, %74 : vector<64x1024xf32>
    %76 = vector.extract_strided_slice %38 {offsets = [576, 0], sizes = [64, 32], strides = [1, 1]} : vector<896x32xbf16> to vector<64x32xbf16>
    %c288 = arith.constant 288 : index
    %c0_53 = arith.constant 0 : index
    %77 = vector.load %arg7[%c288, %c0_53] : memref<448x1024xbf16, #tpu.memory_space<vmem>>, vector<32x1024xbf16>
    %cst_54 = arith.constant dense<0.000000e+00> : vector<64x1024xf32>
    %78 = tpu.matmul %76, %77, %cst_54 {dimension_numbers = #tpu.dot_dimension_numbers<[1], [0], [0], [1], [0, 0, 1, 1], [], []>} : vector<64x32xbf16>, vector<32x1024xbf16>, vector<64x1024xf32> -> vector<64x1024xf32>
    %79 = arith.addf %75, %78 : vector<64x1024xf32>
    %80 = vector.extract_strided_slice %38 {offsets = [640, 0], sizes = [64, 32], strides = [1, 1]} : vector<896x32xbf16> to vector<64x32xbf16>
    %c320 = arith.constant 320 : index
    %c0_55 = arith.constant 0 : index
    %81 = vector.load %arg7[%c320, %c0_55] : memref<448x1024xbf16, #tpu.memory_space<vmem>>, vector<32x1024xbf16>
    %cst_56 = arith.constant dense<0.000000e+00> : vector<64x1024xf32>
    %82 = tpu.matmul %80, %81, %cst_56 {dimension_numbers = #tpu.dot_dimension_numbers<[1], [0], [0], [1], [0, 0, 1, 1], [], []>} : vector<64x32xbf16>, vector<32x1024xbf16>, vector<64x1024xf32> -> vector<64x1024xf32>
    %83 = arith.addf %79, %82 : vector<64x1024xf32>
    %84 = vector.extract_strided_slice %38 {offsets = [704, 0], sizes = [64, 32], strides = [1, 1]} : vector<896x32xbf16> to vector<64x32xbf16>
    %c352 = arith.constant 352 : index
    %c0_57 = arith.constant 0 : index
    %85 = vector.load %arg7[%c352, %c0_57] : memref<448x1024xbf16, #tpu.memory_space<vmem>>, vector<32x1024xbf16>
    %cst_58 = arith.constant dense<0.000000e+00> : vector<64x1024xf32>
    %86 = tpu.matmul %84, %85, %cst_58 {dimension_numbers = #tpu.dot_dimension_numbers<[1], [0], [0], [1], [0, 0, 1, 1], [], []>} : vector<64x32xbf16>, vector<32x1024xbf16>, vector<64x1024xf32> -> vector<64x1024xf32>
    %87 = arith.addf %83, %86 : vector<64x1024xf32>
    %88 = vector.extract_strided_slice %38 {offsets = [768, 0], sizes = [64, 32], strides = [1, 1]} : vector<896x32xbf16> to vector<64x32xbf16>
    %c384 = arith.constant 384 : index
    %c0_59 = arith.constant 0 : index
    %89 = vector.load %arg7[%c384, %c0_59] : memref<448x1024xbf16, #tpu.memory_space<vmem>>, vector<32x1024xbf16>
    %cst_60 = arith.constant dense<0.000000e+00> : vector<64x1024xf32>
    %90 = tpu.matmul %88, %89, %cst_60 {dimension_numbers = #tpu.dot_dimension_numbers<[1], [0], [0], [1], [0, 0, 1, 1], [], []>} : vector<64x32xbf16>, vector<32x1024xbf16>, vector<64x1024xf32> -> vector<64x1024xf32>
    %91 = arith.addf %87, %90 : vector<64x1024xf32>
    %92 = vector.extract_strided_slice %38 {offsets = [832, 0], sizes = [64, 32], strides = [1, 1]} : vector<896x32xbf16> to vector<64x32xbf16>
    %c416 = arith.constant 416 : index
    %c0_61 = arith.constant 0 : index
    %93 = vector.load %arg7[%c416, %c0_61] : memref<448x1024xbf16, #tpu.memory_space<vmem>>, vector<32x1024xbf16>
    %cst_62 = arith.constant dense<0.000000e+00> : vector<64x1024xf32>
    %94 = tpu.matmul %92, %93, %cst_62 {dimension_numbers = #tpu.dot_dimension_numbers<[1], [0], [0], [1], [0, 0, 1, 1], [], []>} : vector<64x32xbf16>, vector<32x1024xbf16>, vector<64x1024xf32> -> vector<64x1024xf32>
    %95 = arith.addf %91, %94 : vector<64x1024xf32>
    %c0_63 = arith.constant 0 : index
    %c0_64 = arith.constant 0 : index
    %96 = vector.load %arg8[%c0_63, %c0_64] : memref<1x1024xf32, #tpu.memory_space<vmem>>, vector<1x1024xf32>
    %97 = vector.broadcast %96 : vector<1x1024xf32> to vector<64x1024xf32>
    %98 = arith.addf %95, %97 : vector<64x1024xf32>
    %99 = vector.extract_strided_slice %98 {offsets = [0, 0], sizes = [64, 512], strides = [1, 1]} : vector<64x1024xf32> to vector<64x512xf32>
    %100 = vector.extract_strided_slice %98 {offsets = [0, 512], sizes = [64, 512], strides = [1, 1]} : vector<64x1024xf32> to vector<64x512xf32>
    %101 = arith.mulf %100, %99 : vector<64x512xf32>
    %c0_65 = arith.constant 0 : index
    %c0_66 = arith.constant 0 : index
    %102 = vector.load %arg9[%c0_65, %c0_66] : memref<512x13xf32, #tpu.memory_space<vmem>>, vector<512x13xf32>
    %cst_67 = arith.constant dense<0.000000e+00> : vector<64x13xf32>
    %103 = tpu.matmul %101, %102, %cst_67 {dimension_numbers = #tpu.dot_dimension_numbers<[1], [0], [0], [1], [0, 0, 1, 1], [], []>} : vector<64x512xf32>, vector<512x13xf32>, vector<64x13xf32> -> vector<64x13xf32>
    %104 = arith.negf %103 : vector<64x13xf32>
    %105 = math.exp %104 : vector<64x13xf32>
    %cst_68 = arith.constant 1.000000e+00 : f32
    %106 = vector.broadcast %cst_68 : f32 to vector<64x13xf32>
    %107 = arith.addf %106, %105 : vector<64x13xf32>
    %108 = arith.divf %106, %107 : vector<64x13xf32>
    %c0_69 = arith.constant 0 : index
    %c0_70 = arith.constant 0 : index
    %109 = vector.load %arg10[%c0_69, %c0_70] : memref<13x512xf32, #tpu.memory_space<vmem>>, vector<13x512xf32>
    %cst_71 = arith.constant dense<0.000000e+00> : vector<64x512xf32>
    %110 = tpu.matmul %108, %109, %cst_71 {dimension_numbers = #tpu.dot_dimension_numbers<[1], [0], [0], [1], [0, 0, 1, 1], [], []>} : vector<64x13xf32>, vector<13x512xf32>, vector<64x512xf32> -> vector<64x512xf32>
    %111 = arith.subf %100, %99 : vector<64x512xf32>
    %112 = arith.mulf %110, %111 : vector<64x512xf32>
    %c0_72 = arith.constant 0 : index
    %c0_73 = arith.constant 0 : index
    %113 = vector.load %arg11[%c0_72, %c0_73] : memref<64x512xf32, #tpu.memory_space<vmem>>, vector<64x512xf32>
    tpu.vector_store %arg11[%c0_72, %c0_73], %112 {strides = array<i32>} : memref<64x512xf32, #tpu.memory_space<vmem>>, vector<64x512xf32>,
    return
  }
}

</mosaic_0001>

<llo_original>
// kernel: tpu_custom_call.1
$region0: #{tpu_custom_call.1}
  #allocation0 [shape = 'u32[]', space=smem, size = 0x4, offset = 0x4, fixed_abs, tag = 'smem constant byte address 0x4 - core index']
  #allocation1 [shape = 'u32[72,128]{1,0:T(1,128)}', space=vmem, size = 0x9000, scoped, tag = 'internal scratch']
  %s0 = inlined_call_operand.vmem [shape: bf16[64,32], index: 0, kind: input, shape index: {}]
  %s1 = inlined_call_operand.vmem [shape: bf16[3,64,64], index: 1, kind: input, shape index: {}]
  %s2 = inlined_call_operand.vmem [shape: f32[64,1], index: 2, kind: input, shape index: {}]
  %s3 = inlined_call_operand.vmem [shape: bf16[896,64], index: 3, kind: input, shape index: {}]
  %s4 = inlined_call_operand.vmem [shape: bf16[3,32,32], index: 4, kind: input, shape index: {}]
  %s5 = inlined_call_operand.vmem [shape: bf16[32,32], index: 5, kind: input, shape index: {}]
  %s6 = inlined_call_operand.vmem [shape: f32[1,32], index: 6, kind: input, shape index: {}]
  %s7 = inlined_call_operand.hbm [shape: bf16[448,1024], index: 7, kind: input, shape index: {}]
  %s8 = inlined_call_operand.vmem [shape: f32[1,1024], index: 8, kind: input, shape index: {}]
  %s9 = inlined_call_operand.vmem [shape: f32[512,13], index: 9, kind: input, shape index: {}]
  %s10 = inlined_call_operand.vmem [shape: f32[13,512], index: 10, kind: input, shape index: {}]
  %s11 = inlined_call_operand.hbm [shape: f32[64,512], index: 11, kind: output, shape index: {}]
  %s12 = sld [smem:[#allocation0]]
  $region58: #{tpu_custom_call.1} parent=0
    _
  %s14 = ssub.s32 1, %s12
  %s15 = scalar_select 0, %s14, %s12
  $region1: #{tpu_custom_call.1} parent=0
    #allocation2 [shape = 'u8[917504]{0}', space=vmem, size = 0xe0000, scoped, tag = 'input window, operand 7, single buffered']
    #allocation3 [shape = 's32[1]{0}', space=sflag, size = 0x4, scoped, tag = 'scoped memory for tpu_custom_call.1']
    #allocation4 [shape = 's32[1]{0}', space=sflag, size = 0x4, scoped, tag = 'scoped memory for tpu_custom_call.1']
    #allocation5 [shape = 'u8[131072]{0}', space=vmem, size = 0x20000, scoped, tag = 'output window, operand 0, single buffered']
    %16 = vsyncpa [#allocation3], 0
    %17 = vsyncpa [#allocation4], 0
    // Predicated region
    $region2: #{tpu_custom_call.1} parent=1 // pred_check
      _
    $region3: #{tpu_custom_call.1} parent=1 // pred_check_branch
      %19 = sbr.rel (0) target = $region5
    $region4: #{tpu_custom_call.1} parent=1 // pred_region
      _
    $region5: #{tpu_custom_call.1} parent=1 // pred_fallthru
      _
    // Predicated region
    $region6: #{tpu_custom_call.1} parent=1 // pred_check
      _
    $region7: #{tpu_custom_call.1} parent=1 // pred_check_branch
      %21 = sbr.rel (0) target = $region9
    $region8: #{tpu_custom_call.1} parent=1 // pred_region
      _
    $region9: #{tpu_custom_call.1} parent=1 // pred_fallthru
      _
    // Predicated region
    $region10: #{tpu_custom_call.1} parent=1 // pred_check
      _
    $region11: #{tpu_custom_call.1} parent=1 // pred_check_branch
      %23 = sbr.rel (0) target = $region13
    $region12: #{tpu_custom_call.1} parent=1 // pred_region
      _
    $region13: #{tpu_custom_call.1} parent=1 // pred_fallthru
      _
    // Predicated region
    $region14: #{tpu_custom_call.1} parent=1 // pred_check
      _
    $region15: #{tpu_custom_call.1} parent=1 // pred_check_branch
      %25 = sbr.rel (0) target = $region17
    $region16: #{tpu_custom_call.1} parent=1 // pred_region
      _
    $region17: #{tpu_custom_call.1} parent=1 // pred_fallthru
      _
    // Predicated region
    $region18: #{tpu_custom_call.1} parent=1 // pred_check
      _
    $region19: #{tpu_custom_call.1} parent=1 // pred_check_branch
      %27 = sbr.rel (0) target = $region21
    $region20: #{tpu_custom_call.1} parent=1 // pred_region
      _
    $region21: #{tpu_custom_call.1} parent=1 // pred_fallthru
      _
    // Predicated region
    $region22: #{tpu_custom_call.1} parent=1 // pred_check
      _
    $region23: #{tpu_custom_call.1} parent=1 // pred_check_branch
      %29 = sbr.rel (0) target = $region25
    $region24: #{tpu_custom_call.1} parent=1 // pred_region
      _
    $region25: #{tpu_custom_call.1} parent=1 // pred_fallthru
      _
    // Predicated region
    $region26: #{tpu_custom_call.1} parent=1 // pred_check
      _
    $region27: #{tpu_custom_call.1} parent=1 // pred_check_branch
      %31 = sbr.rel (0) target = $region29
    $region28: #{tpu_custom_call.1} parent=1 // pred_region
      _
    $region29: #{tpu_custom_call.1} parent=1 // pred_fallthru
      _
    // Predicated region
    $region30: #{tpu_custom_call.1} parent=1 // pred_check
      _
    $region31: #{tpu_custom_call.1} parent=1 // pred_check_branch
      %33 = sbr.rel (0) target = $region33
    $region32: #{tpu_custom_call.1} parent=1 // pred_region
      %35 = vsyncadd [#allocation3], 0
      %s36 = sshll.u32 %s7, 4
      %s37 = int_to_ptr.hbm [resolvable:$true] %s36
      %s38 = sshll.u32 [#allocation2], 4
      %s39 = int_to_ptr.vmem [resolvable:$true] %s38
      %44 = dma.hbm_to_vmem [thread:$0]  %s37, 28672, %s39, [#allocation3], 512, 512, 32
    $region33: #{tpu_custom_call.1} parent=1 // pred_fallthru
      _
    // Predicated region
    $region34: #{tpu_custom_call.1} parent=1 // pred_check
      _
    $region35: #{tpu_custom_call.1} parent=1 // pred_check_branch
      %46 = sbr.rel (0) target = $region37
    $region36: #{tpu_custom_call.1} parent=1 // pred_region
      _
    $region37: #{tpu_custom_call.1} parent=1 // pred_fallthru
      _
    // Predicated region
    $region38: #{tpu_custom_call.1} parent=1 // pred_check
      _
    $region39: #{tpu_custom_call.1} parent=1 // pred_check_branch
      %48 = sbr.rel (0) target = $region41
    $region40: #{tpu_custom_call.1} parent=1 // pred_region
      _
    $region41: #{tpu_custom_call.1} parent=1 // pred_fallthru
      _
    // Predicated region
    $region42: #{tpu_custom_call.1} parent=1 // pred_check
      _
    $region43: #{tpu_custom_call.1} parent=1 // pred_check_branch
      %50 = sbr.rel (0) target = $region45
    $region44: #{tpu_custom_call.1} parent=1 // pred_region
      _
    $region45: #{tpu_custom_call.1} parent=1 // pred_fallthru
      _
    // Predicated region
    $region46: #{tpu_custom_call.1} parent=1 // pred_check
      _
    $region47: #{tpu_custom_call.1} parent=1 // pred_check_branch
      %52 = sbr.rel (0) target = $region49
    $region48: #{tpu_custom_call.1} parent=1 // pred_region
      %54 = dma.done [#allocation3], 28672
    $region49: #{tpu_custom_call.1} parent=1 // pred_fallthru
      _
    %v56 = vld [vmem:[%s0] sm:$0xf]
    %v57 = vld [vmem:[%s0 + $0x4] sm:$0xf]
    %v58 = vld [vmem:[%s0 + $0x8] sm:$0xf]
    %v59 = vld [vmem:[%s0 + $0xc] sm:$0xf]
    %v60 = vld [vmem:[%s0 + $0x10] sm:$0xf]
    %v61 = vld [vmem:[%s0 + $0x14] sm:$0xf]
    %v62 = vld [vmem:[%s0 + $0x18] sm:$0xf]
    %v63 = vld [vmem:[%s0 + $0x1c] sm:$0xf]
    %v64 = vld [vmem:[%s4] sm:$0xf]
    %v65 = vld [vmem:[%s4 + $0x4] sm:$0xf]
    %v66 = vld [vmem:[%s4 + $0x8] sm:$0xf]
    %v67 = vld [vmem:[%s4 + $0xc] sm:$0xf]
    %v76 = vunpack.c.l.b16 %v56
    %v77 = vunpack.c.l.b16 %v57
    %v78 = vunpack.c.l.b16 %v58
    %v79 = vunpack.c.l.b16 %v59
    %v80 = vunpack.c.l.b16 %v60
    %v81 = vunpack.c.l.b16 %v61
    %v82 = vunpack.c.l.b16 %v62
    %v83 = vunpack.c.l.b16 %v63
    %v84 = vpack.c.b16 %v77, %v76
    %v85 = vpack.c.b16 %v79, %v78
    %v86 = vpack.c.b16 %v81, %v80
    %v87 = vpack.c.b16 %v83, %v82
    %v92 = vunpack.c.l.b16 %v64
    %v93 = vunpack.c.l.b16 %v65
    %v94 = vunpack.c.l.b16 %v66
    %v95 = vunpack.c.l.b16 %v67
    %v96 = vpack.c.b16 %v93, %v92
    %v97 = vpack.c.b16 %v95, %v94
    %vm100 = vcmask 261120
    %v102 = vsel %vm100, %v84, 0
    %v105 = vsel %vm100, %v85, 0
    %v108 = vsel %vm100, %v86, 0
    %v111 = vsel %vm100, %v87, 0
    %113 = vmatpush.bf16.msra.mxu0 0
    %114 = vmatpush.bf16.msra.mxu0 0
    %115 = vmatpush.bf16.msra.mxu0 0
    %116 = vmatpush.bf16.msra.mxu0 0
    %117 = vmatpush.bf16.msra.mxu0 0
    %118 = vmatpush.bf16.msra.mxu0 0
    %119 = vmatpush.bf16.msra.mxu0 %v97
    %120 = vmatpush.bf16.msra.mxu0 %v96
    %121 = vmatmul.bf16.gmra.mxu0 %v102
    %v122 = vpop.f32.mrf.mxu0
    %v123 = vadd.f32 0.0, %v122
    %v124 = vpop.f32.mrf.mxu0
    %v125 = vadd.f32 0.0, %v124
    %126 = vmatmul.bf16.gmra.mxu0 %v105
    %v127 = vpop.f32.mrf.mxu0
    %v128 = vadd.f32 0.0, %v127
    %v129 = vpop.f32.mrf.mxu0
    %v130 = vadd.f32 0.0, %v129
    %131 = vmatmul.bf16.gmra.mxu0 %v108
    %v132 = vpop.f32.mrf.mxu0
    %v133 = vadd.f32 0.0, %v132
    %v134 = vpop.f32.mrf.mxu0
    %v135 = vadd.f32 0.0, %v134
    %136 = vmatmul.bf16.gmra.mxu0 %v111
    %v137 = vpop.f32.mrf.mxu0
    %v138 = vadd.f32 0.0, %v137
    %v139 = vpop.f32.mrf.mxu0
    %v140 = vadd.f32 0.0, %v139
    %141 = vdwg.mxu0
    %v142 = vld [vmem:[%s1] sm:$0xf]
    %v143 = vld [vmem:[%s1 + $0x4] sm:$0xf]
    %v144 = vld [vmem:[%s1 + $0x8] sm:$0xf]
    %v145 = vld [vmem:[%s1 + $0xc] sm:$0xf]
    %v146 = vld [vmem:[%s1 + $0x10] sm:$0xf]
    %v147 = vld [vmem:[%s1 + $0x14] sm:$0xf]
    %v148 = vld [vmem:[%s1 + $0x18] sm:$0xf]
    %v149 = vld [vmem:[%s1 + $0x1c] sm:$0xf]
    %v150 = vpack.c.bf16 %v125, %v123
    %v151 = vpack.c.bf16 %v130, %v128
    %v152 = vpack.c.bf16 %v135, %v133
    %v153 = vpack.c.bf16 %v140, %v138
    %s154 = scalar_lea.vmem %s4, 16
    %v155 = vld [vmem:[%s154] sm:$0xf]
    %v156 = vld [vmem:[%s154 + $0x4] sm:$0xf]
    %v157 = vld [vmem:[%s154 + $0x8] sm:$0xf]
    %v158 = vld [vmem:[%s154 + $0xc] sm:$0xf]
    %v163 = vunpack.c.l.b16 %v155
    %v164 = vunpack.c.l.b16 %v156
    %v165 = vunpack.c.l.b16 %v157
    %v166 = vunpack.c.l.b16 %v158
    %v167 = vpack.c.b16 %v164, %v163
    %v168 = vpack.c.b16 %v166, %v165
    %171 = vmatpush.bf16.msra.mxu0 0
    %172 = vmatpush.bf16.msra.mxu0 0
    %173 = vmatpush.bf16.msra.mxu0 0
    %174 = vmatpush.bf16.msra.mxu0 0
    %175 = vmatpush.bf16.msra.mxu0 0
    %176 = vmatpush.bf16.msra.mxu0 0
    %177 = vmatpush.bf16.msra.mxu0 %v168
    %178 = vmatpush.bf16.msra.mxu0 %v167
    %179 = vmatmul.bf16.gmra.mxu0 %v102
    %v180 = vpop.f32.mrf.mxu0
    %v181 = vadd.f32 0.0, %v180
    %v182 = vpop.f32.mrf.mxu0
    %v183 = vadd.f32 0.0, %v182
    %184 = vmatmul.bf16.gmra.mxu0 %v105
    %v185 = vpop.f32.mrf.mxu0
    %v186 = vadd.f32 0.0, %v185
    %v187 = vpop.f32.mrf.mxu0
    %v188 = vadd.f32 0.0, %v187
    %189 = vmatmul.bf16.gmra.mxu0 %v108
    %v190 = vpop.f32.mrf.mxu0
    %v191 = vadd.f32 0.0, %v190
    %v192 = vpop.f32.mrf.mxu0
    %v193 = vadd.f32 0.0, %v192
    %194 = vmatmul.bf16.gmra.mxu0 %v111
    %v195 = vpop.f32.mrf.mxu0
    %v196 = vadd.f32 0.0, %v195
    %v197 = vpop.f32.mrf.mxu0
    %v198 = vadd.f32 0.0, %v197
    %199 = vdwg.mxu0
    %s200 = scalar_lea.vmem %s1, 32
    %v201 = vld [vmem:[%s200] sm:$0xf]
    %v202 = vld [vmem:[%s200 + $0x4] sm:$0xf]
    %v203 = vld [vmem:[%s200 + $0x8] sm:$0xf]
    %v204 = vld [vmem:[%s200 + $0xc] sm:$0xf]
    %v205 = vld [vmem:[%s200 + $0x10] sm:$0xf]
    %v206 = vld [vmem:[%s200 + $0x14] sm:$0xf]
    %v207 = vld [vmem:[%s200 + $0x18] sm:$0xf]
    %v208 = vld [vmem:[%s200 + $0x1c] sm:$0xf]
    %v209 = vpack.c.bf16 %v183, %v181
    %v210 = vpack.c.bf16 %v188, %v186
    %v211 = vpack.c.bf16 %v193, %v191
    %v212 = vpack.c.bf16 %v198, %v196
    %v221 = vunpack.c.l.b16 %v201
    %v222 = vunpack.c.l.b16 %v202
    %v223 = vunpack.c.l.b16 %v203
    %v224 = vunpack.c.l.b16 %v204
    %v225 = vunpack.c.l.b16 %v205
    %v226 = vunpack.c.l.b16 %v206
    %v227 = vunpack.c.l.b16 %v207
    %v228 = vunpack.c.l.b16 %v208
    %v229 = vpack.c.b16 %v222, %v221
    %v230 = vpack.c.b16 %v224, %v223
    %v231 = vpack.c.b16 %v226, %v225
    %v232 = vpack.c.b16 %v228, %v227
    %vm233 = vcmask 523264
    %v235 = vsel %vm233, %v229, 0
    %v238 = vsel %vm233, %v230, 0
    %v241 = vsel %vm233, %v231, 0
    %v244 = vsel %vm233, %v232, 0
    %246 = vmatpush.bf16.msra.mxu0 0
    %247 = vmatpush.bf16.msra.mxu0 0
    %248 = vmatpush.bf16.msra.mxu0 0
    %249 = vmatpush.bf16.msra.mxu0 0
    %250 = vmatpush.bf16.msra.mxu0 %v212
    %251 = vmatpush.bf16.msra.mxu0 %v211
    %252 = vmatpush.bf16.msra.mxu0 %v210
    %253 = vmatpush.bf16.msra.mxu0 %v209
    %254 = vmatmul.bf16.gmra.mxu0 %v235
    %v255 = vpop.f32.mrf.mxu0
    %v256 = vadd.f32 0.0, %v255
    %v257 = vpop.f32.mrf.mxu0
    %v258 = vadd.f32 0.0, %v257
    %259 = vmatmul.bf16.gmra.mxu0 %v238
    %v260 = vpop.f32.mrf.mxu0
    %v261 = vadd.f32 0.0, %v260
    %v262 = vpop.f32.mrf.mxu0
    %v263 = vadd.f32 0.0, %v262
    %264 = vmatmul.bf16.gmra.mxu0 %v241
    %v265 = vpop.f32.mrf.mxu0
    %v266 = vadd.f32 0.0, %v265
    %v267 = vpop.f32.mrf.mxu0
    %v268 = vadd.f32 0.0, %v267
    %269 = vmatmul.bf16.gmra.mxu0 %v244
    %v270 = vpop.f32.mrf.mxu0
    %v271 = vadd.f32 0.0, %v270
    %v272 = vpop.f32.mrf.mxu0
    %v273 = vadd.f32 0.0, %v272
    %274 = vdwg.mxu0
    %v283 = vunpack.c.l.b16 %v142
    %v284 = vunpack.c.l.b16 %v143
    %v285 = vunpack.c.l.b16 %v144
    %v286 = vunpack.c.l.b16 %v145
    %v287 = vunpack.c.l.b16 %v146
    %v288 = vunpack.c.l.b16 %v147
    %v289 = vunpack.c.l.b16 %v148
    %v290 = vunpack.c.l.b16 %v149
    %v291 = vpack.c.b16 %v284, %v283
    %v292 = vpack.c.b16 %v286, %v285
    %v293 = vpack.c.b16 %v288, %v287
    %v294 = vpack.c.b16 %v290, %v289
    %v296 = vsel %vm233, %v291, 0
    %v299 = vsel %vm233, %v292, 0
    %v302 = vsel %vm233, %v293, 0
    %v305 = vsel %vm233, %v294, 0
    %307 = vmatpush.bf16.msra.mxu0 0
    %308 = vmatpush.bf16.msra.mxu0 0
    %309 = vmatpush.bf16.msra.mxu0 0
    %310 = vmatpush.bf16.msra.mxu0 0
    %311 = vmatpush.bf16.msra.mxu0 %v153
    %312 = vmatpush.bf16.msra.mxu0 %v152
    %313 = vmatpush.bf16.msra.mxu0 %v151
    %314 = vmatpush.bf16.msra.mxu0 %v150
    %315 = vmatmul.bf16.gmra.mxu0 %v296
    %v316 = vpop.f32.mrf.mxu0
    %v317 = vadd.f32 %v256, %v316
    %v318 = vpop.f32.mrf.mxu0
    %v319 = vadd.f32 %v258, %v318
    %320 = vmatmul.bf16.gmra.mxu0 %v299
    %v321 = vpop.f32.mrf.mxu0
    %v322 = vadd.f32 %v261, %v321
    %v323 = vpop.f32.mrf.mxu0
    %v324 = vadd.f32 %v263, %v323
    %325 = vmatmul.bf16.gmra.mxu0 %v302
    %v326 = vpop.f32.mrf.mxu0
    %v327 = vadd.f32 %v266, %v326
    %v328 = vpop.f32.mrf.mxu0
    %v329 = vadd.f32 %v268, %v328
    %330 = vmatmul.bf16.gmra.mxu0 %v305
    %v331 = vpop.f32.mrf.mxu0
    %v332 = vadd.f32 %v271, %v331
    %v333 = vpop.f32.mrf.mxu0
    %v334 = vadd.f32 %v273, %v333
    %335 = vdwg.mxu0
    %s336 = scalar_lea.vmem %s4, 32
    %v337 = vld [vmem:[%s336] sm:$0xf]
    %v338 = vld [vmem:[%s336 + $0x4] sm:$0xf]
    %v339 = vld [vmem:[%s336 + $0x8] sm:$0xf]
    %v340 = vld [vmem:[%s336 + $0xc] sm:$0xf]
    %v345 = vunpack.c.l.b16 %v337
    %v346 = vunpack.c.l.b16 %v338
    %v347 = vunpack.c.l.b16 %v339
    %v348 = vunpack.c.l.b16 %v340
    %v349 = vpack.c.b16 %v346, %v345
    %v350 = vpack.c.b16 %v348, %v347
    %353 = vmatpush.bf16.msra.mxu0 0
    %354 = vmatpush.bf16.msra.mxu0 0
    %355 = vmatpush.bf16.msra.mxu0 0
    %356 = vmatpush.bf16.msra.mxu0 0
    %357 = vmatpush.bf16.msra.mxu0 0
    %358 = vmatpush.bf16.msra.mxu0 0
    %359 = vmatpush.bf16.msra.mxu0 %v350
    %360 = vmatpush.bf16.msra.mxu0 %v349
    %361 = vmatmul.bf16.gmra.mxu0 %v102
    %v362 = vpop.f32.mrf.mxu0
    %v363 = vadd.f32 0.0, %v362
    %v364 = vpop.f32.mrf.mxu0
    %v365 = vadd.f32 0.0, %v364
    %366 = vmatmul.bf16.gmra.mxu0 %v105
    %v367 = vpop.f32.mrf.mxu0
    %v368 = vadd.f32 0.0, %v367
    %v369 = vpop.f32.mrf.mxu0
    %v370 = vadd.f32 0.0, %v369
    %371 = vmatmul.bf16.gmra.mxu0 %v108
    %v372 = vpop.f32.mrf.mxu0
    %v373 = vadd.f32 0.0, %v372
    %v374 = vpop.f32.mrf.mxu0
    %v375 = vadd.f32 0.0, %v374
    %376 = vmatmul.bf16.gmra.mxu0 %v111
    %v377 = vpop.f32.mrf.mxu0
    %v378 = vadd.f32 0.0, %v377
    %v379 = vpop.f32.mrf.mxu0
    %v380 = vadd.f32 0.0, %v379
    %381 = vdwg.mxu0
    %s382 = scalar_lea.vmem %s1, 64
    %v383 = vld [vmem:[%s382] sm:$0xf]
    %v384 = vld [vmem:[%s382 + $0x4] sm:$0xf]
    %v385 = vld [vmem:[%s382 + $0x8] sm:$0xf]
    %v386 = vld [vmem:[%s382 + $0xc] sm:$0xf]
    %v387 = vld [vmem:[%s382 + $0x10] sm:$0xf]
    %v388 = vld [vmem:[%s382 + $0x14] sm:$0xf]
    %v389 = vld [vmem:[%s382 + $0x18] sm:$0xf]
    %v390 = vld [vmem:[%s382 + $0x1c] sm:$0xf]
    %v391 = vpack.c.bf16 %v365, %v363
    %v392 = vpack.c.bf16 %v370, %v368
    %v393 = vpack.c.bf16 %v375, %v373
    %v394 = vpack.c.bf16 %v380, %v378
    %v403 = vunpack.c.l.b16 %v383
    %v404 = vunpack.c.l.b16 %v384
    %v405 = vunpack.c.l.b16 %v385
    %v406 = vunpack.c.l.b16 %v386
    %v407 = vunpack.c.l.b16 %v387
    %v408 = vunpack.c.l.b16 %v388
    %v409 = vunpack.c.l.b16 %v389
    %v410 = vunpack.c.l.b16 %v390
    %v411 = vpack.c.b16 %v404, %v403
    %v412 = vpack.c.b16 %v406, %v405
    %v413 = vpack.c.b16 %v408, %v407
    %v414 = vpack.c.b16 %v410, %v409
    %v416 = vsel %vm233, %v411, 0
    %v419 = vsel %vm233, %v412, 0
    %v422 = vsel %vm233, %v413, 0
    %v425 = vsel %vm233, %v414, 0
    %427 = vmatpush.bf16.msra.mxu0 0
    %428 = vmatpush.bf16.msra.mxu0 0
    %429 = vmatpush.bf16.msra.mxu0 0
    %430 = vmatpush.bf16.msra.mxu0 0
    %431 = vmatpush.bf16.msra.mxu0 %v394
    %432 = vmatpush.bf16.msra.mxu0 %v393
    %433 = vmatpush.bf16.msra.mxu0 %v392
    %434 = vmatpush.bf16.msra.mxu0 %v391
    %435 = vmatmul.bf16.gmra.mxu0 %v416
    %v436 = vpop.f32.mrf.mxu0
    %v437 = vadd.f32 0.0, %v436
    %v438 = vpop.f32.mrf.mxu0
    %v439 = vadd.f32 0.0, %v438
    %440 = vmatmul.bf16.gmra.mxu0 %v419
    %v441 = vpop.f32.mrf.mxu0
    %v442 = vadd.f32 0.0, %v441
    %v443 = vpop.f32.mrf.mxu0
    %v444 = vadd.f32 0.0, %v443
    %445 = vmatmul.bf16.gmra.mxu0 %v422
    %v446 = vpop.f32.mrf.mxu0
    %v447 = vadd.f32 0.0, %v446
    %v448 = vpop.f32.mrf.mxu0
    %v449 = vadd.f32 0.0, %v448
    %450 = vmatmul.bf16.gmra.mxu0 %v425
    %v451 = vpop.f32.mrf.mxu0
    %v452 = vadd.f32 0.0, %v451
    %v453 = vpop.f32.mrf.mxu0
    %v454 = vadd.f32 0.0, %v453
    %455 = vdwg.mxu0
    %v456 = vadd.f32 %v317, %v437
    %v457 = vadd.f32 %v319, %v439
    %v458 = vadd.f32 %v322, %v442
    %v459 = vadd.f32 %v324, %v444
    %v460 = vadd.f32 %v327, %v447
    %v461 = vadd.f32 %v329, %v449
    %v462 = vadd.f32 %v332, %v452
    %v463 = vadd.f32 %v334, %v454
    %v464 = vld [vmem:[%s2] sm:$0xff]
    %v465 = vld [vmem:[%s2 + $0x8] sm:$0xff]
    %v466 = vld [vmem:[%s2 + $0x10] sm:$0xff]
    %v467 = vld [vmem:[%s2 + $0x18] sm:$0xff]
    %v468 = vld [vmem:[%s2 + $0x20] sm:$0xff]
    %v469 = vld [vmem:[%s2 + $0x28] sm:$0xff]
    %v470 = vld [vmem:[%s2 + $0x30] sm:$0xff]
    %v471 = vld [vmem:[%s2 + $0x38] sm:$0xff]
    %473 = vset.pattern.permute.xlu0 0
    %474 = vperm.xlu0 %473, %v464
    %v475 = vpop.permute.xlu0 %474
    %478 = vset.pattern.permute.xlu0 0
    %479 = vperm.xlu0 %478, %v465
    %v480 = vpop.permute.xlu0 %479
    %483 = vset.pattern.permute.xlu0 0
    %484 = vperm.xlu0 %483, %v466
    %v485 = vpop.permute.xlu0 %484
    %488 = vset.pattern.permute.xlu0 0
    %489 = vperm.xlu0 %488, %v467
    %v490 = vpop.permute.xlu0 %489
    %493 = vset.pattern.permute.xlu0 0
    %494 = vperm.xlu0 %493, %v468
    %v495 = vpop.permute.xlu0 %494
    %498 = vset.pattern.permute.xlu0 0
    %499 = vperm.xlu0 %498, %v469
    %v500 = vpop.permute.xlu0 %499
    %503 = vset.pattern.permute.xlu0 0
    %504 = vperm.xlu0 %503, %v470
    %v505 = vpop.permute.xlu0 %504
    %508 = vset.pattern.permute.xlu0 0
    %509 = vperm.xlu0 %508, %v471
    %v510 = vpop.permute.xlu0 %509
    %v512 = vmul.f32 %v456, %v475
    %v513 = vmul.f32 %v457, %v480
    %v514 = vmul.f32 %v458, %v485
    %v515 = vmul.f32 %v459, %v490
    %v516 = vmul.f32 %v460, %v495
    %v517 = vmul.f32 %v461, %v500
    %v518 = vmul.f32 %v462, %v505
    %v519 = vmul.f32 %v463, %v510
    %v520 = vld [vmem:[%s5] sm:$0xf]
    %v521 = vld [vmem:[%s5 + $0x4] sm:$0xf]
    %v522 = vld [vmem:[%s5 + $0x8] sm:$0xf]
    %v523 = vld [vmem:[%s5 + $0xc] sm:$0xf]
    %v528 = vunpack.c.l.b16 %v520
    %v529 = vunpack.c.l.b16 %v521
    %v530 = vunpack.c.l.b16 %v522
    %v531 = vunpack.c.l.b16 %v523
    %v532 = vpack.c.b16 %v529, %v528
    %v533 = vpack.c.b16 %v531, %v530
    %536 = vmatpush.bf16.msra.mxu0 0
    %537 = vmatpush.bf16.msra.mxu0 0
    %538 = vmatpush.bf16.msra.mxu0 0
    %539 = vmatpush.bf16.msra.mxu0 0
    %540 = vmatpush.bf16.msra.mxu0 0
    %541 = vmatpush.bf16.msra.mxu0 0
    %542 = vmatpush.bf16.msra.mxu0 %v533
    %543 = vmatpush.bf16.msra.mxu0 %v532
    %544 = vmatmul.bf16.gmra.mxu0 %v102
    %v545 = vpop.f32.mrf.mxu0
    %v546 = vadd.f32 0.0, %v545
    %v547 = vpop.f32.mrf.mxu0
    %v548 = vadd.f32 0.0, %v547
    %549 = vmatmul.bf16.gmra.mxu0 %v105
    %v550 = vpop.f32.mrf.mxu0
    %v551 = vadd.f32 0.0, %v550
    %v552 = vpop.f32.mrf.mxu0
    %v553 = vadd.f32 0.0, %v552
    %554 = vmatmul.bf16.gmra.mxu0 %v108
    %v555 = vpop.f32.mrf.mxu0
    %v556 = vadd.f32 0.0, %v555
    %v557 = vpop.f32.mrf.mxu0
    %v558 = vadd.f32 0.0, %v557
    %559 = vmatmul.bf16.gmra.mxu0 %v111
    %v560 = vpop.f32.mrf.mxu0
    %v561 = vadd.f32 0.0, %v560
    %v562 = vpop.f32.mrf.mxu0
    %v563 = vadd.f32 0.0, %v562
    %564 = vdwg.mxu0
    %v565 = vadd.f32 %v512, %v546
    %v566 = vadd.f32 %v513, %v548
    %v567 = vadd.f32 %v514, %v551
    %v568 = vadd.f32 %v515, %v553
    %v569 = vadd.f32 %v516, %v556
    %v570 = vadd.f32 %v517, %v558
    %v571 = vadd.f32 %v518, %v561
    %v572 = vadd.f32 %v519, %v563
    %v573 = vld [vmem:[%s6] sm:$0x1]
    %v575 = vperm.slane %v573, 0
    %v577 = vadd.f32 %v565, %v575
    %v578 = vadd.f32 %v566, %v575
    %v579 = vadd.f32 %v567, %v575
    %v580 = vadd.f32 %v568, %v575
    %v581 = vadd.f32 %v569, %v575
    %v582 = vadd.f32 %v570, %v575
    %v583 = vadd.f32 %v571, %v575
    %v584 = vadd.f32 %v572, %v575
    %v585 = vld [vmem:[%s3] sm:$0xf]
    %v586 = vld [vmem:[%s3 + $0x4] sm:$0xf]
    %v587 = vld [vmem:[%s3 + $0x8] sm:$0xf]
    %v588 = vld [vmem:[%s3 + $0xc] sm:$0xf]
    %v589 = vld [vmem:[%s3 + $0x10] sm:$0xf]
    %v590 = vld [vmem:[%s3 + $0x14] sm:$0xf]
    %v591 = vld [vmem:[%s3 + $0x18] sm:$0xf]
    %v592 = vld [vmem:[%s3 + $0x1c] sm:$0xf]
    %v593 = vld [vmem:[%s3 + $0x20] sm:$0xf]
    %v594 = vld [vmem:[%s3 + $0x24] sm:$0xf]
    %v595 = vld [vmem:[%s3 + $0x28] sm:$0xf]
    %v596 = vld [vmem:[%s3 + $0x2c] sm:$0xf]
    %v597 = vld [vmem:[%s3 + $0x30] sm:$0xf]
    %v598 = vld [vmem:[%s3 + $0x34] sm:$0xf]
    %v599 = vld [vmem:[%s3 + $0x38] sm:$0xf]
    %v600 = vld [vmem:[%s3 + $0x3c] sm:$0xf]
    %v601 = vld [vmem:[%s3 + $0x40] sm:$0xf]
    %v602 = vld [vmem:[%s3 + $0x44] sm:$0xf]
    %v603 = vld [vmem:[%s3 + $0x48] sm:$0xf]
    %v604 = vld [vmem:[%s3 + $0x4c] sm:$0xf]
    %v605 = vld [vmem:[%s3 + $0x50] sm:$0xf]
    %v606 = vld [vmem:[%s3 + $0x54] sm:$0xf]
    %v607 = vld [vmem:[%s3 + $0x58] sm:$0xf]
    %v608 = vld [vmem:[%s3 + $0x5c] sm:$0xf]
    %v609 = vld [vmem:[%s3 + $0x60] sm:$0xf]
    %v610 = vld [vmem:[%s3 + $0x64] sm:$0xf]
    %v611 = vld [vmem:[%s3 + $0x68] sm:$0xf]
    %v612 = vld [vmem:[%s3 + $0x6c] sm:$0xf]
    %v613 = vld [vmem:[%s3 + $0x70] sm:$0xf]
    %v614 = vld [vmem:[%s3 + $0x74] sm:$0xf]
    %v615 = vld [vmem:[%s3 + $0x78] sm:$0xf]
    %v616 = vld [vmem:[%s3 + $0x7c] sm:$0xf]
    %v617 = vld [vmem:[%s3 + $0x80] sm:$0xf]
    %v618 = vld [vmem:[%s3 + $0x84] sm:$0xf]
    %v619 = vld [vmem:[%s3 + $0x88] sm:$0xf]
    %v620 = vld [vmem:[%s3 + $0x8c] sm:$0xf]
    %v621 = vld [vmem:[%s3 + $0x90] sm:$0xf]
    %v622 = vld [vmem:[%s3 + $0x94] sm:$0xf]
    %v623 = vld [vmem:[%s3 + $0x98] sm:$0xf]
    %v624 = vld [vmem:[%s3 + $0x9c] sm:$0xf]
    %v625 = vld [vmem:[%s3 + $0xa0] sm:$0xf]
    %v626 = vld [vmem:[%s3 + $0xa4] sm:$0xf]
    %v627 = vld [vmem:[%s3 + $0xa8] sm:$0xf]
    %v628 = vld [vmem:[%s3 + $0xac] sm:$0xf]
    %v629 = vld [vmem:[%s3 + $0xb0] sm:$0xf]
    %v630 = vld [vmem:[%s3 + $0xb4] sm:$0xf]
    %v631 = vld [vmem:[%s3 + $0xb8] sm:$0xf]
    %v632 = vld [vmem:[%s3 + $0xbc] sm:$0xf]
    %v633 = vld [vmem:[%s3 + $0xc0] sm:$0xf]
    %v634 = vld [vmem:[%s3 + $0xc4] sm:$0xf]
    %v635 = vld [vmem:[%s3 + $0xc8] sm:$0xf]
    %v636 = vld [vmem:[%s3 + $0xcc] sm:$0xf]
    %v637 = vld [vmem:[%s3 + $0xd0] sm:$0xf]
    %v638 = vld [vmem:[%s3 + $0xd4] sm:$0xf]
    %v639 = vld [vmem:[%s3 + $0xd8] sm:$0xf]
    %v640 = vld [vmem:[%s3 + $0xdc] sm:$0xf]
    %v641 = vld [vmem:[%s3 + $0xe0] sm:$0xf]
    %v642 = vld [vmem:[%s3 + $0xe4] sm:$0xf]
    %v643 = vld [vmem:[%s3 + $0xe8] sm:$0xf]
    %v644 = vld [vmem:[%s3 + $0xec] sm:$0xf]
    %v645 = vld [vmem:[%s3 + $0xf0] sm:$0xf]
    %v646 = vld [vmem:[%s3 + $0xf4] sm:$0xf]
    %v647 = vld [vmem:[%s3 + $0xf8] sm:$0xf]
    %v648 = vld [vmem:[%s3 + $0xfc] sm:$0xf]
    %v649 = vld [vmem:[%s3 + $0x100] sm:$0xf]
    %v650 = vld [vmem:[%s3 + $0x104] sm:$0xf]
    %v651 = vld [vmem:[%s3 + $0x108] sm:$0xf]
    %v652 = vld [vmem:[%s3 + $0x10c] sm:$0xf]
    %v653 = vld [vmem:[%s3 + $0x110] sm:$0xf]
    %v654 = vld [vmem:[%s3 + $0x114] sm:$0xf]
    %v655 = vld [vmem:[%s3 + $0x118] sm:$0xf]
    %v656 = vld [vmem:[%s3 + $0x11c] sm:$0xf]
    %v657 = vld [vmem:[%s3 + $0x120] sm:$0xf]
    %v658 = vld [vmem:[%s3 + $0x124] sm:$0xf]
    %v659 = vld [vmem:[%s3 + $0x128] sm:$0xf]
    %v660 = vld [vmem:[%s3 + $0x12c] sm:$0xf]
    %v661 = vld [vmem:[%s3 + $0x130] sm:$0xf]
    %v662 = vld [vmem:[%s3 + $0x134] sm:$0xf]
    %v663 = vld [vmem:[%s3 + $0x138] sm:$0xf]
    %v664 = vld [vmem:[%s3 + $0x13c] sm:$0xf]
    %v665 = vld [vmem:[%s3 + $0x140] sm:$0xf]
    %v666 = vld [vmem:[%s3 + $0x144] sm:$0xf]
    %v667 = vld [vmem:[%s3 + $0x148] sm:$0xf]
    %v668 = vld [vmem:[%s3 + $0x14c] sm:$0xf]
    %v669 = vld [vmem:[%s3 + $0x150] sm:$0xf]
    %v670 = vld [vmem:[%s3 + $0x154] sm:$0xf]
    %v671 = vld [vmem:[%s3 + $0x158] sm:$0xf]
    %v672 = vld [vmem:[%s3 + $0x15c] sm:$0xf]
    %v673 = vld [vmem:[%s3 + $0x160] sm:$0xf]
    %v674 = vld [vmem:[%s3 + $0x164] sm:$0xf]
    %v675 = vld [vmem:[%s3 + $0x168] sm:$0xf]
    %v676 = vld [vmem:[%s3 + $0x16c] sm:$0xf]
    %v677 = vld [vmem:[%s3 + $0x170] sm:$0xf]
    %v678 = vld [vmem:[%s3 + $0x174] sm:$0xf]
    %v679 = vld [vmem:[%s3 + $0x178] sm:$0xf]
    %v680 = vld [vmem:[%s3 + $0x17c] sm:$0xf]
    %v681 = vld [vmem:[%s3 + $0x180] sm:$0xf]
    %v682 = vld [vmem:[%s3 + $0x184] sm:$0xf]
    %v683 = vld [vmem:[%s3 + $0x188] sm:$0xf]
    %v684 = vld [vmem:[%s3 + $0x18c] sm:$0xf]
    %v685 = vld [vmem:[%s3 + $0x190] sm:$0xf]
    %v686 = vld [vmem:[%s3 + $0x194] sm:$0xf]
    %v687 = vld [vmem:[%s3 + $0x198] sm:$0xf]
    %v688 = vld [vmem:[%s3 + $0x19c] sm:$0xf]
    %v689 = vld [vmem:[%s3 + $0x1a0] sm:$0xf]
    %v690 = vld [vmem:[%s3 + $0x1a4] sm:$0xf]
    %v691 = vld [vmem:[%s3 + $0x1a8] sm:$0xf]
    %v692 = vld [vmem:[%s3 + $0x1ac] sm:$0xf]
    %v693 = vld [vmem:[%s3 + $0x1b0] sm:$0xf]
    %v694 = vld [vmem:[%s3 + $0x1b4] sm:$0xf]
    %v695 = vld [vmem:[%s3 + $0x1b8] sm:$0xf]
    %v696 = vld [vmem:[%s3 + $0x1bc] sm:$0xf]
    %v697 = vpack.c.bf16 %v578, %v577
    %v698 = vpack.c.bf16 %v580, %v579
    %v699 = vpack.c.bf16 %v582, %v581
    %v700 = vpack.c.bf16 %v584, %v583
    %v813 = vunpack.c.l.b16 %v585
    %v814 = vunpack.c.l.b16 %v586
    %v815 = vunpack.c.l.b16 %v587
    %v816 = vunpack.c.l.b16 %v588
    %v817 = vunpack.c.l.b16 %v589
    %v818 = vunpack.c.l.b16 %v590
    %v819 = vunpack.c.l.b16 %v591
    %v820 = vunpack.c.l.b16 %v592
    %v821 = vunpack.c.l.b16 %v593
    %v822 = vunpack.c.l.b16 %v594
    %v823 = vunpack.c.l.b16 %v595
    %v824 = vunpack.c.l.b16 %v596
    %v825 = vunpack.c.l.b16 %v597
    %v826 = vunpack.c.l.b16 %v598
    %v827 = vunpack.c.l.b16 %v599
    %v828 = vunpack.c.l.b16 %v600
    %v829 = vunpack.c.l.b16 %v601
    %v830 = vunpack.c.l.b16 %v602
    %v831 = vunpack.c.l.b16 %v603
    %v832 = vunpack.c.l.b16 %v604
    %v833 = vunpack.c.l.b16 %v605
    %v834 = vunpack.c.l.b16 %v606
    %v835 = vunpack.c.l.b16 %v607
    %v836 = vunpack.c.l.b16 %v608
    %v837 = vunpack.c.l.b16 %v609
    %v838 = vunpack.c.l.b16 %v610
    %v839 = vunpack.c.l.b16 %v611
    %v840 = vunpack.c.l.b16 %v612
    %v841 = vunpack.c.l.b16 %v613
    %v842 = vunpack.c.l.b16 %v614
    %v843 = vunpack.c.l.b16 %v615
    %v844 = vunpack.c.l.b16 %v616
    %v845 = vunpack.c.l.b16 %v617
    %v846 = vunpack.c.l.b16 %v618
    %v847 = vunpack.c.l.b16 %v619
    %v848 = vunpack.c.l.b16 %v620
    %v849 = vunpack.c.l.b16 %v621
    %v850 = vunpack.c.l.b16 %v622
    %v851 = vunpack.c.l.b16 %v623
    %v852 = vunpack.c.l.b16 %v624
    %v853 = vunpack.c.l.b16 %v625
    %v854 = vunpack.c.l.b16 %v626
    %v855 = vunpack.c.l.b16 %v627
    %v856 = vunpack.c.l.b16 %v628
    %v857 = vunpack.c.l.b16 %v629
    %v858 = vunpack.c.l.b16 %v630
    %v859 = vunpack.c.l.b16 %v631
    %v860 = vunpack.c.l.b16 %v632
    %v861 = vunpack.c.l.b16 %v633
    %v862 = vunpack.c.l.b16 %v634
    %v863 = vunpack.c.l.b16 %v635
    %v864 = vunpack.c.l.b16 %v636
    %v865 = vunpack.c.l.b16 %v637
    %v866 = vunpack.c.l.b16 %v638
    %v867 = vunpack.c.l.b16 %v639
    %v868 = vunpack.c.l.b16 %v640
    %v869 = vunpack.c.l.b16 %v641
    %v870 = vunpack.c.l.b16 %v642
    %v871 = vunpack.c.l.b16 %v643
    %v872 = vunpack.c.l.b16 %v644
    %v873 = vunpack.c.l.b16 %v645
    %v874 = vunpack.c.l.b16 %v646
    %v875 = vunpack.c.l.b16 %v647
    %v876 = vunpack.c.l.b16 %v648
    %v877 = vunpack.c.l.b16 %v649
    %v878 = vunpack.c.l.b16 %v650
    %v879 = vunpack.c.l.b16 %v651
    %v880 = vunpack.c.l.b16 %v652
    %v881 = vunpack.c.l.b16 %v653
    %v882 = vunpack.c.l.b16 %v654
    %v883 = vunpack.c.l.b16 %v655
    %v884 = vunpack.c.l.b16 %v656
    %v885 = vunpack.c.l.b16 %v657
    %v886 = vunpack.c.l.b16 %v658
    %v887 = vunpack.c.l.b16 %v659
    %v888 = vunpack.c.l.b16 %v660
    %v889 = vunpack.c.l.b16 %v661
    %v890 = vunpack.c.l.b16 %v662
    %v891 = vunpack.c.l.b16 %v663
    %v892 = vunpack.c.l.b16 %v664
    %v893 = vunpack.c.l.b16 %v665
    %v894 = vunpack.c.l.b16 %v666
    %v895 = vunpack.c.l.b16 %v667
    %v896 = vunpack.c.l.b16 %v668
    %v897 = vunpack.c.l.b16 %v669
    %v898 = vunpack.c.l.b16 %v670
    %v899 = vunpack.c.l.b16 %v671
    %v900 = vunpack.c.l.b16 %v672
    %v901 = vunpack.c.l.b16 %v673
    %v902 = vunpack.c.l.b16 %v674
    %v903 = vunpack.c.l.b16 %v675
    %v904 = vunpack.c.l.b16 %v676
    %v905 = vunpack.c.l.b16 %v677
    %v906 = vunpack.c.l.b16 %v678
    %v907 = vunpack.c.l.b16 %v679
    %v908 = vunpack.c.l.b16 %v680
    %v909 = vunpack.c.l.b16 %v681
    %v910 = vunpack.c.l.b16 %v682
    %v911 = vunpack.c.l.b16 %v683
    %v912 = vunpack.c.l.b16 %v684
    %v913 = vunpack.c.l.b16 %v685
    %v914 = vunpack.c.l.b16 %v686
    %v915 = vunpack.c.l.b16 %v687
    %v916 = vunpack.c.l.b16 %v688
    %v917 = vunpack.c.l.b16 %v689
    %v918 = vunpack.c.l.b16 %v690
    %v919 = vunpack.c.l.b16 %v691
    %v920 = vunpack.c.l.b16 %v692
    %v921 = vunpack.c.l.b16 %v693
    %v922 = vunpack.c.l.b16 %v694
    %v923 = vunpack.c.l.b16 %v695
    %v924 = vunpack.c.l.b16 %v696
    %v925 = vpack.c.b16 %v814, %v813
    %v926 = vpack.c.b16 %v816, %v815
    %v927 = vpack.c.b16 %v818, %v817
    %v928 = vpack.c.b16 %v820, %v819
    %v929 = vpack.c.b16 %v822, %v821
    %v930 = vpack.c.b16 %v824, %v823
    %v931 = vpack.c.b16 %v826, %v825
    %v932 = vpack.c.b16 %v828, %v827
    %v933 = vpack.c.b16 %v830, %v829
    %v934 = vpack.c.b16 %v832, %v831
    %v935 = vpack.c.b16 %v834, %v833
    %v936 = vpack.c.b16 %v836, %v835
    %v937 = vpack.c.b16 %v838, %v837
    %v938 = vpack.c.b16 %v840, %v839
    %v939 = vpack.c.b16 %v842, %v841
    %v940 = vpack.c.b16 %v844, %v843
    %v941 = vpack.c.b16 %v846, %v845
    %v942 = vpack.c.b16 %v848, %v847
    %v943 = vpack.c.b16 %v850, %v849
    %v944 = vpack.c.b16 %v852, %v851
    %v945 = vpack.c.b16 %v854, %v853
    %v946 = vpack.c.b16 %v856, %v855
    %v947 = vpack.c.b16 %v858, %v857
    %v948 = vpack.c.b16 %v860, %v859
    %v949 = vpack.c.b16 %v862, %v861
    %v950 = vpack.c.b16 %v864, %v863
    %v951 = vpack.c.b16 %v866, %v865
    %v952 = vpack.c.b16 %v868, %v867
    %v953 = vpack.c.b16 %v870, %v869
    %v954 = vpack.c.b16 %v872, %v871
    %v955 = vpack.c.b16 %v874, %v873
    %v956 = vpack.c.b16 %v876, %v875
    %v957 = vpack.c.b16 %v878, %v877
    %v958 = vpack.c.b16 %v880, %v879
    %v959 = vpack.c.b16 %v882, %v881
    %v960 = vpack.c.b16 %v884, %v883
    %v961 = vpack.c.b16 %v886, %v885
    %v962 = vpack.c.b16 %v888, %v887
    %v963 = vpack.c.b16 %v890, %v889
    %v964 = vpack.c.b16 %v892, %v891
    %v965 = vpack.c.b16 %v894, %v893
    %v966 = vpack.c.b16 %v896, %v895
    %v967 = vpack.c.b16 %v898, %v897
    %v968 = vpack.c.b16 %v900, %v899
    %v969 = vpack.c.b16 %v902, %v901
    %v970 = vpack.c.b16 %v904, %v903
    %v971 = vpack.c.b16 %v906, %v905
    %v972 = vpack.c.b16 %v908, %v907
    %v973 = vpack.c.b16 %v910, %v909
    %v974 = vpack.c.b16 %v912, %v911
    %v975 = vpack.c.b16 %v914, %v913
    %v976 = vpack.c.b16 %v916, %v915
    %v977 = vpack.c.b16 %v918, %v917
    %v978 = vpack.c.b16 %v920, %v919
    %v979 = vpack.c.b16 %v922, %v921
    %v980 = vpack.c.b16 %v924, %v923
    %v982 = vsel %vm233, %v925, 0
    %v985 = vsel %vm233, %v926, 0
    %v988 = vsel %vm233, %v927, 0
    %v991 = vsel %vm233, %v928, 0
    %v994 = vsel %vm233, %v929, 0
    %v997 = vsel %vm233, %v930, 0
    %v1000 = vsel %vm233, %v931, 0
    %v1003 = vsel %vm233, %v932, 0
    %v1006 = vsel %vm233, %v933, 0
    %v1009 = vsel %vm233, %v934, 0
    %v1012 = vsel %vm233, %v935, 0
    %v1015 = vsel %vm233, %v936, 0
    %v1018 = vsel %vm233, %v937, 0
    %v1021 = vsel %vm233, %v938, 0
    %v1024 = vsel %vm233, %v939, 0
    %v1027 = vsel %vm233, %v940, 0
    %v1030 = vsel %vm233, %v941, 0
    %v1033 = vsel %vm233, %v942, 0
    %v1036 = vsel %vm233, %v943, 0
    %v1039 = vsel %vm233, %v944, 0
    %v1042 = vsel %vm233, %v945, 0
    %v1045 = vsel %vm233, %v946, 0
    %v1048 = vsel %vm233, %v947, 0
    %v1051 = vsel %vm233, %v948, 0
    %v1054 = vsel %vm233, %v949, 0
    %v1057 = vsel %vm233, %v950, 0
    %v1060 = vsel %vm233, %v951, 0
    %v1063 = vsel %vm233, %v952, 0
    %v1066 = vsel %vm233, %v953, 0
    %v1069 = vsel %vm233, %v954, 0
    %v1072 = vsel %vm233, %v955, 0
    %v1075 = vsel %vm233, %v956, 0
    %v1078 = vsel %vm233, %v957, 0
    %v1081 = vsel %vm233, %v958, 0
    %v1084 = vsel %vm233, %v959, 0
    %v1087 = vsel %vm233, %v960, 0
    %v1090 = vsel %vm233, %v961, 0
    %v1093 = vsel %vm233, %v962, 0
    %v1096 = vsel %vm233, %v963, 0
    %v1099 = vsel %vm233, %v964, 0
    %v1102 = vsel %vm233, %v965, 0
    %v1105 = vsel %vm233, %v966, 0
    %v1108 = vsel %vm233, %v967, 0
    %v1111 = vsel %vm233, %v968, 0
    %v1114 = vsel %vm233, %v969, 0
    %v1117 = vsel %vm233, %v970, 0
    %v1120 = vsel %vm233, %v971, 0
    %v1123 = vsel %vm233, %v972, 0
    %v1126 = vsel %vm233, %v973, 0
    %v1129 = vsel %vm233, %v974, 0
    %v1132 = vsel %vm233, %v975, 0
    %v1135 = vsel %vm233, %v976, 0
    %v1138 = vsel %vm233, %v977, 0
    %v1141 = vsel %vm233, %v978, 0
    %v1144 = vsel %vm233, %v979, 0
    %v1147 = vsel %vm233, %v980, 0
    %1149 = vmatpush.bf16.msra.mxu0 0
    %1150 = vmatpush.bf16.msra.mxu0 0
    %1151 = vmatpush.bf16.msra.mxu0 0
    %1152 = vmatpush.bf16.msra.mxu0 0
    %1153 = vmatpush.bf16.msra.mxu0 %v700
    %1154 = vmatpush.bf16.msra.mxu0 %v699
    %1155 = vmatpush.bf16.msra.mxu0 %v698
    %1156 = vmatpush.bf16.msra.mxu0 %v697
    %1157 = vmatmul.bf16.gmra.mxu0 %v982
    %v1158 = vpop.f32.mrf.mxu0
    %v1159 = vadd.f32 0.0, %v1158
    %v1160 = vpop.f32.mrf.mxu0
    %v1161 = vadd.f32 0.0, %v1160
    %1162 = vmatmul.bf16.gmra.mxu0 %v985
    %v1163 = vpop.f32.mrf.mxu0
    %v1164 = vadd.f32 0.0, %v1163
    %v1165 = vpop.f32.mrf.mxu0
    %v1166 = vadd.f32 0.0, %v1165
    %1167 = vmatmul.bf16.gmra.mxu0 %v988
    %v1168 = vpop.f32.mrf.mxu0
    %v1169 = vadd.f32 0.0, %v1168
    %v1170 = vpop.f32.mrf.mxu0
    %v1171 = vadd.f32 0.0, %v1170
    %1172 = vmatmul.bf16.gmra.mxu0 %v991
    %v1173 = vpop.f32.mrf.mxu0
    %v1174 = vadd.f32 0.0, %v1173
    %v1175 = vpop.f32.mrf.mxu0
    %v1176 = vadd.f32 0.0, %v1175
    %1177 = vmatmul.bf16.gmra.mxu0 %v994
    %v1178 = vpop.f32.mrf.mxu0
    %v1179 = vadd.f32 0.0, %v1178
    %v1180 = vpop.f32.mrf.mxu0
    %v1181 = vadd.f32 0.0, %v1180
    %1182 = vmatmul.bf16.gmra.mxu0 %v997
    %v1183 = vpop.f32.mrf.mxu0
    %v1184 = vadd.f32 0.0, %v1183
    %v1185 = vpop.f32.mrf.mxu0
    %v1186 = vadd.f32 0.0, %v1185
    %1187 = vmatmul.bf16.gmra.mxu0 %v1000
    %v1188 = vpop.f32.mrf.mxu0
    %v1189 = vadd.f32 0.0, %v1188
    %v1190 = vpop.f32.mrf.mxu0
    %v1191 = vadd.f32 0.0, %v1190
    %1192 = vmatmul.bf16.gmra.mxu0 %v1003
    %v1193 = vpop.f32.mrf.mxu0
    %v1194 = vadd.f32 0.0, %v1193
    %v1195 = vpop.f32.mrf.mxu0
    %v1196 = vadd.f32 0.0, %v1195
    %1197 = vmatmul.bf16.gmra.mxu0 %v1006
    %v1198 = vpop.f32.mrf.mxu0
    %v1199 = vadd.f32 0.0, %v1198
    %v1200 = vpop.f32.mrf.mxu0
    %v1201 = vadd.f32 0.0, %v1200
    %1202 = vmatmul.bf16.gmra.mxu0 %v1009
    %v1203 = vpop.f32.mrf.mxu0
    %v1204 = vadd.f32 0.0, %v1203
    %v1205 = vpop.f32.mrf.mxu0
    %v1206 = vadd.f32 0.0, %v1205
    %1207 = vmatmul.bf16.gmra.mxu0 %v1012
    %v1208 = vpop.f32.mrf.mxu0
    %v1209 = vadd.f32 0.0, %v1208
    %v1210 = vpop.f32.mrf.mxu0
    %v1211 = vadd.f32 0.0, %v1210
    %1212 = vmatmul.bf16.gmra.mxu0 %v1015
    %v1213 = vpop.f32.mrf.mxu0
    %v1214 = vadd.f32 0.0, %v1213
    %v1215 = vpop.f32.mrf.mxu0
    %v1216 = vadd.f32 0.0, %v1215
    %1217 = vmatmul.bf16.gmra.mxu0 %v1018
    %v1218 = vpop.f32.mrf.mxu0
    %v1219 = vadd.f32 0.0, %v1218
    %v1220 = vpop.f32.mrf.mxu0
    %v1221 = vadd.f32 0.0, %v1220
    %1222 = vmatmul.bf16.gmra.mxu0 %v1021
    %v1223 = vpop.f32.mrf.mxu0
    %v1224 = vadd.f32 0.0, %v1223
    %v1225 = vpop.f32.mrf.mxu0
    %v1226 = vadd.f32 0.0, %v1225
    %1227 = vmatmul.bf16.gmra.mxu0 %v1024
    %v1228 = vpop.f32.mrf.mxu0
    %v1229 = vadd.f32 0.0, %v1228
    %v1230 = vpop.f32.mrf.mxu0
    %v1231 = vadd.f32 0.0, %v1230
    %1232 = vmatmul.bf16.gmra.mxu0 %v1027
    %v1233 = vpop.f32.mrf.mxu0
    %v1234 = vadd.f32 0.0, %v1233
    %v1235 = vpop.f32.mrf.mxu0
    %v1236 = vadd.f32 0.0, %v1235
    %1237 = vmatmul.bf16.gmra.mxu0 %v1030
    %v1238 = vpop.f32.mrf.mxu0
    %v1239 = vadd.f32 0.0, %v1238
    %v1240 = vpop.f32.mrf.mxu0
    %v1241 = vadd.f32 0.0, %v1240
    %1242 = vmatmul.bf16.gmra.mxu0 %v1033
    %v1243 = vpop.f32.mrf.mxu0
    %v1244 = vadd.f32 0.0, %v1243
    %v1245 = vpop.f32.mrf.mxu0
    %v1246 = vadd.f32 0.0, %v1245
    %1247 = vmatmul.bf16.gmra.mxu0 %v1036
    %v1248 = vpop.f32.mrf.mxu0
    %v1249 = vadd.f32 0.0, %v1248
    %v1250 = vpop.f32.mrf.mxu0
    %v1251 = vadd.f32 0.0, %v1250
    %1252 = vmatmul.bf16.gmra.mxu0 %v1039
    %v1253 = vpop.f32.mrf.mxu0
    %v1254 = vadd.f32 0.0, %v1253
    %v1255 = vpop.f32.mrf.mxu0
    %v1256 = vadd.f32 0.0, %v1255
    %1257 = vmatmul.bf16.gmra.mxu0 %v1042
    %v1258 = vpop.f32.mrf.mxu0
    %v1259 = vadd.f32 0.0, %v1258
    %v1260 = vpop.f32.mrf.mxu0
    %v1261 = vadd.f32 0.0, %v1260
    %1262 = vmatmul.bf16.gmra.mxu0 %v1045
    %v1263 = vpop.f32.mrf.mxu0
    %v1264 = vadd.f32 0.0, %v1263
    %v1265 = vpop.f32.mrf.mxu0
    %v1266 = vadd.f32 0.0, %v1265
    %1267 = vmatmul.bf16.gmra.mxu0 %v1048
    %v1268 = vpop.f32.mrf.mxu0
    %v1269 = vadd.f32 0.0, %v1268
    %v1270 = vpop.f32.mrf.mxu0
    %v1271 = vadd.f32 0.0, %v1270
    %1272 = vmatmul.bf16.gmra.mxu0 %v1051
    %v1273 = vpop.f32.mrf.mxu0
    %v1274 = vadd.f32 0.0, %v1273
    %v1275 = vpop.f32.mrf.mxu0
    %v1276 = vadd.f32 0.0, %v1275
    %1277 = vmatmul.bf16.gmra.mxu0 %v1054
    %v1278 = vpop.f32.mrf.mxu0
    %v1279 = vadd.f32 0.0, %v1278
    %v1280 = vpop.f32.mrf.mxu0
    %v1281 = vadd.f32 0.0, %v1280
    %1282 = vmatmul.bf16.gmra.mxu0 %v1057
    %v1283 = vpop.f32.mrf.mxu0
    %v1284 = vadd.f32 0.0, %v1283
    %v1285 = vpop.f32.mrf.mxu0
    %v1286 = vadd.f32 0.0, %v1285
    %1287 = vmatmul.bf16.gmra.mxu0 %v1060
    %v1288 = vpop.f32.mrf.mxu0
    %v1289 = vadd.f32 0.0, %v1288
    %v1290 = vpop.f32.mrf.mxu0
    %v1291 = vadd.f32 0.0, %v1290
    %1292 = vmatmul.bf16.gmra.mxu0 %v1063
    %v1293 = vpop.f32.mrf.mxu0
    %v1294 = vadd.f32 0.0, %v1293
    %v1295 = vpop.f32.mrf.mxu0
    %v1296 = vadd.f32 0.0, %v1295
    %1297 = vmatmul.bf16.gmra.mxu0 %v1066
    %v1298 = vpop.f32.mrf.mxu0
    %v1299 = vadd.f32 0.0, %v1298
    %v1300 = vpop.f32.mrf.mxu0
    %v1301 = vadd.f32 0.0, %v1300
    %1302 = vmatmul.bf16.gmra.mxu0 %v1069
    %v1303 = vpop.f32.mrf.mxu0
    %v1304 = vadd.f32 0.0, %v1303
    %v1305 = vpop.f32.mrf.mxu0
    %v1306 = vadd.f32 0.0, %v1305
    %1307 = vmatmul.bf16.gmra.mxu0 %v1072
    %v1308 = vpop.f32.mrf.mxu0
    %v1309 = vadd.f32 0.0, %v1308
    %v1310 = vpop.f32.mrf.mxu0
    %v1311 = vadd.f32 0.0, %v1310
    %1312 = vmatmul.bf16.gmra.mxu0 %v1075
    %v1313 = vpop.f32.mrf.mxu0
    %v1314 = vadd.f32 0.0, %v1313
    %v1315 = vpop.f32.mrf.mxu0
    %v1316 = vadd.f32 0.0, %v1315
    %1317 = vmatmul.bf16.gmra.mxu0 %v1078
    %v1318 = vpop.f32.mrf.mxu0
    %v1319 = vadd.f32 0.0, %v1318
    %v1320 = vpop.f32.mrf.mxu0
    %v1321 = vadd.f32 0.0, %v1320
    %1322 = vmatmul.bf16.gmra.mxu0 %v1081
    %v1323 = vpop.f32.mrf.mxu0
    %v1324 = vadd.f32 0.0, %v1323
    %v1325 = vpop.f32.mrf.mxu0
    %v1326 = vadd.f32 0.0, %v1325
    %1327 = vmatmul.bf16.gmra.mxu0 %v1084
    %v1328 = vpop.f32.mrf.mxu0
    %v1329 = vadd.f32 0.0, %v1328
    %v1330 = vpop.f32.mrf.mxu0
    %v1331 = vadd.f32 0.0, %v1330
    %1332 = vmatmul.bf16.gmra.mxu0 %v1087
    %v1333 = vpop.f32.mrf.mxu0
    %v1334 = vadd.f32 0.0, %v1333
    %v1335 = vpop.f32.mrf.mxu0
    %v1336 = vadd.f32 0.0, %v1335
    %1337 = vmatmul.bf16.gmra.mxu0 %v1090
    %v1338 = vpop.f32.mrf.mxu0
    %v1339 = vadd.f32 0.0, %v1338
    %v1340 = vpop.f32.mrf.mxu0
    %v1341 = vadd.f32 0.0, %v1340
    %1342 = vmatmul.bf16.gmra.mxu0 %v1093
    %v1343 = vpop.f32.mrf.mxu0
    %v1344 = vadd.f32 0.0, %v1343
    %v1345 = vpop.f32.mrf.mxu0
    %v1346 = vadd.f32 0.0, %v1345
    %1347 = vmatmul.bf16.gmra.mxu0 %v1096
    %v1348 = vpop.f32.mrf.mxu0
    %v1349 = vadd.f32 0.0, %v1348
    %v1350 = vpop.f32.mrf.mxu0
    %v1351 = vadd.f32 0.0, %v1350
    %1352 = vmatmul.bf16.gmra.mxu0 %v1099
    %v1353 = vpop.f32.mrf.mxu0
    %v1354 = vadd.f32 0.0, %v1353
    %v1355 = vpop.f32.mrf.mxu0
    %v1356 = vadd.f32 0.0, %v1355
    %1357 = vmatmul.bf16.gmra.mxu0 %v1102
    %v1358 = vpop.f32.mrf.mxu0
    %v1359 = vadd.f32 0.0, %v1358
    %v1360 = vpop.f32.mrf.mxu0
    %v1361 = vadd.f32 0.0, %v1360
    %1362 = vmatmul.bf16.gmra.mxu0 %v1105
    %v1363 = vpop.f32.mrf.mxu0
    %v1364 = vadd.f32 0.0, %v1363
    %v1365 = vpop.f32.mrf.mxu0
    %v1366 = vadd.f32 0.0, %v1365
    %1367 = vmatmul.bf16.gmra.mxu0 %v1108
    %v1368 = vpop.f32.mrf.mxu0
    %v1369 = vadd.f32 0.0, %v1368
    %v1370 = vpop.f32.mrf.mxu0
    %v1371 = vadd.f32 0.0, %v1370
    %1372 = vmatmul.bf16.gmra.mxu0 %v1111
    %v1373 = vpop.f32.mrf.mxu0
    %v1374 = vadd.f32 0.0, %v1373
    %v1375 = vpop.f32.mrf.mxu0
    %v1376 = vadd.f32 0.0, %v1375
    %1377 = vmatmul.bf16.gmra.mxu0 %v1114
    %v1378 = vpop.f32.mrf.mxu0
    %v1379 = vadd.f32 0.0, %v1378
    %v1380 = vpop.f32.mrf.mxu0
    %v1381 = vadd.f32 0.0, %v1380
    %1382 = vmatmul.bf16.gmra.mxu0 %v1117
    %v1383 = vpop.f32.mrf.mxu0
    %v1384 = vadd.f32 0.0, %v1383
    %v1385 = vpop.f32.mrf.mxu0
    %v1386 = vadd.f32 0.0, %v1385
    %1387 = vmatmul.bf16.gmra.mxu0 %v1120
    %v1388 = vpop.f32.mrf.mxu0
    %v1389 = vadd.f32 0.0, %v1388
    %v1390 = vpop.f32.mrf.mxu0
    %v1391 = vadd.f32 0.0, %v1390
    %1392 = vmatmul.bf16.gmra.mxu0 %v1123
    %v1393 = vpop.f32.mrf.mxu0
    %v1394 = vadd.f32 0.0, %v1393
    %v1395 = vpop.f32.mrf.mxu0
    %v1396 = vadd.f32 0.0, %v1395
    %1397 = vmatmul.bf16.gmra.mxu0 %v1126
    %v1398 = vpop.f32.mrf.mxu0
    %v1399 = vadd.f32 0.0, %v1398
    %v1400 = vpop.f32.mrf.mxu0
    %v1401 = vadd.f32 0.0, %v1400
    %1402 = vmatmul.bf16.gmra.mxu0 %v1129
    %v1403 = vpop.f32.mrf.mxu0
    %v1404 = vadd.f32 0.0, %v1403
    %v1405 = vpop.f32.mrf.mxu0
    %v1406 = vadd.f32 0.0, %v1405
    %1407 = vmatmul.bf16.gmra.mxu0 %v1132
    %v1408 = vpop.f32.mrf.mxu0
    %v1409 = vadd.f32 0.0, %v1408
    %v1410 = vpop.f32.mrf.mxu0
    %v1411 = vadd.f32 0.0, %v1410
    %1412 = vmatmul.bf16.gmra.mxu0 %v1135
    %v1413 = vpop.f32.mrf.mxu0
    %v1414 = vadd.f32 0.0, %v1413
    %v1415 = vpop.f32.mrf.mxu0
    %v1416 = vadd.f32 0.0, %v1415
    %1417 = vmatmul.bf16.gmra.mxu0 %v1138
    %v1418 = vpop.f32.mrf.mxu0
    %v1419 = vadd.f32 0.0, %v1418
    %v1420 = vpop.f32.mrf.mxu0
    %v1421 = vadd.f32 0.0, %v1420
    %1422 = vmatmul.bf16.gmra.mxu0 %v1141
    %v1423 = vpop.f32.mrf.mxu0
    %v1424 = vadd.f32 0.0, %v1423
    %v1425 = vpop.f32.mrf.mxu0
    %v1426 = vadd.f32 0.0, %v1425
    %1427 = vmatmul.bf16.gmra.mxu0 %v1144
    %v1428 = vpop.f32.mrf.mxu0
    %v1429 = vadd.f32 0.0, %v1428
    %v1430 = vpop.f32.mrf.mxu0
    %v1431 = vadd.f32 0.0, %v1430
    %1432 = vmatmul.bf16.gmra.mxu0 %v1147
    %v1433 = vpop.f32.mrf.mxu0
    %v1434 = vadd.f32 0.0, %v1433
    %v1435 = vpop.f32.mrf.mxu0
    %v1436 = vadd.f32 0.0, %v1435
    %1437 = vdwg.mxu0
    %v1438 = vpack.c.bf16 %v1159, %v1159
    %v1439 = vpack.c.bf16 %v1161, %v1161
    %v1440 = vpack.c.bf16 %v1164, %v1164
    %v1441 = vpack.c.bf16 %v1166, %v1166
    %v1442 = vpack.c.bf16 %v1169, %v1169
    %v1443 = vpack.c.bf16 %v1171, %v1171
    %v1444 = vpack.c.bf16 %v1174, %v1174
    %v1445 = vpack.c.bf16 %v1176, %v1176
    %v1446 = vpack.c.bf16 %v1179, %v1179
    %v1447 = vpack.c.bf16 %v1181, %v1181
    %v1448 = vpack.c.bf16 %v1184, %v1184
    %v1449 = vpack.c.bf16 %v1186, %v1186
    %v1450 = vpack.c.bf16 %v1189, %v1189
    %v1451 = vpack.c.bf16 %v1191, %v1191
    %v1452 = vpack.c.bf16 %v1194, %v1194
    %v1453 = vpack.c.bf16 %v1196, %v1196
    %v1454 = vpack.c.bf16 %v1199, %v1199
    %v1455 = vpack.c.bf16 %v1201, %v1201
    %v1456 = vpack.c.bf16 %v1204, %v1204
    %v1457 = vpack.c.bf16 %v1206, %v1206
    %v1458 = vpack.c.bf16 %v1209, %v1209
    %v1459 = vpack.c.bf16 %v1211, %v1211
    %v1460 = vpack.c.bf16 %v1214, %v1214
    %v1461 = vpack.c.bf16 %v1216, %v1216
    %v1462 = vpack.c.bf16 %v1219, %v1219
    %v1463 = vpack.c.bf16 %v1221, %v1221
    %v1464 = vpack.c.bf16 %v1224, %v1224
    %v1465 = vpack.c.bf16 %v1226, %v1226
    %v1466 = vpack.c.bf16 %v1229, %v1229
    %v1467 = vpack.c.bf16 %v1231, %v1231
    %v1468 = vpack.c.bf16 %v1234, %v1234
    %v1469 = vpack.c.bf16 %v1236, %v1236
    %v1470 = vpack.c.bf16 %v1239, %v1239
    %v1471 = vpack.c.bf16 %v1241, %v1241
    %v1472 = vpack.c.bf16 %v1244, %v1244
    %v1473 = vpack.c.bf16 %v1246, %v1246
    %v1474 = vpack.c.bf16 %v1249, %v1249
    %v1475 = vpack.c.bf16 %v1251, %v1251
    %v1476 = vpack.c.bf16 %v1254, %v1254
    %v1477 = vpack.c.bf16 %v1256, %v1256
    %v1478 = vpack.c.bf16 %v1259, %v1259
    %v1479 = vpack.c.bf16 %v1261, %v1261
    %v1480 = vpack.c.bf16 %v1264, %v1264
    %v1481 = vpack.c.bf16 %v1266, %v1266
    %v1482 = vpack.c.bf16 %v1269, %v1269
    %v1483 = vpack.c.bf16 %v1271, %v1271
    %v1484 = vpack.c.bf16 %v1274, %v1274
    %v1485 = vpack.c.bf16 %v1276, %v1276
    %v1486 = vpack.c.bf16 %v1279, %v1279
    %v1487 = vpack.c.bf16 %v1281, %v1281
    %v1488 = vpack.c.bf16 %v1284, %v1284
    %v1489 = vpack.c.bf16 %v1286, %v1286
    %v1490 = vpack.c.bf16 %v1289, %v1289
    %v1491 = vpack.c.bf16 %v1291, %v1291
    %v1492 = vpack.c.bf16 %v1294, %v1294
    %v1493 = vpack.c.bf16 %v1296, %v1296
    %v1494 = vpack.c.bf16 %v1299, %v1299
    %v1495 = vpack.c.bf16 %v1301, %v1301
    %v1496 = vpack.c.bf16 %v1304, %v1304
    %v1497 = vpack.c.bf16 %v1306, %v1306
    %v1498 = vpack.c.bf16 %v1309, %v1309
    %v1499 = vpack.c.bf16 %v1311, %v1311
    %v1500 = vpack.c.bf16 %v1314, %v1314
    %v1501 = vpack.c.bf16 %v1316, %v1316
    %v1502 = vpack.c.bf16 %v1319, %v1319
    %v1503 = vpack.c.bf16 %v1321, %v1321
    %v1504 = vpack.c.bf16 %v1324, %v1324
    %v1505 = vpack.c.bf16 %v1326, %v1326
    %v1506 = vpack.c.bf16 %v1329, %v1329
    %v1507 = vpack.c.bf16 %v1331, %v1331
    %v1508 = vpack.c.bf16 %v1334, %v1334
    %v1509 = vpack.c.bf16 %v1336, %v1336
    %v1510 = vpack.c.bf16 %v1339, %v1339
    %v1511 = vpack.c.bf16 %v1341, %v1341
    %v1512 = vpack.c.bf16 %v1344, %v1344
    %v1513 = vpack.c.bf16 %v1346, %v1346
    %v1514 = vpack.c.bf16 %v1349, %v1349
    %v1515 = vpack.c.bf16 %v1351, %v1351
    %v1516 = vpack.c.bf16 %v1354, %v1354
    %v1517 = vpack.c.bf16 %v1356, %v1356
    %v1518 = vpack.c.bf16 %v1359, %v1359
    %v1519 = vpack.c.bf16 %v1361, %v1361
    %v1520 = vpack.c.bf16 %v1364, %v1364
    %v1521 = vpack.c.bf16 %v1366, %v1366
    %v1522 = vpack.c.bf16 %v1369, %v1369
    %v1523 = vpack.c.bf16 %v1371, %v1371
    %v1524 = vpack.c.bf16 %v1374, %v1374
    %v1525 = vpack.c.bf16 %v1376, %v1376
    %v1526 = vpack.c.bf16 %v1379, %v1379
    %v1527 = vpack.c.bf16 %v1381, %v1381
    %v1528 = vpack.c.bf16 %v1384, %v1384
    %v1529 = vpack.c.bf16 %v1386, %v1386
    %v1530 = vpack.c.bf16 %v1389, %v1389
    %v1531 = vpack.c.bf16 %v1391, %v1391
    %v1532 = vpack.c.bf16 %v1394, %v1394
    %v1533 = vpack.c.bf16 %v1396, %v1396
    %v1534 = vpack.c.bf16 %v1399, %v1399
    %v1535 = vpack.c.bf16 %v1401, %v1401
    %v1536 = vpack.c.bf16 %v1404, %v1404
    %v1537 = vpack.c.bf16 %v1406, %v1406
    %v1538 = vpack.c.bf16 %v1409, %v1409
    %v1539 = vpack.c.bf16 %v1411, %v1411
    %v1540 = vpack.c.bf16 %v1414, %v1414
    %v1541 = vpack.c.bf16 %v1416, %v1416
    %v1542 = vpack.c.bf16 %v1419, %v1419
    %v1543 = vpack.c.bf16 %v1421, %v1421
    %v1544 = vpack.c.bf16 %v1424, %v1424
    %v1545 = vpack.c.bf16 %v1426, %v1426
    %v1546 = vpack.c.bf16 %v1429, %v1429
    %v1547 = vpack.c.bf16 %v1431, %v1431
    %v1548 = vpack.c.bf16 %v1434, %v1434
    %v1549 = vpack.c.bf16 %v1436, %v1436
    %v1550 = vld [vmem:[#allocation2] sm:$0xff]
    %v1551 = vld [vmem:[#allocation2 + $0x8] sm:$0xff]
    %v1552 = vld [vmem:[#allocation2 + $0x10] sm:$0xff]
    %v1553 = vld [vmem:[#allocation2 + $0x18] sm:$0xff]
    %v1554 = vld [vmem:[#allocation2 + $0x20] sm:$0xff]
    %v1555 = vld [vmem:[#allocation2 + $0x28] sm:$0xff]
    %v1556 = vld [vmem:[#allocation2 + $0x30] sm:$0xff]
    %v1557 = vld [vmem:[#allocation2 + $0x38] sm:$0xff]
    %v1558 = vld [vmem:[#allocation2 + $0x40] sm:$0xff]
    %v1559 = vld [vmem:[#allocation2 + $0x48] sm:$0xff]
    %v1560 = vld [vmem:[#allocation2 + $0x50] sm:$0xff]
    %v1561 = vld [vmem:[#allocation2 + $0x58] sm:$0xff]
    %v1562 = vld [vmem:[#allocation2 + $0x60] sm:$0xff]
    %v1563 = vld [vmem:[#allocation2 + $0x68] sm:$0xff]
    %v1564 = vld [vmem:[#allocation2 + $0x70] sm:$0xff]
    %v1565 = vld [vmem:[#allocation2 + $0x78] sm:$0xff]
    %v1566 = vld [vmem:[#allocation2 + $0x80] sm:$0xff]
    %v1567 = vld [vmem:[#allocation2 + $0x88] sm:$0xff]
    %v1568 = vld [vmem:[#allocation2 + $0x90] sm:$0xff]
    %v1569 = vld [vmem:[#allocation2 + $0x98] sm:$0xff]
    %v1570 = vld [vmem:[#allocation2 + $0xa0] sm:$0xff]
    %v1571 = vld [vmem:[#allocation2 + $0xa8] sm:$0xff]
    %v1572 = vld [vmem:[#allocation2 + $0xb0] sm:$0xff]
    %v1573 = vld [vmem:[#allocation2 + $0xb8] sm:$0xff]
    %v1574 = vld [vmem:[#allocation2 + $0xc0] sm:$0xff]
    %v1575 = vld [vmem:[#allocation2 + $0xc8] sm:$0xff]
    %v1576 = vld [vmem:[#allocation2 + $0xd0] sm:$0xff]
    %v1577 = vld [vmem:[#allocation2 + $0xd8] sm:$0xff]
    %v1578 = vld [vmem:[#allocation2 + $0xe0] sm:$0xff]
    %v1579 = vld [vmem:[#allocation2 + $0xe8] sm:$0xff]
    %v1580 = vld [vmem:[#allocation2 + $0xf0] sm:$0xff]
    %v1581 = vld [vmem:[#allocation2 + $0xf8] sm:$0xff]
    %v1590 = vunpack.c.l.b16 %v1446
    %v1591 = vunpack.c.l.b16 %v1447
    %v1592 = vunpack.c.l.b16 %v1448
    %v1593 = vunpack.c.l.b16 %v1449
    %v1594 = vunpack.c.l.b16 %v1450
    %v1595 = vunpack.c.l.b16 %v1451
    %v1596 = vunpack.c.l.b16 %v1452
    %v1597 = vunpack.c.l.b16 %v1453
    %v1598 = vpack.c.b16 %v1591, %v1590
    %v1599 = vpack.c.b16 %v1593, %v1592
    %v1600 = vpack.c.b16 %v1595, %v1594
    %v1601 = vpack.c.b16 %v1597, %v1596
    %v1618 = vunpack.c.l.b16 %v1566
    %v1619 = vunpack.c.h.b16 %v1566
    %v1620 = vunpack.c.l.b16 %v1567
    %v1621 = vunpack.c.h.b16 %v1567
    %v1622 = vunpack.c.l.b16 %v1568
    %v1623 = vunpack.c.h.b16 %v1568
    %v1624 = vunpack.c.l.b16 %v1569
    %v1625 = vunpack.c.h.b16 %v1569
    %v1626 = vunpack.c.l.b16 %v1570
    %v1627 = vunpack.c.h.b16 %v1570
    %v1628 = vunpack.c.l.b16 %v1571
    %v1629 = vunpack.c.h.b16 %v1571
    %v1630 = vunpack.c.l.b16 %v1572
    %v1631 = vunpack.c.h.b16 %v1572
    %v1632 = vunpack.c.l.b16 %v1573
    %v1633 = vunpack.c.h.b16 %v1573
    %v1634 = vunpack.c.l.b16 %v1574
    %v1635 = vunpack.c.h.b16 %v1574
    %v1636 = vunpack.c.l.b16 %v1575
    %v1637 = vunpack.c.h.b16 %v1575
    %v1638 = vunpack.c.l.b16 %v1576
    %v1639 = vunpack.c.h.b16 %v1576
    %v1640 = vunpack.c.l.b16 %v1577
    %v1641 = vunpack.c.h.b16 %v1577
    %v1642 = vunpack.c.l.b16 %v1578
    %v1643 = vunpack.c.h.b16 %v1578
    %v1644 = vunpack.c.l.b16 %v1579
    %v1645 = vunpack.c.h.b16 %v1579
    %v1646 = vunpack.c.l.b16 %v1580
    %v1647 = vunpack.c.h.b16 %v1580
    %v1648 = vunpack.c.l.b16 %v1581
    %v1649 = vunpack.c.h.b16 %v1581
    %v1650 = vpack.c.b16 %v1626, %v1618
    %v1651 = vpack.c.b16 %v1627, %v1619
    %v1652 = vpack.c.b16 %v1628, %v1620
    %v1653 = vpack.c.b16 %v1629, %v1621
    %v1654 = vpack.c.b16 %v1630, %v1622
    %v1655 = vpack.c.b16 %v1631, %v1623
    %v1656 = vpack.c.b16 %v1632, %v1624
    %v1657 = vpack.c.b16 %v1633, %v1625
    %v1658 = vpack.c.b16 %v1642, %v1634
    %v1659 = vpack.c.b16 %v1643, %v1635
    %v1660 = vpack.c.b16 %v1644, %v1636
    %v1661 = vpack.c.b16 %v1645, %v1637
    %v1662 = vpack.c.b16 %v1646, %v1638
    %v1663 = vpack.c.b16 %v1647, %v1639
    %v1664 = vpack.c.b16 %v1648, %v1640
    %v1665 = vpack.c.b16 %v1649, %v1641
    %v1683 = vsel %vm100, %v1598, 0
    %v1686 = vsel %vm100, %v1599, 0
    %v1689 = vsel %vm100, %v1600, 0
    %v1692 = vsel %vm100, %v1601, 0
    %1694 = vmatpush.bf16.msra.mxu0 0
    %1695 = vmatpush.bf16.msra.mxu0 0
    %1696 = vmatpush.bf16.msra.mxu0 0
    %1697 = vmatpush.bf16.msra.mxu0 0
    %1698 = vmatpush.bf16.msra.mxu0 0
    %1699 = vmatpush.bf16.msra.mxu0 0
    %1700 = vmatpush.bf16.msra.mxu0 %v1658
    %1701 = vmatpush.bf16.msra.mxu0 %v1650
    %1702 = vmatmul.bf16.gmra.mxu0 %v1683
    %v1703 = vpop.f32.mrf.mxu0
    %v1704 = vadd.f32 0.0, %v1703
    %v1705 = vpop.f32.mrf.mxu0
    %v1706 = vadd.f32 0.0, %v1705
    %1707 = vmatmul.bf16.gmra.mxu0 %v1686
    %v1708 = vpop.f32.mrf.mxu0
    %v1709 = vadd.f32 0.0, %v1708
    %v1710 = vpop.f32.mrf.mxu0
    %v1711 = vadd.f32 0.0, %v1710
    %1712 = vmatmul.bf16.gmra.mxu0 %v1689
    %v1713 = vpop.f32.mrf.mxu0
    %v1714 = vadd.f32 0.0, %v1713
    %v1715 = vpop.f32.mrf.mxu0
    %v1716 = vadd.f32 0.0, %v1715
    %1717 = vmatmul.bf16.gmra.mxu0 %v1692
    %v1718 = vpop.f32.mrf.mxu0
    %v1719 = vadd.f32 0.0, %v1718
    %v1720 = vpop.f32.mrf.mxu0
    %v1721 = vadd.f32 0.0, %v1720
    %1722 = vdwg.mxu0
    %1723 = vmatpush.bf16.msra.mxu0 0
    %1724 = vmatpush.bf16.msra.mxu0 0
    %1725 = vmatpush.bf16.msra.mxu0 0
    %1726 = vmatpush.bf16.msra.mxu0 0
    %1727 = vmatpush.bf16.msra.mxu0 0
    %1728 = vmatpush.bf16.msra.mxu0 0
    %1729 = vmatpush.bf16.msra.mxu0 %v1659
    %1730 = vmatpush.bf16.msra.mxu0 %v1651
    %1731 = vmatmul.bf16.gmra.mxu0 %v1683
    %v1732 = vpop.f32.mrf.mxu0
    %v1733 = vadd.f32 0.0, %v1732
    %v1734 = vpop.f32.mrf.mxu0
    %v1735 = vadd.f32 0.0, %v1734
    %1736 = vmatmul.bf16.gmra.mxu0 %v1686
    %v1737 = vpop.f32.mrf.mxu0
    %v1738 = vadd.f32 0.0, %v1737
    %v1739 = vpop.f32.mrf.mxu0
    %v1740 = vadd.f32 0.0, %v1739
    %1741 = vmatmul.bf16.gmra.mxu0 %v1689
    %v1742 = vpop.f32.mrf.mxu0
    %v1743 = vadd.f32 0.0, %v1742
    %v1744 = vpop.f32.mrf.mxu0
    %v1745 = vadd.f32 0.0, %v1744
    %1746 = vmatmul.bf16.gmra.mxu0 %v1692
    %v1747 = vpop.f32.mrf.mxu0
    %v1748 = vadd.f32 0.0, %v1747
    %v1749 = vpop.f32.mrf.mxu0
    %v1750 = vadd.f32 0.0, %v1749
    %1751 = vdwg.mxu0
    %1752 = vmatpush.bf16.msra.mxu0 0
    %1753 = vmatpush.bf16.msra.mxu0 0
    %1754 = vmatpush.bf16.msra.mxu0 0
    %1755 = vmatpush.bf16.msra.mxu0 0
    %1756 = vmatpush.bf16.msra.mxu0 0
    %1757 = vmatpush.bf16.msra.mxu0 0
    %1758 = vmatpush.bf16.msra.mxu0 %v1660
    %1759 = vmatpush.bf16.msra.mxu0 %v1652
    %1760 = vmatmul.bf16.gmra.mxu0 %v1683
    %v1761 = vpop.f32.mrf.mxu0
    %v1762 = vadd.f32 0.0, %v1761
    %v1763 = vpop.f32.mrf.mxu0
    %v1764 = vadd.f32 0.0, %v1763
    %1765 = vmatmul.bf16.gmra.mxu0 %v1686
    %v1766 = vpop.f32.mrf.mxu0
    %v1767 = vadd.f32 0.0, %v1766
    %v1768 = vpop.f32.mrf.mxu0
    %v1769 = vadd.f32 0.0, %v1768
    %1770 = vmatmul.bf16.gmra.mxu0 %v1689
    %v1771 = vpop.f32.mrf.mxu0
    %v1772 = vadd.f32 0.0, %v1771
    %v1773 = vpop.f32.mrf.mxu0
    %v1774 = vadd.f32 0.0, %v1773
    %1775 = vmatmul.bf16.gmra.mxu0 %v1692
    %v1776 = vpop.f32.mrf.mxu0
    %v1777 = vadd.f32 0.0, %v1776
    %v1778 = vpop.f32.mrf.mxu0
    %v1779 = vadd.f32 0.0, %v1778
    %1780 = vdwg.mxu0
    %1781 = vmatpush.bf16.msra.mxu0 0
    %1782 = vmatpush.bf16.msra.mxu0 0
    %1783 = vmatpush.bf16.msra.mxu0 0
    %1784 = vmatpush.bf16.msra.mxu0 0
    %1785 = vmatpush.bf16.msra.mxu0 0
    %1786 = vmatpush.bf16.msra.mxu0 0
    %1787 = vmatpush.bf16.msra.mxu0 %v1661
    %1788 = vmatpush.bf16.msra.mxu0 %v1653
    %1789 = vmatmul.bf16.gmra.mxu0 %v1683
    %v1790 = vpop.f32.mrf.mxu0
    %v1791 = vadd.f32 0.0, %v1790
    %v1792 = vpop.f32.mrf.mxu0
    %v1793 = vadd.f32 0.0, %v1792
    %1794 = vmatmul.bf16.gmra.mxu0 %v1686
    %v1795 = vpop.f32.mrf.mxu0
    %v1796 = vadd.f32 0.0, %v1795
    %v1797 = vpop.f32.mrf.mxu0
    %v1798 = vadd.f32 0.0, %v1797
    %1799 = vmatmul.bf16.gmra.mxu0 %v1689
    %v1800 = vpop.f32.mrf.mxu0
    %v1801 = vadd.f32 0.0, %v1800
    %v1802 = vpop.f32.mrf.mxu0
    %v1803 = vadd.f32 0.0, %v1802
    %1804 = vmatmul.bf16.gmra.mxu0 %v1692
    %v1805 = vpop.f32.mrf.mxu0
    %v1806 = vadd.f32 0.0, %v1805
    %v1807 = vpop.f32.mrf.mxu0
    %v1808 = vadd.f32 0.0, %v1807
    %1809 = vdwg.mxu0
    %1810 = vmatpush.bf16.msra.mxu0 0
    %1811 = vmatpush.bf16.msra.mxu0 0
    %1812 = vmatpush.bf16.msra.mxu0 0
    %1813 = vmatpush.bf16.msra.mxu0 0
    %1814 = vmatpush.bf16.msra.mxu0 0
    %1815 = vmatpush.bf16.msra.mxu0 0
    %1816 = vmatpush.bf16.msra.mxu0 %v1662
    %1817 = vmatpush.bf16.msra.mxu0 %v1654
    %1818 = vmatmul.bf16.gmra.mxu0 %v1683
    %v1819 = vpop.f32.mrf.mxu0
    %v1820 = vadd.f32 0.0, %v1819
    %v1821 = vpop.f32.mrf.mxu0
    %v1822 = vadd.f32 0.0, %v1821
    %1823 = vmatmul.bf16.gmra.mxu0 %v1686
    %v1824 = vpop.f32.mrf.mxu0
    %v1825 = vadd.f32 0.0, %v1824
    %v1826 = vpop.f32.mrf.mxu0
    %v1827 = vadd.f32 0.0, %v1826
    %1828 = vmatmul.bf16.gmra.mxu0 %v1689
    %v1829 = vpop.f32.mrf.mxu0
    %v1830 = vadd.f32 0.0, %v1829
    %v1831 = vpop.f32.mrf.mxu0
    %v1832 = vadd.f32 0.0, %v1831
    %1833 = vmatmul.bf16.gmra.mxu0 %v1692
    %v1834 = vpop.f32.mrf.mxu0
    %v1835 = vadd.f32 0.0, %v1834
    %v1836 = vpop.f32.mrf.mxu0
    %v1837 = vadd.f32 0.0, %v1836
    %1838 = vdwg.mxu0
    %1839 = vmatpush.bf16.msra.mxu0 0
    %1840 = vmatpush.bf16.msra.mxu0 0
    %1841 = vmatpush.bf16.msra.mxu0 0
    %1842 = vmatpush.bf16.msra.mxu0 0
    %1843 = vmatpush.bf16.msra.mxu0 0
    %1844 = vmatpush.bf16.msra.mxu0 0
    %1845 = vmatpush.bf16.msra.mxu0 %v1663
    %1846 = vmatpush.bf16.msra.mxu0 %v1655
    %1847 = vmatmul.bf16.gmra.mxu0 %v1683
    %v1848 = vpop.f32.mrf.mxu0
    %v1849 = vadd.f32 0.0, %v1848
    %v1850 = vpop.f32.mrf.mxu0
    %v1851 = vadd.f32 0.0, %v1850
    %1852 = vmatmul.bf16.gmra.mxu0 %v1686
    %v1853 = vpop.f32.mrf.mxu0
    %v1854 = vadd.f32 0.0, %v1853
    %v1855 = vpop.f32.mrf.mxu0
    %v1856 = vadd.f32 0.0, %v1855
    %1857 = vmatmul.bf16.gmra.mxu0 %v1689
    %v1858 = vpop.f32.mrf.mxu0
    %v1859 = vadd.f32 0.0, %v1858
    %v1860 = vpop.f32.mrf.mxu0
    %v1861 = vadd.f32 0.0, %v1860
    %1862 = vmatmul.bf16.gmra.mxu0 %v1692
    %v1863 = vpop.f32.mrf.mxu0
    %v1864 = vadd.f32 0.0, %v1863
    %v1865 = vpop.f32.mrf.mxu0
    %v1866 = vadd.f32 0.0, %v1865
    %1867 = vdwg.mxu0
    %1868 = vmatpush.bf16.msra.mxu0 0
    %1869 = vmatpush.bf16.msra.mxu0 0
    %1870 = vmatpush.bf16.msra.mxu0 0
    %1871 = vmatpush.bf16.msra.mxu0 0
    %1872 = vmatpush.bf16.msra.mxu0 0
    %1873 = vmatpush.bf16.msra.mxu0 0
    %1874 = vmatpush.bf16.msra.mxu0 %v1664
    %1875 = vmatpush.bf16.msra.mxu0 %v1656
    %1876 = vmatmul.bf16.gmra.mxu0 %v1683
    %v1877 = vpop.f32.mrf.mxu0
    %v1878 = vadd.f32 0.0, %v1877
    %v1879 = vpop.f32.mrf.mxu0
    %v1880 = vadd.f32 0.0, %v1879
    %1881 = vmatmul.bf16.gmra.mxu0 %v1686
    %v1882 = vpop.f32.mrf.mxu0
    %v1883 = vadd.f32 0.0, %v1882
    %v1884 = vpop.f32.mrf.mxu0
    %v1885 = vadd.f32 0.0, %v1884
    %1886 = vmatmul.bf16.gmra.mxu0 %v1689
    %v1887 = vpop.f32.mrf.mxu0
    %v1888 = vadd.f32 0.0, %v1887
    %v1889 = vpop.f32.mrf.mxu0
    %v1890 = vadd.f32 0.0, %v1889
    %1891 = vmatmul.bf16.gmra.mxu0 %v1692
    %v1892 = vpop.f32.mrf.mxu0
    %v1893 = vadd.f32 0.0, %v1892
    %v1894 = vpop.f32.mrf.mxu0
    %v1895 = vadd.f32 0.0, %v1894
    %1896 = vdwg.mxu0
    %1897 = vmatpush.bf16.msra.mxu0 0
    %1898 = vmatpush.bf16.msra.mxu0 0
    %1899 = vmatpush.bf16.msra.mxu0 0
    %1900 = vmatpush.bf16.msra.mxu0 0
    %1901 = vmatpush.bf16.msra.mxu0 0
    %1902 = vmatpush.bf16.msra.mxu0 0
    %1903 = vmatpush.bf16.msra.mxu0 %v1665
    %1904 = vmatpush.bf16.msra.mxu0 %v1657
    %1905 = vmatmul.bf16.gmra.mxu0 %v1683
    %v1906 = vpop.f32.mrf.mxu0
    %v1907 = vadd.f32 0.0, %v1906
    %v1908 = vpop.f32.mrf.mxu0
    %v1909 = vadd.f32 0.0, %v1908
    %1910 = vmatmul.bf16.gmra.mxu0 %v1686
    %v1911 = vpop.f32.mrf.mxu0
    %v1912 = vadd.f32 0.0, %v1911
    %v1913 = vpop.f32.mrf.mxu0
    %v1914 = vadd.f32 0.0, %v1913
    %1915 = vmatmul.bf16.gmra.mxu0 %v1689
    %v1916 = vpop.f32.mrf.mxu0
    %v1917 = vadd.f32 0.0, %v1916
    %v1918 = vpop.f32.mrf.mxu0
    %v1919 = vadd.f32 0.0, %v1918
    %1920 = vmatmul.bf16.gmra.mxu0 %v1692
    %v1921 = vpop.f32.mrf.mxu0
    %v1922 = vadd.f32 0.0, %v1921
    %v1923 = vpop.f32.mrf.mxu0
    %v1924 = vadd.f32 0.0, %v1923
    %1925 = vdwg.mxu0
    %v1934 = vunpack.c.l.b16 %v1438
    %v1935 = vunpack.c.l.b16 %v1439
    %v1936 = vunpack.c.l.b16 %v1440
    %v1937 = vunpack.c.l.b16 %v1441
    %v1938 = vunpack.c.l.b16 %v1442
    %v1939 = vunpack.c.l.b16 %v1443
    %v1940 = vunpack.c.l.b16 %v1444
    %v1941 = vunpack.c.l.b16 %v1445
    %v1942 = vpack.c.b16 %v1935, %v1934
    %v1943 = vpack.c.b16 %v1937, %v1936
    %v1944 = vpack.c.b16 %v1939, %v1938
    %v1945 = vpack.c.b16 %v1941, %v1940
    %v1962 = vunpack.c.l.b16 %v1550
    %v1963 = vunpack.c.h.b16 %v1550
    %v1964 = vunpack.c.l.b16 %v1551
    %v1965 = vunpack.c.h.b16 %v1551
    %v1966 = vunpack.c.l.b16 %v1552
    %v1967 = vunpack.c.h.b16 %v1552
    %v1968 = vunpack.c.l.b16 %v1553
    %v1969 = vunpack.c.h.b16 %v1553
    %v1970 = vunpack.c.l.b16 %v1554
    %v1971 = vunpack.c.h.b16 %v1554
    %v1972 = vunpack.c.l.b16 %v1555
    %v1973 = vunpack.c.h.b16 %v1555
    %v1974 = vunpack.c.l.b16 %v1556
    %v1975 = vunpack.c.h.b16 %v1556
    %v1976 = vunpack.c.l.b16 %v1557
    %v1977 = vunpack.c.h.b16 %v1557
    %v1978 = vunpack.c.l.b16 %v1558
    %v1979 = vunpack.c.h.b16 %v1558
    %v1980 = vunpack.c.l.b16 %v1559
    %v1981 = vunpack.c.h.b16 %v1559
    %v1982 = vunpack.c.l.b16 %v1560
    %v1983 = vunpack.c.h.b16 %v1560
    %v1984 = vunpack.c.l.b16 %v1561
    %v1985 = vunpack.c.h.b16 %v1561
    %v1986 = vunpack.c.l.b16 %v1562
    %v1987 = vunpack.c.h.b16 %v1562
    %v1988 = vunpack.c.l.b16 %v1563
    %v1989 = vunpack.c.h.b16 %v1563
    %v1990 = vunpack.c.l.b16 %v1564
    %v1991 = vunpack.c.h.b16 %v1564
    %v1992 = vunpack.c.l.b16 %v1565
    %v1993 = vunpack.c.h.b16 %v1565
    %v1994 = vpack.c.b16 %v1970, %v1962
    %v1995 = vpack.c.b16 %v1971, %v1963
    %v1996 = vpack.c.b16 %v1972, %v1964
    %v1997 = vpack.c.b16 %v1973, %v1965
    %v1998 = vpack.c.b16 %v1974, %v1966
    %v1999 = vpack.c.b16 %v1975, %v1967
    %v2000 = vpack.c.b16 %v1976, %v1968
    %v2001 = vpack.c.b16 %v1977, %v1969
    %v2002 = vpack.c.b16 %v1986, %v1978
    %v2003 = vpack.c.b16 %v1987, %v1979
    %v2004 = vpack.c.b16 %v1988, %v1980
    %v2005 = vpack.c.b16 %v1989, %v1981
    %v2006 = vpack.c.b16 %v1990, %v1982
    %v2007 = vpack.c.b16 %v1991, %v1983
    %v2008 = vpack.c.b16 %v1992, %v1984
    %v2009 = vpack.c.b16 %v1993, %v1985
    %v2027 = vsel %vm100, %v1942, 0
    %v2030 = vsel %vm100, %v1943, 0
    %v2033 = vsel %vm100, %v1944, 0
    %v2036 = vsel %vm100, %v1945, 0
    %2038 = vmatpush.bf16.msra.mxu0 0
    %2039 = vmatpush.bf16.msra.mxu0 0
    %2040 = vmatpush.bf16.msra.mxu0 0
    %2041 = vmatpush.bf16.msra.mxu0 0
    %2042 = vmatpush.bf16.msra.mxu0 0
    %2043 = vmatpush.bf16.msra.mxu0 0
    %2044 = vmatpush.bf16.msra.mxu0 %v2002
    %2045 = vmatpush.bf16.msra.mxu0 %v1994
    %2046 = vmatmul.bf16.gmra.mxu0 %v2027
    %v2047 = vpop.f32.mrf.mxu0
    %v2048 = vadd.f32 %v1704, %v2047
    %v2049 = vpop.f32.mrf.mxu0
    %v2050 = vadd.f32 %v1706, %v2049
    %2051 = vmatmul.bf16.gmra.mxu0 %v2030
    %v2052 = vpop.f32.mrf.mxu0
    %v2053 = vadd.f32 %v1709, %v2052
    %v2054 = vpop.f32.mrf.mxu0
    %v2055 = vadd.f32 %v1711, %v2054
    %2056 = vmatmul.bf16.gmra.mxu0 %v2033
    %v2057 = vpop.f32.mrf.mxu0
    %v2058 = vadd.f32 %v1714, %v2057
    %v2059 = vpop.f32.mrf.mxu0
    %v2060 = vadd.f32 %v1716, %v2059
    %2061 = vmatmul.bf16.gmra.mxu0 %v2036
    %v2062 = vpop.f32.mrf.mxu0
    %v2063 = vadd.f32 %v1719, %v2062
    %v2064 = vpop.f32.mrf.mxu0
    %v2065 = vadd.f32 %v1721, %v2064
    %2066 = vdwg.mxu0
    %2067 = vmatpush.bf16.msra.mxu0 0
    %2068 = vmatpush.bf16.msra.mxu0 0
    %2069 = vmatpush.bf16.msra.mxu0 0
    %2070 = vmatpush.bf16.msra.mxu0 0
    %2071 = vmatpush.bf16.msra.mxu0 0
    %2072 = vmatpush.bf16.msra.mxu0 0
    %2073 = vmatpush.bf16.msra.mxu0 %v2003
    %2074 = vmatpush.bf16.msra.mxu0 %v1995
    %2075 = vmatmul.bf16.gmra.mxu0 %v2027
    %v2076 = vpop.f32.mrf.mxu0
    %v2077 = vadd.f32 %v1733, %v2076
    %v2078 = vpop.f32.mrf.mxu0
    %v2079 = vadd.f32 %v1735, %v2078
    %2080 = vmatmul.bf16.gmra.mxu0 %v2030
    %v2081 = vpop.f32.mrf.mxu0
    %v2082 = vadd.f32 %v1738, %v2081
    %v2083 = vpop.f32.mrf.mxu0
    %v2084 = vadd.f32 %v1740, %v2083
    %2085 = vmatmul.bf16.gmra.mxu0 %v2033
    %v2086 = vpop.f32.mrf.mxu0
    %v2087 = vadd.f32 %v1743, %v2086
    %v2088 = vpop.f32.mrf.mxu0
    %v2089 = vadd.f32 %v1745, %v2088
    %2090 = vmatmul.bf16.gmra.mxu0 %v2036
    %v2091 = vpop.f32.mrf.mxu0
    %v2092 = vadd.f32 %v1748, %v2091
    %v2093 = vpop.f32.mrf.mxu0
    %v2094 = vadd.f32 %v1750, %v2093
    %2095 = vdwg.mxu0
    %2096 = vmatpush.bf16.msra.mxu0 0
    %2097 = vmatpush.bf16.msra.mxu0 0
    %2098 = vmatpush.bf16.msra.mxu0 0
    %2099 = vmatpush.bf16.msra.mxu0 0
    %2100 = vmatpush.bf16.msra.mxu0 0
    %2101 = vmatpush.bf16.msra.mxu0 0
    %2102 = vmatpush.bf16.msra.mxu0 %v2004
    %2103 = vmatpush.bf16.msra.mxu0 %v1996
    %2104 = vmatmul.bf16.gmra.mxu0 %v2027
    %v2105 = vpop.f32.mrf.mxu0
    %v2106 = vadd.f32 %v1762, %v2105
    %v2107 = vpop.f32.mrf.mxu0
    %v2108 = vadd.f32 %v1764, %v2107
    %2109 = vmatmul.bf16.gmra.mxu0 %v2030
    %v2110 = vpop.f32.mrf.mxu0
    %v2111 = vadd.f32 %v1767, %v2110
    %v2112 = vpop.f32.mrf.mxu0
    %v2113 = vadd.f32 %v1769, %v2112
    %2114 = vmatmul.bf16.gmra.mxu0 %v2033
    %v2115 = vpop.f32.mrf.mxu0
    %v2116 = vadd.f32 %v1772, %v2115
    %v2117 = vpop.f32.mrf.mxu0
    %v2118 = vadd.f32 %v1774, %v2117
    %2119 = vmatmul.bf16.gmra.mxu0 %v2036
    %v2120 = vpop.f32.mrf.mxu0
    %v2121 = vadd.f32 %v1777, %v2120
    %v2122 = vpop.f32.mrf.mxu0
    %v2123 = vadd.f32 %v1779, %v2122
    %2124 = vdwg.mxu0
    %2125 = vmatpush.bf16.msra.mxu0 0
    %2126 = vmatpush.bf16.msra.mxu0 0
    %2127 = vmatpush.bf16.msra.mxu0 0
    %2128 = vmatpush.bf16.msra.mxu0 0
    %2129 = vmatpush.bf16.msra.mxu0 0
    %2130 = vmatpush.bf16.msra.mxu0 0
    %2131 = vmatpush.bf16.msra.mxu0 %v2005
    %2132 = vmatpush.bf16.msra.mxu0 %v1997
    %2133 = vmatmul.bf16.gmra.mxu0 %v2027
    %v2134 = vpop.f32.mrf.mxu0
    %v2135 = vadd.f32 %v1791, %v2134
    %v2136 = vpop.f32.mrf.mxu0
    %v2137 = vadd.f32 %v1793, %v2136
    %2138 = vmatmul.bf16.gmra.mxu0 %v2030
    %v2139 = vpop.f32.mrf.mxu0
    %v2140 = vadd.f32 %v1796, %v2139
    %v2141 = vpop.f32.mrf.mxu0
    %v2142 = vadd.f32 %v1798, %v2141
    %2143 = vmatmul.bf16.gmra.mxu0 %v2033
    %v2144 = vpop.f32.mrf.mxu0
    %v2145 = vadd.f32 %v1801, %v2144
    %v2146 = vpop.f32.mrf.mxu0
    %v2147 = vadd.f32 %v1803, %v2146
    %2148 = vmatmul.bf16.gmra.mxu0 %v2036
    %v2149 = vpop.f32.mrf.mxu0
    %v2150 = vadd.f32 %v1806, %v2149
    %v2151 = vpop.f32.mrf.mxu0
    %v2152 = vadd.f32 %v1808, %v2151
    %2153 = vdwg.mxu0
    %2154 = vmatpush.bf16.msra.mxu0 0
    %2155 = vmatpush.bf16.msra.mxu0 0
    %2156 = vmatpush.bf16.msra.mxu0 0
    %2157 = vmatpush.bf16.msra.mxu0 0
    %2158 = vmatpush.bf16.msra.mxu0 0
    %2159 = vmatpush.bf16.msra.mxu0 0
    %2160 = vmatpush.bf16.msra.mxu0 %v2006
    %2161 = vmatpush.bf16.msra.mxu0 %v1998
    %2162 = vmatmul.bf16.gmra.mxu0 %v2027
    %v2163 = vpop.f32.mrf.mxu0
    %v2164 = vadd.f32 %v1820, %v2163
    %v2165 = vpop.f32.mrf.mxu0
    %v2166 = vadd.f32 %v1822, %v2165
    %2167 = vmatmul.bf16.gmra.mxu0 %v2030
    %v2168 = vpop.f32.mrf.mxu0
    %v2169 = vadd.f32 %v1825, %v2168
    %v2170 = vpop.f32.mrf.mxu0
    %v2171 = vadd.f32 %v1827, %v2170
    %2172 = vmatmul.bf16.gmra.mxu0 %v2033
    %v2173 = vpop.f32.mrf.mxu0
    %v2174 = vadd.f32 %v1830, %v2173
    %v2175 = vpop.f32.mrf.mxu0
    %v2176 = vadd.f32 %v1832, %v2175
    %2177 = vmatmul.bf16.gmra.mxu0 %v2036
    %v2178 = vpop.f32.mrf.mxu0
    %v2179 = vadd.f32 %v1835, %v2178
    %v2180 = vpop.f32.mrf.mxu0
    %v2181 = vadd.f32 %v1837, %v2180
    %2182 = vdwg.mxu0
    %2183 = vmatpush.bf16.msra.mxu0 0
    %2184 = vmatpush.bf16.msra.mxu0 0
    %2185 = vmatpush.bf16.msra.mxu0 0
    %2186 = vmatpush.bf16.msra.mxu0 0
    %2187 = vmatpush.bf16.msra.mxu0 0
    %2188 = vmatpush.bf16.msra.mxu0 0
    %2189 = vmatpush.bf16.msra.mxu0 %v2007
    %2190 = vmatpush.bf16.msra.mxu0 %v1999
    %2191 = vmatmul.bf16.gmra.mxu0 %v2027
    %v2192 = vpop.f32.mrf.mxu0
    %v2193 = vadd.f32 %v1849, %v2192
    %v2194 = vpop.f32.mrf.mxu0
    %v2195 = vadd.f32 %v1851, %v2194
    %2196 = vmatmul.bf16.gmra.mxu0 %v2030
    %v2197 = vpop.f32.mrf.mxu0
    %v2198 = vadd.f32 %v1854, %v2197
    %v2199 = vpop.f32.mrf.mxu0
    %v2200 = vadd.f32 %v1856, %v2199
    %2201 = vmatmul.bf16.gmra.mxu0 %v2033
    %v2202 = vpop.f32.mrf.mxu0
    %v2203 = vadd.f32 %v1859, %v2202
    %v2204 = vpop.f32.mrf.mxu0
    %v2205 = vadd.f32 %v1861, %v2204
    %2206 = vmatmul.bf16.gmra.mxu0 %v2036
    %v2207 = vpop.f32.mrf.mxu0
    %v2208 = vadd.f32 %v1864, %v2207
    %v2209 = vpop.f32.mrf.mxu0
    %v2210 = vadd.f32 %v1866, %v2209
    %2211 = vdwg.mxu0
    %2212 = vmatpush.bf16.msra.mxu0 0
    %2213 = vmatpush.bf16.msra.mxu0 0
    %2214 = vmatpush.bf16.msra.mxu0 0
    %2215 = vmatpush.bf16.msra.mxu0 0
    %2216 = vmatpush.bf16.msra.mxu0 0
    %2217 = vmatpush.bf16.msra.mxu0 0
    %2218 = vmatpush.bf16.msra.mxu0 %v2008
    %2219 = vmatpush.bf16.msra.mxu0 %v2000
    %2220 = vmatmul.bf16.gmra.mxu0 %v2027
    %v2221 = vpop.f32.mrf.mxu0
    %v2222 = vadd.f32 %v1878, %v2221
    %v2223 = vpop.f32.mrf.mxu0
    %v2224 = vadd.f32 %v1880, %v2223
    %2225 = vmatmul.bf16.gmra.mxu0 %v2030
    %v2226 = vpop.f32.mrf.mxu0
    %v2227 = vadd.f32 %v1883, %v2226
    %v2228 = vpop.f32.mrf.mxu0
    %v2229 = vadd.f32 %v1885, %v2228
    %2230 = vmatmul.bf16.gmra.mxu0 %v2033
    %v2231 = vpop.f32.mrf.mxu0
    %v2232 = vadd.f32 %v1888, %v2231
    %v2233 = vpop.f32.mrf.mxu0
    %v2234 = vadd.f32 %v1890, %v2233
    %2235 = vmatmul.bf16.gmra.mxu0 %v2036
    %v2236 = vpop.f32.mrf.mxu0
    %v2237 = vadd.f32 %v1893, %v2236
    %v2238 = vpop.f32.mrf.mxu0
    %v2239 = vadd.f32 %v1895, %v2238
    %2240 = vdwg.mxu0
    %2241 = vmatpush.bf16.msra.mxu0 0
    %2242 = vmatpush.bf16.msra.mxu0 0
    %2243 = vmatpush.bf16.msra.mxu0 0
    %2244 = vmatpush.bf16.msra.mxu0 0
    %2245 = vmatpush.bf16.msra.mxu0 0
    %2246 = vmatpush.bf16.msra.mxu0 0
    %2247 = vmatpush.bf16.msra.mxu0 %v2009
    %2248 = vmatpush.bf16.msra.mxu0 %v2001
    %2249 = vmatmul.bf16.gmra.mxu0 %v2027
    %v2250 = vpop.f32.mrf.mxu0
    %v2251 = vadd.f32 %v1907, %v2250
    %v2252 = vpop.f32.mrf.mxu0
    %v2253 = vadd.f32 %v1909, %v2252
    %2254 = vmatmul.bf16.gmra.mxu0 %v2030
    %v2255 = vpop.f32.mrf.mxu0
    %v2256 = vadd.f32 %v1912, %v2255
    %v2257 = vpop.f32.mrf.mxu0
    %v2258 = vadd.f32 %v1914, %v2257
    %2259 = vmatmul.bf16.gmra.mxu0 %v2033
    %v2260 = vpop.f32.mrf.mxu0
    %v2261 = vadd.f32 %v1917, %v2260
    %v2262 = vpop.f32.mrf.mxu0
    %v2263 = vadd.f32 %v1919, %v2262
    %2264 = vmatmul.bf16.gmra.mxu0 %v2036
    %v2265 = vpop.f32.mrf.mxu0
    %v2266 = vadd.f32 %v1922, %v2265
    %v2267 = vpop.f32.mrf.mxu0
    %v2268 = vadd.f32 %v1924, %v2267
    %2269 = vdwg.mxu0
    %v2270 = vld [vmem:[#allocation2 + $0x100] sm:$0xff]
    %v2271 = vld [vmem:[#allocation2 + $0x108] sm:$0xff]
    %v2272 = vld [vmem:[#allocation2 + $0x110] sm:$0xff]
    %v2273 = vld [vmem:[#allocation2 + $0x118] sm:$0xff]
    %v2274 = vld [vmem:[#allocation2 + $0x120] sm:$0xff]
    %v2275 = vld [vmem:[#allocation2 + $0x128] sm:$0xff]
    %v2276 = vld [vmem:[#allocation2 + $0x130] sm:$0xff]
    %v2277 = vld [vmem:[#allocation2 + $0x138] sm:$0xff]
    %v2278 = vld [vmem:[#allocation2 + $0x140] sm:$0xff]
    %v2279 = vld [vmem:[#allocation2 + $0x148] sm:$0xff]
    %v2280 = vld [vmem:[#allocation2 + $0x150] sm:$0xff]
    %v2281 = vld [vmem:[#allocation2 + $0x158] sm:$0xff]
    %v2282 = vld [vmem:[#allocation2 + $0x160] sm:$0xff]
    %v2283 = vld [vmem:[#allocation2 + $0x168] sm:$0xff]
    %v2284 = vld [vmem:[#allocation2 + $0x170] sm:$0xff]
    %v2285 = vld [vmem:[#allocation2 + $0x178] sm:$0xff]
    %v2294 = vunpack.c.l.b16 %v1454
    %v2295 = vunpack.c.l.b16 %v1455
    %v2296 = vunpack.c.l.b16 %v1456
    %v2297 = vunpack.c.l.b16 %v1457
    %v2298 = vunpack.c.l.b16 %v1458
    %v2299 = vunpack.c.l.b16 %v1459
    %v2300 = vunpack.c.l.b16 %v1460
    %v2301 = vunpack.c.l.b16 %v1461
    %v2302 = vpack.c.b16 %v2295, %v2294
    %v2303 = vpack.c.b16 %v2297, %v2296
    %v2304 = vpack.c.b16 %v2299, %v2298
    %v2305 = vpack.c.b16 %v2301, %v2300
    %v2322 = vunpack.c.l.b16 %v2270
    %v2323 = vunpack.c.h.b16 %v2270
    %v2324 = vunpack.c.l.b16 %v2271
    %v2325 = vunpack.c.h.b16 %v2271
    %v2326 = vunpack.c.l.b16 %v2272
    %v2327 = vunpack.c.h.b16 %v2272
    %v2328 = vunpack.c.l.b16 %v2273
    %v2329 = vunpack.c.h.b16 %v2273
    %v2330 = vunpack.c.l.b16 %v2274
    %v2331 = vunpack.c.h.b16 %v2274
    %v2332 = vunpack.c.l.b16 %v2275
    %v2333 = vunpack.c.h.b16 %v2275
    %v2334 = vunpack.c.l.b16 %v2276
    %v2335 = vunpack.c.h.b16 %v2276
    %v2336 = vunpack.c.l.b16 %v2277
    %v2337 = vunpack.c.h.b16 %v2277
    %v2338 = vunpack.c.l.b16 %v2278
    %v2339 = vunpack.c.h.b16 %v2278
    %v2340 = vunpack.c.l.b16 %v2279
    %v2341 = vunpack.c.h.b16 %v2279
    %v2342 = vunpack.c.l.b16 %v2280
    %v2343 = vunpack.c.h.b16 %v2280
    %v2344 = vunpack.c.l.b16 %v2281
    %v2345 = vunpack.c.h.b16 %v2281
    %v2346 = vunpack.c.l.b16 %v2282
    %v2347 = vunpack.c.h.b16 %v2282
    %v2348 = vunpack.c.l.b16 %v2283
    %v2349 = vunpack.c.h.b16 %v2283
    %v2350 = vunpack.c.l.b16 %v2284
    %v2351 = vunpack.c.h.b16 %v2284
    %v2352 = vunpack.c.l.b16 %v2285
    %v2353 = vunpack.c.h.b16 %v2285
    %v2354 = vpack.c.b16 %v2330, %v2322
    %v2355 = vpack.c.b16 %v2331, %v2323
    %v2356 = vpack.c.b16 %v2332, %v2324
    %v2357 = vpack.c.b16 %v2333, %v2325
    %v2358 = vpack.c.b16 %v2334, %v2326
    %v2359 = vpack.c.b16 %v2335, %v2327
    %v2360 = vpack.c.b16 %v2336, %v2328
    %v2361 = vpack.c.b16 %v2337, %v2329
    %v2362 = vpack.c.b16 %v2346, %v2338
    %v2363 = vpack.c.b16 %v2347, %v2339
    %v2364 = vpack.c.b16 %v2348, %v2340
    %v2365 = vpack.c.b16 %v2349, %v2341
    %v2366 = vpack.c.b16 %v2350, %v2342
    %v2367 = vpack.c.b16 %v2351, %v2343
    %v2368 = vpack.c.b16 %v2352, %v2344
    %v2369 = vpack.c.b16 %v2353, %v2345
    %v2387 = vsel %vm100, %v2302, 0
    %v2390 = vsel %vm100, %v2303, 0
    %v2393 = vsel %vm100, %v2304, 0
    %v2396 = vsel %vm100, %v2305, 0
    %2398 = vmatpush.bf16.msra.mxu0 0
    %2399 = vmatpush.bf16.msra.mxu0 0
    %2400 = vmatpush.bf16.msra.mxu0 0
    %2401 = vmatpush.bf16.msra.mxu0 0
    %2402 = vmatpush.bf16.msra.mxu0 0
    %2403 = vmatpush.bf16.msra.mxu0 0
    %2404 = vmatpush.bf16.msra.mxu0 %v2362
    %2405 = vmatpush.bf16.msra.mxu0 %v2354
    %2406 = vmatmul.bf16.gmra.mxu0 %v2387
    %v2407 = vpop.f32.mrf.mxu0
    %v2408 = vadd.f32 0.0, %v2407
    %v2409 = vpop.f32.mrf.mxu0
    %v2410 = vadd.f32 0.0, %v2409
    %2411 = vmatmul.bf16.gmra.mxu0 %v2390
    %v2412 = vpop.f32.mrf.mxu0
    %v2413 = vadd.f32 0.0, %v2412
    %v2414 = vpop.f32.mrf.mxu0
    %v2415 = vadd.f32 0.0, %v2414
    %2416 = vmatmul.bf16.gmra.mxu0 %v2393
    %v2417 = vpop.f32.mrf.mxu0
    %v2418 = vadd.f32 0.0, %v2417
    %v2419 = vpop.f32.mrf.mxu0
    %v2420 = vadd.f32 0.0, %v2419
    %2421 = vmatmul.bf16.gmra.mxu0 %v2396
    %v2422 = vpop.f32.mrf.mxu0
    %v2423 = vadd.f32 0.0, %v2422
    %v2424 = vpop.f32.mrf.mxu0
    %v2425 = vadd.f32 0.0, %v2424
    %2426 = vdwg.mxu0
    %2427 = vmatpush.bf16.msra.mxu0 0
    %2428 = vmatpush.bf16.msra.mxu0 0
    %2429 = vmatpush.bf16.msra.mxu0 0
    %2430 = vmatpush.bf16.msra.mxu0 0
    %2431 = vmatpush.bf16.msra.mxu0 0
    %2432 = vmatpush.bf16.msra.mxu0 0
    %2433 = vmatpush.bf16.msra.mxu0 %v2363
    %2434 = vmatpush.bf16.msra.mxu0 %v2355
    %2435 = vmatmul.bf16.gmra.mxu0 %v2387
    %v2436 = vpop.f32.mrf.mxu0
    %v2437 = vadd.f32 0.0, %v2436
    %v2438 = vpop.f32.mrf.mxu0
    %v2439 = vadd.f32 0.0, %v2438
    %2440 = vmatmul.bf16.gmra.mxu0 %v2390
    %v2441 = vpop.f32.mrf.mxu0
    %v2442 = vadd.f32 0.0, %v2441
    %v2443 = vpop.f32.mrf.mxu0
    %v2444 = vadd.f32 0.0, %v2443
    %2445 = vmatmul.bf16.gmra.mxu0 %v2393
    %v2446 = vpop.f32.mrf.mxu0
    %v2447 = vadd.f32 0.0, %v2446
    %v2448 = vpop.f32.mrf.mxu0
    %v2449 = vadd.f32 0.0, %v2448
    %2450 = vmatmul.bf16.gmra.mxu0 %v2396
    %v2451 = vpop.f32.mrf.mxu0
    %v2452 = vadd.f32 0.0, %v2451
    %v2453 = vpop.f32.mrf.mxu0
    %v2454 = vadd.f32 0.0, %v2453
    %2455 = vdwg.mxu0
    %2456 = vmatpush.bf16.msra.mxu0 0
    %2457 = vmatpush.bf16.msra.mxu0 0
    %2458 = vmatpush.bf16.msra.mxu0 0
    %2459 = vmatpush.bf16.msra.mxu0 0
    %2460 = vmatpush.bf16.msra.mxu0 0
    %2461 = vmatpush.bf16.msra.mxu0 0
    %2462 = vmatpush.bf16.msra.mxu0 %v2364
    %2463 = vmatpush.bf16.msra.mxu0 %v2356
    %2464 = vmatmul.bf16.gmra.mxu0 %v2387
    %v2465 = vpop.f32.mrf.mxu0
    %v2466 = vadd.f32 0.0, %v2465
    %v2467 = vpop.f32.mrf.mxu0
    %v2468 = vadd.f32 0.0, %v2467
    %2469 = vmatmul.bf16.gmra.mxu0 %v2390
    %v2470 = vpop.f32.mrf.mxu0
    %v2471 = vadd.f32 0.0, %v2470
    %v2472 = vpop.f32.mrf.mxu0
    %v2473 = vadd.f32 0.0, %v2472
    %2474 = vmatmul.bf16.gmra.mxu0 %v2393
    %v2475 = vpop.f32.mrf.mxu0
    %v2476 = vadd.f32 0.0, %v2475
    %v2477 = vpop.f32.mrf.mxu0
    %v2478 = vadd.f32 0.0, %v2477
    %2479 = vmatmul.bf16.gmra.mxu0 %v2396
    %v2480 = vpop.f32.mrf.mxu0
    %v2481 = vadd.f32 0.0, %v2480
    %v2482 = vpop.f32.mrf.mxu0
    %v2483 = vadd.f32 0.0, %v2482
    %2484 = vdwg.mxu0
    %2485 = vmatpush.bf16.msra.mxu0 0
    %2486 = vmatpush.bf16.msra.mxu0 0
    %2487 = vmatpush.bf16.msra.mxu0 0
    %2488 = vmatpush.bf16.msra.mxu0 0
    %2489 = vmatpush.bf16.msra.mxu0 0
    %2490 = vmatpush.bf16.msra.mxu0 0
    %2491 = vmatpush.bf16.msra.mxu0 %v2365
    %2492 = vmatpush.bf16.msra.mxu0 %v2357
    %2493 = vmatmul.bf16.gmra.mxu0 %v2387
    %v2494 = vpop.f32.mrf.mxu0
    %v2495 = vadd.f32 0.0, %v2494
    %v2496 = vpop.f32.mrf.mxu0
    %v2497 = vadd.f32 0.0, %v2496
    %2498 = vmatmul.bf16.gmra.mxu0 %v2390
    %v2499 = vpop.f32.mrf.mxu0
    %v2500 = vadd.f32 0.0, %v2499
    %v2501 = vpop.f32.mrf.mxu0
    %v2502 = vadd.f32 0.0, %v2501
    %2503 = vmatmul.bf16.gmra.mxu0 %v2393
    %v2504 = vpop.f32.mrf.mxu0
    %v2505 = vadd.f32 0.0, %v2504
    %v2506 = vpop.f32.mrf.mxu0
    %v2507 = vadd.f32 0.0, %v2506
    %2508 = vmatmul.bf16.gmra.mxu0 %v2396
    %v2509 = vpop.f32.mrf.mxu0
    %v2510 = vadd.f32 0.0, %v2509
    %v2511 = vpop.f32.mrf.mxu0
    %v2512 = vadd.f32 0.0, %v2511
    %2513 = vdwg.mxu0
    %2514 = vmatpush.bf16.msra.mxu0 0
    %2515 = vmatpush.bf16.msra.mxu0 0
    %2516 = vmatpush.bf16.msra.mxu0 0
    %2517 = vmatpush.bf16.msra.mxu0 0
    %2518 = vmatpush.bf16.msra.mxu0 0
    %2519 = vmatpush.bf16.msra.mxu0 0
    %2520 = vmatpush.bf16.msra.mxu0 %v2366
    %2521 = vmatpush.bf16.msra.mxu0 %v2358
    %2522 = vmatmul.bf16.gmra.mxu0 %v2387
    %v2523 = vpop.f32.mrf.mxu0
    %v2524 = vadd.f32 0.0, %v2523
    %v2525 = vpop.f32.mrf.mxu0
    %v2526 = vadd.f32 0.0, %v2525
    %2527 = vmatmul.bf16.gmra.mxu0 %v2390
    %v2528 = vpop.f32.mrf.mxu0
    %v2529 = vadd.f32 0.0, %v2528
    %v2530 = vpop.f32.mrf.mxu0
    %v2531 = vadd.f32 0.0, %v2530
    %2532 = vmatmul.bf16.gmra.mxu0 %v2393
    %v2533 = vpop.f32.mrf.mxu0
    %v2534 = vadd.f32 0.0, %v2533
    %v2535 = vpop.f32.mrf.mxu0
    %v2536 = vadd.f32 0.0, %v2535
    %2537 = vmatmul.bf16.gmra.mxu0 %v2396
    %v2538 = vpop.f32.mrf.mxu0
    %v2539 = vadd.f32 0.0, %v2538
    %v2540 = vpop.f32.mrf.mxu0
    %v2541 = vadd.f32 0.0, %v2540
    %2542 = vdwg.mxu0
    %2543 = vmatpush.bf16.msra.mxu0 0
    %2544 = vmatpush.bf16.msra.mxu0 0
    %2545 = vmatpush.bf16.msra.mxu0 0
    %2546 = vmatpush.bf16.msra.mxu0 0
    %2547 = vmatpush.bf16.msra.mxu0 0
    %2548 = vmatpush.bf16.msra.mxu0 0
    %2549 = vmatpush.bf16.msra.mxu0 %v2367
    %2550 = vmatpush.bf16.msra.mxu0 %v2359
    %2551 = vmatmul.bf16.gmra.mxu0 %v2387
    %v2552 = vpop.f32.mrf.mxu0
    %v2553 = vadd.f32 0.0, %v2552
    %v2554 = vpop.f32.mrf.mxu0
    %v2555 = vadd.f32 0.0, %v2554
    %2556 = vmatmul.bf16.gmra.mxu0 %v2390
    %v2557 = vpop.f32.mrf.mxu0
    %v2558 = vadd.f32 0.0, %v2557
    %v2559 = vpop.f32.mrf.mxu0
    %v2560 = vadd.f32 0.0, %v2559
    %2561 = vmatmul.bf16.gmra.mxu0 %v2393
    %v2562 = vpop.f32.mrf.mxu0
    %v2563 = vadd.f32 0.0, %v2562
    %v2564 = vpop.f32.mrf.mxu0
    %v2565 = vadd.f32 0.0, %v2564
    %2566 = vmatmul.bf16.gmra.mxu0 %v2396
    %v2567 = vpop.f32.mrf.mxu0
    %v2568 = vadd.f32 0.0, %v2567
    %v2569 = vpop.f32.mrf.mxu0
    %v2570 = vadd.f32 0.0, %v2569
    %2571 = vdwg.mxu0
    %2572 = vmatpush.bf16.msra.mxu0 0
    %2573 = vmatpush.bf16.msra.mxu0 0
    %2574 = vmatpush.bf16.msra.mxu0 0
    %2575 = vmatpush.bf16.msra.mxu0 0
    %2576 = vmatpush.bf16.msra.mxu0 0
    %2577 = vmatpush.bf16.msra.mxu0 0
    %2578 = vmatpush.bf16.msra.mxu0 %v2368
    %2579 = vmatpush.bf16.msra.mxu0 %v2360
    %2580 = vmatmul.bf16.gmra.mxu0 %v2387
    %v2581 = vpop.f32.mrf.mxu0
    %v2582 = vadd.f32 0.0, %v2581
    %v2583 = vpop.f32.mrf.mxu0
    %v2584 = vadd.f32 0.0, %v2583
    %2585 = vmatmul.bf16.gmra.mxu0 %v2390
    %v2586 = vpop.f32.mrf.mxu0
    %v2587 = vadd.f32 0.0, %v2586
    %v2588 = vpop.f32.mrf.mxu0
    %v2589 = vadd.f32 0.0, %v2588
    %2590 = vmatmul.bf16.gmra.mxu0 %v2393
    %v2591 = vpop.f32.mrf.mxu0
    %v2592 = vadd.f32 0.0, %v2591
    %v2593 = vpop.f32.mrf.mxu0
    %v2594 = vadd.f32 0.0, %v2593
    %2595 = vmatmul.bf16.gmra.mxu0 %v2396
    %v2596 = vpop.f32.mrf.mxu0
    %v2597 = vadd.f32 0.0, %v2596
    %v2598 = vpop.f32.mrf.mxu0
    %v2599 = vadd.f32 0.0, %v2598
    %2600 = vdwg.mxu0
    %2601 = vmatpush.bf16.msra.mxu0 0
    %2602 = vmatpush.bf16.msra.mxu0 0
    %2603 = vmatpush.bf16.msra.mxu0 0
    %2604 = vmatpush.bf16.msra.mxu0 0
    %2605 = vmatpush.bf16.msra.mxu0 0
    %2606 = vmatpush.bf16.msra.mxu0 0
    %2607 = vmatpush.bf16.msra.mxu0 %v2369
    %2608 = vmatpush.bf16.msra.mxu0 %v2361
    %2609 = vmatmul.bf16.gmra.mxu0 %v2387
    %v2610 = vpop.f32.mrf.mxu0
    %v2611 = vadd.f32 0.0, %v2610
    %v2612 = vpop.f32.mrf.mxu0
    %v2613 = vadd.f32 0.0, %v2612
    %2614 = vmatmul.bf16.gmra.mxu0 %v2390
    %v2615 = vpop.f32.mrf.mxu0
    %v2616 = vadd.f32 0.0, %v2615
    %v2617 = vpop.f32.mrf.mxu0
    %v2618 = vadd.f32 0.0, %v2617
    %2619 = vmatmul.bf16.gmra.mxu0 %v2393
    %v2620 = vpop.f32.mrf.mxu0
    %v2621 = vadd.f32 0.0, %v2620
    %v2622 = vpop.f32.mrf.mxu0
    %v2623 = vadd.f32 0.0, %v2622
    %2624 = vmatmul.bf16.gmra.mxu0 %v2396
    %v2625 = vpop.f32.mrf.mxu0
    %v2626 = vadd.f32 0.0, %v2625
    %v2627 = vpop.f32.mrf.mxu0
    %v2628 = vadd.f32 0.0, %v2627
    %2629 = vdwg.mxu0
    %v2630 = vadd.f32 %v2048, %v2408
    %v2631 = vadd.f32 %v2077, %v2437
    %v2632 = vadd.f32 %v2106, %v2466
    %v2633 = vadd.f32 %v2135, %v2495
    %v2634 = vadd.f32 %v2164, %v2524
    %v2635 = vadd.f32 %v2193, %v2553
    %v2636 = vadd.f32 %v2222, %v2582
    %v2637 = vadd.f32 %v2251, %v2611
    %v2638 = vadd.f32 %v2050, %v2410
    %v2639 = vadd.f32 %v2079, %v2439
    %v2640 = vadd.f32 %v2108, %v2468
    %v2641 = vadd.f32 %v2137, %v2497
    %v2642 = vadd.f32 %v2166, %v2526
    %v2643 = vadd.f32 %v2195, %v2555
    %v2644 = vadd.f32 %v2224, %v2584
    %v2645 = vadd.f32 %v2253, %v2613
    %v2646 = vadd.f32 %v2053, %v2413
    %v2647 = vadd.f32 %v2082, %v2442
    %v2648 = vadd.f32 %v2111, %v2471
    %v2649 = vadd.f32 %v2140, %v2500
    %v2650 = vadd.f32 %v2169, %v2529
    %v2651 = vadd.f32 %v2198, %v2558
    %v2652 = vadd.f32 %v2227, %v2587
    %v2653 = vadd.f32 %v2256, %v2616
    %v2654 = vadd.f32 %v2055, %v2415
    %v2655 = vadd.f32 %v2084, %v2444
    %v2656 = vadd.f32 %v2113, %v2473
    %v2657 = vadd.f32 %v2142, %v2502
    %v2658 = vadd.f32 %v2171, %v2531
    %v2659 = vadd.f32 %v2200, %v2560
    %v2660 = vadd.f32 %v2229, %v2589
    %v2661 = vadd.f32 %v2258, %v2618
    %v2662 = vadd.f32 %v2058, %v2418
    %v2663 = vadd.f32 %v2087, %v2447
    %v2664 = vadd.f32 %v2116, %v2476
    %v2665 = vadd.f32 %v2145, %v2505
    %v2666 = vadd.f32 %v2174, %v2534
    %v2667 = vadd.f32 %v2203, %v2563
    %v2668 = vadd.f32 %v2232, %v2592
    %v2669 = vadd.f32 %v2261, %v2621
    %v2670 = vadd.f32 %v2060, %v2420
    %v2671 = vadd.f32 %v2089, %v2449
    %v2672 = vadd.f32 %v2118, %v2478
    %v2673 = vadd.f32 %v2147, %v2507
    %v2674 = vadd.f32 %v2176, %v2536
    %v2675 = vadd.f32 %v2205, %v2565
    %v2676 = vadd.f32 %v2234, %v2594
    %v2677 = vadd.f32 %v2263, %v2623
    %v2678 = vadd.f32 %v2063, %v2423
    %v2679 = vadd.f32 %v2092, %v2452
    %v2680 = vadd.f32 %v2121, %v2481
    %v2681 = vadd.f32 %v2150, %v2510
    %v2682 = vadd.f32 %v2179, %v2539
    %v2683 = vadd.f32 %v2208, %v2568
    %v2684 = vadd.f32 %v2237, %v2597
    %v2685 = vadd.f32 %v2266, %v2626
    %v2686 = vadd.f32 %v2065, %v2425
    %v2687 = vadd.f32 %v2094, %v2454
    %v2688 = vadd.f32 %v2123, %v2483
    %v2689 = vadd.f32 %v2152, %v2512
    %v2690 = vadd.f32 %v2181, %v2541
    %v2691 = vadd.f32 %v2210, %v2570
    %v2692 = vadd.f32 %v2239, %v2599
    %v2693 = vadd.f32 %v2268, %v2628
    %v2694 = vld [vmem:[#allocation2 + $0x180] sm:$0xff]
    %v2695 = vld [vmem:[#allocation2 + $0x188] sm:$0xff]
    %v2696 = vld [vmem:[#allocation2 + $0x190] sm:$0xff]
    %v2697 = vld [vmem:[#allocation2 + $0x198] sm:$0xff]
    %v2698 = vld [vmem:[#allocation2 + $0x1a0] sm:$0xff]
    %v2699 = vld [vmem:[#allocation2 + $0x1a8] sm:$0xff]
    %v2700 = vld [vmem:[#allocation2 + $0x1b0] sm:$0xff]
    %v2701 = vld [vmem:[#allocation2 + $0x1b8] sm:$0xff]
    %v2702 = vld [vmem:[#allocation2 + $0x1c0] sm:$0xff]
    %v2703 = vld [vmem:[#allocation2 + $0x1c8] sm:$0xff]
    %v2704 = vld [vmem:[#allocation2 + $0x1d0] sm:$0xff]
    %v2705 = vld [vmem:[#allocation2 + $0x1d8] sm:$0xff]
    %v2706 = vld [vmem:[#allocation2 + $0x1e0] sm:$0xff]
    %v2707 = vld [vmem:[#allocation2 + $0x1e8] sm:$0xff]
    %v2708 = vld [vmem:[#allocation2 + $0x1f0] sm:$0xff]
    %v2709 = vld [vmem:[#allocation2 + $0x1f8] sm:$0xff]
    %v2718 = vunpack.c.l.b16 %v1462
    %v2719 = vunpack.c.l.b16 %v1463
    %v2720 = vunpack.c.l.b16 %v1464
    %v2721 = vunpack.c.l.b16 %v1465
    %v2722 = vunpack.c.l.b16 %v1466
    %v2723 = vunpack.c.l.b16 %v1467
    %v2724 = vunpack.c.l.b16 %v1468
    %v2725 = vunpack.c.l.b16 %v1469
    %v2726 = vpack.c.b16 %v2719, %v2718
    %v2727 = vpack.c.b16 %v2721, %v2720
    %v2728 = vpack.c.b16 %v2723, %v2722
    %v2729 = vpack.c.b16 %v2725, %v2724
    %v2746 = vunpack.c.l.b16 %v2694
    %v2747 = vunpack.c.h.b16 %v2694
    %v2748 = vunpack.c.l.b16 %v2695
    %v2749 = vunpack.c.h.b16 %v2695
    %v2750 = vunpack.c.l.b16 %v2696
    %v2751 = vunpack.c.h.b16 %v2696
    %v2752 = vunpack.c.l.b16 %v2697
    %v2753 = vunpack.c.h.b16 %v2697
    %v2754 = vunpack.c.l.b16 %v2698
    %v2755 = vunpack.c.h.b16 %v2698
    %v2756 = vunpack.c.l.b16 %v2699
    %v2757 = vunpack.c.h.b16 %v2699
    %v2758 = vunpack.c.l.b16 %v2700
    %v2759 = vunpack.c.h.b16 %v2700
    %v2760 = vunpack.c.l.b16 %v2701
    %v2761 = vunpack.c.h.b16 %v2701
    %v2762 = vunpack.c.l.b16 %v2702
    %v2763 = vunpack.c.h.b16 %v2702
    %v2764 = vunpack.c.l.b16 %v2703
    %v2765 = vunpack.c.h.b16 %v2703
    %v2766 = vunpack.c.l.b16 %v2704
    %v2767 = vunpack.c.h.b16 %v2704
    %v2768 = vunpack.c.l.b16 %v2705
    %v2769 = vunpack.c.h.b16 %v2705
    %v2770 = vunpack.c.l.b16 %v2706
    %v2771 = vunpack.c.h.b16 %v2706
    %v2772 = vunpack.c.l.b16 %v2707
    %v2773 = vunpack.c.h.b16 %v2707
    %v2774 = vunpack.c.l.b16 %v2708
    %v2775 = vunpack.c.h.b16 %v2708
    %v2776 = vunpack.c.l.b16 %v2709
    %v2777 = vunpack.c.h.b16 %v2709
    %v2778 = vpack.c.b16 %v2754, %v2746
    %v2779 = vpack.c.b16 %v2755, %v2747
    %v2780 = vpack.c.b16 %v2756, %v2748
    %v2781 = vpack.c.b16 %v2757, %v2749
    %v2782 = vpack.c.b16 %v2758, %v2750
    %v2783 = vpack.c.b16 %v2759, %v2751
    %v2784 = vpack.c.b16 %v2760, %v2752
    %v2785 = vpack.c.b16 %v2761, %v2753
    %v2786 = vpack.c.b16 %v2770, %v2762
    %v2787 = vpack.c.b16 %v2771, %v2763
    %v2788 = vpack.c.b16 %v2772, %v2764
    %v2789 = vpack.c.b16 %v2773, %v2765
    %v2790 = vpack.c.b16 %v2774, %v2766
    %v2791 = vpack.c.b16 %v2775, %v2767
    %v2792 = vpack.c.b16 %v2776, %v2768
    %v2793 = vpack.c.b16 %v2777, %v2769
    %v2811 = vsel %vm100, %v2726, 0
    %v2814 = vsel %vm100, %v2727, 0
    %v2817 = vsel %vm100, %v2728, 0
    %v2820 = vsel %vm100, %v2729, 0
    %2822 = vmatpush.bf16.msra.mxu0 0
    %2823 = vmatpush.bf16.msra.mxu0 0
    %2824 = vmatpush.bf16.msra.mxu0 0
    %2825 = vmatpush.bf16.msra.mxu0 0
    %2826 = vmatpush.bf16.msra.mxu0 0
    %2827 = vmatpush.bf16.msra.mxu0 0
    %2828 = vmatpush.bf16.msra.mxu0 %v2786
    %2829 = vmatpush.bf16.msra.mxu0 %v2778
    %2830 = vmatmul.bf16.gmra.mxu0 %v2811
    %v2831 = vpop.f32.mrf.mxu0
    %v2832 = vadd.f32 0.0, %v2831
    %v2833 = vpop.f32.mrf.mxu0
    %v2834 = vadd.f32 0.0, %v2833
    %2835 = vmatmul.bf16.gmra.mxu0 %v2814
    %v2836 = vpop.f32.mrf.mxu0
    %v2837 = vadd.f32 0.0, %v2836
    %v2838 = vpop.f32.mrf.mxu0
    %v2839 = vadd.f32 0.0, %v2838
    %2840 = vmatmul.bf16.gmra.mxu0 %v2817
    %v2841 = vpop.f32.mrf.mxu0
    %v2842 = vadd.f32 0.0, %v2841
    %v2843 = vpop.f32.mrf.mxu0
    %v2844 = vadd.f32 0.0, %v2843
    %2845 = vmatmul.bf16.gmra.mxu0 %v2820
    %v2846 = vpop.f32.mrf.mxu0
    %v2847 = vadd.f32 0.0, %v2846
    %v2848 = vpop.f32.mrf.mxu0
    %v2849 = vadd.f32 0.0, %v2848
    %2850 = vdwg.mxu0
    %2851 = vmatpush.bf16.msra.mxu0 0
    %2852 = vmatpush.bf16.msra.mxu0 0
    %2853 = vmatpush.bf16.msra.mxu0 0
    %2854 = vmatpush.bf16.msra.mxu0 0
    %2855 = vmatpush.bf16.msra.mxu0 0
    %2856 = vmatpush.bf16.msra.mxu0 0
    %2857 = vmatpush.bf16.msra.mxu0 %v2787
    %2858 = vmatpush.bf16.msra.mxu0 %v2779
    %2859 = vmatmul.bf16.gmra.mxu0 %v2811
    %v2860 = vpop.f32.mrf.mxu0
    %v2861 = vadd.f32 0.0, %v2860
    %v2862 = vpop.f32.mrf.mxu0
    %v2863 = vadd.f32 0.0, %v2862
    %2864 = vmatmul.bf16.gmra.mxu0 %v2814
    %v2865 = vpop.f32.mrf.mxu0
    %v2866 = vadd.f32 0.0, %v2865
    %v2867 = vpop.f32.mrf.mxu0
    %v2868 = vadd.f32 0.0, %v2867
    %2869 = vmatmul.bf16.gmra.mxu0 %v2817
    %v2870 = vpop.f32.mrf.mxu0
    %v2871 = vadd.f32 0.0, %v2870
    %v2872 = vpop.f32.mrf.mxu0
    %v2873 = vadd.f32 0.0, %v2872
    %2874 = vmatmul.bf16.gmra.mxu0 %v2820
    %v2875 = vpop.f32.mrf.mxu0
    %v2876 = vadd.f32 0.0, %v2875
    %v2877 = vpop.f32.mrf.mxu0
    %v2878 = vadd.f32 0.0, %v2877
    %2879 = vdwg.mxu0
    %2880 = vmatpush.bf16.msra.mxu0 0
    %2881 = vmatpush.bf16.msra.mxu0 0
    %2882 = vmatpush.bf16.msra.mxu0 0
    %2883 = vmatpush.bf16.msra.mxu0 0
    %2884 = vmatpush.bf16.msra.mxu0 0
    %2885 = vmatpush.bf16.msra.mxu0 0
    %2886 = vmatpush.bf16.msra.mxu0 %v2788
    %2887 = vmatpush.bf16.msra.mxu0 %v2780
    %2888 = vmatmul.bf16.gmra.mxu0 %v2811
    %v2889 = vpop.f32.mrf.mxu0
    %v2890 = vadd.f32 0.0, %v2889
    %v2891 = vpop.f32.mrf.mxu0
    %v2892 = vadd.f32 0.0, %v2891
    %2893 = vmatmul.bf16.gmra.mxu0 %v2814
    %v2894 = vpop.f32.mrf.mxu0
    %v2895 = vadd.f32 0.0, %v2894
    %v2896 = vpop.f32.mrf.mxu0
    %v2897 = vadd.f32 0.0, %v2896
    %2898 = vmatmul.bf16.gmra.mxu0 %v2817
    %v2899 = vpop.f32.mrf.mxu0
    %v2900 = vadd.f32 0.0, %v2899
    %v2901 = vpop.f32.mrf.mxu0
    %v2902 = vadd.f32 0.0, %v2901
    %2903 = vmatmul.bf16.gmra.mxu0 %v2820
    %v2904 = vpop.f32.mrf.mxu0
    %v2905 = vadd.f32 0.0, %v2904
    %v2906 = vpop.f32.mrf.mxu0
    %v2907 = vadd.f32 0.0, %v2906
    %2908 = vdwg.mxu0
    %2909 = vmatpush.bf16.msra.mxu0 0
    %2910 = vmatpush.bf16.msra.mxu0 0
    %2911 = vmatpush.bf16.msra.mxu0 0
    %2912 = vmatpush.bf16.msra.mxu0 0
    %2913 = vmatpush.bf16.msra.mxu0 0
    %2914 = vmatpush.bf16.msra.mxu0 0
    %2915 = vmatpush.bf16.msra.mxu0 %v2789
    %2916 = vmatpush.bf16.msra.mxu0 %v2781
    %2917 = vmatmul.bf16.gmra.mxu0 %v2811
    %v2918 = vpop.f32.mrf.mxu0
    %v2919 = vadd.f32 0.0, %v2918
    %v2920 = vpop.f32.mrf.mxu0
    %v2921 = vadd.f32 0.0, %v2920
    %2922 = vmatmul.bf16.gmra.mxu0 %v2814
    %v2923 = vpop.f32.mrf.mxu0
    %v2924 = vadd.f32 0.0, %v2923
    %v2925 = vpop.f32.mrf.mxu0
    %v2926 = vadd.f32 0.0, %v2925
    %2927 = vmatmul.bf16.gmra.mxu0 %v2817
    %v2928 = vpop.f32.mrf.mxu0
    %v2929 = vadd.f32 0.0, %v2928
    %v2930 = vpop.f32.mrf.mxu0
    %v2931 = vadd.f32 0.0, %v2930
    %2932 = vmatmul.bf16.gmra.mxu0 %v2820
    %v2933 = vpop.f32.mrf.mxu0
    %v2934 = vadd.f32 0.0, %v2933
    %v2935 = vpop.f32.mrf.mxu0
    %v2936 = vadd.f32 0.0, %v2935
    %2937 = vdwg.mxu0
    %2938 = vmatpush.bf16.msra.mxu0 0
    %2939 = vmatpush.bf16.msra.mxu0 0
    %2940 = vmatpush.bf16.msra.mxu0 0
    %2941 = vmatpush.bf16.msra.mxu0 0
    %2942 = vmatpush.bf16.msra.mxu0 0
    %2943 = vmatpush.bf16.msra.mxu0 0
    %2944 = vmatpush.bf16.msra.mxu0 %v2790
    %2945 = vmatpush.bf16.msra.mxu0 %v2782
    %2946 = vmatmul.bf16.gmra.mxu0 %v2811
    %v2947 = vpop.f32.mrf.mxu0
    %v2948 = vadd.f32 0.0, %v2947
    %v2949 = vpop.f32.mrf.mxu0
    %v2950 = vadd.f32 0.0, %v2949
    %2951 = vmatmul.bf16.gmra.mxu0 %v2814
    %v2952 = vpop.f32.mrf.mxu0
    %v2953 = vadd.f32 0.0, %v2952
    %v2954 = vpop.f32.mrf.mxu0
    %v2955 = vadd.f32 0.0, %v2954
    %2956 = vmatmul.bf16.gmra.mxu0 %v2817
    %v2957 = vpop.f32.mrf.mxu0
    %v2958 = vadd.f32 0.0, %v2957
    %v2959 = vpop.f32.mrf.mxu0
    %v2960 = vadd.f32 0.0, %v2959
    %2961 = vmatmul.bf16.gmra.mxu0 %v2820
    %v2962 = vpop.f32.mrf.mxu0
    %v2963 = vadd.f32 0.0, %v2962
    %v2964 = vpop.f32.mrf.mxu0
    %v2965 = vadd.f32 0.0, %v2964
    %2966 = vdwg.mxu0
    %2967 = vmatpush.bf16.msra.mxu0 0
    %2968 = vmatpush.bf16.msra.mxu0 0
    %2969 = vmatpush.bf16.msra.mxu0 0
    %2970 = vmatpush.bf16.msra.mxu0 0
    %2971 = vmatpush.bf16.msra.mxu0 0
    %2972 = vmatpush.bf16.msra.mxu0 0
    %2973 = vmatpush.bf16.msra.mxu0 %v2791
    %2974 = vmatpush.bf16.msra.mxu0 %v2783
    %2975 = vmatmul.bf16.gmra.mxu0 %v2811
    %v2976 = vpop.f32.mrf.mxu0
    %v2977 = vadd.f32 0.0, %v2976
    %v2978 = vpop.f32.mrf.mxu0
    %v2979 = vadd.f32 0.0, %v2978
    %2980 = vmatmul.bf16.gmra.mxu0 %v2814
    %v2981 = vpop.f32.mrf.mxu0
    %v2982 = vadd.f32 0.0, %v2981
    %v2983 = vpop.f32.mrf.mxu0
    %v2984 = vadd.f32 0.0, %v2983
    %2985 = vmatmul.bf16.gmra.mxu0 %v2817
    %v2986 = vpop.f32.mrf.mxu0
    %v2987 = vadd.f32 0.0, %v2986
    %v2988 = vpop.f32.mrf.mxu0
    %v2989 = vadd.f32 0.0, %v2988
    %2990 = vmatmul.bf16.gmra.mxu0 %v2820
    %v2991 = vpop.f32.mrf.mxu0
    %v2992 = vadd.f32 0.0, %v2991
    %v2993 = vpop.f32.mrf.mxu0
    %v2994 = vadd.f32 0.0, %v2993
    %2995 = vdwg.mxu0
    %2996 = vmatpush.bf16.msra.mxu0 0
    %2997 = vmatpush.bf16.msra.mxu0 0
    %2998 = vmatpush.bf16.msra.mxu0 0
    %2999 = vmatpush.bf16.msra.mxu0 0
    %3000 = vmatpush.bf16.msra.mxu0 0
    %3001 = vmatpush.bf16.msra.mxu0 0
    %3002 = vmatpush.bf16.msra.mxu0 %v2792
    %3003 = vmatpush.bf16.msra.mxu0 %v2784
    %3004 = vmatmul.bf16.gmra.mxu0 %v2811
    %v3005 = vpop.f32.mrf.mxu0
    %v3006 = vadd.f32 0.0, %v3005
    %v3007 = vpop.f32.mrf.mxu0
    %v3008 = vadd.f32 0.0, %v3007
    %3009 = vmatmul.bf16.gmra.mxu0 %v2814
    %v3010 = vpop.f32.mrf.mxu0
    %v3011 = vadd.f32 0.0, %v3010
    %v3012 = vpop.f32.mrf.mxu0
    %v3013 = vadd.f32 0.0, %v3012
    %3014 = vmatmul.bf16.gmra.mxu0 %v2817
    %v3015 = vpop.f32.mrf.mxu0
    %v3016 = vadd.f32 0.0, %v3015
    %v3017 = vpop.f32.mrf.mxu0
    %v3018 = vadd.f32 0.0, %v3017
    %3019 = vmatmul.bf16.gmra.mxu0 %v2820
    %v3020 = vpop.f32.mrf.mxu0
    %v3021 = vadd.f32 0.0, %v3020
    %v3022 = vpop.f32.mrf.mxu0
    %v3023 = vadd.f32 0.0, %v3022
    %3024 = vdwg.mxu0
    %3025 = vmatpush.bf16.msra.mxu0 0
    %3026 = vmatpush.bf16.msra.mxu0 0
    %3027 = vmatpush.bf16.msra.mxu0 0
    %3028 = vmatpush.bf16.msra.mxu0 0
    %3029 = vmatpush.bf16.msra.mxu0 0
    %3030 = vmatpush.bf16.msra.mxu0 0
    %3031 = vmatpush.bf16.msra.mxu0 %v2793
    %3032 = vmatpush.bf16.msra.mxu0 %v2785
    %3033 = vmatmul.bf16.gmra.mxu0 %v2811
    %v3034 = vpop.f32.mrf.mxu0
    %v3035 = vadd.f32 0.0, %v3034
    %v3036 = vpop.f32.mrf.mxu0
    %v3037 = vadd.f32 0.0, %v3036
    %3038 = vmatmul.bf16.gmra.mxu0 %v2814
    %v3039 = vpop.f32.mrf.mxu0
    %v3040 = vadd.f32 0.0, %v3039
    %v3041 = vpop.f32.mrf.mxu0
    %v3042 = vadd.f32 0.0, %v3041
    %3043 = vmatmul.bf16.gmra.mxu0 %v2817
    %v3044 = vpop.f32.mrf.mxu0
    %v3045 = vadd.f32 0.0, %v3044
    %v3046 = vpop.f32.mrf.mxu0
    %v3047 = vadd.f32 0.0, %v3046
    %3048 = vmatmul.bf16.gmra.mxu0 %v2820
    %v3049 = vpop.f32.mrf.mxu0
    %v3050 = vadd.f32 0.0, %v3049
    %v3051 = vpop.f32.mrf.mxu0
    %v3052 = vadd.f32 0.0, %v3051
    %3053 = vdwg.mxu0
    %v3054 = vadd.f32 %v2630, %v2832
    %v3055 = vadd.f32 %v2631, %v2861
    %v3056 = vadd.f32 %v2632, %v2890
    %v3057 = vadd.f32 %v2633, %v2919
    %v3058 = vadd.f32 %v2634, %v2948
    %v3059 = vadd.f32 %v2635, %v2977
    %v3060 = vadd.f32 %v2636, %v3006
    %v3061 = vadd.f32 %v2637, %v3035
    %v3062 = vadd.f32 %v2638, %v2834
    %v3063 = vadd.f32 %v2639, %v2863
    %v3064 = vadd.f32 %v2640, %v2892
    %v3065 = vadd.f32 %v2641, %v2921
    %v3066 = vadd.f32 %v2642, %v2950
    %v3067 = vadd.f32 %v2643, %v2979
    %v3068 = vadd.f32 %v2644, %v3008
    %v3069 = vadd.f32 %v2645, %v3037
    %v3070 = vadd.f32 %v2646, %v2837
    %v3071 = vadd.f32 %v2647, %v2866
    %v3072 = vadd.f32 %v2648, %v2895
    %v3073 = vadd.f32 %v2649, %v2924
    %v3074 = vadd.f32 %v2650, %v2953
    %v3075 = vadd.f32 %v2651, %v2982
    %v3076 = vadd.f32 %v2652, %v3011
    %v3077 = vadd.f32 %v2653, %v3040
    %v3078 = vadd.f32 %v2654, %v2839
    %v3079 = vadd.f32 %v2655, %v2868
    %v3080 = vadd.f32 %v2656, %v2897
    %v3081 = vadd.f32 %v2657, %v2926
    %v3082 = vadd.f32 %v2658, %v2955
    %v3083 = vadd.f32 %v2659, %v2984
    %v3084 = vadd.f32 %v2660, %v3013
    %v3085 = vadd.f32 %v2661, %v3042
    %v3086 = vadd.f32 %v2662, %v2842
    %v3087 = vadd.f32 %v2663, %v2871
    %v3088 = vadd.f32 %v2664, %v2900
    %v3089 = vadd.f32 %v2665, %v2929
    %v3090 = vadd.f32 %v2666, %v2958
    %v3091 = vadd.f32 %v2667, %v2987
    %v3092 = vadd.f32 %v2668, %v3016
    %v3093 = vadd.f32 %v2669, %v3045
    %v3094 = vadd.f32 %v2670, %v2844
    %v3095 = vadd.f32 %v2671, %v2873
    %v3096 = vadd.f32 %v2672, %v2902
    %v3097 = vadd.f32 %v2673, %v2931
    %v3098 = vadd.f32 %v2674, %v2960
    %v3099 = vadd.f32 %v2675, %v2989
    %v3100 = vadd.f32 %v2676, %v3018
    %v3101 = vadd.f32 %v2677, %v3047
    %v3102 = vadd.f32 %v2678, %v2847
    %v3103 = vadd.f32 %v2679, %v2876
    %v3104 = vadd.f32 %v2680, %v2905
    %v3105 = vadd.f32 %v2681, %v2934
    %v3106 = vadd.f32 %v2682, %v2963
    %v3107 = vadd.f32 %v2683, %v2992
    %v3108 = vadd.f32 %v2684, %v3021
    %v3109 = vadd.f32 %v2685, %v3050
    %v3110 = vadd.f32 %v2686, %v2849
    %v3111 = vadd.f32 %v2687, %v2878
    %v3112 = vadd.f32 %v2688, %v2907
    %v3113 = vadd.f32 %v2689, %v2936
    %v3114 = vadd.f32 %v2690, %v2965
    %v3115 = vadd.f32 %v2691, %v2994
    %v3116 = vadd.f32 %v2692, %v3023
    %v3117 = vadd.f32 %v2693, %v3052
    %v3118 = vld [vmem:[#allocation2 + $0x200] sm:$0xff]
    %v3119 = vld [vmem:[#allocation2 + $0x208] sm:$0xff]
    %v3120 = vld [vmem:[#allocation2 + $0x210] sm:$0xff]
    %v3121 = vld [vmem:[#allocation2 + $0x218] sm:$0xff]
    %v3122 = vld [vmem:[#allocation2 + $0x220] sm:$0xff]
    %v3123 = vld [vmem:[#allocation2 + $0x228] sm:$0xff]
    %v3124 = vld [vmem:[#allocation2 + $0x230] sm:$0xff]
    %v3125 = vld [vmem:[#allocation2 + $0x238] sm:$0xff]
    %v3126 = vld [vmem:[#allocation2 + $0x240] sm:$0xff]
    %v3127 = vld [vmem:[#allocation2 + $0x248] sm:$0xff]
    %v3128 = vld [vmem:[#allocation2 + $0x250] sm:$0xff]
    %v3129 = vld [vmem:[#allocation2 + $0x258] sm:$0xff]
    %v3130 = vld [vmem:[#allocation2 + $0x260] sm:$0xff]
    %v3131 = vld [vmem:[#allocation2 + $0x268] sm:$0xff]
    %v3132 = vld [vmem:[#allocation2 + $0x270] sm:$0xff]
    %v3133 = vld [vmem:[#allocation2 + $0x278] sm:$0xff]
    %v3142 = vunpack.c.l.b16 %v1470
    %v3143 = vunpack.c.l.b16 %v1471
    %v3144 = vunpack.c.l.b16 %v1472
    %v3145 = vunpack.c.l.b16 %v1473
    %v3146 = vunpack.c.l.b16 %v1474
    %v3147 = vunpack.c.l.b16 %v1475
    %v3148 = vunpack.c.l.b16 %v1476
    %v3149 = vunpack.c.l.b16 %v1477
    %v3150 = vpack.c.b16 %v3143, %v3142
    %v3151 = vpack.c.b16 %v3145, %v3144
    %v3152 = vpack.c.b16 %v3147, %v3146
    %v3153 = vpack.c.b16 %v3149, %v3148
    %v3170 = vunpack.c.l.b16 %v3118
    %v3171 = vunpack.c.h.b16 %v3118
    %v3172 = vunpack.c.l.b16 %v3119
    %v3173 = vunpack.c.h.b16 %v3119
    %v3174 = vunpack.c.l.b16 %v3120
    %v3175 = vunpack.c.h.b16 %v3120
    %v3176 = vunpack.c.l.b16 %v3121
    %v3177 = vunpack.c.h.b16 %v3121
    %v3178 = vunpack.c.l.b16 %v3122
    %v3179 = vunpack.c.h.b16 %v3122
    %v3180 = vunpack.c.l.b16 %v3123
    %v3181 = vunpack.c.h.b16 %v3123
    %v3182 = vunpack.c.l.b16 %v3124
    %v3183 = vunpack.c.h.b16 %v3124
    %v3184 = vunpack.c.l.b16 %v3125
    %v3185 = vunpack.c.h.b16 %v3125
    %v3186 = vunpack.c.l.b16 %v3126
    %v3187 = vunpack.c.h.b16 %v3126
    %v3188 = vunpack.c.l.b16 %v3127
    %v3189 = vunpack.c.h.b16 %v3127
    %v3190 = vunpack.c.l.b16 %v3128
    %v3191 = vunpack.c.h.b16 %v3128
    %v3192 = vunpack.c.l.b16 %v3129
    %v3193 = vunpack.c.h.b16 %v3129
    %v3194 = vunpack.c.l.b16 %v3130
    %v3195 = vunpack.c.h.b16 %v3130
    %v3196 = vunpack.c.l.b16 %v3131
    %v3197 = vunpack.c.h.b16 %v3131
    %v3198 = vunpack.c.l.b16 %v3132
    %v3199 = vunpack.c.h.b16 %v3132
    %v3200 = vunpack.c.l.b16 %v3133
    %v3201 = vunpack.c.h.b16 %v3133
    %v3202 = vpack.c.b16 %v3178, %v3170
    %v3203 = vpack.c.b16 %v3179, %v3171
    %v3204 = vpack.c.b16 %v3180, %v3172
    %v3205 = vpack.c.b16 %v3181, %v3173
    %v3206 = vpack.c.b16 %v3182, %v3174
    %v3207 = vpack.c.b16 %v3183, %v3175
    %v3208 = vpack.c.b16 %v3184, %v3176
    %v3209 = vpack.c.b16 %v3185, %v3177
    %v3210 = vpack.c.b16 %v3194, %v3186
    %v3211 = vpack.c.b16 %v3195, %v3187
    %v3212 = vpack.c.b16 %v3196, %v3188
    %v3213 = vpack.c.b16 %v3197, %v3189
    %v3214 = vpack.c.b16 %v3198, %v3190
    %v3215 = vpack.c.b16 %v3199, %v3191
    %v3216 = vpack.c.b16 %v3200, %v3192
    %v3217 = vpack.c.b16 %v3201, %v3193
    %v3235 = vsel %vm100, %v3150, 0
    %v3238 = vsel %vm100, %v3151, 0
    %v3241 = vsel %vm100, %v3152, 0
    %v3244 = vsel %vm100, %v3153, 0
    %3246 = vmatpush.bf16.msra.mxu0 0
    %3247 = vmatpush.bf16.msra.mxu0 0
    %3248 = vmatpush.bf16.msra.mxu0 0
    %3249 = vmatpush.bf16.msra.mxu0 0
    %3250 = vmatpush.bf16.msra.mxu0 0
    %3251 = vmatpush.bf16.msra.mxu0 0
    %3252 = vmatpush.bf16.msra.mxu0 %v3210
    %3253 = vmatpush.bf16.msra.mxu0 %v3202
    %3254 = vmatmul.bf16.gmra.mxu0 %v3235
    %v3255 = vpop.f32.mrf.mxu0
    %v3256 = vadd.f32 0.0, %v3255
    %v3257 = vpop.f32.mrf.mxu0
    %v3258 = vadd.f32 0.0, %v3257
    %3259 = vmatmul.bf16.gmra.mxu0 %v3238
    %v3260 = vpop.f32.mrf.mxu0
    %v3261 = vadd.f32 0.0, %v3260
    %v3262 = vpop.f32.mrf.mxu0
    %v3263 = vadd.f32 0.0, %v3262
    %3264 = vmatmul.bf16.gmra.mxu0 %v3241
    %v3265 = vpop.f32.mrf.mxu0
    %v3266 = vadd.f32 0.0, %v3265
    %v3267 = vpop.f32.mrf.mxu0
    %v3268 = vadd.f32 0.0, %v3267
    %3269 = vmatmul.bf16.gmra.mxu0 %v3244
    %v3270 = vpop.f32.mrf.mxu0
    %v3271 = vadd.f32 0.0, %v3270
    %v3272 = vpop.f32.mrf.mxu0
    %v3273 = vadd.f32 0.0, %v3272
    %3274 = vdwg.mxu0
    %3275 = vmatpush.bf16.msra.mxu0 0
    %3276 = vmatpush.bf16.msra.mxu0 0
    %3277 = vmatpush.bf16.msra.mxu0 0
    %3278 = vmatpush.bf16.msra.mxu0 0
    %3279 = vmatpush.bf16.msra.mxu0 0
    %3280 = vmatpush.bf16.msra.mxu0 0
    %3281 = vmatpush.bf16.msra.mxu0 %v3211
    %3282 = vmatpush.bf16.msra.mxu0 %v3203
    %3283 = vmatmul.bf16.gmra.mxu0 %v3235
    %v3284 = vpop.f32.mrf.mxu0
    %v3285 = vadd.f32 0.0, %v3284
    %v3286 = vpop.f32.mrf.mxu0
    %v3287 = vadd.f32 0.0, %v3286
    %3288 = vmatmul.bf16.gmra.mxu0 %v3238
    %v3289 = vpop.f32.mrf.mxu0
    %v3290 = vadd.f32 0.0, %v3289
    %v3291 = vpop.f32.mrf.mxu0
    %v3292 = vadd.f32 0.0, %v3291
    %3293 = vmatmul.bf16.gmra.mxu0 %v3241
    %v3294 = vpop.f32.mrf.mxu0
    %v3295 = vadd.f32 0.0, %v3294
    %v3296 = vpop.f32.mrf.mxu0
    %v3297 = vadd.f32 0.0, %v3296
    %3298 = vmatmul.bf16.gmra.mxu0 %v3244
    %v3299 = vpop.f32.mrf.mxu0
    %v3300 = vadd.f32 0.0, %v3299
    %v3301 = vpop.f32.mrf.mxu0
    %v3302 = vadd.f32 0.0, %v3301
    %3303 = vdwg.mxu0
    %3304 = vmatpush.bf16.msra.mxu0 0
    %3305 = vmatpush.bf16.msra.mxu0 0
    %3306 = vmatpush.bf16.msra.mxu0 0
    %3307 = vmatpush.bf16.msra.mxu0 0
    %3308 = vmatpush.bf16.msra.mxu0 0
    %3309 = vmatpush.bf16.msra.mxu0 0
    %3310 = vmatpush.bf16.msra.mxu0 %v3212
    %3311 = vmatpush.bf16.msra.mxu0 %v3204
    %3312 = vmatmul.bf16.gmra.mxu0 %v3235
    %v3313 = vpop.f32.mrf.mxu0
    %v3314 = vadd.f32 0.0, %v3313
    %v3315 = vpop.f32.mrf.mxu0
    %v3316 = vadd.f32 0.0, %v3315
    %3317 = vmatmul.bf16.gmra.mxu0 %v3238
    %v3318 = vpop.f32.mrf.mxu0
    %v3319 = vadd.f32 0.0, %v3318
    %v3320 = vpop.f32.mrf.mxu0
    %v3321 = vadd.f32 0.0, %v3320
    %3322 = vmatmul.bf16.gmra.mxu0 %v3241
    %v3323 = vpop.f32.mrf.mxu0
    %v3324 = vadd.f32 0.0, %v3323
    %v3325 = vpop.f32.mrf.mxu0
    %v3326 = vadd.f32 0.0, %v3325
    %3327 = vmatmul.bf16.gmra.mxu0 %v3244
    %v3328 = vpop.f32.mrf.mxu0
    %v3329 = vadd.f32 0.0, %v3328
    %v3330 = vpop.f32.mrf.mxu0
    %v3331 = vadd.f32 0.0, %v3330
    %3332 = vdwg.mxu0
    %3333 = vmatpush.bf16.msra.mxu0 0
    %3334 = vmatpush.bf16.msra.mxu0 0
    %3335 = vmatpush.bf16.msra.mxu0 0
    %3336 = vmatpush.bf16.msra.mxu0 0
    %3337 = vmatpush.bf16.msra.mxu0 0
    %3338 = vmatpush.bf16.msra.mxu0 0
    %3339 = vmatpush.bf16.msra.mxu0 %v3213
    %3340 = vmatpush.bf16.msra.mxu0 %v3205
    %3341 = vmatmul.bf16.gmra.mxu0 %v3235
    %v3342 = vpop.f32.mrf.mxu0
    %v3343 = vadd.f32 0.0, %v3342
    %v3344 = vpop.f32.mrf.mxu0
    %v3345 = vadd.f32 0.0, %v3344
    %3346 = vmatmul.bf16.gmra.mxu0 %v3238
    %v3347 = vpop.f32.mrf.mxu0
    %v3348 = vadd.f32 0.0, %v3347
    %v3349 = vpop.f32.mrf.mxu0
    %v3350 = vadd.f32 0.0, %v3349
    %3351 = vmatmul.bf16.gmra.mxu0 %v3241
    %v3352 = vpop.f32.mrf.mxu0
    %v3353 = vadd.f32 0.0, %v3352
    %v3354 = vpop.f32.mrf.mxu0
    %v3355 = vadd.f32 0.0, %v3354
    %3356 = vmatmul.bf16.gmra.mxu0 %v3244
    %v3357 = vpop.f32.mrf.mxu0
    %v3358 = vadd.f32 0.0, %v3357
    %v3359 = vpop.f32.mrf.mxu0
    %v3360 = vadd.f32 0.0, %v3359
    %3361 = vdwg.mxu0
    %3362 = vmatpush.bf16.msra.mxu0 0
    %3363 = vmatpush.bf16.msra.mxu0 0
    %3364 = vmatpush.bf16.msra.mxu0 0
    %3365 = vmatpush.bf16.msra.mxu0 0
    %3366 = vmatpush.bf16.msra.mxu0 0
    %3367 = vmatpush.bf16.msra.mxu0 0
    %3368 = vmatpush.bf16.msra.mxu0 %v3214
    %3369 = vmatpush.bf16.msra.mxu0 %v3206
    %3370 = vmatmul.bf16.gmra.mxu0 %v3235
    %v3371 = vpop.f32.mrf.mxu0
    %v3372 = vadd.f32 0.0, %v3371
    %v3373 = vpop.f32.mrf.mxu0
    %v3374 = vadd.f32 0.0, %v3373
    %3375 = vmatmul.bf16.gmra.mxu0 %v3238
    %v3376 = vpop.f32.mrf.mxu0
    %v3377 = vadd.f32 0.0, %v3376
    %v3378 = vpop.f32.mrf.mxu0
    %v3379 = vadd.f32 0.0, %v3378
    %3380 = vmatmul.bf16.gmra.mxu0 %v3241
    %v3381 = vpop.f32.mrf.mxu0
    %v3382 = vadd.f32 0.0, %v3381
    %v3383 = vpop.f32.mrf.mxu0
    %v3384 = vadd.f32 0.0, %v3383
    %3385 = vmatmul.bf16.gmra.mxu0 %v3244
    %v3386 = vpop.f32.mrf.mxu0
    %v3387 = vadd.f32 0.0, %v3386
    %v3388 = vpop.f32.mrf.mxu0
    %v3389 = vadd.f32 0.0, %v3388
    %3390 = vdwg.mxu0
    %3391 = vmatpush.bf16.msra.mxu0 0
    %3392 = vmatpush.bf16.msra.mxu0 0
    %3393 = vmatpush.bf16.msra.mxu0 0
    %3394 = vmatpush.bf16.msra.mxu0 0
    %3395 = vmatpush.bf16.msra.mxu0 0
    %3396 = vmatpush.bf16.msra.mxu0 0
    %3397 = vmatpush.bf16.msra.mxu0 %v3215
    %3398 = vmatpush.bf16.msra.mxu0 %v3207
    %3399 = vmatmul.bf16.gmra.mxu0 %v3235
    %v3400 = vpop.f32.mrf.mxu0
    %v3401 = vadd.f32 0.0, %v3400
    %v3402 = vpop.f32.mrf.mxu0
    %v3403 = vadd.f32 0.0, %v3402
    %3404 = vmatmul.bf16.gmra.mxu0 %v3238
    %v3405 = vpop.f32.mrf.mxu0
    %v3406 = vadd.f32 0.0, %v3405
    %v3407 = vpop.f32.mrf.mxu0
    %v3408 = vadd.f32 0.0, %v3407
    %3409 = vmatmul.bf16.gmra.mxu0 %v3241
    %v3410 = vpop.f32.mrf.mxu0
    %v3411 = vadd.f32 0.0, %v3410
    %v3412 = vpop.f32.mrf.mxu0
    %v3413 = vadd.f32 0.0, %v3412
    %3414 = vmatmul.bf16.gmra.mxu0 %v3244
    %v3415 = vpop.f32.mrf.mxu0
    %v3416 = vadd.f32 0.0, %v3415
    %v3417 = vpop.f32.mrf.mxu0
    %v3418 = vadd.f32 0.0, %v3417
    %3419 = vdwg.mxu0
    %3420 = vmatpush.bf16.msra.mxu0 0
    %3421 = vmatpush.bf16.msra.mxu0 0
    %3422 = vmatpush.bf16.msra.mxu0 0
    %3423 = vmatpush.bf16.msra.mxu0 0
    %3424 = vmatpush.bf16.msra.mxu0 0
    %3425 = vmatpush.bf16.msra.mxu0 0
    %3426 = vmatpush.bf16.msra.mxu0 %v3216
    %3427 = vmatpush.bf16.msra.mxu0 %v3208
    %3428 = vmatmul.bf16.gmra.mxu0 %v3235
    %v3429 = vpop.f32.mrf.mxu0
    %v3430 = vadd.f32 0.0, %v3429
    %v3431 = vpop.f32.mrf.mxu0
    %v3432 = vadd.f32 0.0, %v3431
    %3433 = vmatmul.bf16.gmra.mxu0 %v3238
    %v3434 = vpop.f32.mrf.mxu0
    %v3435 = vadd.f32 0.0, %v3434
    %v3436 = vpop.f32.mrf.mxu0
    %v3437 = vadd.f32 0.0, %v3436
    %3438 = vmatmul.bf16.gmra.mxu0 %v3241
    %v3439 = vpop.f32.mrf.mxu0
    %v3440 = vadd.f32 0.0, %v3439
    %v3441 = vpop.f32.mrf.mxu0
    %v3442 = vadd.f32 0.0, %v3441
    %3443 = vmatmul.bf16.gmra.mxu0 %v3244
    %v3444 = vpop.f32.mrf.mxu0
    %v3445 = vadd.f32 0.0, %v3444
    %v3446 = vpop.f32.mrf.mxu0
    %v3447 = vadd.f32 0.0, %v3446
    %3448 = vdwg.mxu0
    %3449 = vmatpush.bf16.msra.mxu0 0
    %3450 = vmatpush.bf16.msra.mxu0 0
    %3451 = vmatpush.bf16.msra.mxu0 0
    %3452 = vmatpush.bf16.msra.mxu0 0
    %3453 = vmatpush.bf16.msra.mxu0 0
    %3454 = vmatpush.bf16.msra.mxu0 0
    %3455 = vmatpush.bf16.msra.mxu0 %v3217
    %3456 = vmatpush.bf16.msra.mxu0 %v3209
    %3457 = vmatmul.bf16.gmra.mxu0 %v3235
    %v3458 = vpop.f32.mrf.mxu0
    %v3459 = vadd.f32 0.0, %v3458
    %v3460 = vpop.f32.mrf.mxu0
    %v3461 = vadd.f32 0.0, %v3460
    %3462 = vmatmul.bf16.gmra.mxu0 %v3238
    %v3463 = vpop.f32.mrf.mxu0
    %v3464 = vadd.f32 0.0, %v3463
    %v3465 = vpop.f32.mrf.mxu0
    %v3466 = vadd.f32 0.0, %v3465
    %3467 = vmatmul.bf16.gmra.mxu0 %v3241
    %v3468 = vpop.f32.mrf.mxu0
    %v3469 = vadd.f32 0.0, %v3468
    %v3470 = vpop.f32.mrf.mxu0
    %v3471 = vadd.f32 0.0, %v3470
    %3472 = vmatmul.bf16.gmra.mxu0 %v3244
    %v3473 = vpop.f32.mrf.mxu0
    %v3474 = vadd.f32 0.0, %v3473
    %v3475 = vpop.f32.mrf.mxu0
    %v3476 = vadd.f32 0.0, %v3475
    %3477 = vdwg.mxu0
    %v3478 = vadd.f32 %v3054, %v3256
    %v3479 = vadd.f32 %v3055, %v3285
    %v3480 = vadd.f32 %v3056, %v3314
    %v3481 = vadd.f32 %v3057, %v3343
    %v3482 = vadd.f32 %v3058, %v3372
    %v3483 = vadd.f32 %v3059, %v3401
    %v3484 = vadd.f32 %v3060, %v3430
    %v3485 = vadd.f32 %v3061, %v3459
    %v3486 = vadd.f32 %v3062, %v3258
    %v3487 = vadd.f32 %v3063, %v3287
    %v3488 = vadd.f32 %v3064, %v3316
    %v3489 = vadd.f32 %v3065, %v3345
    %v3490 = vadd.f32 %v3066, %v3374
    %v3491 = vadd.f32 %v3067, %v3403
    %v3492 = vadd.f32 %v3068, %v3432
    %v3493 = vadd.f32 %v3069, %v3461
    %v3494 = vadd.f32 %v3070, %v3261
    %v3495 = vadd.f32 %v3071, %v3290
    %v3496 = vadd.f32 %v3072, %v3319
    %v3497 = vadd.f32 %v3073, %v3348
    %v3498 = vadd.f32 %v3074, %v3377
    %v3499 = vadd.f32 %v3075, %v3406
    %v3500 = vadd.f32 %v3076, %v3435
    %v3501 = vadd.f32 %v3077, %v3464
    %v3502 = vadd.f32 %v3078, %v3263
    %v3503 = vadd.f32 %v3079, %v3292
    %v3504 = vadd.f32 %v3080, %v3321
    %v3505 = vadd.f32 %v3081, %v3350
    %v3506 = vadd.f32 %v3082, %v3379
    %v3507 = vadd.f32 %v3083, %v3408
    %v3508 = vadd.f32 %v3084, %v3437
    %v3509 = vadd.f32 %v3085, %v3466
    %v3510 = vadd.f32 %v3086, %v3266
    %v3511 = vadd.f32 %v3087, %v3295
    %v3512 = vadd.f32 %v3088, %v3324
    %v3513 = vadd.f32 %v3089, %v3353
    %v3514 = vadd.f32 %v3090, %v3382
    %v3515 = vadd.f32 %v3091, %v3411
    %v3516 = vadd.f32 %v3092, %v3440
    %v3517 = vadd.f32 %v3093, %v3469
    %v3518 = vadd.f32 %v3094, %v3268
    %v3519 = vadd.f32 %v3095, %v3297
    %v3520 = vadd.f32 %v3096, %v3326
    %v3521 = vadd.f32 %v3097, %v3355
    %v3522 = vadd.f32 %v3098, %v3384
    %v3523 = vadd.f32 %v3099, %v3413
    %v3524 = vadd.f32 %v3100, %v3442
    %v3525 = vadd.f32 %v3101, %v3471
    %v3526 = vadd.f32 %v3102, %v3271
    %v3527 = vadd.f32 %v3103, %v3300
    %v3528 = vadd.f32 %v3104, %v3329
    %v3529 = vadd.f32 %v3105, %v3358
    %v3530 = vadd.f32 %v3106, %v3387
    %v3531 = vadd.f32 %v3107, %v3416
    %v3532 = vadd.f32 %v3108, %v3445
    %v3533 = vadd.f32 %v3109, %v3474
    %v3534 = vadd.f32 %v3110, %v3273
    %v3535 = vadd.f32 %v3111, %v3302
    %v3536 = vadd.f32 %v3112, %v3331
    %v3537 = vadd.f32 %v3113, %v3360
    %v3538 = vadd.f32 %v3114, %v3389
    %v3539 = vadd.f32 %v3115, %v3418
    %v3540 = vadd.f32 %v3116, %v3447
    %v3541 = vadd.f32 %v3117, %v3476
    %v3542 = vld [vmem:[#allocation2 + $0x280] sm:$0xff]
    %v3543 = vld [vmem:[#allocation2 + $0x288] sm:$0xff]
    %v3544 = vld [vmem:[#allocation2 + $0x290] sm:$0xff]
    %v3545 = vld [vmem:[#allocation2 + $0x298] sm:$0xff]
    %v3546 = vld [vmem:[#allocation2 + $0x2a0] sm:$0xff]
    %v3547 = vld [vmem:[#allocation2 + $0x2a8] sm:$0xff]
    %v3548 = vld [vmem:[#allocation2 + $0x2b0] sm:$0xff]
    %v3549 = vld [vmem:[#allocation2 + $0x2b8] sm:$0xff]
    %v3550 = vld [vmem:[#allocation2 + $0x2c0] sm:$0xff]
    %v3551 = vld [vmem:[#allocation2 + $0x2c8] sm:$0xff]
    %v3552 = vld [vmem:[#allocation2 + $0x2d0] sm:$0xff]
    %v3553 = vld [vmem:[#allocation2 + $0x2d8] sm:$0xff]
    %v3554 = vld [vmem:[#allocation2 + $0x2e0] sm:$0xff]
    %v3555 = vld [vmem:[#allocation2 + $0x2e8] sm:$0xff]
    %v3556 = vld [vmem:[#allocation2 + $0x2f0] sm:$0xff]
    %v3557 = vld [vmem:[#allocation2 + $0x2f8] sm:$0xff]
    %v3566 = vunpack.c.l.b16 %v1478
    %v3567 = vunpack.c.l.b16 %v1479
    %v3568 = vunpack.c.l.b16 %v1480
    %v3569 = vunpack.c.l.b16 %v1481
    %v3570 = vunpack.c.l.b16 %v1482
    %v3571 = vunpack.c.l.b16 %v1483
    %v3572 = vunpack.c.l.b16 %v1484
    %v3573 = vunpack.c.l.b16 %v1485
    %v3574 = vpack.c.b16 %v3567, %v3566
    %v3575 = vpack.c.b16 %v3569, %v3568
    %v3576 = vpack.c.b16 %v3571, %v3570
    %v3577 = vpack.c.b16 %v3573, %v3572
    %v3594 = vunpack.c.l.b16 %v3542
    %v3595 = vunpack.c.h.b16 %v3542
    %v3596 = vunpack.c.l.b16 %v3543
    %v3597 = vunpack.c.h.b16 %v3543
    %v3598 = vunpack.c.l.b16 %v3544
    %v3599 = vunpack.c.h.b16 %v3544
    %v3600 = vunpack.c.l.b16 %v3545
    %v3601 = vunpack.c.h.b16 %v3545
    %v3602 = vunpack.c.l.b16 %v3546
    %v3603 = vunpack.c.h.b16 %v3546
    %v3604 = vunpack.c.l.b16 %v3547
    %v3605 = vunpack.c.h.b16 %v3547
    %v3606 = vunpack.c.l.b16 %v3548
    %v3607 = vunpack.c.h.b16 %v3548
    %v3608 = vunpack.c.l.b16 %v3549
    %v3609 = vunpack.c.h.b16 %v3549
    %v3610 = vunpack.c.l.b16 %v3550
    %v3611 = vunpack.c.h.b16 %v3550
    %v3612 = vunpack.c.l.b16 %v3551
    %v3613 = vunpack.c.h.b16 %v3551
    %v3614 = vunpack.c.l.b16 %v3552
    %v3615 = vunpack.c.h.b16 %v3552
    %v3616 = vunpack.c.l.b16 %v3553
    %v3617 = vunpack.c.h.b16 %v3553
    %v3618 = vunpack.c.l.b16 %v3554
    %v3619 = vunpack.c.h.b16 %v3554
    %v3620 = vunpack.c.l.b16 %v3555
    %v3621 = vunpack.c.h.b16 %v3555
    %v3622 = vunpack.c.l.b16 %v3556
    %v3623 = vunpack.c.h.b16 %v3556
    %v3624 = vunpack.c.l.b16 %v3557
    %v3625 = vunpack.c.h.b16 %v3557
    %v3626 = vpack.c.b16 %v3602, %v3594
    %v3627 = vpack.c.b16 %v3603, %v3595
    %v3628 = vpack.c.b16 %v3604, %v3596
    %v3629 = vpack.c.b16 %v3605, %v3597
    %v3630 = vpack.c.b16 %v3606, %v3598
    %v3631 = vpack.c.b16 %v3607, %v3599
    %v3632 = vpack.c.b16 %v3608, %v3600
    %v3633 = vpack.c.b16 %v3609, %v3601
    %v3634 = vpack.c.b16 %v3618, %v3610
    %v3635 = vpack.c.b16 %v3619, %v3611
    %v3636 = vpack.c.b16 %v3620, %v3612
    %v3637 = vpack.c.b16 %v3621, %v3613
    %v3638 = vpack.c.b16 %v3622, %v3614
    %v3639 = vpack.c.b16 %v3623, %v3615
    %v3640 = vpack.c.b16 %v3624, %v3616
    %v3641 = vpack.c.b16 %v3625, %v3617
    %v3659 = vsel %vm100, %v3574, 0
    %v3662 = vsel %vm100, %v3575, 0
    %v3665 = vsel %vm100, %v3576, 0
    %v3668 = vsel %vm100, %v3577, 0
    %3670 = vmatpush.bf16.msra.mxu0 0
    %3671 = vmatpush.bf16.msra.mxu0 0
    %3672 = vmatpush.bf16.msra.mxu0 0
    %3673 = vmatpush.bf16.msra.mxu0 0
    %3674 = vmatpush.bf16.msra.mxu0 0
    %3675 = vmatpush.bf16.msra.mxu0 0
    %3676 = vmatpush.bf16.msra.mxu0 %v3634
    %3677 = vmatpush.bf16.msra.mxu0 %v3626
    %3678 = vmatmul.bf16.gmra.mxu0 %v3659
    %v3679 = vpop.f32.mrf.mxu0
    %v3680 = vadd.f32 0.0, %v3679
    %v3681 = vpop.f32.mrf.mxu0
    %v3682 = vadd.f32 0.0, %v3681
    %3683 = vmatmul.bf16.gmra.mxu0 %v3662
    %v3684 = vpop.f32.mrf.mxu0
    %v3685 = vadd.f32 0.0, %v3684
    %v3686 = vpop.f32.mrf.mxu0
    %v3687 = vadd.f32 0.0, %v3686
    %3688 = vmatmul.bf16.gmra.mxu0 %v3665
    %v3689 = vpop.f32.mrf.mxu0
    %v3690 = vadd.f32 0.0, %v3689
    %v3691 = vpop.f32.mrf.mxu0
    %v3692 = vadd.f32 0.0, %v3691
    %3693 = vmatmul.bf16.gmra.mxu0 %v3668
    %v3694 = vpop.f32.mrf.mxu0
    %v3695 = vadd.f32 0.0, %v3694
    %v3696 = vpop.f32.mrf.mxu0
    %v3697 = vadd.f32 0.0, %v3696
    %3698 = vdwg.mxu0
    %3699 = vmatpush.bf16.msra.mxu0 0
    %3700 = vmatpush.bf16.msra.mxu0 0
    %3701 = vmatpush.bf16.msra.mxu0 0
    %3702 = vmatpush.bf16.msra.mxu0 0
    %3703 = vmatpush.bf16.msra.mxu0 0
    %3704 = vmatpush.bf16.msra.mxu0 0
    %3705 = vmatpush.bf16.msra.mxu0 %v3635
    %3706 = vmatpush.bf16.msra.mxu0 %v3627
    %3707 = vmatmul.bf16.gmra.mxu0 %v3659
    %v3708 = vpop.f32.mrf.mxu0
    %v3709 = vadd.f32 0.0, %v3708
    %v3710 = vpop.f32.mrf.mxu0
    %v3711 = vadd.f32 0.0, %v3710
    %3712 = vmatmul.bf16.gmra.mxu0 %v3662
    %v3713 = vpop.f32.mrf.mxu0
    %v3714 = vadd.f32 0.0, %v3713
    %v3715 = vpop.f32.mrf.mxu0
    %v3716 = vadd.f32 0.0, %v3715
    %3717 = vmatmul.bf16.gmra.mxu0 %v3665
    %v3718 = vpop.f32.mrf.mxu0
    %v3719 = vadd.f32 0.0, %v3718
    %v3720 = vpop.f32.mrf.mxu0
    %v3721 = vadd.f32 0.0, %v3720
    %3722 = vmatmul.bf16.gmra.mxu0 %v3668
    %v3723 = vpop.f32.mrf.mxu0
    %v3724 = vadd.f32 0.0, %v3723
    %v3725 = vpop.f32.mrf.mxu0
    %v3726 = vadd.f32 0.0, %v3725
    %3727 = vdwg.mxu0
    %3728 = vmatpush.bf16.msra.mxu0 0
    %3729 = vmatpush.bf16.msra.mxu0 0
    %3730 = vmatpush.bf16.msra.mxu0 0
    %3731 = vmatpush.bf16.msra.mxu0 0
    %3732 = vmatpush.bf16.msra.mxu0 0
    %3733 = vmatpush.bf16.msra.mxu0 0
    %3734 = vmatpush.bf16.msra.mxu0 %v3636
    %3735 = vmatpush.bf16.msra.mxu0 %v3628
    %3736 = vmatmul.bf16.gmra.mxu0 %v3659
    %v3737 = vpop.f32.mrf.mxu0
    %v3738 = vadd.f32 0.0, %v3737
    %v3739 = vpop.f32.mrf.mxu0
    %v3740 = vadd.f32 0.0, %v3739
    %3741 = vmatmul.bf16.gmra.mxu0 %v3662
    %v3742 = vpop.f32.mrf.mxu0
    %v3743 = vadd.f32 0.0, %v3742
    %v3744 = vpop.f32.mrf.mxu0
    %v3745 = vadd.f32 0.0, %v3744
    %3746 = vmatmul.bf16.gmra.mxu0 %v3665
    %v3747 = vpop.f32.mrf.mxu0
    %v3748 = vadd.f32 0.0, %v3747
    %v3749 = vpop.f32.mrf.mxu0
    %v3750 = vadd.f32 0.0, %v3749
    %3751 = vmatmul.bf16.gmra.mxu0 %v3668
    %v3752 = vpop.f32.mrf.mxu0
    %v3753 = vadd.f32 0.0, %v3752
    %v3754 = vpop.f32.mrf.mxu0
    %v3755 = vadd.f32 0.0, %v3754
    %3756 = vdwg.mxu0
    %3757 = vmatpush.bf16.msra.mxu0 0
    %3758 = vmatpush.bf16.msra.mxu0 0
    %3759 = vmatpush.bf16.msra.mxu0 0
    %3760 = vmatpush.bf16.msra.mxu0 0
    %3761 = vmatpush.bf16.msra.mxu0 0
    %3762 = vmatpush.bf16.msra.mxu0 0
    %3763 = vmatpush.bf16.msra.mxu0 %v3637
    %3764 = vmatpush.bf16.msra.mxu0 %v3629
    %3765 = vmatmul.bf16.gmra.mxu0 %v3659
    %v3766 = vpop.f32.mrf.mxu0
    %v3767 = vadd.f32 0.0, %v3766
    %v3768 = vpop.f32.mrf.mxu0
    %v3769 = vadd.f32 0.0, %v3768
    %3770 = vmatmul.bf16.gmra.mxu0 %v3662
    %v3771 = vpop.f32.mrf.mxu0
    %v3772 = vadd.f32 0.0, %v3771
    %v3773 = vpop.f32.mrf.mxu0
    %v3774 = vadd.f32 0.0, %v3773
    %3775 = vmatmul.bf16.gmra.mxu0 %v3665
    %v3776 = vpop.f32.mrf.mxu0
    %v3777 = vadd.f32 0.0, %v3776
    %v3778 = vpop.f32.mrf.mxu0
    %v3779 = vadd.f32 0.0, %v3778
    %3780 = vmatmul.bf16.gmra.mxu0 %v3668
    %v3781 = vpop.f32.mrf.mxu0
    %v3782 = vadd.f32 0.0, %v3781
    %v3783 = vpop.f32.mrf.mxu0
    %v3784 = vadd.f32 0.0, %v3783
    %3785 = vdwg.mxu0
    %3786 = vmatpush.bf16.msra.mxu0 0
    %3787 = vmatpush.bf16.msra.mxu0 0
    %3788 = vmatpush.bf16.msra.mxu0 0
    %3789 = vmatpush.bf16.msra.mxu0 0
    %3790 = vmatpush.bf16.msra.mxu0 0
    %3791 = vmatpush.bf16.msra.mxu0 0
    %3792 = vmatpush.bf16.msra.mxu0 %v3638
    %3793 = vmatpush.bf16.msra.mxu0 %v3630
    %3794 = vmatmul.bf16.gmra.mxu0 %v3659
    %v3795 = vpop.f32.mrf.mxu0
    %v3796 = vadd.f32 0.0, %v3795
    %v3797 = vpop.f32.mrf.mxu0
    %v3798 = vadd.f32 0.0, %v3797
    %3799 = vmatmul.bf16.gmra.mxu0 %v3662
    %v3800 = vpop.f32.mrf.mxu0
    %v3801 = vadd.f32 0.0, %v3800
    %v3802 = vpop.f32.mrf.mxu0
    %v3803 = vadd.f32 0.0, %v3802
    %3804 = vmatmul.bf16.gmra.mxu0 %v3665
    %v3805 = vpop.f32.mrf.mxu0
    %v3806 = vadd.f32 0.0, %v3805
    %v3807 = vpop.f32.mrf.mxu0
    %v3808 = vadd.f32 0.0, %v3807
    %3809 = vmatmul.bf16.gmra.mxu0 %v3668
    %v3810 = vpop.f32.mrf.mxu0
    %v3811 = vadd.f32 0.0, %v3810
    %v3812 = vpop.f32.mrf.mxu0
    %v3813 = vadd.f32 0.0, %v3812
    %3814 = vdwg.mxu0
    %3815 = vmatpush.bf16.msra.mxu0 0
    %3816 = vmatpush.bf16.msra.mxu0 0
    %3817 = vmatpush.bf16.msra.mxu0 0
    %3818 = vmatpush.bf16.msra.mxu0 0
    %3819 = vmatpush.bf16.msra.mxu0 0
    %3820 = vmatpush.bf16.msra.mxu0 0
    %3821 = vmatpush.bf16.msra.mxu0 %v3639
    %3822 = vmatpush.bf16.msra.mxu0 %v3631
    %3823 = vmatmul.bf16.gmra.mxu0 %v3659
    %v3824 = vpop.f32.mrf.mxu0
    %v3825 = vadd.f32 0.0, %v3824
    %v3826 = vpop.f32.mrf.mxu0
    %v3827 = vadd.f32 0.0, %v3826
    %3828 = vmatmul.bf16.gmra.mxu0 %v3662
    %v3829 = vpop.f32.mrf.mxu0
    %v3830 = vadd.f32 0.0, %v3829
    %v3831 = vpop.f32.mrf.mxu0
    %v3832 = vadd.f32 0.0, %v3831
    %3833 = vmatmul.bf16.gmra.mxu0 %v3665
    %v3834 = vpop.f32.mrf.mxu0
    %v3835 = vadd.f32 0.0, %v3834
    %v3836 = vpop.f32.mrf.mxu0
    %v3837 = vadd.f32 0.0, %v3836
    %3838 = vmatmul.bf16.gmra.mxu0 %v3668
    %v3839 = vpop.f32.mrf.mxu0
    %v3840 = vadd.f32 0.0, %v3839
    %v3841 = vpop.f32.mrf.mxu0
    %v3842 = vadd.f32 0.0, %v3841
    %3843 = vdwg.mxu0
    %3844 = vmatpush.bf16.msra.mxu0 0
    %3845 = vmatpush.bf16.msra.mxu0 0
    %3846 = vmatpush.bf16.msra.mxu0 0
    %3847 = vmatpush.bf16.msra.mxu0 0
    %3848 = vmatpush.bf16.msra.mxu0 0
    %3849 = vmatpush.bf16.msra.mxu0 0
    %3850 = vmatpush.bf16.msra.mxu0 %v3640
    %3851 = vmatpush.bf16.msra.mxu0 %v3632
    %3852 = vmatmul.bf16.gmra.mxu0 %v3659
    %v3853 = vpop.f32.mrf.mxu0
    %v3854 = vadd.f32 0.0, %v3853
    %v3855 = vpop.f32.mrf.mxu0
    %v3856 = vadd.f32 0.0, %v3855
    %3857 = vmatmul.bf16.gmra.mxu0 %v3662
    %v3858 = vpop.f32.mrf.mxu0
    %v3859 = vadd.f32 0.0, %v3858
    %v3860 = vpop.f32.mrf.mxu0
    %v3861 = vadd.f32 0.0, %v3860
    %3862 = vmatmul.bf16.gmra.mxu0 %v3665
    %v3863 = vpop.f32.mrf.mxu0
    %v3864 = vadd.f32 0.0, %v3863
    %v3865 = vpop.f32.mrf.mxu0
    %v3866 = vadd.f32 0.0, %v3865
    %3867 = vmatmul.bf16.gmra.mxu0 %v3668
    %v3868 = vpop.f32.mrf.mxu0
    %v3869 = vadd.f32 0.0, %v3868
    %v3870 = vpop.f32.mrf.mxu0
    %v3871 = vadd.f32 0.0, %v3870
    %3872 = vdwg.mxu0
    %3873 = vmatpush.bf16.msra.mxu0 0
    %3874 = vmatpush.bf16.msra.mxu0 0
    %3875 = vmatpush.bf16.msra.mxu0 0
    %3876 = vmatpush.bf16.msra.mxu0 0
    %3877 = vmatpush.bf16.msra.mxu0 0
    %3878 = vmatpush.bf16.msra.mxu0 0
    %3879 = vmatpush.bf16.msra.mxu0 %v3641
    %3880 = vmatpush.bf16.msra.mxu0 %v3633
    %3881 = vmatmul.bf16.gmra.mxu0 %v3659
    %v3882 = vpop.f32.mrf.mxu0
    %v3883 = vadd.f32 0.0, %v3882
    %v3884 = vpop.f32.mrf.mxu0
    %v3885 = vadd.f32 0.0, %v3884
    %3886 = vmatmul.bf16.gmra.mxu0 %v3662
    %v3887 = vpop.f32.mrf.mxu0
    %v3888 = vadd.f32 0.0, %v3887
    %v3889 = vpop.f32.mrf.mxu0
    %v3890 = vadd.f32 0.0, %v3889
    %3891 = vmatmul.bf16.gmra.mxu0 %v3665
    %v3892 = vpop.f32.mrf.mxu0
    %v3893 = vadd.f32 0.0, %v3892
    %v3894 = vpop.f32.mrf.mxu0
    %v3895 = vadd.f32 0.0, %v3894
    %3896 = vmatmul.bf16.gmra.mxu0 %v3668
    %v3897 = vpop.f32.mrf.mxu0
    %v3898 = vadd.f32 0.0, %v3897
    %v3899 = vpop.f32.mrf.mxu0
    %v3900 = vadd.f32 0.0, %v3899
    %3901 = vdwg.mxu0
    %v3902 = vadd.f32 %v3478, %v3680
    %v3903 = vadd.f32 %v3479, %v3709
    %v3904 = vadd.f32 %v3480, %v3738
    %v3905 = vadd.f32 %v3481, %v3767
    %v3906 = vadd.f32 %v3482, %v3796
    %v3907 = vadd.f32 %v3483, %v3825
    %v3908 = vadd.f32 %v3484, %v3854
    %v3909 = vadd.f32 %v3485, %v3883
    %v3910 = vadd.f32 %v3486, %v3682
    %v3911 = vadd.f32 %v3487, %v3711
    %v3912 = vadd.f32 %v3488, %v3740
    %v3913 = vadd.f32 %v3489, %v3769
    %v3914 = vadd.f32 %v3490, %v3798
    %v3915 = vadd.f32 %v3491, %v3827
    %v3916 = vadd.f32 %v3492, %v3856
    %v3917 = vadd.f32 %v3493, %v3885
    %v3918 = vadd.f32 %v3494, %v3685
    %v3919 = vadd.f32 %v3495, %v3714
    %v3920 = vadd.f32 %v3496, %v3743
    %v3921 = vadd.f32 %v3497, %v3772
    %v3922 = vadd.f32 %v3498, %v3801
    %v3923 = vadd.f32 %v3499, %v3830
    %v3924 = vadd.f32 %v3500, %v3859
    %v3925 = vadd.f32 %v3501, %v3888
    %v3926 = vadd.f32 %v3502, %v3687
    %v3927 = vadd.f32 %v3503, %v3716
    %v3928 = vadd.f32 %v3504, %v3745
    %v3929 = vadd.f32 %v3505, %v3774
    %v3930 = vadd.f32 %v3506, %v3803
    %v3931 = vadd.f32 %v3507, %v3832
    %v3932 = vadd.f32 %v3508, %v3861
    %v3933 = vadd.f32 %v3509, %v3890
    %v3934 = vadd.f32 %v3510, %v3690
    %v3935 = vadd.f32 %v3511, %v3719
    %v3936 = vadd.f32 %v3512, %v3748
    %v3937 = vadd.f32 %v3513, %v3777
    %v3938 = vadd.f32 %v3514, %v3806
    %v3939 = vadd.f32 %v3515, %v3835
    %v3940 = vadd.f32 %v3516, %v3864
    %v3941 = vadd.f32 %v3517, %v3893
    %v3942 = vadd.f32 %v3518, %v3692
    %v3943 = vadd.f32 %v3519, %v3721
    %v3944 = vadd.f32 %v3520, %v3750
    %v3945 = vadd.f32 %v3521, %v3779
    %v3946 = vadd.f32 %v3522, %v3808
    %v3947 = vadd.f32 %v3523, %v3837
    %v3948 = vadd.f32 %v3524, %v3866
    %v3949 = vadd.f32 %v3525, %v3895
    %v3950 = vadd.f32 %v3526, %v3695
    %v3951 = vadd.f32 %v3527, %v3724
    %v3952 = vadd.f32 %v3528, %v3753
    %v3953 = vadd.f32 %v3529, %v3782
    %v3954 = vadd.f32 %v3530, %v3811
    %v3955 = vadd.f32 %v3531, %v3840
    %v3956 = vadd.f32 %v3532, %v3869
    %v3957 = vadd.f32 %v3533, %v3898
    %v3958 = vadd.f32 %v3534, %v3697
    %v3959 = vadd.f32 %v3535, %v3726
    %v3960 = vadd.f32 %v3536, %v3755
    %v3961 = vadd.f32 %v3537, %v3784
    %v3962 = vadd.f32 %v3538, %v3813
    %v3963 = vadd.f32 %v3539, %v3842
    %v3964 = vadd.f32 %v3540, %v3871
    %v3965 = vadd.f32 %v3541, %v3900
    %v3966 = vld [vmem:[#allocation2 + $0x300] sm:$0xff]
    %v3967 = vld [vmem:[#allocation2 + $0x308] sm:$0xff]
    %v3968 = vld [vmem:[#allocation2 + $0x310] sm:$0xff]
    %v3969 = vld [vmem:[#allocation2 + $0x318] sm:$0xff]
    %v3970 = vld [vmem:[#allocation2 + $0x320] sm:$0xff]
    %v3971 = vld [vmem:[#allocation2 + $0x328] sm:$0xff]
    %v3972 = vld [vmem:[#allocation2 + $0x330] sm:$0xff]
    %v3973 = vld [vmem:[#allocation2 + $0x338] sm:$0xff]
    %v3974 = vld [vmem:[#allocation2 + $0x340] sm:$0xff]
    %v3975 = vld [vmem:[#allocation2 + $0x348] sm:$0xff]
    %v3976 = vld [vmem:[#allocation2 + $0x350] sm:$0xff]
    %v3977 = vld [vmem:[#allocation2 + $0x358] sm:$0xff]
    %v3978 = vld [vmem:[#allocation2 + $0x360] sm:$0xff]
    %v3979 = vld [vmem:[#allocation2 + $0x368] sm:$0xff]
    %v3980 = vld [vmem:[#allocation2 + $0x370] sm:$0xff]
    %v3981 = vld [vmem:[#allocation2 + $0x378] sm:$0xff]
    %v3990 = vunpack.c.l.b16 %v1486
    %v3991 = vunpack.c.l.b16 %v1487
    %v3992 = vunpack.c.l.b16 %v1488
    %v3993 = vunpack.c.l.b16 %v1489
    %v3994 = vunpack.c.l.b16 %v1490
    %v3995 = vunpack.c.l.b16 %v1491
    %v3996 = vunpack.c.l.b16 %v1492
    %v3997 = vunpack.c.l.b16 %v1493
    %v3998 = vpack.c.b16 %v3991, %v3990
    %v3999 = vpack.c.b16 %v3993, %v3992
    %v4000 = vpack.c.b16 %v3995, %v3994
    %v4001 = vpack.c.b16 %v3997, %v3996
    %v4018 = vunpack.c.l.b16 %v3966
    %v4019 = vunpack.c.h.b16 %v3966
    %v4020 = vunpack.c.l.b16 %v3967
    %v4021 = vunpack.c.h.b16 %v3967
    %v4022 = vunpack.c.l.b16 %v3968
    %v4023 = vunpack.c.h.b16 %v3968
    %v4024 = vunpack.c.l.b16 %v3969
    %v4025 = vunpack.c.h.b16 %v3969
    %v4026 = vunpack.c.l.b16 %v3970
    %v4027 = vunpack.c.h.b16 %v3970
    %v4028 = vunpack.c.l.b16 %v3971
    %v4029 = vunpack.c.h.b16 %v3971
    %v4030 = vunpack.c.l.b16 %v3972
    %v4031 = vunpack.c.h.b16 %v3972
    %v4032 = vunpack.c.l.b16 %v3973
    %v4033 = vunpack.c.h.b16 %v3973
    %v4034 = vunpack.c.l.b16 %v3974
    %v4035 = vunpack.c.h.b16 %v3974
    %v4036 = vunpack.c.l.b16 %v3975
    %v4037 = vunpack.c.h.b16 %v3975
    %v4038 = vunpack.c.l.b16 %v3976
    %v4039 = vunpack.c.h.b16 %v3976
    %v4040 = vunpack.c.l.b16 %v3977
    %v4041 = vunpack.c.h.b16 %v3977
    %v4042 = vunpack.c.l.b16 %v3978
    %v4043 = vunpack.c.h.b16 %v3978
    %v4044 = vunpack.c.l.b16 %v3979
    %v4045 = vunpack.c.h.b16 %v3979
    %v4046 = vunpack.c.l.b16 %v3980
    %v4047 = vunpack.c.h.b16 %v3980
    %v4048 = vunpack.c.l.b16 %v3981
    %v4049 = vunpack.c.h.b16 %v3981
    %v4050 = vpack.c.b16 %v4026, %v4018
    %v4051 = vpack.c.b16 %v4027, %v4019
    %v4052 = vpack.c.b16 %v4028, %v4020
    %v4053 = vpack.c.b16 %v4029, %v4021
    %v4054 = vpack.c.b16 %v4030, %v4022
    %v4055 = vpack.c.b16 %v4031, %v4023
    %v4056 = vpack.c.b16 %v4032, %v4024
    %v4057 = vpack.c.b16 %v4033, %v4025
    %v4058 = vpack.c.b16 %v4042, %v4034
    %v4059 = vpack.c.b16 %v4043, %v4035
    %v4060 = vpack.c.b16 %v4044, %v4036
    %v4061 = vpack.c.b16 %v4045, %v4037
    %v4062 = vpack.c.b16 %v4046, %v4038
    %v4063 = vpack.c.b16 %v4047, %v4039
    %v4064 = vpack.c.b16 %v4048, %v4040
    %v4065 = vpack.c.b16 %v4049, %v4041
    %v4083 = vsel %vm100, %v3998, 0
    %v4086 = vsel %vm100, %v3999, 0
    %v4089 = vsel %vm100, %v4000, 0
    %v4092 = vsel %vm100, %v4001, 0
    %4094 = vmatpush.bf16.msra.mxu0 0
    %4095 = vmatpush.bf16.msra.mxu0 0
    %4096 = vmatpush.bf16.msra.mxu0 0
    %4097 = vmatpush.bf16.msra.mxu0 0
    %4098 = vmatpush.bf16.msra.mxu0 0
    %4099 = vmatpush.bf16.msra.mxu0 0
    %4100 = vmatpush.bf16.msra.mxu0 %v4058
    %4101 = vmatpush.bf16.msra.mxu0 %v4050
    %4102 = vmatmul.bf16.gmra.mxu0 %v4083
    %v4103 = vpop.f32.mrf.mxu0
    %v4104 = vadd.f32 0.0, %v4103
    %v4105 = vpop.f32.mrf.mxu0
    %v4106 = vadd.f32 0.0, %v4105
    %4107 = vmatmul.bf16.gmra.mxu0 %v4086
    %v4108 = vpop.f32.mrf.mxu0
    %v4109 = vadd.f32 0.0, %v4108
    %v4110 = vpop.f32.mrf.mxu0
    %v4111 = vadd.f32 0.0, %v4110
    %4112 = vmatmul.bf16.gmra.mxu0 %v4089
    %v4113 = vpop.f32.mrf.mxu0
    %v4114 = vadd.f32 0.0, %v4113
    %v4115 = vpop.f32.mrf.mxu0
    %v4116 = vadd.f32 0.0, %v4115
    %4117 = vmatmul.bf16.gmra.mxu0 %v4092
    %v4118 = vpop.f32.mrf.mxu0
    %v4119 = vadd.f32 0.0, %v4118
    %v4120 = vpop.f32.mrf.mxu0
    %v4121 = vadd.f32 0.0, %v4120
    %4122 = vdwg.mxu0
    %4123 = vmatpush.bf16.msra.mxu0 0
    %4124 = vmatpush.bf16.msra.mxu0 0
    %4125 = vmatpush.bf16.msra.mxu0 0
    %4126 = vmatpush.bf16.msra.mxu0 0
    %4127 = vmatpush.bf16.msra.mxu0 0
    %4128 = vmatpush.bf16.msra.mxu0 0
    %4129 = vmatpush.bf16.msra.mxu0 %v4059
    %4130 = vmatpush.bf16.msra.mxu0 %v4051
    %4131 = vmatmul.bf16.gmra.mxu0 %v4083
    %v4132 = vpop.f32.mrf.mxu0
    %v4133 = vadd.f32 0.0, %v4132
    %v4134 = vpop.f32.mrf.mxu0
    %v4135 = vadd.f32 0.0, %v4134
    %4136 = vmatmul.bf16.gmra.mxu0 %v4086
    %v4137 = vpop.f32.mrf.mxu0
    %v4138 = vadd.f32 0.0, %v4137
    %v4139 = vpop.f32.mrf.mxu0
    %v4140 = vadd.f32 0.0, %v4139
    %4141 = vmatmul.bf16.gmra.mxu0 %v4089
    %v4142 = vpop.f32.mrf.mxu0
    %v4143 = vadd.f32 0.0, %v4142
    %v4144 = vpop.f32.mrf.mxu0
    %v4145 = vadd.f32 0.0, %v4144
    %4146 = vmatmul.bf16.gmra.mxu0 %v4092
    %v4147 = vpop.f32.mrf.mxu0
    %v4148 = vadd.f32 0.0, %v4147
    %v4149 = vpop.f32.mrf.mxu0
    %v4150 = vadd.f32 0.0, %v4149
    %4151 = vdwg.mxu0
    %4152 = vmatpush.bf16.msra.mxu0 0
    %4153 = vmatpush.bf16.msra.mxu0 0
    %4154 = vmatpush.bf16.msra.mxu0 0
    %4155 = vmatpush.bf16.msra.mxu0 0
    %4156 = vmatpush.bf16.msra.mxu0 0
    %4157 = vmatpush.bf16.msra.mxu0 0
    %4158 = vmatpush.bf16.msra.mxu0 %v4060
    %4159 = vmatpush.bf16.msra.mxu0 %v4052
    %4160 = vmatmul.bf16.gmra.mxu0 %v4083
    %v4161 = vpop.f32.mrf.mxu0
    %v4162 = vadd.f32 0.0, %v4161
    %v4163 = vpop.f32.mrf.mxu0
    %v4164 = vadd.f32 0.0, %v4163
    %4165 = vmatmul.bf16.gmra.mxu0 %v4086
    %v4166 = vpop.f32.mrf.mxu0
    %v4167 = vadd.f32 0.0, %v4166
    %v4168 = vpop.f32.mrf.mxu0
    %v4169 = vadd.f32 0.0, %v4168
    %4170 = vmatmul.bf16.gmra.mxu0 %v4089
    %v4171 = vpop.f32.mrf.mxu0
    %v4172 = vadd.f32 0.0, %v4171
    %v4173 = vpop.f32.mrf.mxu0
    %v4174 = vadd.f32 0.0, %v4173
    %4175 = vmatmul.bf16.gmra.mxu0 %v4092
    %v4176 = vpop.f32.mrf.mxu0
    %v4177 = vadd.f32 0.0, %v4176
    %v4178 = vpop.f32.mrf.mxu0
    %v4179 = vadd.f32 0.0, %v4178
    %4180 = vdwg.mxu0
    %4181 = vmatpush.bf16.msra.mxu0 0
    %4182 = vmatpush.bf16.msra.mxu0 0
    %4183 = vmatpush.bf16.msra.mxu0 0
    %4184 = vmatpush.bf16.msra.mxu0 0
    %4185 = vmatpush.bf16.msra.mxu0 0
    %4186 = vmatpush.bf16.msra.mxu0 0
    %4187 = vmatpush.bf16.msra.mxu0 %v4061
    %4188 = vmatpush.bf16.msra.mxu0 %v4053
    %4189 = vmatmul.bf16.gmra.mxu0 %v4083
    %v4190 = vpop.f32.mrf.mxu0
    %v4191 = vadd.f32 0.0, %v4190
    %v4192 = vpop.f32.mrf.mxu0
    %v4193 = vadd.f32 0.0, %v4192
    %4194 = vmatmul.bf16.gmra.mxu0 %v4086
    %v4195 = vpop.f32.mrf.mxu0
    %v4196 = vadd.f32 0.0, %v4195
    %v4197 = vpop.f32.mrf.mxu0
    %v4198 = vadd.f32 0.0, %v4197
    %4199 = vmatmul.bf16.gmra.mxu0 %v4089
    %v4200 = vpop.f32.mrf.mxu0
    %v4201 = vadd.f32 0.0, %v4200
    %v4202 = vpop.f32.mrf.mxu0
    %v4203 = vadd.f32 0.0, %v4202
    %4204 = vmatmul.bf16.gmra.mxu0 %v4092
    %v4205 = vpop.f32.mrf.mxu0
    %v4206 = vadd.f32 0.0, %v4205
    %v4207 = vpop.f32.mrf.mxu0
    %v4208 = vadd.f32 0.0, %v4207
    %4209 = vdwg.mxu0
    %4210 = vmatpush.bf16.msra.mxu0 0
    %4211 = vmatpush.bf16.msra.mxu0 0
    %4212 = vmatpush.bf16.msra.mxu0 0
    %4213 = vmatpush.bf16.msra.mxu0 0
    %4214 = vmatpush.bf16.msra.mxu0 0
    %4215 = vmatpush.bf16.msra.mxu0 0
    %4216 = vmatpush.bf16.msra.mxu0 %v4062
    %4217 = vmatpush.bf16.msra.mxu0 %v4054
    %4218 = vmatmul.bf16.gmra.mxu0 %v4083
    %v4219 = vpop.f32.mrf.mxu0
    %v4220 = vadd.f32 0.0, %v4219
    %v4221 = vpop.f32.mrf.mxu0
    %v4222 = vadd.f32 0.0, %v4221
    %4223 = vmatmul.bf16.gmra.mxu0 %v4086
    %v4224 = vpop.f32.mrf.mxu0
    %v4225 = vadd.f32 0.0, %v4224
    %v4226 = vpop.f32.mrf.mxu0
    %v4227 = vadd.f32 0.0, %v4226
    %4228 = vmatmul.bf16.gmra.mxu0 %v4089
    %v4229 = vpop.f32.mrf.mxu0
    %v4230 = vadd.f32 0.0, %v4229
    %v4231 = vpop.f32.mrf.mxu0
    %v4232 = vadd.f32 0.0, %v4231
    %4233 = vmatmul.bf16.gmra.mxu0 %v4092
    %v4234 = vpop.f32.mrf.mxu0
    %v4235 = vadd.f32 0.0, %v4234
    %v4236 = vpop.f32.mrf.mxu0
    %v4237 = vadd.f32 0.0, %v4236
    %4238 = vdwg.mxu0
    %4239 = vmatpush.bf16.msra.mxu0 0
    %4240 = vmatpush.bf16.msra.mxu0 0
    %4241 = vmatpush.bf16.msra.mxu0 0
    %4242 = vmatpush.bf16.msra.mxu0 0
    %4243 = vmatpush.bf16.msra.mxu0 0
    %4244 = vmatpush.bf16.msra.mxu0 0
    %4245 = vmatpush.bf16.msra.mxu0 %v4063
    %4246 = vmatpush.bf16.msra.mxu0 %v4055
    %4247 = vmatmul.bf16.gmra.mxu0 %v4083
    %v4248 = vpop.f32.mrf.mxu0
    %v4249 = vadd.f32 0.0, %v4248
    %v4250 = vpop.f32.mrf.mxu0
    %v4251 = vadd.f32 0.0, %v4250
    %4252 = vmatmul.bf16.gmra.mxu0 %v4086
    %v4253 = vpop.f32.mrf.mxu0
    %v4254 = vadd.f32 0.0, %v4253
    %v4255 = vpop.f32.mrf.mxu0
    %v4256 = vadd.f32 0.0, %v4255
    %4257 = vmatmul.bf16.gmra.mxu0 %v4089
    %v4258 = vpop.f32.mrf.mxu0
    %v4259 = vadd.f32 0.0, %v4258
    %v4260 = vpop.f32.mrf.mxu0
    %v4261 = vadd.f32 0.0, %v4260
    %4262 = vmatmul.bf16.gmra.mxu0 %v4092
    %v4263 = vpop.f32.mrf.mxu0
    %v4264 = vadd.f32 0.0, %v4263
    %v4265 = vpop.f32.mrf.mxu0
    %v4266 = vadd.f32 0.0, %v4265
    %4267 = vdwg.mxu0
    %4268 = vmatpush.bf16.msra.mxu0 0
    %4269 = vmatpush.bf16.msra.mxu0 0
    %4270 = vmatpush.bf16.msra.mxu0 0
    %4271 = vmatpush.bf16.msra.mxu0 0
    %4272 = vmatpush.bf16.msra.mxu0 0
    %4273 = vmatpush.bf16.msra.mxu0 0
    %4274 = vmatpush.bf16.msra.mxu0 %v4064
    %4275 = vmatpush.bf16.msra.mxu0 %v4056
    %4276 = vmatmul.bf16.gmra.mxu0 %v4083
    %v4277 = vpop.f32.mrf.mxu0
    %v4278 = vadd.f32 0.0, %v4277
    %v4279 = vpop.f32.mrf.mxu0
    %v4280 = vadd.f32 0.0, %v4279
    %4281 = vmatmul.bf16.gmra.mxu0 %v4086
    %v4282 = vpop.f32.mrf.mxu0
    %v4283 = vadd.f32 0.0, %v4282
    %v4284 = vpop.f32.mrf.mxu0
    %v4285 = vadd.f32 0.0, %v4284
    %4286 = vmatmul.bf16.gmra.mxu0 %v4089
    %v4287 = vpop.f32.mrf.mxu0
    %v4288 = vadd.f32 0.0, %v4287
    %v4289 = vpop.f32.mrf.mxu0
    %v4290 = vadd.f32 0.0, %v4289
    %4291 = vmatmul.bf16.gmra.mxu0 %v4092
    %v4292 = vpop.f32.mrf.mxu0
    %v4293 = vadd.f32 0.0, %v4292
    %v4294 = vpop.f32.mrf.mxu0
    %v4295 = vadd.f32 0.0, %v4294
    %4296 = vdwg.mxu0
    %4297 = vmatpush.bf16.msra.mxu0 0
    %4298 = vmatpush.bf16.msra.mxu0 0
    %4299 = vmatpush.bf16.msra.mxu0 0
    %4300 = vmatpush.bf16.msra.mxu0 0
    %4301 = vmatpush.bf16.msra.mxu0 0
    %4302 = vmatpush.bf16.msra.mxu0 0
    %4303 = vmatpush.bf16.msra.mxu0 %v4065
    %4304 = vmatpush.bf16.msra.mxu0 %v4057
    %4305 = vmatmul.bf16.gmra.mxu0 %v4083
    %v4306 = vpop.f32.mrf.mxu0
    %v4307 = vadd.f32 0.0, %v4306
    %v4308 = vpop.f32.mrf.mxu0
    %v4309 = vadd.f32 0.0, %v4308
    %4310 = vmatmul.bf16.gmra.mxu0 %v4086
    %v4311 = vpop.f32.mrf.mxu0
    %v4312 = vadd.f32 0.0, %v4311
    %v4313 = vpop.f32.mrf.mxu0
    %v4314 = vadd.f32 0.0, %v4313
    %4315 = vmatmul.bf16.gmra.mxu0 %v4089
    %v4316 = vpop.f32.mrf.mxu0
    %v4317 = vadd.f32 0.0, %v4316
    %v4318 = vpop.f32.mrf.mxu0
    %v4319 = vadd.f32 0.0, %v4318
    %4320 = vmatmul.bf16.gmra.mxu0 %v4092
    %v4321 = vpop.f32.mrf.mxu0
    %v4322 = vadd.f32 0.0, %v4321
    %v4323 = vpop.f32.mrf.mxu0
    %v4324 = vadd.f32 0.0, %v4323
    %4325 = vdwg.mxu0
    %v4326 = vadd.f32 %v3902, %v4104
    %v4327 = vadd.f32 %v3903, %v4133
    %v4328 = vadd.f32 %v3904, %v4162
    %v4329 = vadd.f32 %v3905, %v4191
    %v4330 = vadd.f32 %v3906, %v4220
    %v4331 = vadd.f32 %v3907, %v4249
    %v4332 = vadd.f32 %v3908, %v4278
    %v4333 = vadd.f32 %v3909, %v4307
    %v4334 = vadd.f32 %v3910, %v4106
    %v4335 = vadd.f32 %v3911, %v4135
    %v4336 = vadd.f32 %v3912, %v4164
    %v4337 = vadd.f32 %v3913, %v4193
    %v4338 = vadd.f32 %v3914, %v4222
    %v4339 = vadd.f32 %v3915, %v4251
    %v4340 = vadd.f32 %v3916, %v4280
    %v4341 = vadd.f32 %v3917, %v4309
    %v4342 = vadd.f32 %v3918, %v4109
    %v4343 = vadd.f32 %v3919, %v4138
    %v4344 = vadd.f32 %v3920, %v4167
    %v4345 = vadd.f32 %v3921, %v4196
    %v4346 = vadd.f32 %v3922, %v4225
    %v4347 = vadd.f32 %v3923, %v4254
    %v4348 = vadd.f32 %v3924, %v4283
    %v4349 = vadd.f32 %v3925, %v4312
    %v4350 = vadd.f32 %v3926, %v4111
    %v4351 = vadd.f32 %v3927, %v4140
    %v4352 = vadd.f32 %v3928, %v4169
    %v4353 = vadd.f32 %v3929, %v4198
    %v4354 = vadd.f32 %v3930, %v4227
    %v4355 = vadd.f32 %v3931, %v4256
    %v4356 = vadd.f32 %v3932, %v4285
    %v4357 = vadd.f32 %v3933, %v4314
    %v4358 = vadd.f32 %v3934, %v4114
    %v4359 = vadd.f32 %v3935, %v4143
    %v4360 = vadd.f32 %v3936, %v4172
    %v4361 = vadd.f32 %v3937, %v4201
    %v4362 = vadd.f32 %v3938, %v4230
    %v4363 = vadd.f32 %v3939, %v4259
    %v4364 = vadd.f32 %v3940, %v4288
    %v4365 = vadd.f32 %v3941, %v4317
    %v4366 = vadd.f32 %v3942, %v4116
    %v4367 = vadd.f32 %v3943, %v4145
    %v4368 = vadd.f32 %v3944, %v4174
    %v4369 = vadd.f32 %v3945, %v4203
    %v4370 = vadd.f32 %v3946, %v4232
    %v4371 = vadd.f32 %v3947, %v4261
    %v4372 = vadd.f32 %v3948, %v4290
    %v4373 = vadd.f32 %v3949, %v4319
    %v4374 = vadd.f32 %v3950, %v4119
    %v4375 = vadd.f32 %v3951, %v4148
    %v4376 = vadd.f32 %v3952, %v4177
    %v4377 = vadd.f32 %v3953, %v4206
    %v4378 = vadd.f32 %v3954, %v4235
    %v4379 = vadd.f32 %v3955, %v4264
    %v4380 = vadd.f32 %v3956, %v4293
    %v4381 = vadd.f32 %v3957, %v4322
    %v4382 = vadd.f32 %v3958, %v4121
    %v4383 = vadd.f32 %v3959, %v4150
    %v4384 = vadd.f32 %v3960, %v4179
    %v4385 = vadd.f32 %v3961, %v4208
    %v4386 = vadd.f32 %v3962, %v4237
    %v4387 = vadd.f32 %v3963, %v4266
    %v4388 = vadd.f32 %v3964, %v4295
    %v4389 = vadd.f32 %v3965, %v4324
    %v4390 = vld [vmem:[#allocation2 + $0x380] sm:$0xff]
    %v4391 = vld [vmem:[#allocation2 + $0x388] sm:$0xff]
    %v4392 = vld [vmem:[#allocation2 + $0x390] sm:$0xff]
    %v4393 = vld [vmem:[#allocation2 + $0x398] sm:$0xff]
    %v4394 = vld [vmem:[#allocation2 + $0x3a0] sm:$0xff]
    %v4395 = vld [vmem:[#allocation2 + $0x3a8] sm:$0xff]
    %v4396 = vld [vmem:[#allocation2 + $0x3b0] sm:$0xff]
    %v4397 = vld [vmem:[#allocation2 + $0x3b8] sm:$0xff]
    %v4398 = vld [vmem:[#allocation2 + $0x3c0] sm:$0xff]
    %v4399 = vld [vmem:[#allocation2 + $0x3c8] sm:$0xff]
    %v4400 = vld [vmem:[#allocation2 + $0x3d0] sm:$0xff]
    %v4401 = vld [vmem:[#allocation2 + $0x3d8] sm:$0xff]
    %v4402 = vld [vmem:[#allocation2 + $0x3e0] sm:$0xff]
    %v4403 = vld [vmem:[#allocation2 + $0x3e8] sm:$0xff]
    %v4404 = vld [vmem:[#allocation2 + $0x3f0] sm:$0xff]
    %v4405 = vld [vmem:[#allocation2 + $0x3f8] sm:$0xff]
    %v4414 = vunpack.c.l.b16 %v1494
    %v4415 = vunpack.c.l.b16 %v1495
    %v4416 = vunpack.c.l.b16 %v1496
    %v4417 = vunpack.c.l.b16 %v1497
    %v4418 = vunpack.c.l.b16 %v1498
    %v4419 = vunpack.c.l.b16 %v1499
    %v4420 = vunpack.c.l.b16 %v1500
    %v4421 = vunpack.c.l.b16 %v1501
    %v4422 = vpack.c.b16 %v4415, %v4414
    %v4423 = vpack.c.b16 %v4417, %v4416
    %v4424 = vpack.c.b16 %v4419, %v4418
    %v4425 = vpack.c.b16 %v4421, %v4420
    %v4442 = vunpack.c.l.b16 %v4390
    %v4443 = vunpack.c.h.b16 %v4390
    %v4444 = vunpack.c.l.b16 %v4391
    %v4445 = vunpack.c.h.b16 %v4391
    %v4446 = vunpack.c.l.b16 %v4392
    %v4447 = vunpack.c.h.b16 %v4392
    %v4448 = vunpack.c.l.b16 %v4393
    %v4449 = vunpack.c.h.b16 %v4393
    %v4450 = vunpack.c.l.b16 %v4394
    %v4451 = vunpack.c.h.b16 %v4394
    %v4452 = vunpack.c.l.b16 %v4395
    %v4453 = vunpack.c.h.b16 %v4395
    %v4454 = vunpack.c.l.b16 %v4396
    %v4455 = vunpack.c.h.b16 %v4396
    %v4456 = vunpack.c.l.b16 %v4397
    %v4457 = vunpack.c.h.b16 %v4397
    %v4458 = vunpack.c.l.b16 %v4398
    %v4459 = vunpack.c.h.b16 %v4398
    %v4460 = vunpack.c.l.b16 %v4399
    %v4461 = vunpack.c.h.b16 %v4399
    %v4462 = vunpack.c.l.b16 %v4400
    %v4463 = vunpack.c.h.b16 %v4400
    %v4464 = vunpack.c.l.b16 %v4401
    %v4465 = vunpack.c.h.b16 %v4401
    %v4466 = vunpack.c.l.b16 %v4402
    %v4467 = vunpack.c.h.b16 %v4402
    %v4468 = vunpack.c.l.b16 %v4403
    %v4469 = vunpack.c.h.b16 %v4403
    %v4470 = vunpack.c.l.b16 %v4404
    %v4471 = vunpack.c.h.b16 %v4404
    %v4472 = vunpack.c.l.b16 %v4405
    %v4473 = vunpack.c.h.b16 %v4405
    %v4474 = vpack.c.b16 %v4450, %v4442
    %v4475 = vpack.c.b16 %v4451, %v4443
    %v4476 = vpack.c.b16 %v4452, %v4444
    %v4477 = vpack.c.b16 %v4453, %v4445
    %v4478 = vpack.c.b16 %v4454, %v4446
    %v4479 = vpack.c.b16 %v4455, %v4447
    %v4480 = vpack.c.b16 %v4456, %v4448
    %v4481 = vpack.c.b16 %v4457, %v4449
    %v4482 = vpack.c.b16 %v4466, %v4458
    %v4483 = vpack.c.b16 %v4467, %v4459
    %v4484 = vpack.c.b16 %v4468, %v4460
    %v4485 = vpack.c.b16 %v4469, %v4461
    %v4486 = vpack.c.b16 %v4470, %v4462
    %v4487 = vpack.c.b16 %v4471, %v4463
    %v4488 = vpack.c.b16 %v4472, %v4464
    %v4489 = vpack.c.b16 %v4473, %v4465
    %v4507 = vsel %vm100, %v4422, 0
    %v4510 = vsel %vm100, %v4423, 0
    %v4513 = vsel %vm100, %v4424, 0
    %v4516 = vsel %vm100, %v4425, 0
    %4518 = vmatpush.bf16.msra.mxu0 0
    %4519 = vmatpush.bf16.msra.mxu0 0
    %4520 = vmatpush.bf16.msra.mxu0 0
    %4521 = vmatpush.bf16.msra.mxu0 0
    %4522 = vmatpush.bf16.msra.mxu0 0
    %4523 = vmatpush.bf16.msra.mxu0 0
    %4524 = vmatpush.bf16.msra.mxu0 %v4482
    %4525 = vmatpush.bf16.msra.mxu0 %v4474
    %4526 = vmatmul.bf16.gmra.mxu0 %v4507
    %v4527 = vpop.f32.mrf.mxu0
    %v4528 = vadd.f32 0.0, %v4527
    %v4529 = vpop.f32.mrf.mxu0
    %v4530 = vadd.f32 0.0, %v4529
    %4531 = vmatmul.bf16.gmra.mxu0 %v4510
    %v4532 = vpop.f32.mrf.mxu0
    %v4533 = vadd.f32 0.0, %v4532
    %v4534 = vpop.f32.mrf.mxu0
    %v4535 = vadd.f32 0.0, %v4534
    %4536 = vmatmul.bf16.gmra.mxu0 %v4513
    %v4537 = vpop.f32.mrf.mxu0
    %v4538 = vadd.f32 0.0, %v4537
    %v4539 = vpop.f32.mrf.mxu0
    %v4540 = vadd.f32 0.0, %v4539
    %4541 = vmatmul.bf16.gmra.mxu0 %v4516
    %v4542 = vpop.f32.mrf.mxu0
    %v4543 = vadd.f32 0.0, %v4542
    %v4544 = vpop.f32.mrf.mxu0
    %v4545 = vadd.f32 0.0, %v4544
    %4546 = vdwg.mxu0
    %4547 = vmatpush.bf16.msra.mxu0 0
    %4548 = vmatpush.bf16.msra.mxu0 0
    %4549 = vmatpush.bf16.msra.mxu0 0
    %4550 = vmatpush.bf16.msra.mxu0 0
    %4551 = vmatpush.bf16.msra.mxu0 0
    %4552 = vmatpush.bf16.msra.mxu0 0
    %4553 = vmatpush.bf16.msra.mxu0 %v4483
    %4554 = vmatpush.bf16.msra.mxu0 %v4475
    %4555 = vmatmul.bf16.gmra.mxu0 %v4507
    %v4556 = vpop.f32.mrf.mxu0
    %v4557 = vadd.f32 0.0, %v4556
    %v4558 = vpop.f32.mrf.mxu0
    %v4559 = vadd.f32 0.0, %v4558
    %4560 = vmatmul.bf16.gmra.mxu0 %v4510
    %v4561 = vpop.f32.mrf.mxu0
    %v4562 = vadd.f32 0.0, %v4561
    %v4563 = vpop.f32.mrf.mxu0
    %v4564 = vadd.f32 0.0, %v4563
    %4565 = vmatmul.bf16.gmra.mxu0 %v4513
    %v4566 = vpop.f32.mrf.mxu0
    %v4567 = vadd.f32 0.0, %v4566
    %v4568 = vpop.f32.mrf.mxu0
    %v4569 = vadd.f32 0.0, %v4568
    %4570 = vmatmul.bf16.gmra.mxu0 %v4516
    %v4571 = vpop.f32.mrf.mxu0
    %v4572 = vadd.f32 0.0, %v4571
    %v4573 = vpop.f32.mrf.mxu0
    %v4574 = vadd.f32 0.0, %v4573
    %4575 = vdwg.mxu0
    %4576 = vmatpush.bf16.msra.mxu0 0
    %4577 = vmatpush.bf16.msra.mxu0 0
    %4578 = vmatpush.bf16.msra.mxu0 0
    %4579 = vmatpush.bf16.msra.mxu0 0
    %4580 = vmatpush.bf16.msra.mxu0 0
    %4581 = vmatpush.bf16.msra.mxu0 0
    %4582 = vmatpush.bf16.msra.mxu0 %v4484
    %4583 = vmatpush.bf16.msra.mxu0 %v4476
    %4584 = vmatmul.bf16.gmra.mxu0 %v4507
    %v4585 = vpop.f32.mrf.mxu0
    %v4586 = vadd.f32 0.0, %v4585
    %v4587 = vpop.f32.mrf.mxu0
    %v4588 = vadd.f32 0.0, %v4587
    %4589 = vmatmul.bf16.gmra.mxu0 %v4510
    %v4590 = vpop.f32.mrf.mxu0
    %v4591 = vadd.f32 0.0, %v4590
    %v4592 = vpop.f32.mrf.mxu0
    %v4593 = vadd.f32 0.0, %v4592
    %4594 = vmatmul.bf16.gmra.mxu0 %v4513
    %v4595 = vpop.f32.mrf.mxu0
    %v4596 = vadd.f32 0.0, %v4595
    %v4597 = vpop.f32.mrf.mxu0
    %v4598 = vadd.f32 0.0, %v4597
    %4599 = vmatmul.bf16.gmra.mxu0 %v4516
    %v4600 = vpop.f32.mrf.mxu0
    %v4601 = vadd.f32 0.0, %v4600
    %v4602 = vpop.f32.mrf.mxu0
    %v4603 = vadd.f32 0.0, %v4602
    %4604 = vdwg.mxu0
    %4605 = vmatpush.bf16.msra.mxu0 0
    %4606 = vmatpush.bf16.msra.mxu0 0
    %4607 = vmatpush.bf16.msra.mxu0 0
    %4608 = vmatpush.bf16.msra.mxu0 0
    %4609 = vmatpush.bf16.msra.mxu0 0
    %4610 = vmatpush.bf16.msra.mxu0 0
    %4611 = vmatpush.bf16.msra.mxu0 %v4485
    %4612 = vmatpush.bf16.msra.mxu0 %v4477
    %4613 = vmatmul.bf16.gmra.mxu0 %v4507
    %v4614 = vpop.f32.mrf.mxu0
    %v4615 = vadd.f32 0.0, %v4614
    %v4616 = vpop.f32.mrf.mxu0
    %v4617 = vadd.f32 0.0, %v4616
    %4618 = vmatmul.bf16.gmra.mxu0 %v4510
    %v4619 = vpop.f32.mrf.mxu0
    %v4620 = vadd.f32 0.0, %v4619
    %v4621 = vpop.f32.mrf.mxu0
    %v4622 = vadd.f32 0.0, %v4621
    %4623 = vmatmul.bf16.gmra.mxu0 %v4513
    %v4624 = vpop.f32.mrf.mxu0
    %v4625 = vadd.f32 0.0, %v4624
    %v4626 = vpop.f32.mrf.mxu0
    %v4627 = vadd.f32 0.0, %v4626
    %4628 = vmatmul.bf16.gmra.mxu0 %v4516
    %v4629 = vpop.f32.mrf.mxu0
    %v4630 = vadd.f32 0.0, %v4629
    %v4631 = vpop.f32.mrf.mxu0
    %v4632 = vadd.f32 0.0, %v4631
    %4633 = vdwg.mxu0
    %4634 = vmatpush.bf16.msra.mxu0 0
    %4635 = vmatpush.bf16.msra.mxu0 0
    %4636 = vmatpush.bf16.msra.mxu0 0
    %4637 = vmatpush.bf16.msra.mxu0 0
    %4638 = vmatpush.bf16.msra.mxu0 0
    %4639 = vmatpush.bf16.msra.mxu0 0
    %4640 = vmatpush.bf16.msra.mxu0 %v4486
    %4641 = vmatpush.bf16.msra.mxu0 %v4478
    %4642 = vmatmul.bf16.gmra.mxu0 %v4507
    %v4643 = vpop.f32.mrf.mxu0
    %v4644 = vadd.f32 0.0, %v4643
    %v4645 = vpop.f32.mrf.mxu0
    %v4646 = vadd.f32 0.0, %v4645
    %4647 = vmatmul.bf16.gmra.mxu0 %v4510
    %v4648 = vpop.f32.mrf.mxu0
    %v4649 = vadd.f32 0.0, %v4648
    %v4650 = vpop.f32.mrf.mxu0
    %v4651 = vadd.f32 0.0, %v4650
    %4652 = vmatmul.bf16.gmra.mxu0 %v4513
    %v4653 = vpop.f32.mrf.mxu0
    %v4654 = vadd.f32 0.0, %v4653
    %v4655 = vpop.f32.mrf.mxu0
    %v4656 = vadd.f32 0.0, %v4655
    %4657 = vmatmul.bf16.gmra.mxu0 %v4516
    %v4658 = vpop.f32.mrf.mxu0
    %v4659 = vadd.f32 0.0, %v4658
    %v4660 = vpop.f32.mrf.mxu0
    %v4661 = vadd.f32 0.0, %v4660
    %4662 = vdwg.mxu0
    %4663 = vmatpush.bf16.msra.mxu0 0
    %4664 = vmatpush.bf16.msra.mxu0 0
    %4665 = vmatpush.bf16.msra.mxu0 0
    %4666 = vmatpush.bf16.msra.mxu0 0
    %4667 = vmatpush.bf16.msra.mxu0 0
    %4668 = vmatpush.bf16.msra.mxu0 0
    %4669 = vmatpush.bf16.msra.mxu0 %v4487
    %4670 = vmatpush.bf16.msra.mxu0 %v4479
    %4671 = vmatmul.bf16.gmra.mxu0 %v4507
    %v4672 = vpop.f32.mrf.mxu0
    %v4673 = vadd.f32 0.0, %v4672
    %v4674 = vpop.f32.mrf.mxu0
    %v4675 = vadd.f32 0.0, %v4674
    %4676 = vmatmul.bf16.gmra.mxu0 %v4510
    %v4677 = vpop.f32.mrf.mxu0
    %v4678 = vadd.f32 0.0, %v4677
    %v4679 = vpop.f32.mrf.mxu0
    %v4680 = vadd.f32 0.0, %v4679
    %4681 = vmatmul.bf16.gmra.mxu0 %v4513
    %v4682 = vpop.f32.mrf.mxu0
    %v4683 = vadd.f32 0.0, %v4682
    %v4684 = vpop.f32.mrf.mxu0
    %v4685 = vadd.f32 0.0, %v4684
    %4686 = vmatmul.bf16.gmra.mxu0 %v4516
    %v4687 = vpop.f32.mrf.mxu0
    %v4688 = vadd.f32 0.0, %v4687
    %v4689 = vpop.f32.mrf.mxu0
    %v4690 = vadd.f32 0.0, %v4689
    %4691 = vdwg.mxu0
    %4692 = vmatpush.bf16.msra.mxu0 0
    %4693 = vmatpush.bf16.msra.mxu0 0
    %4694 = vmatpush.bf16.msra.mxu0 0
    %4695 = vmatpush.bf16.msra.mxu0 0
    %4696 = vmatpush.bf16.msra.mxu0 0
    %4697 = vmatpush.bf16.msra.mxu0 0
    %4698 = vmatpush.bf16.msra.mxu0 %v4488
    %4699 = vmatpush.bf16.msra.mxu0 %v4480
    %4700 = vmatmul.bf16.gmra.mxu0 %v4507
    %v4701 = vpop.f32.mrf.mxu0
    %v4702 = vadd.f32 0.0, %v4701
    %v4703 = vpop.f32.mrf.mxu0
    %v4704 = vadd.f32 0.0, %v4703
    %4705 = vmatmul.bf16.gmra.mxu0 %v4510
    %v4706 = vpop.f32.mrf.mxu0
    %v4707 = vadd.f32 0.0, %v4706
    %v4708 = vpop.f32.mrf.mxu0
    %v4709 = vadd.f32 0.0, %v4708
    %4710 = vmatmul.bf16.gmra.mxu0 %v4513
    %v4711 = vpop.f32.mrf.mxu0
    %v4712 = vadd.f32 0.0, %v4711
    %v4713 = vpop.f32.mrf.mxu0
    %v4714 = vadd.f32 0.0, %v4713
    %4715 = vmatmul.bf16.gmra.mxu0 %v4516
    %v4716 = vpop.f32.mrf.mxu0
    %v4717 = vadd.f32 0.0, %v4716
    %v4718 = vpop.f32.mrf.mxu0
    %v4719 = vadd.f32 0.0, %v4718
    %4720 = vdwg.mxu0
    %4721 = vmatpush.bf16.msra.mxu0 0
    %4722 = vmatpush.bf16.msra.mxu0 0
    %4723 = vmatpush.bf16.msra.mxu0 0
    %4724 = vmatpush.bf16.msra.mxu0 0
    %4725 = vmatpush.bf16.msra.mxu0 0
    %4726 = vmatpush.bf16.msra.mxu0 0
    %4727 = vmatpush.bf16.msra.mxu0 %v4489
    %4728 = vmatpush.bf16.msra.mxu0 %v4481
    %4729 = vmatmul.bf16.gmra.mxu0 %v4507
    %v4730 = vpop.f32.mrf.mxu0
    %v4731 = vadd.f32 0.0, %v4730
    %v4732 = vpop.f32.mrf.mxu0
    %v4733 = vadd.f32 0.0, %v4732
    %4734 = vmatmul.bf16.gmra.mxu0 %v4510
    %v4735 = vpop.f32.mrf.mxu0
    %v4736 = vadd.f32 0.0, %v4735
    %v4737 = vpop.f32.mrf.mxu0
    %v4738 = vadd.f32 0.0, %v4737
    %4739 = vmatmul.bf16.gmra.mxu0 %v4513
    %v4740 = vpop.f32.mrf.mxu0
    %v4741 = vadd.f32 0.0, %v4740
    %v4742 = vpop.f32.mrf.mxu0
    %v4743 = vadd.f32 0.0, %v4742
    %4744 = vmatmul.bf16.gmra.mxu0 %v4516
    %v4745 = vpop.f32.mrf.mxu0
    %v4746 = vadd.f32 0.0, %v4745
    %v4747 = vpop.f32.mrf.mxu0
    %v4748 = vadd.f32 0.0, %v4747
    %4749 = vdwg.mxu0
    %v4750 = vadd.f32 %v4326, %v4528
    %v4751 = vadd.f32 %v4327, %v4557
    %v4752 = vadd.f32 %v4328, %v4586
    %v4753 = vadd.f32 %v4329, %v4615
    %v4754 = vadd.f32 %v4330, %v4644
    %v4755 = vadd.f32 %v4331, %v4673
    %v4756 = vadd.f32 %v4332, %v4702
    %v4757 = vadd.f32 %v4333, %v4731
    %v4758 = vadd.f32 %v4334, %v4530
    %v4759 = vadd.f32 %v4335, %v4559
    %v4760 = vadd.f32 %v4336, %v4588
    %v4761 = vadd.f32 %v4337, %v4617
    %v4762 = vadd.f32 %v4338, %v4646
    %v4763 = vadd.f32 %v4339, %v4675
    %v4764 = vadd.f32 %v4340, %v4704
    %v4765 = vadd.f32 %v4341, %v4733
    %v4766 = vadd.f32 %v4342, %v4533
    %v4767 = vadd.f32 %v4343, %v4562
    %v4768 = vadd.f32 %v4344, %v4591
    %v4769 = vadd.f32 %v4345, %v4620
    %v4770 = vadd.f32 %v4346, %v4649
    %v4771 = vadd.f32 %v4347, %v4678
    %v4772 = vadd.f32 %v4348, %v4707
    %v4773 = vadd.f32 %v4349, %v4736
    %v4774 = vadd.f32 %v4350, %v4535
    %v4775 = vadd.f32 %v4351, %v4564
    %v4776 = vadd.f32 %v4352, %v4593
    %v4777 = vadd.f32 %v4353, %v4622
    %v4778 = vadd.f32 %v4354, %v4651
    %v4779 = vadd.f32 %v4355, %v4680
    %v4780 = vadd.f32 %v4356, %v4709
    %v4781 = vadd.f32 %v4357, %v4738
    %v4782 = vadd.f32 %v4358, %v4538
    %v4783 = vadd.f32 %v4359, %v4567
    %v4784 = vadd.f32 %v4360, %v4596
    %v4785 = vadd.f32 %v4361, %v4625
    %v4786 = vadd.f32 %v4362, %v4654
    %v4787 = vadd.f32 %v4363, %v4683
    %v4788 = vadd.f32 %v4364, %v4712
    %v4789 = vadd.f32 %v4365, %v4741
    %v4790 = vadd.f32 %v4366, %v4540
    %v4791 = vadd.f32 %v4367, %v4569
    %v4792 = vadd.f32 %v4368, %v4598
    %v4793 = vadd.f32 %v4369, %v4627
    %v4794 = vadd.f32 %v4370, %v4656
    %v4795 = vadd.f32 %v4371, %v4685
    %v4796 = vadd.f32 %v4372, %v4714
    %v4797 = vadd.f32 %v4373, %v4743
    %v4798 = vadd.f32 %v4374, %v4543
    %v4799 = vadd.f32 %v4375, %v4572
    %v4800 = vadd.f32 %v4376, %v4601
    %v4801 = vadd.f32 %v4377, %v4630
    %v4802 = vadd.f32 %v4378, %v4659
    %v4803 = vadd.f32 %v4379, %v4688
    %v4804 = vadd.f32 %v4380, %v4717
    %v4805 = vadd.f32 %v4381, %v4746
    %v4806 = vadd.f32 %v4382, %v4545
    %v4807 = vadd.f32 %v4383, %v4574
    %v4808 = vadd.f32 %v4384, %v4603
    %v4809 = vadd.f32 %v4385, %v4632
    %v4810 = vadd.f32 %v4386, %v4661
    %v4811 = vadd.f32 %v4387, %v4690
    %v4812 = vadd.f32 %v4388, %v4719
    %v4813 = vadd.f32 %v4389, %v4748
    %v4814 = vld [vmem:[#allocation2 + $0x400] sm:$0xff]
    %v4815 = vld [vmem:[#allocation2 + $0x408] sm:$0xff]
    %v4816 = vld [vmem:[#allocation2 + $0x410] sm:$0xff]
    %v4817 = vld [vmem:[#allocation2 + $0x418] sm:$0xff]
    %v4818 = vld [vmem:[#allocation2 + $0x420] sm:$0xff]
    %v4819 = vld [vmem:[#allocation2 + $0x428] sm:$0xff]
    %v4820 = vld [vmem:[#allocation2 + $0x430] sm:$0xff]
    %v4821 = vld [vmem:[#allocation2 + $0x438] sm:$0xff]
    %v4822 = vld [vmem:[#allocation2 + $0x440] sm:$0xff]
    %v4823 = vld [vmem:[#allocation2 + $0x448] sm:$0xff]
    %v4824 = vld [vmem:[#allocation2 + $0x450] sm:$0xff]
    %v4825 = vld [vmem:[#allocation2 + $0x458] sm:$0xff]
    %v4826 = vld [vmem:[#allocation2 + $0x460] sm:$0xff]
    %v4827 = vld [vmem:[#allocation2 + $0x468] sm:$0xff]
    %v4828 = vld [vmem:[#allocation2 + $0x470] sm:$0xff]
    %v4829 = vld [vmem:[#allocation2 + $0x478] sm:$0xff]
    %v4838 = vunpack.c.l.b16 %v1502
    %v4839 = vunpack.c.l.b16 %v1503
    %v4840 = vunpack.c.l.b16 %v1504
    %v4841 = vunpack.c.l.b16 %v1505
    %v4842 = vunpack.c.l.b16 %v1506
    %v4843 = vunpack.c.l.b16 %v1507
    %v4844 = vunpack.c.l.b16 %v1508
    %v4845 = vunpack.c.l.b16 %v1509
    %v4846 = vpack.c.b16 %v4839, %v4838
    %v4847 = vpack.c.b16 %v4841, %v4840
    %v4848 = vpack.c.b16 %v4843, %v4842
    %v4849 = vpack.c.b16 %v4845, %v4844
    %v4866 = vunpack.c.l.b16 %v4814
    %v4867 = vunpack.c.h.b16 %v4814
    %v4868 = vunpack.c.l.b16 %v4815
    %v4869 = vunpack.c.h.b16 %v4815
    %v4870 = vunpack.c.l.b16 %v4816
    %v4871 = vunpack.c.h.b16 %v4816
    %v4872 = vunpack.c.l.b16 %v4817
    %v4873 = vunpack.c.h.b16 %v4817
    %v4874 = vunpack.c.l.b16 %v4818
    %v4875 = vunpack.c.h.b16 %v4818
    %v4876 = vunpack.c.l.b16 %v4819
    %v4877 = vunpack.c.h.b16 %v4819
    %v4878 = vunpack.c.l.b16 %v4820
    %v4879 = vunpack.c.h.b16 %v4820
    %v4880 = vunpack.c.l.b16 %v4821
    %v4881 = vunpack.c.h.b16 %v4821
    %v4882 = vunpack.c.l.b16 %v4822
    %v4883 = vunpack.c.h.b16 %v4822
    %v4884 = vunpack.c.l.b16 %v4823
    %v4885 = vunpack.c.h.b16 %v4823
    %v4886 = vunpack.c.l.b16 %v4824
    %v4887 = vunpack.c.h.b16 %v4824
    %v4888 = vunpack.c.l.b16 %v4825
    %v4889 = vunpack.c.h.b16 %v4825
    %v4890 = vunpack.c.l.b16 %v4826
    %v4891 = vunpack.c.h.b16 %v4826
    %v4892 = vunpack.c.l.b16 %v4827
    %v4893 = vunpack.c.h.b16 %v4827
    %v4894 = vunpack.c.l.b16 %v4828
    %v4895 = vunpack.c.h.b16 %v4828
    %v4896 = vunpack.c.l.b16 %v4829
    %v4897 = vunpack.c.h.b16 %v4829
    %v4898 = vpack.c.b16 %v4874, %v4866
    %v4899 = vpack.c.b16 %v4875, %v4867
    %v4900 = vpack.c.b16 %v4876, %v4868
    %v4901 = vpack.c.b16 %v4877, %v4869
    %v4902 = vpack.c.b16 %v4878, %v4870
    %v4903 = vpack.c.b16 %v4879, %v4871
    %v4904 = vpack.c.b16 %v4880, %v4872
    %v4905 = vpack.c.b16 %v4881, %v4873
    %v4906 = vpack.c.b16 %v4890, %v4882
    %v4907 = vpack.c.b16 %v4891, %v4883
    %v4908 = vpack.c.b16 %v4892, %v4884
    %v4909 = vpack.c.b16 %v4893, %v4885
    %v4910 = vpack.c.b16 %v4894, %v4886
    %v4911 = vpack.c.b16 %v4895, %v4887
    %v4912 = vpack.c.b16 %v4896, %v4888
    %v4913 = vpack.c.b16 %v4897, %v4889
    %v4931 = vsel %vm100, %v4846, 0
    %v4934 = vsel %vm100, %v4847, 0
    %v4937 = vsel %vm100, %v4848, 0
    %v4940 = vsel %vm100, %v4849, 0
    %4942 = vmatpush.bf16.msra.mxu0 0
    %4943 = vmatpush.bf16.msra.mxu0 0
    %4944 = vmatpush.bf16.msra.mxu0 0
    %4945 = vmatpush.bf16.msra.mxu0 0
    %4946 = vmatpush.bf16.msra.mxu0 0
    %4947 = vmatpush.bf16.msra.mxu0 0
    %4948 = vmatpush.bf16.msra.mxu0 %v4906
    %4949 = vmatpush.bf16.msra.mxu0 %v4898
    %4950 = vmatmul.bf16.gmra.mxu0 %v4931
    %v4951 = vpop.f32.mrf.mxu0
    %v4952 = vadd.f32 0.0, %v4951
    %v4953 = vpop.f32.mrf.mxu0
    %v4954 = vadd.f32 0.0, %v4953
    %4955 = vmatmul.bf16.gmra.mxu0 %v4934
    %v4956 = vpop.f32.mrf.mxu0
    %v4957 = vadd.f32 0.0, %v4956
    %v4958 = vpop.f32.mrf.mxu0
    %v4959 = vadd.f32 0.0, %v4958
    %4960 = vmatmul.bf16.gmra.mxu0 %v4937
    %v4961 = vpop.f32.mrf.mxu0
    %v4962 = vadd.f32 0.0, %v4961
    %v4963 = vpop.f32.mrf.mxu0
    %v4964 = vadd.f32 0.0, %v4963
    %4965 = vmatmul.bf16.gmra.mxu0 %v4940
    %v4966 = vpop.f32.mrf.mxu0
    %v4967 = vadd.f32 0.0, %v4966
    %v4968 = vpop.f32.mrf.mxu0
    %v4969 = vadd.f32 0.0, %v4968
    %4970 = vdwg.mxu0
    %4971 = vmatpush.bf16.msra.mxu0 0
    %4972 = vmatpush.bf16.msra.mxu0 0
    %4973 = vmatpush.bf16.msra.mxu0 0
    %4974 = vmatpush.bf16.msra.mxu0 0
    %4975 = vmatpush.bf16.msra.mxu0 0
    %4976 = vmatpush.bf16.msra.mxu0 0
    %4977 = vmatpush.bf16.msra.mxu0 %v4907
    %4978 = vmatpush.bf16.msra.mxu0 %v4899
    %4979 = vmatmul.bf16.gmra.mxu0 %v4931
    %v4980 = vpop.f32.mrf.mxu0
    %v4981 = vadd.f32 0.0, %v4980
    %v4982 = vpop.f32.mrf.mxu0
    %v4983 = vadd.f32 0.0, %v4982
    %4984 = vmatmul.bf16.gmra.mxu0 %v4934
    %v4985 = vpop.f32.mrf.mxu0
    %v4986 = vadd.f32 0.0, %v4985
    %v4987 = vpop.f32.mrf.mxu0
    %v4988 = vadd.f32 0.0, %v4987
    %4989 = vmatmul.bf16.gmra.mxu0 %v4937
    %v4990 = vpop.f32.mrf.mxu0
    %v4991 = vadd.f32 0.0, %v4990
    %v4992 = vpop.f32.mrf.mxu0
    %v4993 = vadd.f32 0.0, %v4992
    %4994 = vmatmul.bf16.gmra.mxu0 %v4940
    %v4995 = vpop.f32.mrf.mxu0
    %v4996 = vadd.f32 0.0, %v4995
    %v4997 = vpop.f32.mrf.mxu0
    %v4998 = vadd.f32 0.0, %v4997
    %4999 = vdwg.mxu0
    %5000 = vmatpush.bf16.msra.mxu0 0
    %5001 = vmatpush.bf16.msra.mxu0 0
    %5002 = vmatpush.bf16.msra.mxu0 0
    %5003 = vmatpush.bf16.msra.mxu0 0
    %5004 = vmatpush.bf16.msra.mxu0 0
    %5005 = vmatpush.bf16.msra.mxu0 0
    %5006 = vmatpush.bf16.msra.mxu0 %v4908
    %5007 = vmatpush.bf16.msra.mxu0 %v4900
    %5008 = vmatmul.bf16.gmra.mxu0 %v4931
    %v5009 = vpop.f32.mrf.mxu0
    %v5010 = vadd.f32 0.0, %v5009
    %v5011 = vpop.f32.mrf.mxu0
    %v5012 = vadd.f32 0.0, %v5011
    %5013 = vmatmul.bf16.gmra.mxu0 %v4934
    %v5014 = vpop.f32.mrf.mxu0
    %v5015 = vadd.f32 0.0, %v5014
    %v5016 = vpop.f32.mrf.mxu0
    %v5017 = vadd.f32 0.0, %v5016
    %5018 = vmatmul.bf16.gmra.mxu0 %v4937
    %v5019 = vpop.f32.mrf.mxu0
    %v5020 = vadd.f32 0.0, %v5019
    %v5021 = vpop.f32.mrf.mxu0
    %v5022 = vadd.f32 0.0, %v5021
    %5023 = vmatmul.bf16.gmra.mxu0 %v4940
    %v5024 = vpop.f32.mrf.mxu0
    %v5025 = vadd.f32 0.0, %v5024
    %v5026 = vpop.f32.mrf.mxu0
    %v5027 = vadd.f32 0.0, %v5026
    %5028 = vdwg.mxu0
    %5029 = vmatpush.bf16.msra.mxu0 0
    %5030 = vmatpush.bf16.msra.mxu0 0
    %5031 = vmatpush.bf16.msra.mxu0 0
    %5032 = vmatpush.bf16.msra.mxu0 0
    %5033 = vmatpush.bf16.msra.mxu0 0
    %5034 = vmatpush.bf16.msra.mxu0 0
    %5035 = vmatpush.bf16.msra.mxu0 %v4909
    %5036 = vmatpush.bf16.msra.mxu0 %v4901
    %5037 = vmatmul.bf16.gmra.mxu0 %v4931
    %v5038 = vpop.f32.mrf.mxu0
    %v5039 = vadd.f32 0.0, %v5038
    %v5040 = vpop.f32.mrf.mxu0
    %v5041 = vadd.f32 0.0, %v5040
    %5042 = vmatmul.bf16.gmra.mxu0 %v4934
    %v5043 = vpop.f32.mrf.mxu0
    %v5044 = vadd.f32 0.0, %v5043
    %v5045 = vpop.f32.mrf.mxu0
    %v5046 = vadd.f32 0.0, %v5045
    %5047 = vmatmul.bf16.gmra.mxu0 %v4937
    %v5048 = vpop.f32.mrf.mxu0
    %v5049 = vadd.f32 0.0, %v5048
    %v5050 = vpop.f32.mrf.mxu0
    %v5051 = vadd.f32 0.0, %v5050
    %5052 = vmatmul.bf16.gmra.mxu0 %v4940
    %v5053 = vpop.f32.mrf.mxu0
    %v5054 = vadd.f32 0.0, %v5053
    %v5055 = vpop.f32.mrf.mxu0
    %v5056 = vadd.f32 0.0, %v5055
    %5057 = vdwg.mxu0
    %5058 = vmatpush.bf16.msra.mxu0 0
    %5059 = vmatpush.bf16.msra.mxu0 0
    %5060 = vmatpush.bf16.msra.mxu0 0
    %5061 = vmatpush.bf16.msra.mxu0 0
    %5062 = vmatpush.bf16.msra.mxu0 0
    %5063 = vmatpush.bf16.msra.mxu0 0
    %5064 = vmatpush.bf16.msra.mxu0 %v4910
    %5065 = vmatpush.bf16.msra.mxu0 %v4902
    %5066 = vmatmul.bf16.gmra.mxu0 %v4931
    %v5067 = vpop.f32.mrf.mxu0
    %v5068 = vadd.f32 0.0, %v5067
    %v5069 = vpop.f32.mrf.mxu0
    %v5070 = vadd.f32 0.0, %v5069
    %5071 = vmatmul.bf16.gmra.mxu0 %v4934
    %v5072 = vpop.f32.mrf.mxu0
    %v5073 = vadd.f32 0.0, %v5072
    %v5074 = vpop.f32.mrf.mxu0
    %v5075 = vadd.f32 0.0, %v5074
    %5076 = vmatmul.bf16.gmra.mxu0 %v4937
    %v5077 = vpop.f32.mrf.mxu0
    %v5078 = vadd.f32 0.0, %v5077
    %v5079 = vpop.f32.mrf.mxu0
    %v5080 = vadd.f32 0.0, %v5079
    %5081 = vmatmul.bf16.gmra.mxu0 %v4940
    %v5082 = vpop.f32.mrf.mxu0
    %v5083 = vadd.f32 0.0, %v5082
    %v5084 = vpop.f32.mrf.mxu0
    %v5085 = vadd.f32 0.0, %v5084
    %5086 = vdwg.mxu0
    %5087 = vmatpush.bf16.msra.mxu0 0
    %5088 = vmatpush.bf16.msra.mxu0 0
    %5089 = vmatpush.bf16.msra.mxu0 0
    %5090 = vmatpush.bf16.msra.mxu0 0
    %5091 = vmatpush.bf16.msra.mxu0 0
    %5092 = vmatpush.bf16.msra.mxu0 0
    %5093 = vmatpush.bf16.msra.mxu0 %v4911
    %5094 = vmatpush.bf16.msra.mxu0 %v4903
    %5095 = vmatmul.bf16.gmra.mxu0 %v4931
    %v5096 = vpop.f32.mrf.mxu0
    %v5097 = vadd.f32 0.0, %v5096
    %v5098 = vpop.f32.mrf.mxu0
    %v5099 = vadd.f32 0.0, %v5098
    %5100 = vmatmul.bf16.gmra.mxu0 %v4934
    %v5101 = vpop.f32.mrf.mxu0
    %v5102 = vadd.f32 0.0, %v5101
    %v5103 = vpop.f32.mrf.mxu0
    %v5104 = vadd.f32 0.0, %v5103
    %5105 = vmatmul.bf16.gmra.mxu0 %v4937
    %v5106 = vpop.f32.mrf.mxu0
    %v5107 = vadd.f32 0.0, %v5106
    %v5108 = vpop.f32.mrf.mxu0
    %v5109 = vadd.f32 0.0, %v5108
    %5110 = vmatmul.bf16.gmra.mxu0 %v4940
    %v5111 = vpop.f32.mrf.mxu0
    %v5112 = vadd.f32 0.0, %v5111
    %v5113 = vpop.f32.mrf.mxu0
    %v5114 = vadd.f32 0.0, %v5113
    %5115 = vdwg.mxu0
    %5116 = vmatpush.bf16.msra.mxu0 0
    %5117 = vmatpush.bf16.msra.mxu0 0
    %5118 = vmatpush.bf16.msra.mxu0 0
    %5119 = vmatpush.bf16.msra.mxu0 0
    %5120 = vmatpush.bf16.msra.mxu0 0
    %5121 = vmatpush.bf16.msra.mxu0 0
    %5122 = vmatpush.bf16.msra.mxu0 %v4912
    %5123 = vmatpush.bf16.msra.mxu0 %v4904
    %5124 = vmatmul.bf16.gmra.mxu0 %v4931
    %v5125 = vpop.f32.mrf.mxu0
    %v5126 = vadd.f32 0.0, %v5125
    %v5127 = vpop.f32.mrf.mxu0
    %v5128 = vadd.f32 0.0, %v5127
    %5129 = vmatmul.bf16.gmra.mxu0 %v4934
    %v5130 = vpop.f32.mrf.mxu0
    %v5131 = vadd.f32 0.0, %v5130
    %v5132 = vpop.f32.mrf.mxu0
    %v5133 = vadd.f32 0.0, %v5132
    %5134 = vmatmul.bf16.gmra.mxu0 %v4937
    %v5135 = vpop.f32.mrf.mxu0
    %v5136 = vadd.f32 0.0, %v5135
    %v5137 = vpop.f32.mrf.mxu0
    %v5138 = vadd.f32 0.0, %v5137
    %5139 = vmatmul.bf16.gmra.mxu0 %v4940
    %v5140 = vpop.f32.mrf.mxu0
    %v5141 = vadd.f32 0.0, %v5140
    %v5142 = vpop.f32.mrf.mxu0
    %v5143 = vadd.f32 0.0, %v5142
    %5144 = vdwg.mxu0
    %5145 = vmatpush.bf16.msra.mxu0 0
    %5146 = vmatpush.bf16.msra.mxu0 0
    %5147 = vmatpush.bf16.msra.mxu0 0
    %5148 = vmatpush.bf16.msra.mxu0 0
    %5149 = vmatpush.bf16.msra.mxu0 0
    %5150 = vmatpush.bf16.msra.mxu0 0
    %5151 = vmatpush.bf16.msra.mxu0 %v4913
    %5152 = vmatpush.bf16.msra.mxu0 %v4905
    %5153 = vmatmul.bf16.gmra.mxu0 %v4931
    %v5154 = vpop.f32.mrf.mxu0
    %v5155 = vadd.f32 0.0, %v5154
    %v5156 = vpop.f32.mrf.mxu0
    %v5157 = vadd.f32 0.0, %v5156
    %5158 = vmatmul.bf16.gmra.mxu0 %v4934
    %v5159 = vpop.f32.mrf.mxu0
    %v5160 = vadd.f32 0.0, %v5159
    %v5161 = vpop.f32.mrf.mxu0
    %v5162 = vadd.f32 0.0, %v5161
    %5163 = vmatmul.bf16.gmra.mxu0 %v4937
    %v5164 = vpop.f32.mrf.mxu0
    %v5165 = vadd.f32 0.0, %v5164
    %v5166 = vpop.f32.mrf.mxu0
    %v5167 = vadd.f32 0.0, %v5166
    %5168 = vmatmul.bf16.gmra.mxu0 %v4940
    %v5169 = vpop.f32.mrf.mxu0
    %v5170 = vadd.f32 0.0, %v5169
    %v5171 = vpop.f32.mrf.mxu0
    %v5172 = vadd.f32 0.0, %v5171
    %5173 = vdwg.mxu0
    %v5174 = vadd.f32 %v4750, %v4952
    %v5175 = vadd.f32 %v4751, %v4981
    %v5176 = vadd.f32 %v4752, %v5010
    %v5177 = vadd.f32 %v4753, %v5039
    %v5178 = vadd.f32 %v4754, %v5068
    %v5179 = vadd.f32 %v4755, %v5097
    %v5180 = vadd.f32 %v4756, %v5126
    %v5181 = vadd.f32 %v4757, %v5155
    %v5182 = vadd.f32 %v4758, %v4954
    %v5183 = vadd.f32 %v4759, %v4983
    %v5184 = vadd.f32 %v4760, %v5012
    %v5185 = vadd.f32 %v4761, %v5041
    %v5186 = vadd.f32 %v4762, %v5070
    %v5187 = vadd.f32 %v4763, %v5099
    %v5188 = vadd.f32 %v4764, %v5128
    %v5189 = vadd.f32 %v4765, %v5157
    %v5190 = vadd.f32 %v4766, %v4957
    %v5191 = vadd.f32 %v4767, %v4986
    %v5192 = vadd.f32 %v4768, %v5015
    %v5193 = vadd.f32 %v4769, %v5044
    %v5194 = vadd.f32 %v4770, %v5073
    %v5195 = vadd.f32 %v4771, %v5102
    %v5196 = vadd.f32 %v4772, %v5131
    %v5197 = vadd.f32 %v4773, %v5160
    %v5198 = vadd.f32 %v4774, %v4959
    %v5199 = vadd.f32 %v4775, %v4988
    %v5200 = vadd.f32 %v4776, %v5017
    %v5201 = vadd.f32 %v4777, %v5046
    %v5202 = vadd.f32 %v4778, %v5075
    %v5203 = vadd.f32 %v4779, %v5104
    %v5204 = vadd.f32 %v4780, %v5133
    %v5205 = vadd.f32 %v4781, %v5162
    %v5206 = vadd.f32 %v4782, %v4962
    %v5207 = vadd.f32 %v4783, %v4991
    %v5208 = vadd.f32 %v4784, %v5020
    %v5209 = vadd.f32 %v4785, %v5049
    %v5210 = vadd.f32 %v4786, %v5078
    %v5211 = vadd.f32 %v4787, %v5107
    %v5212 = vadd.f32 %v4788, %v5136
    %v5213 = vadd.f32 %v4789, %v5165
    %v5214 = vadd.f32 %v4790, %v4964
    %v5215 = vadd.f32 %v4791, %v4993
    %v5216 = vadd.f32 %v4792, %v5022
    %v5217 = vadd.f32 %v4793, %v5051
    %v5218 = vadd.f32 %v4794, %v5080
    %v5219 = vadd.f32 %v4795, %v5109
    %v5220 = vadd.f32 %v4796, %v5138
    %v5221 = vadd.f32 %v4797, %v5167
    %v5222 = vadd.f32 %v4798, %v4967
    %v5223 = vadd.f32 %v4799, %v4996
    %v5224 = vadd.f32 %v4800, %v5025
    %v5225 = vadd.f32 %v4801, %v5054
    %v5226 = vadd.f32 %v4802, %v5083
    %v5227 = vadd.f32 %v4803, %v5112
    %v5228 = vadd.f32 %v4804, %v5141
    %v5229 = vadd.f32 %v4805, %v5170
    %v5230 = vadd.f32 %v4806, %v4969
    %v5231 = vadd.f32 %v4807, %v4998
    %v5232 = vadd.f32 %v4808, %v5027
    %v5233 = vadd.f32 %v4809, %v5056
    %v5234 = vadd.f32 %v4810, %v5085
    %v5235 = vadd.f32 %v4811, %v5114
    %v5236 = vadd.f32 %v4812, %v5143
    %v5237 = vadd.f32 %v4813, %v5172
    %v5238 = vld [vmem:[#allocation2 + $0x480] sm:$0xff]
    %v5239 = vld [vmem:[#allocation2 + $0x488] sm:$0xff]
    %v5240 = vld [vmem:[#allocation2 + $0x490] sm:$0xff]
    %v5241 = vld [vmem:[#allocation2 + $0x498] sm:$0xff]
    %v5242 = vld [vmem:[#allocation2 + $0x4a0] sm:$0xff]
    %v5243 = vld [vmem:[#allocation2 + $0x4a8] sm:$0xff]
    %v5244 = vld [vmem:[#allocation2 + $0x4b0] sm:$0xff]
    %v5245 = vld [vmem:[#allocation2 + $0x4b8] sm:$0xff]
    %v5246 = vld [vmem:[#allocation2 + $0x4c0] sm:$0xff]
    %v5247 = vld [vmem:[#allocation2 + $0x4c8] sm:$0xff]
    %v5248 = vld [vmem:[#allocation2 + $0x4d0] sm:$0xff]
    %v5249 = vld [vmem:[#allocation2 + $0x4d8] sm:$0xff]
    %v5250 = vld [vmem:[#allocation2 + $0x4e0] sm:$0xff]
    %v5251 = vld [vmem:[#allocation2 + $0x4e8] sm:$0xff]
    %v5252 = vld [vmem:[#allocation2 + $0x4f0] sm:$0xff]
    %v5253 = vld [vmem:[#allocation2 + $0x4f8] sm:$0xff]
    %v5262 = vunpack.c.l.b16 %v1510
    %v5263 = vunpack.c.l.b16 %v1511
    %v5264 = vunpack.c.l.b16 %v1512
    %v5265 = vunpack.c.l.b16 %v1513
    %v5266 = vunpack.c.l.b16 %v1514
    %v5267 = vunpack.c.l.b16 %v1515
    %v5268 = vunpack.c.l.b16 %v1516
    %v5269 = vunpack.c.l.b16 %v1517
    %v5270 = vpack.c.b16 %v5263, %v5262
    %v5271 = vpack.c.b16 %v5265, %v5264
    %v5272 = vpack.c.b16 %v5267, %v5266
    %v5273 = vpack.c.b16 %v5269, %v5268
    %v5290 = vunpack.c.l.b16 %v5238
    %v5291 = vunpack.c.h.b16 %v5238
    %v5292 = vunpack.c.l.b16 %v5239
    %v5293 = vunpack.c.h.b16 %v5239
    %v5294 = vunpack.c.l.b16 %v5240
    %v5295 = vunpack.c.h.b16 %v5240
    %v5296 = vunpack.c.l.b16 %v5241
    %v5297 = vunpack.c.h.b16 %v5241
    %v5298 = vunpack.c.l.b16 %v5242
    %v5299 = vunpack.c.h.b16 %v5242
    %v5300 = vunpack.c.l.b16 %v5243
    %v5301 = vunpack.c.h.b16 %v5243
    %v5302 = vunpack.c.l.b16 %v5244
    %v5303 = vunpack.c.h.b16 %v5244
    %v5304 = vunpack.c.l.b16 %v5245
    %v5305 = vunpack.c.h.b16 %v5245
    %v5306 = vunpack.c.l.b16 %v5246
    %v5307 = vunpack.c.h.b16 %v5246
    %v5308 = vunpack.c.l.b16 %v5247
    %v5309 = vunpack.c.h.b16 %v5247
    %v5310 = vunpack.c.l.b16 %v5248
    %v5311 = vunpack.c.h.b16 %v5248
    %v5312 = vunpack.c.l.b16 %v5249
    %v5313 = vunpack.c.h.b16 %v5249
    %v5314 = vunpack.c.l.b16 %v5250
    %v5315 = vunpack.c.h.b16 %v5250
    %v5316 = vunpack.c.l.b16 %v5251
    %v5317 = vunpack.c.h.b16 %v5251
    %v5318 = vunpack.c.l.b16 %v5252
    %v5319 = vunpack.c.h.b16 %v5252
    %v5320 = vunpack.c.l.b16 %v5253
    %v5321 = vunpack.c.h.b16 %v5253
    %v5322 = vpack.c.b16 %v5298, %v5290
    %v5323 = vpack.c.b16 %v5299, %v5291
    %v5324 = vpack.c.b16 %v5300, %v5292
    %v5325 = vpack.c.b16 %v5301, %v5293
    %v5326 = vpack.c.b16 %v5302, %v5294
    %v5327 = vpack.c.b16 %v5303, %v5295
    %v5328 = vpack.c.b16 %v5304, %v5296
    %v5329 = vpack.c.b16 %v5305, %v5297
    %v5330 = vpack.c.b16 %v5314, %v5306
    %v5331 = vpack.c.b16 %v5315, %v5307
    %v5332 = vpack.c.b16 %v5316, %v5308
    %v5333 = vpack.c.b16 %v5317, %v5309
    %v5334 = vpack.c.b16 %v5318, %v5310
    %v5335 = vpack.c.b16 %v5319, %v5311
    %v5336 = vpack.c.b16 %v5320, %v5312
    %v5337 = vpack.c.b16 %v5321, %v5313
    %v5355 = vsel %vm100, %v5270, 0
    %v5358 = vsel %vm100, %v5271, 0
    %v5361 = vsel %vm100, %v5272, 0
    %v5364 = vsel %vm100, %v5273, 0
    %5366 = vmatpush.bf16.msra.mxu0 0
    %5367 = vmatpush.bf16.msra.mxu0 0
    %5368 = vmatpush.bf16.msra.mxu0 0
    %5369 = vmatpush.bf16.msra.mxu0 0
    %5370 = vmatpush.bf16.msra.mxu0 0
    %5371 = vmatpush.bf16.msra.mxu0 0
    %5372 = vmatpush.bf16.msra.mxu0 %v5330
    %5373 = vmatpush.bf16.msra.mxu0 %v5322
    %5374 = vmatmul.bf16.gmra.mxu0 %v5355
    %v5375 = vpop.f32.mrf.mxu0
    %v5376 = vadd.f32 0.0, %v5375
    %v5377 = vpop.f32.mrf.mxu0
    %v5378 = vadd.f32 0.0, %v5377
    %5379 = vmatmul.bf16.gmra.mxu0 %v5358
    %v5380 = vpop.f32.mrf.mxu0
    %v5381 = vadd.f32 0.0, %v5380
    %v5382 = vpop.f32.mrf.mxu0
    %v5383 = vadd.f32 0.0, %v5382
    %5384 = vmatmul.bf16.gmra.mxu0 %v5361
    %v5385 = vpop.f32.mrf.mxu0
    %v5386 = vadd.f32 0.0, %v5385
    %v5387 = vpop.f32.mrf.mxu0
    %v5388 = vadd.f32 0.0, %v5387
    %5389 = vmatmul.bf16.gmra.mxu0 %v5364
    %v5390 = vpop.f32.mrf.mxu0
    %v5391 = vadd.f32 0.0, %v5390
    %v5392 = vpop.f32.mrf.mxu0
    %v5393 = vadd.f32 0.0, %v5392
    %5394 = vdwg.mxu0
    %5395 = vmatpush.bf16.msra.mxu0 0
    %5396 = vmatpush.bf16.msra.mxu0 0
    %5397 = vmatpush.bf16.msra.mxu0 0
    %5398 = vmatpush.bf16.msra.mxu0 0
    %5399 = vmatpush.bf16.msra.mxu0 0
    %5400 = vmatpush.bf16.msra.mxu0 0
    %5401 = vmatpush.bf16.msra.mxu0 %v5331
    %5402 = vmatpush.bf16.msra.mxu0 %v5323
    %5403 = vmatmul.bf16.gmra.mxu0 %v5355
    %v5404 = vpop.f32.mrf.mxu0
    %v5405 = vadd.f32 0.0, %v5404
    %v5406 = vpop.f32.mrf.mxu0
    %v5407 = vadd.f32 0.0, %v5406
    %5408 = vmatmul.bf16.gmra.mxu0 %v5358
    %v5409 = vpop.f32.mrf.mxu0
    %v5410 = vadd.f32 0.0, %v5409
    %v5411 = vpop.f32.mrf.mxu0
    %v5412 = vadd.f32 0.0, %v5411
    %5413 = vmatmul.bf16.gmra.mxu0 %v5361
    %v5414 = vpop.f32.mrf.mxu0
    %v5415 = vadd.f32 0.0, %v5414
    %v5416 = vpop.f32.mrf.mxu0
    %v5417 = vadd.f32 0.0, %v5416
    %5418 = vmatmul.bf16.gmra.mxu0 %v5364
    %v5419 = vpop.f32.mrf.mxu0
    %v5420 = vadd.f32 0.0, %v5419
    %v5421 = vpop.f32.mrf.mxu0
    %v5422 = vadd.f32 0.0, %v5421
    %5423 = vdwg.mxu0
    %5424 = vmatpush.bf16.msra.mxu0 0
    %5425 = vmatpush.bf16.msra.mxu0 0
    %5426 = vmatpush.bf16.msra.mxu0 0
    %5427 = vmatpush.bf16.msra.mxu0 0
    %5428 = vmatpush.bf16.msra.mxu0 0
    %5429 = vmatpush.bf16.msra.mxu0 0
    %5430 = vmatpush.bf16.msra.mxu0 %v5332
    %5431 = vmatpush.bf16.msra.mxu0 %v5324
    %5432 = vmatmul.bf16.gmra.mxu0 %v5355
    %v5433 = vpop.f32.mrf.mxu0
    %v5434 = vadd.f32 0.0, %v5433
    %v5435 = vpop.f32.mrf.mxu0
    %v5436 = vadd.f32 0.0, %v5435
    %5437 = vmatmul.bf16.gmra.mxu0 %v5358
    %v5438 = vpop.f32.mrf.mxu0
    %v5439 = vadd.f32 0.0, %v5438
    %v5440 = vpop.f32.mrf.mxu0
    %v5441 = vadd.f32 0.0, %v5440
    %5442 = vmatmul.bf16.gmra.mxu0 %v5361
    %v5443 = vpop.f32.mrf.mxu0
    %v5444 = vadd.f32 0.0, %v5443
    %v5445 = vpop.f32.mrf.mxu0
    %v5446 = vadd.f32 0.0, %v5445
    %5447 = vmatmul.bf16.gmra.mxu0 %v5364
    %v5448 = vpop.f32.mrf.mxu0
    %v5449 = vadd.f32 0.0, %v5448
    %v5450 = vpop.f32.mrf.mxu0
    %v5451 = vadd.f32 0.0, %v5450
    %5452 = vdwg.mxu0
    %5453 = vmatpush.bf16.msra.mxu0 0
    %5454 = vmatpush.bf16.msra.mxu0 0
    %5455 = vmatpush.bf16.msra.mxu0 0
    %5456 = vmatpush.bf16.msra.mxu0 0
    %5457 = vmatpush.bf16.msra.mxu0 0
    %5458 = vmatpush.bf16.msra.mxu0 0
    %5459 = vmatpush.bf16.msra.mxu0 %v5333
    %5460 = vmatpush.bf16.msra.mxu0 %v5325
    %5461 = vmatmul.bf16.gmra.mxu0 %v5355
    %v5462 = vpop.f32.mrf.mxu0
    %v5463 = vadd.f32 0.0, %v5462
    %v5464 = vpop.f32.mrf.mxu0
    %v5465 = vadd.f32 0.0, %v5464
    %5466 = vmatmul.bf16.gmra.mxu0 %v5358
    %v5467 = vpop.f32.mrf.mxu0
    %v5468 = vadd.f32 0.0, %v5467
    %v5469 = vpop.f32.mrf.mxu0
    %v5470 = vadd.f32 0.0, %v5469
    %5471 = vmatmul.bf16.gmra.mxu0 %v5361
    %v5472 = vpop.f32.mrf.mxu0
    %v5473 = vadd.f32 0.0, %v5472
    %v5474 = vpop.f32.mrf.mxu0
    %v5475 = vadd.f32 0.0, %v5474
    %5476 = vmatmul.bf16.gmra.mxu0 %v5364
    %v5477 = vpop.f32.mrf.mxu0
    %v5478 = vadd.f32 0.0, %v5477
    %v5479 = vpop.f32.mrf.mxu0
    %v5480 = vadd.f32 0.0, %v5479
    %5481 = vdwg.mxu0
    %5482 = vmatpush.bf16.msra.mxu0 0
    %5483 = vmatpush.bf16.msra.mxu0 0
    %5484 = vmatpush.bf16.msra.mxu0 0
    %5485 = vmatpush.bf16.msra.mxu0 0
    %5486 = vmatpush.bf16.msra.mxu0 0
    %5487 = vmatpush.bf16.msra.mxu0 0
    %5488 = vmatpush.bf16.msra.mxu0 %v5334
    %5489 = vmatpush.bf16.msra.mxu0 %v5326
    %5490 = vmatmul.bf16.gmra.mxu0 %v5355
    %v5491 = vpop.f32.mrf.mxu0
    %v5492 = vadd.f32 0.0, %v5491
    %v5493 = vpop.f32.mrf.mxu0
    %v5494 = vadd.f32 0.0, %v5493
    %5495 = vmatmul.bf16.gmra.mxu0 %v5358
    %v5496 = vpop.f32.mrf.mxu0
    %v5497 = vadd.f32 0.0, %v5496
    %v5498 = vpop.f32.mrf.mxu0
    %v5499 = vadd.f32 0.0, %v5498
    %5500 = vmatmul.bf16.gmra.mxu0 %v5361
    %v5501 = vpop.f32.mrf.mxu0
    %v5502 = vadd.f32 0.0, %v5501
    %v5503 = vpop.f32.mrf.mxu0
    %v5504 = vadd.f32 0.0, %v5503
    %5505 = vmatmul.bf16.gmra.mxu0 %v5364
    %v5506 = vpop.f32.mrf.mxu0
    %v5507 = vadd.f32 0.0, %v5506
    %v5508 = vpop.f32.mrf.mxu0
    %v5509 = vadd.f32 0.0, %v5508
    %5510 = vdwg.mxu0
    %5511 = vmatpush.bf16.msra.mxu0 0
    %5512 = vmatpush.bf16.msra.mxu0 0
    %5513 = vmatpush.bf16.msra.mxu0 0
    %5514 = vmatpush.bf16.msra.mxu0 0
    %5515 = vmatpush.bf16.msra.mxu0 0
    %5516 = vmatpush.bf16.msra.mxu0 0
    %5517 = vmatpush.bf16.msra.mxu0 %v5335
    %5518 = vmatpush.bf16.msra.mxu0 %v5327
    %5519 = vmatmul.bf16.gmra.mxu0 %v5355
    %v5520 = vpop.f32.mrf.mxu0
    %v5521 = vadd.f32 0.0, %v5520
    %v5522 = vpop.f32.mrf.mxu0
    %v5523 = vadd.f32 0.0, %v5522
    %5524 = vmatmul.bf16.gmra.mxu0 %v5358
    %v5525 = vpop.f32.mrf.mxu0
    %v5526 = vadd.f32 0.0, %v5525
    %v5527 = vpop.f32.mrf.mxu0
    %v5528 = vadd.f32 0.0, %v5527
    %5529 = vmatmul.bf16.gmra.mxu0 %v5361
    %v5530 = vpop.f32.mrf.mxu0
    %v5531 = vadd.f32 0.0, %v5530
    %v5532 = vpop.f32.mrf.mxu0
    %v5533 = vadd.f32 0.0, %v5532
    %5534 = vmatmul.bf16.gmra.mxu0 %v5364
    %v5535 = vpop.f32.mrf.mxu0
    %v5536 = vadd.f32 0.0, %v5535
    %v5537 = vpop.f32.mrf.mxu0
    %v5538 = vadd.f32 0.0, %v5537
    %5539 = vdwg.mxu0
    %5540 = vmatpush.bf16.msra.mxu0 0
    %5541 = vmatpush.bf16.msra.mxu0 0
    %5542 = vmatpush.bf16.msra.mxu0 0
    %5543 = vmatpush.bf16.msra.mxu0 0
    %5544 = vmatpush.bf16.msra.mxu0 0
    %5545 = vmatpush.bf16.msra.mxu0 0
    %5546 = vmatpush.bf16.msra.mxu0 %v5336
    %5547 = vmatpush.bf16.msra.mxu0 %v5328
    %5548 = vmatmul.bf16.gmra.mxu0 %v5355
    %v5549 = vpop.f32.mrf.mxu0
    %v5550 = vadd.f32 0.0, %v5549
    %v5551 = vpop.f32.mrf.mxu0
    %v5552 = vadd.f32 0.0, %v5551
    %5553 = vmatmul.bf16.gmra.mxu0 %v5358
    %v5554 = vpop.f32.mrf.mxu0
    %v5555 = vadd.f32 0.0, %v5554
    %v5556 = vpop.f32.mrf.mxu0
    %v5557 = vadd.f32 0.0, %v5556
    %5558 = vmatmul.bf16.gmra.mxu0 %v5361
    %v5559 = vpop.f32.mrf.mxu0
    %v5560 = vadd.f32 0.0, %v5559
    %v5561 = vpop.f32.mrf.mxu0
    %v5562 = vadd.f32 0.0, %v5561
    %5563 = vmatmul.bf16.gmra.mxu0 %v5364
    %v5564 = vpop.f32.mrf.mxu0
    %v5565 = vadd.f32 0.0, %v5564
    %v5566 = vpop.f32.mrf.mxu0
    %v5567 = vadd.f32 0.0, %v5566
    %5568 = vdwg.mxu0
    %5569 = vmatpush.bf16.msra.mxu0 0
    %5570 = vmatpush.bf16.msra.mxu0 0
    %5571 = vmatpush.bf16.msra.mxu0 0
    %5572 = vmatpush.bf16.msra.mxu0 0
    %5573 = vmatpush.bf16.msra.mxu0 0
    %5574 = vmatpush.bf16.msra.mxu0 0
    %5575 = vmatpush.bf16.msra.mxu0 %v5337
    %5576 = vmatpush.bf16.msra.mxu0 %v5329
    %5577 = vmatmul.bf16.gmra.mxu0 %v5355
    %v5578 = vpop.f32.mrf.mxu0
    %v5579 = vadd.f32 0.0, %v5578
    %v5580 = vpop.f32.mrf.mxu0
    %v5581 = vadd.f32 0.0, %v5580
    %5582 = vmatmul.bf16.gmra.mxu0 %v5358
    %v5583 = vpop.f32.mrf.mxu0
    %v5584 = vadd.f32 0.0, %v5583
    %v5585 = vpop.f32.mrf.mxu0
    %v5586 = vadd.f32 0.0, %v5585
    %5587 = vmatmul.bf16.gmra.mxu0 %v5361
    %v5588 = vpop.f32.mrf.mxu0
    %v5589 = vadd.f32 0.0, %v5588
    %v5590 = vpop.f32.mrf.mxu0
    %v5591 = vadd.f32 0.0, %v5590
    %5592 = vmatmul.bf16.gmra.mxu0 %v5364
    %v5593 = vpop.f32.mrf.mxu0
    %v5594 = vadd.f32 0.0, %v5593
    %v5595 = vpop.f32.mrf.mxu0
    %v5596 = vadd.f32 0.0, %v5595
    %5597 = vdwg.mxu0
    %v5598 = vadd.f32 %v5174, %v5376
    %v5599 = vadd.f32 %v5175, %v5405
    %v5600 = vadd.f32 %v5176, %v5434
    %v5601 = vadd.f32 %v5177, %v5463
    %v5602 = vadd.f32 %v5178, %v5492
    %v5603 = vadd.f32 %v5179, %v5521
    %v5604 = vadd.f32 %v5180, %v5550
    %v5605 = vadd.f32 %v5181, %v5579
    %v5606 = vadd.f32 %v5182, %v5378
    %v5607 = vadd.f32 %v5183, %v5407
    %v5608 = vadd.f32 %v5184, %v5436
    %v5609 = vadd.f32 %v5185, %v5465
    %v5610 = vadd.f32 %v5186, %v5494
    %v5611 = vadd.f32 %v5187, %v5523
    %v5612 = vadd.f32 %v5188, %v5552
    %v5613 = vadd.f32 %v5189, %v5581
    %v5614 = vadd.f32 %v5190, %v5381
    %v5615 = vadd.f32 %v5191, %v5410
    %v5616 = vadd.f32 %v5192, %v5439
    %v5617 = vadd.f32 %v5193, %v5468
    %v5618 = vadd.f32 %v5194, %v5497
    %v5619 = vadd.f32 %v5195, %v5526
    %v5620 = vadd.f32 %v5196, %v5555
    %v5621 = vadd.f32 %v5197, %v5584
    %v5622 = vadd.f32 %v5198, %v5383
    %v5623 = vadd.f32 %v5199, %v5412
    %v5624 = vadd.f32 %v5200, %v5441
    %v5625 = vadd.f32 %v5201, %v5470
    %v5626 = vadd.f32 %v5202, %v5499
    %v5627 = vadd.f32 %v5203, %v5528
    %v5628 = vadd.f32 %v5204, %v5557
    %v5629 = vadd.f32 %v5205, %v5586
    %v5630 = vadd.f32 %v5206, %v5386
    %v5631 = vadd.f32 %v5207, %v5415
    %v5632 = vadd.f32 %v5208, %v5444
    %v5633 = vadd.f32 %v5209, %v5473
    %v5634 = vadd.f32 %v5210, %v5502
    %v5635 = vadd.f32 %v5211, %v5531
    %v5636 = vadd.f32 %v5212, %v5560
    %v5637 = vadd.f32 %v5213, %v5589
    %v5638 = vadd.f32 %v5214, %v5388
    %v5639 = vadd.f32 %v5215, %v5417
    %v5640 = vadd.f32 %v5216, %v5446
    %v5641 = vadd.f32 %v5217, %v5475
    %v5642 = vadd.f32 %v5218, %v5504
    %v5643 = vadd.f32 %v5219, %v5533
    %v5644 = vadd.f32 %v5220, %v5562
    %v5645 = vadd.f32 %v5221, %v5591
    %v5646 = vadd.f32 %v5222, %v5391
    %v5647 = vadd.f32 %v5223, %v5420
    %v5648 = vadd.f32 %v5224, %v5449
    %v5649 = vadd.f32 %v5225, %v5478
    %v5650 = vadd.f32 %v5226, %v5507
    %v5651 = vadd.f32 %v5227, %v5536
    %v5652 = vadd.f32 %v5228, %v5565
    %v5653 = vadd.f32 %v5229, %v5594
    %v5654 = vadd.f32 %v5230, %v5393
    %v5655 = vadd.f32 %v5231, %v5422
    %v5656 = vadd.f32 %v5232, %v5451
    %v5657 = vadd.f32 %v5233, %v5480
    %v5658 = vadd.f32 %v5234, %v5509
    %v5659 = vadd.f32 %v5235, %v5538
    %v5660 = vadd.f32 %v5236, %v5567
    %v5661 = vadd.f32 %v5237, %v5596
    %v5662 = vld [vmem:[#allocation2 + $0x500] sm:$0xff]
    %v5663 = vld [vmem:[#allocation2 + $0x508] sm:$0xff]
    %v5664 = vld [vmem:[#allocation2 + $0x510] sm:$0xff]
    %v5665 = vld [vmem:[#allocation2 + $0x518] sm:$0xff]
    %v5666 = vld [vmem:[#allocation2 + $0x520] sm:$0xff]
    %v5667 = vld [vmem:[#allocation2 + $0x528] sm:$0xff]
    %v5668 = vld [vmem:[#allocation2 + $0x530] sm:$0xff]
    %v5669 = vld [vmem:[#allocation2 + $0x538] sm:$0xff]
    %v5670 = vld [vmem:[#allocation2 + $0x540] sm:$0xff]
    %v5671 = vld [vmem:[#allocation2 + $0x548] sm:$0xff]
    %v5672 = vld [vmem:[#allocation2 + $0x550] sm:$0xff]
    %v5673 = vld [vmem:[#allocation2 + $0x558] sm:$0xff]
    %v5674 = vld [vmem:[#allocation2 + $0x560] sm:$0xff]
    %v5675 = vld [vmem:[#allocation2 + $0x568] sm:$0xff]
    %v5676 = vld [vmem:[#allocation2 + $0x570] sm:$0xff]
    %v5677 = vld [vmem:[#allocation2 + $0x578] sm:$0xff]
    %v5686 = vunpack.c.l.b16 %v1518
    %v5687 = vunpack.c.l.b16 %v1519
    %v5688 = vunpack.c.l.b16 %v1520
    %v5689 = vunpack.c.l.b16 %v1521
    %v5690 = vunpack.c.l.b16 %v1522
    %v5691 = vunpack.c.l.b16 %v1523
    %v5692 = vunpack.c.l.b16 %v1524
    %v5693 = vunpack.c.l.b16 %v1525
    %v5694 = vpack.c.b16 %v5687, %v5686
    %v5695 = vpack.c.b16 %v5689, %v5688
    %v5696 = vpack.c.b16 %v5691, %v5690
    %v5697 = vpack.c.b16 %v5693, %v5692
    %v5714 = vunpack.c.l.b16 %v5662
    %v5715 = vunpack.c.h.b16 %v5662
    %v5716 = vunpack.c.l.b16 %v5663
    %v5717 = vunpack.c.h.b16 %v5663
    %v5718 = vunpack.c.l.b16 %v5664
    %v5719 = vunpack.c.h.b16 %v5664
    %v5720 = vunpack.c.l.b16 %v5665
    %v5721 = vunpack.c.h.b16 %v5665
    %v5722 = vunpack.c.l.b16 %v5666
    %v5723 = vunpack.c.h.b16 %v5666
    %v5724 = vunpack.c.l.b16 %v5667
    %v5725 = vunpack.c.h.b16 %v5667
    %v5726 = vunpack.c.l.b16 %v5668
    %v5727 = vunpack.c.h.b16 %v5668
    %v5728 = vunpack.c.l.b16 %v5669
    %v5729 = vunpack.c.h.b16 %v5669
    %v5730 = vunpack.c.l.b16 %v5670
    %v5731 = vunpack.c.h.b16 %v5670
    %v5732 = vunpack.c.l.b16 %v5671
    %v5733 = vunpack.c.h.b16 %v5671
    %v5734 = vunpack.c.l.b16 %v5672
    %v5735 = vunpack.c.h.b16 %v5672
    %v5736 = vunpack.c.l.b16 %v5673
    %v5737 = vunpack.c.h.b16 %v5673
    %v5738 = vunpack.c.l.b16 %v5674
    %v5739 = vunpack.c.h.b16 %v5674
    %v5740 = vunpack.c.l.b16 %v5675
    %v5741 = vunpack.c.h.b16 %v5675
    %v5742 = vunpack.c.l.b16 %v5676
    %v5743 = vunpack.c.h.b16 %v5676
    %v5744 = vunpack.c.l.b16 %v5677
    %v5745 = vunpack.c.h.b16 %v5677
    %v5746 = vpack.c.b16 %v5722, %v5714
    %v5747 = vpack.c.b16 %v5723, %v5715
    %v5748 = vpack.c.b16 %v5724, %v5716
    %v5749 = vpack.c.b16 %v5725, %v5717
    %v5750 = vpack.c.b16 %v5726, %v5718
    %v5751 = vpack.c.b16 %v5727, %v5719
    %v5752 = vpack.c.b16 %v5728, %v5720
    %v5753 = vpack.c.b16 %v5729, %v5721
    %v5754 = vpack.c.b16 %v5738, %v5730
    %v5755 = vpack.c.b16 %v5739, %v5731
    %v5756 = vpack.c.b16 %v5740, %v5732
    %v5757 = vpack.c.b16 %v5741, %v5733
    %v5758 = vpack.c.b16 %v5742, %v5734
    %v5759 = vpack.c.b16 %v5743, %v5735
    %v5760 = vpack.c.b16 %v5744, %v5736
    %v5761 = vpack.c.b16 %v5745, %v5737
    %v5779 = vsel %vm100, %v5694, 0
    %v5782 = vsel %vm100, %v5695, 0
    %v5785 = vsel %vm100, %v5696, 0
    %v5788 = vsel %vm100, %v5697, 0
    %5790 = vmatpush.bf16.msra.mxu0 0
    %5791 = vmatpush.bf16.msra.mxu0 0
    %5792 = vmatpush.bf16.msra.mxu0 0
    %5793 = vmatpush.bf16.msra.mxu0 0
    %5794 = vmatpush.bf16.msra.mxu0 0
    %5795 = vmatpush.bf16.msra.mxu0 0
    %5796 = vmatpush.bf16.msra.mxu0 %v5754
    %5797 = vmatpush.bf16.msra.mxu0 %v5746
    %5798 = vmatmul.bf16.gmra.mxu0 %v5779
    %v5799 = vpop.f32.mrf.mxu0
    %v5800 = vadd.f32 0.0, %v5799
    %v5801 = vpop.f32.mrf.mxu0
    %v5802 = vadd.f32 0.0, %v5801
    %5803 = vmatmul.bf16.gmra.mxu0 %v5782
    %v5804 = vpop.f32.mrf.mxu0
    %v5805 = vadd.f32 0.0, %v5804
    %v5806 = vpop.f32.mrf.mxu0
    %v5807 = vadd.f32 0.0, %v5806
    %5808 = vmatmul.bf16.gmra.mxu0 %v5785
    %v5809 = vpop.f32.mrf.mxu0
    %v5810 = vadd.f32 0.0, %v5809
    %v5811 = vpop.f32.mrf.mxu0
    %v5812 = vadd.f32 0.0, %v5811
    %5813 = vmatmul.bf16.gmra.mxu0 %v5788
    %v5814 = vpop.f32.mrf.mxu0
    %v5815 = vadd.f32 0.0, %v5814
    %v5816 = vpop.f32.mrf.mxu0
    %v5817 = vadd.f32 0.0, %v5816
    %5818 = vdwg.mxu0
    %5819 = vmatpush.bf16.msra.mxu0 0
    %5820 = vmatpush.bf16.msra.mxu0 0
    %5821 = vmatpush.bf16.msra.mxu0 0
    %5822 = vmatpush.bf16.msra.mxu0 0
    %5823 = vmatpush.bf16.msra.mxu0 0
    %5824 = vmatpush.bf16.msra.mxu0 0
    %5825 = vmatpush.bf16.msra.mxu0 %v5755
    %5826 = vmatpush.bf16.msra.mxu0 %v5747
    %5827 = vmatmul.bf16.gmra.mxu0 %v5779
    %v5828 = vpop.f32.mrf.mxu0
    %v5829 = vadd.f32 0.0, %v5828
    %v5830 = vpop.f32.mrf.mxu0
    %v5831 = vadd.f32 0.0, %v5830
    %5832 = vmatmul.bf16.gmra.mxu0 %v5782
    %v5833 = vpop.f32.mrf.mxu0
    %v5834 = vadd.f32 0.0, %v5833
    %v5835 = vpop.f32.mrf.mxu0
    %v5836 = vadd.f32 0.0, %v5835
    %5837 = vmatmul.bf16.gmra.mxu0 %v5785
    %v5838 = vpop.f32.mrf.mxu0
    %v5839 = vadd.f32 0.0, %v5838
    %v5840 = vpop.f32.mrf.mxu0
    %v5841 = vadd.f32 0.0, %v5840
    %5842 = vmatmul.bf16.gmra.mxu0 %v5788
    %v5843 = vpop.f32.mrf.mxu0
    %v5844 = vadd.f32 0.0, %v5843
    %v5845 = vpop.f32.mrf.mxu0
    %v5846 = vadd.f32 0.0, %v5845
    %5847 = vdwg.mxu0
    %5848 = vmatpush.bf16.msra.mxu0 0
    %5849 = vmatpush.bf16.msra.mxu0 0
    %5850 = vmatpush.bf16.msra.mxu0 0
    %5851 = vmatpush.bf16.msra.mxu0 0
    %5852 = vmatpush.bf16.msra.mxu0 0
    %5853 = vmatpush.bf16.msra.mxu0 0
    %5854 = vmatpush.bf16.msra.mxu0 %v5756
    %5855 = vmatpush.bf16.msra.mxu0 %v5748
    %5856 = vmatmul.bf16.gmra.mxu0 %v5779
    %v5857 = vpop.f32.mrf.mxu0
    %v5858 = vadd.f32 0.0, %v5857
    %v5859 = vpop.f32.mrf.mxu0
    %v5860 = vadd.f32 0.0, %v5859
    %5861 = vmatmul.bf16.gmra.mxu0 %v5782
    %v5862 = vpop.f32.mrf.mxu0
    %v5863 = vadd.f32 0.0, %v5862
    %v5864 = vpop.f32.mrf.mxu0
    %v5865 = vadd.f32 0.0, %v5864
    %5866 = vmatmul.bf16.gmra.mxu0 %v5785
    %v5867 = vpop.f32.mrf.mxu0
    %v5868 = vadd.f32 0.0, %v5867
    %v5869 = vpop.f32.mrf.mxu0
    %v5870 = vadd.f32 0.0, %v5869
    %5871 = vmatmul.bf16.gmra.mxu0 %v5788
    %v5872 = vpop.f32.mrf.mxu0
    %v5873 = vadd.f32 0.0, %v5872
    %v5874 = vpop.f32.mrf.mxu0
    %v5875 = vadd.f32 0.0, %v5874
    %5876 = vdwg.mxu0
    %5877 = vmatpush.bf16.msra.mxu0 0
    %5878 = vmatpush.bf16.msra.mxu0 0
    %5879 = vmatpush.bf16.msra.mxu0 0
    %5880 = vmatpush.bf16.msra.mxu0 0
    %5881 = vmatpush.bf16.msra.mxu0 0
    %5882 = vmatpush.bf16.msra.mxu0 0
    %5883 = vmatpush.bf16.msra.mxu0 %v5757
    %5884 = vmatpush.bf16.msra.mxu0 %v5749
    %5885 = vmatmul.bf16.gmra.mxu0 %v5779
    %v5886 = vpop.f32.mrf.mxu0
    %v5887 = vadd.f32 0.0, %v5886
    %v5888 = vpop.f32.mrf.mxu0
    %v5889 = vadd.f32 0.0, %v5888
    %5890 = vmatmul.bf16.gmra.mxu0 %v5782
    %v5891 = vpop.f32.mrf.mxu0
    %v5892 = vadd.f32 0.0, %v5891
    %v5893 = vpop.f32.mrf.mxu0
    %v5894 = vadd.f32 0.0, %v5893
    %5895 = vmatmul.bf16.gmra.mxu0 %v5785
    %v5896 = vpop.f32.mrf.mxu0
    %v5897 = vadd.f32 0.0, %v5896
    %v5898 = vpop.f32.mrf.mxu0
    %v5899 = vadd.f32 0.0, %v5898
    %5900 = vmatmul.bf16.gmra.mxu0 %v5788
    %v5901 = vpop.f32.mrf.mxu0
    %v5902 = vadd.f32 0.0, %v5901
    %v5903 = vpop.f32.mrf.mxu0
    %v5904 = vadd.f32 0.0, %v5903
    %5905 = vdwg.mxu0
    %5906 = vmatpush.bf16.msra.mxu0 0
    %5907 = vmatpush.bf16.msra.mxu0 0
    %5908 = vmatpush.bf16.msra.mxu0 0
    %5909 = vmatpush.bf16.msra.mxu0 0
    %5910 = vmatpush.bf16.msra.mxu0 0
    %5911 = vmatpush.bf16.msra.mxu0 0
    %5912 = vmatpush.bf16.msra.mxu0 %v5758
    %5913 = vmatpush.bf16.msra.mxu0 %v5750
    %5914 = vmatmul.bf16.gmra.mxu0 %v5779
    %v5915 = vpop.f32.mrf.mxu0
    %v5916 = vadd.f32 0.0, %v5915
    %v5917 = vpop.f32.mrf.mxu0
    %v5918 = vadd.f32 0.0, %v5917
    %5919 = vmatmul.bf16.gmra.mxu0 %v5782
    %v5920 = vpop.f32.mrf.mxu0
    %v5921 = vadd.f32 0.0, %v5920
    %v5922 = vpop.f32.mrf.mxu0
    %v5923 = vadd.f32 0.0, %v5922
    %5924 = vmatmul.bf16.gmra.mxu0 %v5785
    %v5925 = vpop.f32.mrf.mxu0
    %v5926 = vadd.f32 0.0, %v5925
    %v5927 = vpop.f32.mrf.mxu0
    %v5928 = vadd.f32 0.0, %v5927
    %5929 = vmatmul.bf16.gmra.mxu0 %v5788
    %v5930 = vpop.f32.mrf.mxu0
    %v5931 = vadd.f32 0.0, %v5930
    %v5932 = vpop.f32.mrf.mxu0
    %v5933 = vadd.f32 0.0, %v5932
    %5934 = vdwg.mxu0
    %5935 = vmatpush.bf16.msra.mxu0 0
    %5936 = vmatpush.bf16.msra.mxu0 0
    %5937 = vmatpush.bf16.msra.mxu0 0
    %5938 = vmatpush.bf16.msra.mxu0 0
    %5939 = vmatpush.bf16.msra.mxu0 0
    %5940 = vmatpush.bf16.msra.mxu0 0
    %5941 = vmatpush.bf16.msra.mxu0 %v5759
    %5942 = vmatpush.bf16.msra.mxu0 %v5751
    %5943 = vmatmul.bf16.gmra.mxu0 %v5779
    %v5944 = vpop.f32.mrf.mxu0
    %v5945 = vadd.f32 0.0, %v5944
    %v5946 = vpop.f32.mrf.mxu0
    %v5947 = vadd.f32 0.0, %v5946
    %5948 = vmatmul.bf16.gmra.mxu0 %v5782
    %v5949 = vpop.f32.mrf.mxu0
    %v5950 = vadd.f32 0.0, %v5949
    %v5951 = vpop.f32.mrf.mxu0
    %v5952 = vadd.f32 0.0, %v5951
    %5953 = vmatmul.bf16.gmra.mxu0 %v5785
    %v5954 = vpop.f32.mrf.mxu0
    %v5955 = vadd.f32 0.0, %v5954
    %v5956 = vpop.f32.mrf.mxu0
    %v5957 = vadd.f32 0.0, %v5956
    %5958 = vmatmul.bf16.gmra.mxu0 %v5788
    %v5959 = vpop.f32.mrf.mxu0
    %v5960 = vadd.f32 0.0, %v5959
    %v5961 = vpop.f32.mrf.mxu0
    %v5962 = vadd.f32 0.0, %v5961
    %5963 = vdwg.mxu0
    %5964 = vmatpush.bf16.msra.mxu0 0
    %5965 = vmatpush.bf16.msra.mxu0 0
    %5966 = vmatpush.bf16.msra.mxu0 0
    %5967 = vmatpush.bf16.msra.mxu0 0
    %5968 = vmatpush.bf16.msra.mxu0 0
    %5969 = vmatpush.bf16.msra.mxu0 0
    %5970 = vmatpush.bf16.msra.mxu0 %v5760
    %5971 = vmatpush.bf16.msra.mxu0 %v5752
    %5972 = vmatmul.bf16.gmra.mxu0 %v5779
    %v5973 = vpop.f32.mrf.mxu0
    %v5974 = vadd.f32 0.0, %v5973
    %v5975 = vpop.f32.mrf.mxu0
    %v5976 = vadd.f32 0.0, %v5975
    %5977 = vmatmul.bf16.gmra.mxu0 %v5782
    %v5978 = vpop.f32.mrf.mxu0
    %v5979 = vadd.f32 0.0, %v5978
    %v5980 = vpop.f32.mrf.mxu0
    %v5981 = vadd.f32 0.0, %v5980
    %5982 = vmatmul.bf16.gmra.mxu0 %v5785
    %v5983 = vpop.f32.mrf.mxu0
    %v5984 = vadd.f32 0.0, %v5983
    %v5985 = vpop.f32.mrf.mxu0
    %v5986 = vadd.f32 0.0, %v5985
    %5987 = vmatmul.bf16.gmra.mxu0 %v5788
    %v5988 = vpop.f32.mrf.mxu0
    %v5989 = vadd.f32 0.0, %v5988
    %v5990 = vpop.f32.mrf.mxu0
    %v5991 = vadd.f32 0.0, %v5990
    %5992 = vdwg.mxu0
    %5993 = vmatpush.bf16.msra.mxu0 0
    %5994 = vmatpush.bf16.msra.mxu0 0
    %5995 = vmatpush.bf16.msra.mxu0 0
    %5996 = vmatpush.bf16.msra.mxu0 0
    %5997 = vmatpush.bf16.msra.mxu0 0
    %5998 = vmatpush.bf16.msra.mxu0 0
    %5999 = vmatpush.bf16.msra.mxu0 %v5761
    %6000 = vmatpush.bf16.msra.mxu0 %v5753
    %6001 = vmatmul.bf16.gmra.mxu0 %v5779
    %v6002 = vpop.f32.mrf.mxu0
    %v6003 = vadd.f32 0.0, %v6002
    %v6004 = vpop.f32.mrf.mxu0
    %v6005 = vadd.f32 0.0, %v6004
    %6006 = vmatmul.bf16.gmra.mxu0 %v5782
    %v6007 = vpop.f32.mrf.mxu0
    %v6008 = vadd.f32 0.0, %v6007
    %v6009 = vpop.f32.mrf.mxu0
    %v6010 = vadd.f32 0.0, %v6009
    %6011 = vmatmul.bf16.gmra.mxu0 %v5785
    %v6012 = vpop.f32.mrf.mxu0
    %v6013 = vadd.f32 0.0, %v6012
    %v6014 = vpop.f32.mrf.mxu0
    %v6015 = vadd.f32 0.0, %v6014
    %6016 = vmatmul.bf16.gmra.mxu0 %v5788
    %v6017 = vpop.f32.mrf.mxu0
    %v6018 = vadd.f32 0.0, %v6017
    %v6019 = vpop.f32.mrf.mxu0
    %v6020 = vadd.f32 0.0, %v6019
    %6021 = vdwg.mxu0
    %v6022 = vadd.f32 %v5598, %v5800
    %v6023 = vadd.f32 %v5599, %v5829
    %v6024 = vadd.f32 %v5600, %v5858
    %v6025 = vadd.f32 %v5601, %v5887
    %v6026 = vadd.f32 %v5602, %v5916
    %v6027 = vadd.f32 %v5603, %v5945
    %v6028 = vadd.f32 %v5604, %v5974
    %v6029 = vadd.f32 %v5605, %v6003
    %v6030 = vadd.f32 %v5606, %v5802
    %v6031 = vadd.f32 %v5607, %v5831
    %v6032 = vadd.f32 %v5608, %v5860
    %v6033 = vadd.f32 %v5609, %v5889
    %v6034 = vadd.f32 %v5610, %v5918
    %v6035 = vadd.f32 %v5611, %v5947
    %v6036 = vadd.f32 %v5612, %v5976
    %v6037 = vadd.f32 %v5613, %v6005
    %v6038 = vadd.f32 %v5614, %v5805
    %v6039 = vadd.f32 %v5615, %v5834
    %v6040 = vadd.f32 %v5616, %v5863
    %v6041 = vadd.f32 %v5617, %v5892
    %v6042 = vadd.f32 %v5618, %v5921
    %v6043 = vadd.f32 %v5619, %v5950
    %v6044 = vadd.f32 %v5620, %v5979
    %v6045 = vadd.f32 %v5621, %v6008
    %v6046 = vadd.f32 %v5622, %v5807
    %v6047 = vadd.f32 %v5623, %v5836
    %v6048 = vadd.f32 %v5624, %v5865
    %v6049 = vadd.f32 %v5625, %v5894
    %v6050 = vadd.f32 %v5626, %v5923
    %v6051 = vadd.f32 %v5627, %v5952
    %v6052 = vadd.f32 %v5628, %v5981
    %v6053 = vadd.f32 %v5629, %v6010
    %v6054 = vadd.f32 %v5630, %v5810
    %v6055 = vadd.f32 %v5631, %v5839
    %v6056 = vadd.f32 %v5632, %v5868
    %v6057 = vadd.f32 %v5633, %v5897
    %v6058 = vadd.f32 %v5634, %v5926
    %v6059 = vadd.f32 %v5635, %v5955
    %v6060 = vadd.f32 %v5636, %v5984
    %v6061 = vadd.f32 %v5637, %v6013
    %v6062 = vadd.f32 %v5638, %v5812
    %v6063 = vadd.f32 %v5639, %v5841
    %v6064 = vadd.f32 %v5640, %v5870
    %v6065 = vadd.f32 %v5641, %v5899
    %v6066 = vadd.f32 %v5642, %v5928
    %v6067 = vadd.f32 %v5643, %v5957
    %v6068 = vadd.f32 %v5644, %v5986
    %v6069 = vadd.f32 %v5645, %v6015
    %v6070 = vadd.f32 %v5646, %v5815
    %v6071 = vadd.f32 %v5647, %v5844
    %v6072 = vadd.f32 %v5648, %v5873
    %v6073 = vadd.f32 %v5649, %v5902
    %v6074 = vadd.f32 %v5650, %v5931
    %v6075 = vadd.f32 %v5651, %v5960
    %v6076 = vadd.f32 %v5652, %v5989
    %v6077 = vadd.f32 %v5653, %v6018
    %v6078 = vadd.f32 %v5654, %v5817
    %v6079 = vadd.f32 %v5655, %v5846
    %v6080 = vadd.f32 %v5656, %v5875
    %v6081 = vadd.f32 %v5657, %v5904
    %v6082 = vadd.f32 %v5658, %v5933
    %v6083 = vadd.f32 %v5659, %v5962
    %v6084 = vadd.f32 %v5660, %v5991
    %v6085 = vadd.f32 %v5661, %v6020
    %v6086 = vld [vmem:[#allocation2 + $0x580] sm:$0xff]
    %v6087 = vld [vmem:[#allocation2 + $0x588] sm:$0xff]
    %v6088 = vld [vmem:[#allocation2 + $0x590] sm:$0xff]
    %v6089 = vld [vmem:[#allocation2 + $0x598] sm:$0xff]
    %v6090 = vld [vmem:[#allocation2 + $0x5a0] sm:$0xff]
    %v6091 = vld [vmem:[#allocation2 + $0x5a8] sm:$0xff]
    %v6092 = vld [vmem:[#allocation2 + $0x5b0] sm:$0xff]
    %v6093 = vld [vmem:[#allocation2 + $0x5b8] sm:$0xff]
    %v6094 = vld [vmem:[#allocation2 + $0x5c0] sm:$0xff]
    %v6095 = vld [vmem:[#allocation2 + $0x5c8] sm:$0xff]
    %v6096 = vld [vmem:[#allocation2 + $0x5d0] sm:$0xff]
    %v6097 = vld [vmem:[#allocation2 + $0x5d8] sm:$0xff]
    %v6098 = vld [vmem:[#allocation2 + $0x5e0] sm:$0xff]
    %v6099 = vld [vmem:[#allocation2 + $0x5e8] sm:$0xff]
    %v6100 = vld [vmem:[#allocation2 + $0x5f0] sm:$0xff]
    %v6101 = vld [vmem:[#allocation2 + $0x5f8] sm:$0xff]
    %v6110 = vunpack.c.l.b16 %v1526
    %v6111 = vunpack.c.l.b16 %v1527
    %v6112 = vunpack.c.l.b16 %v1528
    %v6113 = vunpack.c.l.b16 %v1529
    %v6114 = vunpack.c.l.b16 %v1530
    %v6115 = vunpack.c.l.b16 %v1531
    %v6116 = vunpack.c.l.b16 %v1532
    %v6117 = vunpack.c.l.b16 %v1533
    %v6118 = vpack.c.b16 %v6111, %v6110
    %v6119 = vpack.c.b16 %v6113, %v6112
    %v6120 = vpack.c.b16 %v6115, %v6114
    %v6121 = vpack.c.b16 %v6117, %v6116
    %v6138 = vunpack.c.l.b16 %v6086
    %v6139 = vunpack.c.h.b16 %v6086
    %v6140 = vunpack.c.l.b16 %v6087
    %v6141 = vunpack.c.h.b16 %v6087
    %v6142 = vunpack.c.l.b16 %v6088
    %v6143 = vunpack.c.h.b16 %v6088
    %v6144 = vunpack.c.l.b16 %v6089
    %v6145 = vunpack.c.h.b16 %v6089
    %v6146 = vunpack.c.l.b16 %v6090
    %v6147 = vunpack.c.h.b16 %v6090
    %v6148 = vunpack.c.l.b16 %v6091
    %v6149 = vunpack.c.h.b16 %v6091
    %v6150 = vunpack.c.l.b16 %v6092
    %v6151 = vunpack.c.h.b16 %v6092
    %v6152 = vunpack.c.l.b16 %v6093
    %v6153 = vunpack.c.h.b16 %v6093
    %v6154 = vunpack.c.l.b16 %v6094
    %v6155 = vunpack.c.h.b16 %v6094
    %v6156 = vunpack.c.l.b16 %v6095
    %v6157 = vunpack.c.h.b16 %v6095
    %v6158 = vunpack.c.l.b16 %v6096
    %v6159 = vunpack.c.h.b16 %v6096
    %v6160 = vunpack.c.l.b16 %v6097
    %v6161 = vunpack.c.h.b16 %v6097
    %v6162 = vunpack.c.l.b16 %v6098
    %v6163 = vunpack.c.h.b16 %v6098
    %v6164 = vunpack.c.l.b16 %v6099
    %v6165 = vunpack.c.h.b16 %v6099
    %v6166 = vunpack.c.l.b16 %v6100
    %v6167 = vunpack.c.h.b16 %v6100
    %v6168 = vunpack.c.l.b16 %v6101
    %v6169 = vunpack.c.h.b16 %v6101
    %v6170 = vpack.c.b16 %v6146, %v6138
    %v6171 = vpack.c.b16 %v6147, %v6139
    %v6172 = vpack.c.b16 %v6148, %v6140
    %v6173 = vpack.c.b16 %v6149, %v6141
    %v6174 = vpack.c.b16 %v6150, %v6142
    %v6175 = vpack.c.b16 %v6151, %v6143
    %v6176 = vpack.c.b16 %v6152, %v6144
    %v6177 = vpack.c.b16 %v6153, %v6145
    %v6178 = vpack.c.b16 %v6162, %v6154
    %v6179 = vpack.c.b16 %v6163, %v6155
    %v6180 = vpack.c.b16 %v6164, %v6156
    %v6181 = vpack.c.b16 %v6165, %v6157
    %v6182 = vpack.c.b16 %v6166, %v6158
    %v6183 = vpack.c.b16 %v6167, %v6159
    %v6184 = vpack.c.b16 %v6168, %v6160
    %v6185 = vpack.c.b16 %v6169, %v6161
    %v6203 = vsel %vm100, %v6118, 0
    %v6206 = vsel %vm100, %v6119, 0
    %v6209 = vsel %vm100, %v6120, 0
    %v6212 = vsel %vm100, %v6121, 0
    %6214 = vmatpush.bf16.msra.mxu0 0
    %6215 = vmatpush.bf16.msra.mxu0 0
    %6216 = vmatpush.bf16.msra.mxu0 0
    %6217 = vmatpush.bf16.msra.mxu0 0
    %6218 = vmatpush.bf16.msra.mxu0 0
    %6219 = vmatpush.bf16.msra.mxu0 0
    %6220 = vmatpush.bf16.msra.mxu0 %v6178
    %6221 = vmatpush.bf16.msra.mxu0 %v6170
    %6222 = vmatmul.bf16.gmra.mxu0 %v6203
    %v6223 = vpop.f32.mrf.mxu0
    %v6224 = vadd.f32 0.0, %v6223
    %v6225 = vpop.f32.mrf.mxu0
    %v6226 = vadd.f32 0.0, %v6225
    %6227 = vmatmul.bf16.gmra.mxu0 %v6206
    %v6228 = vpop.f32.mrf.mxu0
    %v6229 = vadd.f32 0.0, %v6228
    %v6230 = vpop.f32.mrf.mxu0
    %v6231 = vadd.f32 0.0, %v6230
    %6232 = vmatmul.bf16.gmra.mxu0 %v6209
    %v6233 = vpop.f32.mrf.mxu0
    %v6234 = vadd.f32 0.0, %v6233
    %v6235 = vpop.f32.mrf.mxu0
    %v6236 = vadd.f32 0.0, %v6235
    %6237 = vmatmul.bf16.gmra.mxu0 %v6212
    %v6238 = vpop.f32.mrf.mxu0
    %v6239 = vadd.f32 0.0, %v6238
    %v6240 = vpop.f32.mrf.mxu0
    %v6241 = vadd.f32 0.0, %v6240
    %6242 = vdwg.mxu0
    %6243 = vmatpush.bf16.msra.mxu0 0
    %6244 = vmatpush.bf16.msra.mxu0 0
    %6245 = vmatpush.bf16.msra.mxu0 0
    %6246 = vmatpush.bf16.msra.mxu0 0
    %6247 = vmatpush.bf16.msra.mxu0 0
    %6248 = vmatpush.bf16.msra.mxu0 0
    %6249 = vmatpush.bf16.msra.mxu0 %v6179
    %6250 = vmatpush.bf16.msra.mxu0 %v6171
    %6251 = vmatmul.bf16.gmra.mxu0 %v6203
    %v6252 = vpop.f32.mrf.mxu0
    %v6253 = vadd.f32 0.0, %v6252
    %v6254 = vpop.f32.mrf.mxu0
    %v6255 = vadd.f32 0.0, %v6254
    %6256 = vmatmul.bf16.gmra.mxu0 %v6206
    %v6257 = vpop.f32.mrf.mxu0
    %v6258 = vadd.f32 0.0, %v6257
    %v6259 = vpop.f32.mrf.mxu0
    %v6260 = vadd.f32 0.0, %v6259
    %6261 = vmatmul.bf16.gmra.mxu0 %v6209
    %v6262 = vpop.f32.mrf.mxu0
    %v6263 = vadd.f32 0.0, %v6262
    %v6264 = vpop.f32.mrf.mxu0
    %v6265 = vadd.f32 0.0, %v6264
    %6266 = vmatmul.bf16.gmra.mxu0 %v6212
    %v6267 = vpop.f32.mrf.mxu0
    %v6268 = vadd.f32 0.0, %v6267
    %v6269 = vpop.f32.mrf.mxu0
    %v6270 = vadd.f32 0.0, %v6269
    %6271 = vdwg.mxu0
    %6272 = vmatpush.bf16.msra.mxu0 0
    %6273 = vmatpush.bf16.msra.mxu0 0
    %6274 = vmatpush.bf16.msra.mxu0 0
    %6275 = vmatpush.bf16.msra.mxu0 0
    %6276 = vmatpush.bf16.msra.mxu0 0
    %6277 = vmatpush.bf16.msra.mxu0 0
    %6278 = vmatpush.bf16.msra.mxu0 %v6180
    %6279 = vmatpush.bf16.msra.mxu0 %v6172
    %6280 = vmatmul.bf16.gmra.mxu0 %v6203
    %v6281 = vpop.f32.mrf.mxu0
    %v6282 = vadd.f32 0.0, %v6281
    %v6283 = vpop.f32.mrf.mxu0
    %v6284 = vadd.f32 0.0, %v6283
    %6285 = vmatmul.bf16.gmra.mxu0 %v6206
    %v6286 = vpop.f32.mrf.mxu0
    %v6287 = vadd.f32 0.0, %v6286
    %v6288 = vpop.f32.mrf.mxu0
    %v6289 = vadd.f32 0.0, %v6288
    %6290 = vmatmul.bf16.gmra.mxu0 %v6209
    %v6291 = vpop.f32.mrf.mxu0
    %v6292 = vadd.f32 0.0, %v6291
    %v6293 = vpop.f32.mrf.mxu0
    %v6294 = vadd.f32 0.0, %v6293
    %6295 = vmatmul.bf16.gmra.mxu0 %v6212
    %v6296 = vpop.f32.mrf.mxu0
    %v6297 = vadd.f32 0.0, %v6296
    %v6298 = vpop.f32.mrf.mxu0
    %v6299 = vadd.f32 0.0, %v6298
    %6300 = vdwg.mxu0
    %6301 = vmatpush.bf16.msra.mxu0 0
    %6302 = vmatpush.bf16.msra.mxu0 0
    %6303 = vmatpush.bf16.msra.mxu0 0
    %6304 = vmatpush.bf16.msra.mxu0 0
    %6305 = vmatpush.bf16.msra.mxu0 0
    %6306 = vmatpush.bf16.msra.mxu0 0
    %6307 = vmatpush.bf16.msra.mxu0 %v6181
    %6308 = vmatpush.bf16.msra.mxu0 %v6173
    %6309 = vmatmul.bf16.gmra.mxu0 %v6203
    %v6310 = vpop.f32.mrf.mxu0
    %v6311 = vadd.f32 0.0, %v6310
    %v6312 = vpop.f32.mrf.mxu0
    %v6313 = vadd.f32 0.0, %v6312
    %6314 = vmatmul.bf16.gmra.mxu0 %v6206
    %v6315 = vpop.f32.mrf.mxu0
    %v6316 = vadd.f32 0.0, %v6315
    %v6317 = vpop.f32.mrf.mxu0
    %v6318 = vadd.f32 0.0, %v6317
    %6319 = vmatmul.bf16.gmra.mxu0 %v6209
    %v6320 = vpop.f32.mrf.mxu0
    %v6321 = vadd.f32 0.0, %v6320
    %v6322 = vpop.f32.mrf.mxu0
    %v6323 = vadd.f32 0.0, %v6322
    %6324 = vmatmul.bf16.gmra.mxu0 %v6212
    %v6325 = vpop.f32.mrf.mxu0
    %v6326 = vadd.f32 0.0, %v6325
    %v6327 = vpop.f32.mrf.mxu0
    %v6328 = vadd.f32 0.0, %v6327
    %6329 = vdwg.mxu0
    %6330 = vmatpush.bf16.msra.mxu0 0
    %6331 = vmatpush.bf16.msra.mxu0 0
    %6332 = vmatpush.bf16.msra.mxu0 0
    %6333 = vmatpush.bf16.msra.mxu0 0
    %6334 = vmatpush.bf16.msra.mxu0 0
    %6335 = vmatpush.bf16.msra.mxu0 0
    %6336 = vmatpush.bf16.msra.mxu0 %v6182
    %6337 = vmatpush.bf16.msra.mxu0 %v6174
    %6338 = vmatmul.bf16.gmra.mxu0 %v6203
    %v6339 = vpop.f32.mrf.mxu0
    %v6340 = vadd.f32 0.0, %v6339
    %v6341 = vpop.f32.mrf.mxu0
    %v6342 = vadd.f32 0.0, %v6341
    %6343 = vmatmul.bf16.gmra.mxu0 %v6206
    %v6344 = vpop.f32.mrf.mxu0
    %v6345 = vadd.f32 0.0, %v6344
    %v6346 = vpop.f32.mrf.mxu0
    %v6347 = vadd.f32 0.0, %v6346
    %6348 = vmatmul.bf16.gmra.mxu0 %v6209
    %v6349 = vpop.f32.mrf.mxu0
    %v6350 = vadd.f32 0.0, %v6349
    %v6351 = vpop.f32.mrf.mxu0
    %v6352 = vadd.f32 0.0, %v6351
    %6353 = vmatmul.bf16.gmra.mxu0 %v6212
    %v6354 = vpop.f32.mrf.mxu0
    %v6355 = vadd.f32 0.0, %v6354
    %v6356 = vpop.f32.mrf.mxu0
    %v6357 = vadd.f32 0.0, %v6356
    %6358 = vdwg.mxu0
    %6359 = vmatpush.bf16.msra.mxu0 0
    %6360 = vmatpush.bf16.msra.mxu0 0
    %6361 = vmatpush.bf16.msra.mxu0 0
    %6362 = vmatpush.bf16.msra.mxu0 0
    %6363 = vmatpush.bf16.msra.mxu0 0
    %6364 = vmatpush.bf16.msra.mxu0 0
    %6365 = vmatpush.bf16.msra.mxu0 %v6183
    %6366 = vmatpush.bf16.msra.mxu0 %v6175
    %6367 = vmatmul.bf16.gmra.mxu0 %v6203
    %v6368 = vpop.f32.mrf.mxu0
    %v6369 = vadd.f32 0.0, %v6368
    %v6370 = vpop.f32.mrf.mxu0
    %v6371 = vadd.f32 0.0, %v6370
    %6372 = vmatmul.bf16.gmra.mxu0 %v6206
    %v6373 = vpop.f32.mrf.mxu0
    %v6374 = vadd.f32 0.0, %v6373
    %v6375 = vpop.f32.mrf.mxu0
    %v6376 = vadd.f32 0.0, %v6375
    %6377 = vmatmul.bf16.gmra.mxu0 %v6209
    %v6378 = vpop.f32.mrf.mxu0
    %v6379 = vadd.f32 0.0, %v6378
    %v6380 = vpop.f32.mrf.mxu0
    %v6381 = vadd.f32 0.0, %v6380
    %6382 = vmatmul.bf16.gmra.mxu0 %v6212
    %v6383 = vpop.f32.mrf.mxu0
    %v6384 = vadd.f32 0.0, %v6383
    %v6385 = vpop.f32.mrf.mxu0
    %v6386 = vadd.f32 0.0, %v6385
    %6387 = vdwg.mxu0
    %6388 = vmatpush.bf16.msra.mxu0 0
    %6389 = vmatpush.bf16.msra.mxu0 0
    %6390 = vmatpush.bf16.msra.mxu0 0
    %6391 = vmatpush.bf16.msra.mxu0 0
    %6392 = vmatpush.bf16.msra.mxu0 0
    %6393 = vmatpush.bf16.msra.mxu0 0
    %6394 = vmatpush.bf16.msra.mxu0 %v6184
    %6395 = vmatpush.bf16.msra.mxu0 %v6176
    %6396 = vmatmul.bf16.gmra.mxu0 %v6203
    %v6397 = vpop.f32.mrf.mxu0
    %v6398 = vadd.f32 0.0, %v6397
    %v6399 = vpop.f32.mrf.mxu0
    %v6400 = vadd.f32 0.0, %v6399
    %6401 = vmatmul.bf16.gmra.mxu0 %v6206
    %v6402 = vpop.f32.mrf.mxu0
    %v6403 = vadd.f32 0.0, %v6402
    %v6404 = vpop.f32.mrf.mxu0
    %v6405 = vadd.f32 0.0, %v6404
    %6406 = vmatmul.bf16.gmra.mxu0 %v6209
    %v6407 = vpop.f32.mrf.mxu0
    %v6408 = vadd.f32 0.0, %v6407
    %v6409 = vpop.f32.mrf.mxu0
    %v6410 = vadd.f32 0.0, %v6409
    %6411 = vmatmul.bf16.gmra.mxu0 %v6212
    %v6412 = vpop.f32.mrf.mxu0
    %v6413 = vadd.f32 0.0, %v6412
    %v6414 = vpop.f32.mrf.mxu0
    %v6415 = vadd.f32 0.0, %v6414
    %6416 = vdwg.mxu0
    %6417 = vmatpush.bf16.msra.mxu0 0
    %6418 = vmatpush.bf16.msra.mxu0 0
    %6419 = vmatpush.bf16.msra.mxu0 0
    %6420 = vmatpush.bf16.msra.mxu0 0
    %6421 = vmatpush.bf16.msra.mxu0 0
    %6422 = vmatpush.bf16.msra.mxu0 0
    %6423 = vmatpush.bf16.msra.mxu0 %v6185
    %6424 = vmatpush.bf16.msra.mxu0 %v6177
    %6425 = vmatmul.bf16.gmra.mxu0 %v6203
    %v6426 = vpop.f32.mrf.mxu0
    %v6427 = vadd.f32 0.0, %v6426
    %v6428 = vpop.f32.mrf.mxu0
    %v6429 = vadd.f32 0.0, %v6428
    %6430 = vmatmul.bf16.gmra.mxu0 %v6206
    %v6431 = vpop.f32.mrf.mxu0
    %v6432 = vadd.f32 0.0, %v6431
    %v6433 = vpop.f32.mrf.mxu0
    %v6434 = vadd.f32 0.0, %v6433
    %6435 = vmatmul.bf16.gmra.mxu0 %v6209
    %v6436 = vpop.f32.mrf.mxu0
    %v6437 = vadd.f32 0.0, %v6436
    %v6438 = vpop.f32.mrf.mxu0
    %v6439 = vadd.f32 0.0, %v6438
    %6440 = vmatmul.bf16.gmra.mxu0 %v6212
    %v6441 = vpop.f32.mrf.mxu0
    %v6442 = vadd.f32 0.0, %v6441
    %v6443 = vpop.f32.mrf.mxu0
    %v6444 = vadd.f32 0.0, %v6443
    %6445 = vdwg.mxu0
    %v6446 = vadd.f32 %v6022, %v6224
    %v6447 = vadd.f32 %v6023, %v6253
    %v6448 = vadd.f32 %v6024, %v6282
    %v6449 = vadd.f32 %v6025, %v6311
    %v6450 = vadd.f32 %v6026, %v6340
    %v6451 = vadd.f32 %v6027, %v6369
    %v6452 = vadd.f32 %v6028, %v6398
    %v6453 = vadd.f32 %v6029, %v6427
    %v6454 = vadd.f32 %v6030, %v6226
    %v6455 = vadd.f32 %v6031, %v6255
    %v6456 = vadd.f32 %v6032, %v6284
    %v6457 = vadd.f32 %v6033, %v6313
    %v6458 = vadd.f32 %v6034, %v6342
    %v6459 = vadd.f32 %v6035, %v6371
    %v6460 = vadd.f32 %v6036, %v6400
    %v6461 = vadd.f32 %v6037, %v6429
    %v6462 = vadd.f32 %v6038, %v6229
    %v6463 = vadd.f32 %v6039, %v6258
    %v6464 = vadd.f32 %v6040, %v6287
    %v6465 = vadd.f32 %v6041, %v6316
    %v6466 = vadd.f32 %v6042, %v6345
    %v6467 = vadd.f32 %v6043, %v6374
    %v6468 = vadd.f32 %v6044, %v6403
    %v6469 = vadd.f32 %v6045, %v6432
    %v6470 = vadd.f32 %v6046, %v6231
    %v6471 = vadd.f32 %v6047, %v6260
    %v6472 = vadd.f32 %v6048, %v6289
    %v6473 = vadd.f32 %v6049, %v6318
    %v6474 = vadd.f32 %v6050, %v6347
    %v6475 = vadd.f32 %v6051, %v6376
    %v6476 = vadd.f32 %v6052, %v6405
    %v6477 = vadd.f32 %v6053, %v6434
    %v6478 = vadd.f32 %v6054, %v6234
    %v6479 = vadd.f32 %v6055, %v6263
    %v6480 = vadd.f32 %v6056, %v6292
    %v6481 = vadd.f32 %v6057, %v6321
    %v6482 = vadd.f32 %v6058, %v6350
    %v6483 = vadd.f32 %v6059, %v6379
    %v6484 = vadd.f32 %v6060, %v6408
    %v6485 = vadd.f32 %v6061, %v6437
    %v6486 = vadd.f32 %v6062, %v6236
    %v6487 = vadd.f32 %v6063, %v6265
    %v6488 = vadd.f32 %v6064, %v6294
    %v6489 = vadd.f32 %v6065, %v6323
    %v6490 = vadd.f32 %v6066, %v6352
    %v6491 = vadd.f32 %v6067, %v6381
    %v6492 = vadd.f32 %v6068, %v6410
    %v6493 = vadd.f32 %v6069, %v6439
    %v6494 = vadd.f32 %v6070, %v6239
    %v6495 = vadd.f32 %v6071, %v6268
    %v6496 = vadd.f32 %v6072, %v6297
    %v6497 = vadd.f32 %v6073, %v6326
    %v6498 = vadd.f32 %v6074, %v6355
    %v6499 = vadd.f32 %v6075, %v6384
    %v6500 = vadd.f32 %v6076, %v6413
    %v6501 = vadd.f32 %v6077, %v6442
    %v6502 = vadd.f32 %v6078, %v6241
    %v6503 = vadd.f32 %v6079, %v6270
    %v6504 = vadd.f32 %v6080, %v6299
    %v6505 = vadd.f32 %v6081, %v6328
    %v6506 = vadd.f32 %v6082, %v6357
    %v6507 = vadd.f32 %v6083, %v6386
    %v6508 = vadd.f32 %v6084, %v6415
    %v6509 = vadd.f32 %v6085, %v6444
    %v6510 = vld [vmem:[#allocation2 + $0x600] sm:$0xff]
    %v6511 = vld [vmem:[#allocation2 + $0x608] sm:$0xff]
    %v6512 = vld [vmem:[#allocation2 + $0x610] sm:$0xff]
    %v6513 = vld [vmem:[#allocation2 + $0x618] sm:$0xff]
    %v6514 = vld [vmem:[#allocation2 + $0x620] sm:$0xff]
    %v6515 = vld [vmem:[#allocation2 + $0x628] sm:$0xff]
    %v6516 = vld [vmem:[#allocation2 + $0x630] sm:$0xff]
    %v6517 = vld [vmem:[#allocation2 + $0x638] sm:$0xff]
    %v6518 = vld [vmem:[#allocation2 + $0x640] sm:$0xff]
    %v6519 = vld [vmem:[#allocation2 + $0x648] sm:$0xff]
    %v6520 = vld [vmem:[#allocation2 + $0x650] sm:$0xff]
    %v6521 = vld [vmem:[#allocation2 + $0x658] sm:$0xff]
    %v6522 = vld [vmem:[#allocation2 + $0x660] sm:$0xff]
    %v6523 = vld [vmem:[#allocation2 + $0x668] sm:$0xff]
    %v6524 = vld [vmem:[#allocation2 + $0x670] sm:$0xff]
    %v6525 = vld [vmem:[#allocation2 + $0x678] sm:$0xff]
    %v6534 = vunpack.c.l.b16 %v1534
    %v6535 = vunpack.c.l.b16 %v1535
    %v6536 = vunpack.c.l.b16 %v1536
    %v6537 = vunpack.c.l.b16 %v1537
    %v6538 = vunpack.c.l.b16 %v1538
    %v6539 = vunpack.c.l.b16 %v1539
    %v6540 = vunpack.c.l.b16 %v1540
    %v6541 = vunpack.c.l.b16 %v1541
    %v6542 = vpack.c.b16 %v6535, %v6534
    %v6543 = vpack.c.b16 %v6537, %v6536
    %v6544 = vpack.c.b16 %v6539, %v6538
    %v6545 = vpack.c.b16 %v6541, %v6540
    %v6562 = vunpack.c.l.b16 %v6510
    %v6563 = vunpack.c.h.b16 %v6510
    %v6564 = vunpack.c.l.b16 %v6511
    %v6565 = vunpack.c.h.b16 %v6511
    %v6566 = vunpack.c.l.b16 %v6512
    %v6567 = vunpack.c.h.b16 %v6512
    %v6568 = vunpack.c.l.b16 %v6513
    %v6569 = vunpack.c.h.b16 %v6513
    %v6570 = vunpack.c.l.b16 %v6514
    %v6571 = vunpack.c.h.b16 %v6514
    %v6572 = vunpack.c.l.b16 %v6515
    %v6573 = vunpack.c.h.b16 %v6515
    %v6574 = vunpack.c.l.b16 %v6516
    %v6575 = vunpack.c.h.b16 %v6516
    %v6576 = vunpack.c.l.b16 %v6517
    %v6577 = vunpack.c.h.b16 %v6517
    %v6578 = vunpack.c.l.b16 %v6518
    %v6579 = vunpack.c.h.b16 %v6518
    %v6580 = vunpack.c.l.b16 %v6519
    %v6581 = vunpack.c.h.b16 %v6519
    %v6582 = vunpack.c.l.b16 %v6520
    %v6583 = vunpack.c.h.b16 %v6520
    %v6584 = vunpack.c.l.b16 %v6521
    %v6585 = vunpack.c.h.b16 %v6521
    %v6586 = vunpack.c.l.b16 %v6522
    %v6587 = vunpack.c.h.b16 %v6522
    %v6588 = vunpack.c.l.b16 %v6523
    %v6589 = vunpack.c.h.b16 %v6523
    %v6590 = vunpack.c.l.b16 %v6524
    %v6591 = vunpack.c.h.b16 %v6524
    %v6592 = vunpack.c.l.b16 %v6525
    %v6593 = vunpack.c.h.b16 %v6525
    %v6594 = vpack.c.b16 %v6570, %v6562
    %v6595 = vpack.c.b16 %v6571, %v6563
    %v6596 = vpack.c.b16 %v6572, %v6564
    %v6597 = vpack.c.b16 %v6573, %v6565
    %v6598 = vpack.c.b16 %v6574, %v6566
    %v6599 = vpack.c.b16 %v6575, %v6567
    %v6600 = vpack.c.b16 %v6576, %v6568
    %v6601 = vpack.c.b16 %v6577, %v6569
    %v6602 = vpack.c.b16 %v6586, %v6578
    %v6603 = vpack.c.b16 %v6587, %v6579
    %v6604 = vpack.c.b16 %v6588, %v6580
    %v6605 = vpack.c.b16 %v6589, %v6581
    %v6606 = vpack.c.b16 %v6590, %v6582
    %v6607 = vpack.c.b16 %v6591, %v6583
    %v6608 = vpack.c.b16 %v6592, %v6584
    %v6609 = vpack.c.b16 %v6593, %v6585
    %v6627 = vsel %vm100, %v6542, 0
    %v6630 = vsel %vm100, %v6543, 0
    %v6633 = vsel %vm100, %v6544, 0
    %v6636 = vsel %vm100, %v6545, 0
    %6638 = vmatpush.bf16.msra.mxu0 0
    %6639 = vmatpush.bf16.msra.mxu0 0
    %6640 = vmatpush.bf16.msra.mxu0 0
    %6641 = vmatpush.bf16.msra.mxu0 0
    %6642 = vmatpush.bf16.msra.mxu0 0
    %6643 = vmatpush.bf16.msra.mxu0 0
    %6644 = vmatpush.bf16.msra.mxu0 %v6602
    %6645 = vmatpush.bf16.msra.mxu0 %v6594
    %6646 = vmatmul.bf16.gmra.mxu0 %v6627
    %v6647 = vpop.f32.mrf.mxu0
    %v6648 = vadd.f32 0.0, %v6647
    %v6649 = vpop.f32.mrf.mxu0
    %v6650 = vadd.f32 0.0, %v6649
    %6651 = vmatmul.bf16.gmra.mxu0 %v6630
    %v6652 = vpop.f32.mrf.mxu0
    %v6653 = vadd.f32 0.0, %v6652
    %v6654 = vpop.f32.mrf.mxu0
    %v6655 = vadd.f32 0.0, %v6654
    %6656 = vmatmul.bf16.gmra.mxu0 %v6633
    %v6657 = vpop.f32.mrf.mxu0
    %v6658 = vadd.f32 0.0, %v6657
    %v6659 = vpop.f32.mrf.mxu0
    %v6660 = vadd.f32 0.0, %v6659
    %6661 = vmatmul.bf16.gmra.mxu0 %v6636
    %v6662 = vpop.f32.mrf.mxu0
    %v6663 = vadd.f32 0.0, %v6662
    %v6664 = vpop.f32.mrf.mxu0
    %v6665 = vadd.f32 0.0, %v6664
    %6666 = vdwg.mxu0
    %6667 = vmatpush.bf16.msra.mxu0 0
    %6668 = vmatpush.bf16.msra.mxu0 0
    %6669 = vmatpush.bf16.msra.mxu0 0
    %6670 = vmatpush.bf16.msra.mxu0 0
    %6671 = vmatpush.bf16.msra.mxu0 0
    %6672 = vmatpush.bf16.msra.mxu0 0
    %6673 = vmatpush.bf16.msra.mxu0 %v6603
    %6674 = vmatpush.bf16.msra.mxu0 %v6595
    %6675 = vmatmul.bf16.gmra.mxu0 %v6627
    %v6676 = vpop.f32.mrf.mxu0
    %v6677 = vadd.f32 0.0, %v6676
    %v6678 = vpop.f32.mrf.mxu0
    %v6679 = vadd.f32 0.0, %v6678
    %6680 = vmatmul.bf16.gmra.mxu0 %v6630
    %v6681 = vpop.f32.mrf.mxu0
    %v6682 = vadd.f32 0.0, %v6681
    %v6683 = vpop.f32.mrf.mxu0
    %v6684 = vadd.f32 0.0, %v6683
    %6685 = vmatmul.bf16.gmra.mxu0 %v6633
    %v6686 = vpop.f32.mrf.mxu0
    %v6687 = vadd.f32 0.0, %v6686
    %v6688 = vpop.f32.mrf.mxu0
    %v6689 = vadd.f32 0.0, %v6688
    %6690 = vmatmul.bf16.gmra.mxu0 %v6636
    %v6691 = vpop.f32.mrf.mxu0
    %v6692 = vadd.f32 0.0, %v6691
    %v6693 = vpop.f32.mrf.mxu0
    %v6694 = vadd.f32 0.0, %v6693
    %6695 = vdwg.mxu0
    %6696 = vmatpush.bf16.msra.mxu0 0
    %6697 = vmatpush.bf16.msra.mxu0 0
    %6698 = vmatpush.bf16.msra.mxu0 0
    %6699 = vmatpush.bf16.msra.mxu0 0
    %6700 = vmatpush.bf16.msra.mxu0 0
    %6701 = vmatpush.bf16.msra.mxu0 0
    %6702 = vmatpush.bf16.msra.mxu0 %v6604
    %6703 = vmatpush.bf16.msra.mxu0 %v6596
    %6704 = vmatmul.bf16.gmra.mxu0 %v6627
    %v6705 = vpop.f32.mrf.mxu0
    %v6706 = vadd.f32 0.0, %v6705
    %v6707 = vpop.f32.mrf.mxu0
    %v6708 = vadd.f32 0.0, %v6707
    %6709 = vmatmul.bf16.gmra.mxu0 %v6630
    %v6710 = vpop.f32.mrf.mxu0
    %v6711 = vadd.f32 0.0, %v6710
    %v6712 = vpop.f32.mrf.mxu0
    %v6713 = vadd.f32 0.0, %v6712
    %6714 = vmatmul.bf16.gmra.mxu0 %v6633
    %v6715 = vpop.f32.mrf.mxu0
    %v6716 = vadd.f32 0.0, %v6715
    %v6717 = vpop.f32.mrf.mxu0
    %v6718 = vadd.f32 0.0, %v6717
    %6719 = vmatmul.bf16.gmra.mxu0 %v6636
    %v6720 = vpop.f32.mrf.mxu0
    %v6721 = vadd.f32 0.0, %v6720
    %v6722 = vpop.f32.mrf.mxu0
    %v6723 = vadd.f32 0.0, %v6722
    %6724 = vdwg.mxu0
    %6725 = vmatpush.bf16.msra.mxu0 0
    %6726 = vmatpush.bf16.msra.mxu0 0
    %6727 = vmatpush.bf16.msra.mxu0 0
    %6728 = vmatpush.bf16.msra.mxu0 0
    %6729 = vmatpush.bf16.msra.mxu0 0
    %6730 = vmatpush.bf16.msra.mxu0 0
    %6731 = vmatpush.bf16.msra.mxu0 %v6605
    %6732 = vmatpush.bf16.msra.mxu0 %v6597
    %6733 = vmatmul.bf16.gmra.mxu0 %v6627
    %v6734 = vpop.f32.mrf.mxu0
    %v6735 = vadd.f32 0.0, %v6734
    %v6736 = vpop.f32.mrf.mxu0
    %v6737 = vadd.f32 0.0, %v6736
    %6738 = vmatmul.bf16.gmra.mxu0 %v6630
    %v6739 = vpop.f32.mrf.mxu0
    %v6740 = vadd.f32 0.0, %v6739
    %v6741 = vpop.f32.mrf.mxu0
    %v6742 = vadd.f32 0.0, %v6741
    %6743 = vmatmul.bf16.gmra.mxu0 %v6633
    %v6744 = vpop.f32.mrf.mxu0
    %v6745 = vadd.f32 0.0, %v6744
    %v6746 = vpop.f32.mrf.mxu0
    %v6747 = vadd.f32 0.0, %v6746
    %6748 = vmatmul.bf16.gmra.mxu0 %v6636
    %v6749 = vpop.f32.mrf.mxu0
    %v6750 = vadd.f32 0.0, %v6749
    %v6751 = vpop.f32.mrf.mxu0
    %v6752 = vadd.f32 0.0, %v6751
    %6753 = vdwg.mxu0
    %6754 = vmatpush.bf16.msra.mxu0 0
    %6755 = vmatpush.bf16.msra.mxu0 0
    %6756 = vmatpush.bf16.msra.mxu0 0
    %6757 = vmatpush.bf16.msra.mxu0 0
    %6758 = vmatpush.bf16.msra.mxu0 0
    %6759 = vmatpush.bf16.msra.mxu0 0
    %6760 = vmatpush.bf16.msra.mxu0 %v6606
    %6761 = vmatpush.bf16.msra.mxu0 %v6598
    %6762 = vmatmul.bf16.gmra.mxu0 %v6627
    %v6763 = vpop.f32.mrf.mxu0
    %v6764 = vadd.f32 0.0, %v6763
    %v6765 = vpop.f32.mrf.mxu0
    %v6766 = vadd.f32 0.0, %v6765
    %6767 = vmatmul.bf16.gmra.mxu0 %v6630
    %v6768 = vpop.f32.mrf.mxu0
    %v6769 = vadd.f32 0.0, %v6768
    %v6770 = vpop.f32.mrf.mxu0
    %v6771 = vadd.f32 0.0, %v6770
    %6772 = vmatmul.bf16.gmra.mxu0 %v6633
    %v6773 = vpop.f32.mrf.mxu0
    %v6774 = vadd.f32 0.0, %v6773
    %v6775 = vpop.f32.mrf.mxu0
    %v6776 = vadd.f32 0.0, %v6775
    %6777 = vmatmul.bf16.gmra.mxu0 %v6636
    %v6778 = vpop.f32.mrf.mxu0
    %v6779 = vadd.f32 0.0, %v6778
    %v6780 = vpop.f32.mrf.mxu0
    %v6781 = vadd.f32 0.0, %v6780
    %6782 = vdwg.mxu0
    %6783 = vmatpush.bf16.msra.mxu0 0
    %6784 = vmatpush.bf16.msra.mxu0 0
    %6785 = vmatpush.bf16.msra.mxu0 0
    %6786 = vmatpush.bf16.msra.mxu0 0
    %6787 = vmatpush.bf16.msra.mxu0 0
    %6788 = vmatpush.bf16.msra.mxu0 0
    %6789 = vmatpush.bf16.msra.mxu0 %v6607
    %6790 = vmatpush.bf16.msra.mxu0 %v6599
    %6791 = vmatmul.bf16.gmra.mxu0 %v6627
    %v6792 = vpop.f32.mrf.mxu0
    %v6793 = vadd.f32 0.0, %v6792
    %v6794 = vpop.f32.mrf.mxu0
    %v6795 = vadd.f32 0.0, %v6794
    %6796 = vmatmul.bf16.gmra.mxu0 %v6630
    %v6797 = vpop.f32.mrf.mxu0
    %v6798 = vadd.f32 0.0, %v6797
    %v6799 = vpop.f32.mrf.mxu0
    %v6800 = vadd.f32 0.0, %v6799
    %6801 = vmatmul.bf16.gmra.mxu0 %v6633
    %v6802 = vpop.f32.mrf.mxu0
    %v6803 = vadd.f32 0.0, %v6802
    %v6804 = vpop.f32.mrf.mxu0
    %v6805 = vadd.f32 0.0, %v6804
    %6806 = vmatmul.bf16.gmra.mxu0 %v6636
    %v6807 = vpop.f32.mrf.mxu0
    %v6808 = vadd.f32 0.0, %v6807
    %v6809 = vpop.f32.mrf.mxu0
    %v6810 = vadd.f32 0.0, %v6809
    %6811 = vdwg.mxu0
    %6812 = vmatpush.bf16.msra.mxu0 0
    %6813 = vmatpush.bf16.msra.mxu0 0
    %6814 = vmatpush.bf16.msra.mxu0 0
    %6815 = vmatpush.bf16.msra.mxu0 0
    %6816 = vmatpush.bf16.msra.mxu0 0
    %6817 = vmatpush.bf16.msra.mxu0 0
    %6818 = vmatpush.bf16.msra.mxu0 %v6608
    %6819 = vmatpush.bf16.msra.mxu0 %v6600
    %6820 = vmatmul.bf16.gmra.mxu0 %v6627
    %v6821 = vpop.f32.mrf.mxu0
    %v6822 = vadd.f32 0.0, %v6821
    %v6823 = vpop.f32.mrf.mxu0
    %v6824 = vadd.f32 0.0, %v6823
    %6825 = vmatmul.bf16.gmra.mxu0 %v6630
    %v6826 = vpop.f32.mrf.mxu0
    %v6827 = vadd.f32 0.0, %v6826
    %v6828 = vpop.f32.mrf.mxu0
    %v6829 = vadd.f32 0.0, %v6828
    %6830 = vmatmul.bf16.gmra.mxu0 %v6633
    %v6831 = vpop.f32.mrf.mxu0
    %v6832 = vadd.f32 0.0, %v6831
    %v6833 = vpop.f32.mrf.mxu0
    %v6834 = vadd.f32 0.0, %v6833
    %6835 = vmatmul.bf16.gmra.mxu0 %v6636
    %v6836 = vpop.f32.mrf.mxu0
    %v6837 = vadd.f32 0.0, %v6836
    %v6838 = vpop.f32.mrf.mxu0
    %v6839 = vadd.f32 0.0, %v6838
    %6840 = vdwg.mxu0
    %6841 = vmatpush.bf16.msra.mxu0 0
    %6842 = vmatpush.bf16.msra.mxu0 0
    %6843 = vmatpush.bf16.msra.mxu0 0
    %6844 = vmatpush.bf16.msra.mxu0 0
    %6845 = vmatpush.bf16.msra.mxu0 0
    %6846 = vmatpush.bf16.msra.mxu0 0
    %6847 = vmatpush.bf16.msra.mxu0 %v6609
    %6848 = vmatpush.bf16.msra.mxu0 %v6601
    %6849 = vmatmul.bf16.gmra.mxu0 %v6627
    %v6850 = vpop.f32.mrf.mxu0
    %v6851 = vadd.f32 0.0, %v6850
    %v6852 = vpop.f32.mrf.mxu0
    %v6853 = vadd.f32 0.0, %v6852
    %6854 = vmatmul.bf16.gmra.mxu0 %v6630
    %v6855 = vpop.f32.mrf.mxu0
    %v6856 = vadd.f32 0.0, %v6855
    %v6857 = vpop.f32.mrf.mxu0
    %v6858 = vadd.f32 0.0, %v6857
    %6859 = vmatmul.bf16.gmra.mxu0 %v6633
    %v6860 = vpop.f32.mrf.mxu0
    %v6861 = vadd.f32 0.0, %v6860
    %v6862 = vpop.f32.mrf.mxu0
    %v6863 = vadd.f32 0.0, %v6862
    %6864 = vmatmul.bf16.gmra.mxu0 %v6636
    %v6865 = vpop.f32.mrf.mxu0
    %v6866 = vadd.f32 0.0, %v6865
    %v6867 = vpop.f32.mrf.mxu0
    %v6868 = vadd.f32 0.0, %v6867
    %6869 = vdwg.mxu0
    %v6870 = vadd.f32 %v6446, %v6648
    %v6871 = vadd.f32 %v6447, %v6677
    %v6872 = vadd.f32 %v6448, %v6706
    %v6873 = vadd.f32 %v6449, %v6735
    %v6874 = vadd.f32 %v6450, %v6764
    %v6875 = vadd.f32 %v6451, %v6793
    %v6876 = vadd.f32 %v6452, %v6822
    %v6877 = vadd.f32 %v6453, %v6851
    %v6878 = vadd.f32 %v6454, %v6650
    %v6879 = vadd.f32 %v6455, %v6679
    %v6880 = vadd.f32 %v6456, %v6708
    %v6881 = vadd.f32 %v6457, %v6737
    %v6882 = vadd.f32 %v6458, %v6766
    %v6883 = vadd.f32 %v6459, %v6795
    %v6884 = vadd.f32 %v6460, %v6824
    %v6885 = vadd.f32 %v6461, %v6853
    %v6886 = vadd.f32 %v6462, %v6653
    %v6887 = vadd.f32 %v6463, %v6682
    %v6888 = vadd.f32 %v6464, %v6711
    %v6889 = vadd.f32 %v6465, %v6740
    %v6890 = vadd.f32 %v6466, %v6769
    %v6891 = vadd.f32 %v6467, %v6798
    %v6892 = vadd.f32 %v6468, %v6827
    %v6893 = vadd.f32 %v6469, %v6856
    %v6894 = vadd.f32 %v6470, %v6655
    %v6895 = vadd.f32 %v6471, %v6684
    %v6896 = vadd.f32 %v6472, %v6713
    %v6897 = vadd.f32 %v6473, %v6742
    %v6898 = vadd.f32 %v6474, %v6771
    %v6899 = vadd.f32 %v6475, %v6800
    %v6900 = vadd.f32 %v6476, %v6829
    %v6901 = vadd.f32 %v6477, %v6858
    %v6902 = vadd.f32 %v6478, %v6658
    %v6903 = vadd.f32 %v6479, %v6687
    %v6904 = vadd.f32 %v6480, %v6716
    %v6905 = vadd.f32 %v6481, %v6745
    %v6906 = vadd.f32 %v6482, %v6774
    %v6907 = vadd.f32 %v6483, %v6803
    %v6908 = vadd.f32 %v6484, %v6832
    %v6909 = vadd.f32 %v6485, %v6861
    %v6910 = vadd.f32 %v6486, %v6660
    %v6911 = vadd.f32 %v6487, %v6689
    %v6912 = vadd.f32 %v6488, %v6718
    %v6913 = vadd.f32 %v6489, %v6747
    %v6914 = vadd.f32 %v6490, %v6776
    %v6915 = vadd.f32 %v6491, %v6805
    %v6916 = vadd.f32 %v6492, %v6834
    %v6917 = vadd.f32 %v6493, %v6863
    %v6918 = vadd.f32 %v6494, %v6663
    %v6919 = vadd.f32 %v6495, %v6692
    %v6920 = vadd.f32 %v6496, %v6721
    %v6921 = vadd.f32 %v6497, %v6750
    %v6922 = vadd.f32 %v6498, %v6779
    %v6923 = vadd.f32 %v6499, %v6808
    %v6924 = vadd.f32 %v6500, %v6837
    %v6925 = vadd.f32 %v6501, %v6866
    %v6926 = vadd.f32 %v6502, %v6665
    %v6927 = vadd.f32 %v6503, %v6694
    %v6928 = vadd.f32 %v6504, %v6723
    %v6929 = vadd.f32 %v6505, %v6752
    %v6930 = vadd.f32 %v6506, %v6781
    %v6931 = vadd.f32 %v6507, %v6810
    %v6932 = vadd.f32 %v6508, %v6839
    %v6933 = vadd.f32 %v6509, %v6868
    %v6934 = vld [vmem:[#allocation2 + $0x680] sm:$0xff]
    %v6935 = vld [vmem:[#allocation2 + $0x688] sm:$0xff]
    %v6936 = vld [vmem:[#allocation2 + $0x690] sm:$0xff]
    %v6937 = vld [vmem:[#allocation2 + $0x698] sm:$0xff]
    %v6938 = vld [vmem:[#allocation2 + $0x6a0] sm:$0xff]
    %v6939 = vld [vmem:[#allocation2 + $0x6a8] sm:$0xff]
    %v6940 = vld [vmem:[#allocation2 + $0x6b0] sm:$0xff]
    %v6941 = vld [vmem:[#allocation2 + $0x6b8] sm:$0xff]
    %v6942 = vld [vmem:[#allocation2 + $0x6c0] sm:$0xff]
    %v6943 = vld [vmem:[#allocation2 + $0x6c8] sm:$0xff]
    %v6944 = vld [vmem:[#allocation2 + $0x6d0] sm:$0xff]
    %v6945 = vld [vmem:[#allocation2 + $0x6d8] sm:$0xff]
    %v6946 = vld [vmem:[#allocation2 + $0x6e0] sm:$0xff]
    %v6947 = vld [vmem:[#allocation2 + $0x6e8] sm:$0xff]
    %v6948 = vld [vmem:[#allocation2 + $0x6f0] sm:$0xff]
    %v6949 = vld [vmem:[#allocation2 + $0x6f8] sm:$0xff]
    %v6958 = vunpack.c.l.b16 %v1542
    %v6959 = vunpack.c.l.b16 %v1543
    %v6960 = vunpack.c.l.b16 %v1544
    %v6961 = vunpack.c.l.b16 %v1545
    %v6962 = vunpack.c.l.b16 %v1546
    %v6963 = vunpack.c.l.b16 %v1547
    %v6964 = vunpack.c.l.b16 %v1548
    %v6965 = vunpack.c.l.b16 %v1549
    %v6966 = vpack.c.b16 %v6959, %v6958
    %v6967 = vpack.c.b16 %v6961, %v6960
    %v6968 = vpack.c.b16 %v6963, %v6962
    %v6969 = vpack.c.b16 %v6965, %v6964
    %v6986 = vunpack.c.l.b16 %v6934
    %v6987 = vunpack.c.h.b16 %v6934
    %v6988 = vunpack.c.l.b16 %v6935
    %v6989 = vunpack.c.h.b16 %v6935
    %v6990 = vunpack.c.l.b16 %v6936
    %v6991 = vunpack.c.h.b16 %v6936
    %v6992 = vunpack.c.l.b16 %v6937
    %v6993 = vunpack.c.h.b16 %v6937
    %v6994 = vunpack.c.l.b16 %v6938
    %v6995 = vunpack.c.h.b16 %v6938
    %v6996 = vunpack.c.l.b16 %v6939
    %v6997 = vunpack.c.h.b16 %v6939
    %v6998 = vunpack.c.l.b16 %v6940
    %v6999 = vunpack.c.h.b16 %v6940
    %v7000 = vunpack.c.l.b16 %v6941
    %v7001 = vunpack.c.h.b16 %v6941
    %v7002 = vunpack.c.l.b16 %v6942
    %v7003 = vunpack.c.h.b16 %v6942
    %v7004 = vunpack.c.l.b16 %v6943
    %v7005 = vunpack.c.h.b16 %v6943
    %v7006 = vunpack.c.l.b16 %v6944
    %v7007 = vunpack.c.h.b16 %v6944
    %v7008 = vunpack.c.l.b16 %v6945
    %v7009 = vunpack.c.h.b16 %v6945
    %v7010 = vunpack.c.l.b16 %v6946
    %v7011 = vunpack.c.h.b16 %v6946
    %v7012 = vunpack.c.l.b16 %v6947
    %v7013 = vunpack.c.h.b16 %v6947
    %v7014 = vunpack.c.l.b16 %v6948
    %v7015 = vunpack.c.h.b16 %v6948
    %v7016 = vunpack.c.l.b16 %v6949
    %v7017 = vunpack.c.h.b16 %v6949
    %v7018 = vpack.c.b16 %v6994, %v6986
    %v7019 = vpack.c.b16 %v6995, %v6987
    %v7020 = vpack.c.b16 %v6996, %v6988
    %v7021 = vpack.c.b16 %v6997, %v6989
    %v7022 = vpack.c.b16 %v6998, %v6990
    %v7023 = vpack.c.b16 %v6999, %v6991
    %v7024 = vpack.c.b16 %v7000, %v6992
    %v7025 = vpack.c.b16 %v7001, %v6993
    %v7026 = vpack.c.b16 %v7010, %v7002
    %v7027 = vpack.c.b16 %v7011, %v7003
    %v7028 = vpack.c.b16 %v7012, %v7004
    %v7029 = vpack.c.b16 %v7013, %v7005
    %v7030 = vpack.c.b16 %v7014, %v7006
    %v7031 = vpack.c.b16 %v7015, %v7007
    %v7032 = vpack.c.b16 %v7016, %v7008
    %v7033 = vpack.c.b16 %v7017, %v7009
    %v7051 = vsel %vm100, %v6966, 0
    %v7054 = vsel %vm100, %v6967, 0
    %v7057 = vsel %vm100, %v6968, 0
    %v7060 = vsel %vm100, %v6969, 0
    %7062 = vmatpush.bf16.msra.mxu0 0
    %7063 = vmatpush.bf16.msra.mxu0 0
    %7064 = vmatpush.bf16.msra.mxu0 0
    %7065 = vmatpush.bf16.msra.mxu0 0
    %7066 = vmatpush.bf16.msra.mxu0 0
    %7067 = vmatpush.bf16.msra.mxu0 0
    %7068 = vmatpush.bf16.msra.mxu0 %v7026
    %7069 = vmatpush.bf16.msra.mxu0 %v7018
    %7070 = vmatmul.bf16.gmra.mxu0 %v7051
    %v7071 = vpop.f32.mrf.mxu0
    %v7072 = vadd.f32 0.0, %v7071
    %v7073 = vpop.f32.mrf.mxu0
    %v7074 = vadd.f32 0.0, %v7073
    %7075 = vmatmul.bf16.gmra.mxu0 %v7054
    %v7076 = vpop.f32.mrf.mxu0
    %v7077 = vadd.f32 0.0, %v7076
    %v7078 = vpop.f32.mrf.mxu0
    %v7079 = vadd.f32 0.0, %v7078
    %7080 = vmatmul.bf16.gmra.mxu0 %v7057
    %v7081 = vpop.f32.mrf.mxu0
    %v7082 = vadd.f32 0.0, %v7081
    %v7083 = vpop.f32.mrf.mxu0
    %v7084 = vadd.f32 0.0, %v7083
    %7085 = vmatmul.bf16.gmra.mxu0 %v7060
    %v7086 = vpop.f32.mrf.mxu0
    %v7087 = vadd.f32 0.0, %v7086
    %v7088 = vpop.f32.mrf.mxu0
    %v7089 = vadd.f32 0.0, %v7088
    %7090 = vdwg.mxu0
    %7091 = vmatpush.bf16.msra.mxu0 0
    %7092 = vmatpush.bf16.msra.mxu0 0
    %7093 = vmatpush.bf16.msra.mxu0 0
    %7094 = vmatpush.bf16.msra.mxu0 0
    %7095 = vmatpush.bf16.msra.mxu0 0
    %7096 = vmatpush.bf16.msra.mxu0 0
    %7097 = vmatpush.bf16.msra.mxu0 %v7027
    %7098 = vmatpush.bf16.msra.mxu0 %v7019
    %7099 = vmatmul.bf16.gmra.mxu0 %v7051
    %v7100 = vpop.f32.mrf.mxu0
    %v7101 = vadd.f32 0.0, %v7100
    %v7102 = vpop.f32.mrf.mxu0
    %v7103 = vadd.f32 0.0, %v7102
    %7104 = vmatmul.bf16.gmra.mxu0 %v7054
    %v7105 = vpop.f32.mrf.mxu0
    %v7106 = vadd.f32 0.0, %v7105
    %v7107 = vpop.f32.mrf.mxu0
    %v7108 = vadd.f32 0.0, %v7107
    %7109 = vmatmul.bf16.gmra.mxu0 %v7057
    %v7110 = vpop.f32.mrf.mxu0
    %v7111 = vadd.f32 0.0, %v7110
    %v7112 = vpop.f32.mrf.mxu0
    %v7113 = vadd.f32 0.0, %v7112
    %7114 = vmatmul.bf16.gmra.mxu0 %v7060
    %v7115 = vpop.f32.mrf.mxu0
    %v7116 = vadd.f32 0.0, %v7115
    %v7117 = vpop.f32.mrf.mxu0
    %v7118 = vadd.f32 0.0, %v7117
    %7119 = vdwg.mxu0
    %7120 = vmatpush.bf16.msra.mxu0 0
    %7121 = vmatpush.bf16.msra.mxu0 0
    %7122 = vmatpush.bf16.msra.mxu0 0
    %7123 = vmatpush.bf16.msra.mxu0 0
    %7124 = vmatpush.bf16.msra.mxu0 0
    %7125 = vmatpush.bf16.msra.mxu0 0
    %7126 = vmatpush.bf16.msra.mxu0 %v7028
    %7127 = vmatpush.bf16.msra.mxu0 %v7020
    %7128 = vmatmul.bf16.gmra.mxu0 %v7051
    %v7129 = vpop.f32.mrf.mxu0
    %v7130 = vadd.f32 0.0, %v7129
    %v7131 = vpop.f32.mrf.mxu0
    %v7132 = vadd.f32 0.0, %v7131
    %7133 = vmatmul.bf16.gmra.mxu0 %v7054
    %v7134 = vpop.f32.mrf.mxu0
    %v7135 = vadd.f32 0.0, %v7134
    %v7136 = vpop.f32.mrf.mxu0
    %v7137 = vadd.f32 0.0, %v7136
    %7138 = vmatmul.bf16.gmra.mxu0 %v7057
    %v7139 = vpop.f32.mrf.mxu0
    %v7140 = vadd.f32 0.0, %v7139
    %v7141 = vpop.f32.mrf.mxu0
    %v7142 = vadd.f32 0.0, %v7141
    %7143 = vmatmul.bf16.gmra.mxu0 %v7060
    %v7144 = vpop.f32.mrf.mxu0
    %v7145 = vadd.f32 0.0, %v7144
    %v7146 = vpop.f32.mrf.mxu0
    %v7147 = vadd.f32 0.0, %v7146
    %7148 = vdwg.mxu0
    %7149 = vmatpush.bf16.msra.mxu0 0
    %7150 = vmatpush.bf16.msra.mxu0 0
    %7151 = vmatpush.bf16.msra.mxu0 0
    %7152 = vmatpush.bf16.msra.mxu0 0
    %7153 = vmatpush.bf16.msra.mxu0 0
    %7154 = vmatpush.bf16.msra.mxu0 0
    %7155 = vmatpush.bf16.msra.mxu0 %v7029
    %7156 = vmatpush.bf16.msra.mxu0 %v7021
    %7157 = vmatmul.bf16.gmra.mxu0 %v7051
    %v7158 = vpop.f32.mrf.mxu0
    %v7159 = vadd.f32 0.0, %v7158
    %v7160 = vpop.f32.mrf.mxu0
    %v7161 = vadd.f32 0.0, %v7160
    %7162 = vmatmul.bf16.gmra.mxu0 %v7054
    %v7163 = vpop.f32.mrf.mxu0
    %v7164 = vadd.f32 0.0, %v7163
    %v7165 = vpop.f32.mrf.mxu0
    %v7166 = vadd.f32 0.0, %v7165
    %7167 = vmatmul.bf16.gmra.mxu0 %v7057
    %v7168 = vpop.f32.mrf.mxu0
    %v7169 = vadd.f32 0.0, %v7168
    %v7170 = vpop.f32.mrf.mxu0
    %v7171 = vadd.f32 0.0, %v7170
    %7172 = vmatmul.bf16.gmra.mxu0 %v7060
    %v7173 = vpop.f32.mrf.mxu0
    %v7174 = vadd.f32 0.0, %v7173
    %v7175 = vpop.f32.mrf.mxu0
    %v7176 = vadd.f32 0.0, %v7175
    %7177 = vdwg.mxu0
    %7178 = vmatpush.bf16.msra.mxu0 0
    %7179 = vmatpush.bf16.msra.mxu0 0
    %7180 = vmatpush.bf16.msra.mxu0 0
    %7181 = vmatpush.bf16.msra.mxu0 0
    %7182 = vmatpush.bf16.msra.mxu0 0
    %7183 = vmatpush.bf16.msra.mxu0 0
    %7184 = vmatpush.bf16.msra.mxu0 %v7030
    %7185 = vmatpush.bf16.msra.mxu0 %v7022
    %7186 = vmatmul.bf16.gmra.mxu0 %v7051
    %v7187 = vpop.f32.mrf.mxu0
    %v7188 = vadd.f32 0.0, %v7187
    %v7189 = vpop.f32.mrf.mxu0
    %v7190 = vadd.f32 0.0, %v7189
    %7191 = vmatmul.bf16.gmra.mxu0 %v7054
    %v7192 = vpop.f32.mrf.mxu0
    %v7193 = vadd.f32 0.0, %v7192
    %v7194 = vpop.f32.mrf.mxu0
    %v7195 = vadd.f32 0.0, %v7194
    %7196 = vmatmul.bf16.gmra.mxu0 %v7057
    %v7197 = vpop.f32.mrf.mxu0
    %v7198 = vadd.f32 0.0, %v7197
    %v7199 = vpop.f32.mrf.mxu0
    %v7200 = vadd.f32 0.0, %v7199
    %7201 = vmatmul.bf16.gmra.mxu0 %v7060
    %v7202 = vpop.f32.mrf.mxu0
    %v7203 = vadd.f32 0.0, %v7202
    %v7204 = vpop.f32.mrf.mxu0
    %v7205 = vadd.f32 0.0, %v7204
    %7206 = vdwg.mxu0
    %7207 = vmatpush.bf16.msra.mxu0 0
    %7208 = vmatpush.bf16.msra.mxu0 0
    %7209 = vmatpush.bf16.msra.mxu0 0
    %7210 = vmatpush.bf16.msra.mxu0 0
    %7211 = vmatpush.bf16.msra.mxu0 0
    %7212 = vmatpush.bf16.msra.mxu0 0
    %7213 = vmatpush.bf16.msra.mxu0 %v7031
    %7214 = vmatpush.bf16.msra.mxu0 %v7023
    %7215 = vmatmul.bf16.gmra.mxu0 %v7051
    %v7216 = vpop.f32.mrf.mxu0
    %v7217 = vadd.f32 0.0, %v7216
    %v7218 = vpop.f32.mrf.mxu0
    %v7219 = vadd.f32 0.0, %v7218
    %7220 = vmatmul.bf16.gmra.mxu0 %v7054
    %v7221 = vpop.f32.mrf.mxu0
    %v7222 = vadd.f32 0.0, %v7221
    %v7223 = vpop.f32.mrf.mxu0
    %v7224 = vadd.f32 0.0, %v7223
    %7225 = vmatmul.bf16.gmra.mxu0 %v7057
    %v7226 = vpop.f32.mrf.mxu0
    %v7227 = vadd.f32 0.0, %v7226
    %v7228 = vpop.f32.mrf.mxu0
    %v7229 = vadd.f32 0.0, %v7228
    %7230 = vmatmul.bf16.gmra.mxu0 %v7060
    %v7231 = vpop.f32.mrf.mxu0
    %v7232 = vadd.f32 0.0, %v7231
    %v7233 = vpop.f32.mrf.mxu0
    %v7234 = vadd.f32 0.0, %v7233
    %7235 = vdwg.mxu0
    %7236 = vmatpush.bf16.msra.mxu0 0
    %7237 = vmatpush.bf16.msra.mxu0 0
    %7238 = vmatpush.bf16.msra.mxu0 0
    %7239 = vmatpush.bf16.msra.mxu0 0
    %7240 = vmatpush.bf16.msra.mxu0 0
    %7241 = vmatpush.bf16.msra.mxu0 0
    %7242 = vmatpush.bf16.msra.mxu0 %v7032
    %7243 = vmatpush.bf16.msra.mxu0 %v7024
    %7244 = vmatmul.bf16.gmra.mxu0 %v7051
    %v7245 = vpop.f32.mrf.mxu0
    %v7246 = vadd.f32 0.0, %v7245
    %v7247 = vpop.f32.mrf.mxu0
    %v7248 = vadd.f32 0.0, %v7247
    %7249 = vmatmul.bf16.gmra.mxu0 %v7054
    %v7250 = vpop.f32.mrf.mxu0
    %v7251 = vadd.f32 0.0, %v7250
    %v7252 = vpop.f32.mrf.mxu0
    %v7253 = vadd.f32 0.0, %v7252
    %7254 = vmatmul.bf16.gmra.mxu0 %v7057
    %v7255 = vpop.f32.mrf.mxu0
    %v7256 = vadd.f32 0.0, %v7255
    %v7257 = vpop.f32.mrf.mxu0
    %v7258 = vadd.f32 0.0, %v7257
    %7259 = vmatmul.bf16.gmra.mxu0 %v7060
    %v7260 = vpop.f32.mrf.mxu0
    %v7261 = vadd.f32 0.0, %v7260
    %v7262 = vpop.f32.mrf.mxu0
    %v7263 = vadd.f32 0.0, %v7262
    %7264 = vdwg.mxu0
    %7265 = vmatpush.bf16.msra.mxu0 0
    %7266 = vmatpush.bf16.msra.mxu0 0
    %7267 = vmatpush.bf16.msra.mxu0 0
    %7268 = vmatpush.bf16.msra.mxu0 0
    %7269 = vmatpush.bf16.msra.mxu0 0
    %7270 = vmatpush.bf16.msra.mxu0 0
    %7271 = vmatpush.bf16.msra.mxu0 %v7033
    %7272 = vmatpush.bf16.msra.mxu0 %v7025
    %7273 = vmatmul.bf16.gmra.mxu0 %v7051
    %v7274 = vpop.f32.mrf.mxu0
    %v7275 = vadd.f32 0.0, %v7274
    %v7276 = vpop.f32.mrf.mxu0
    %v7277 = vadd.f32 0.0, %v7276
    %7278 = vmatmul.bf16.gmra.mxu0 %v7054
    %v7279 = vpop.f32.mrf.mxu0
    %v7280 = vadd.f32 0.0, %v7279
    %v7281 = vpop.f32.mrf.mxu0
    %v7282 = vadd.f32 0.0, %v7281
    %7283 = vmatmul.bf16.gmra.mxu0 %v7057
    %v7284 = vpop.f32.mrf.mxu0
    %v7285 = vadd.f32 0.0, %v7284
    %v7286 = vpop.f32.mrf.mxu0
    %v7287 = vadd.f32 0.0, %v7286
    %7288 = vmatmul.bf16.gmra.mxu0 %v7060
    %v7289 = vpop.f32.mrf.mxu0
    %v7290 = vadd.f32 0.0, %v7289
    %v7291 = vpop.f32.mrf.mxu0
    %v7292 = vadd.f32 0.0, %v7291
    %7293 = vdwg.mxu0
    %v7294 = vadd.f32 %v6870, %v7072
    %v7295 = vadd.f32 %v6871, %v7101
    %v7296 = vadd.f32 %v6872, %v7130
    %v7297 = vadd.f32 %v6873, %v7159
    %v7298 = vadd.f32 %v6874, %v7188
    %v7299 = vadd.f32 %v6875, %v7217
    %v7300 = vadd.f32 %v6876, %v7246
    %v7301 = vadd.f32 %v6877, %v7275
    %v7302 = vadd.f32 %v6878, %v7074
    %v7303 = vadd.f32 %v6879, %v7103
    %v7304 = vadd.f32 %v6880, %v7132
    %v7305 = vadd.f32 %v6881, %v7161
    %v7306 = vadd.f32 %v6882, %v7190
    %v7307 = vadd.f32 %v6883, %v7219
    %v7308 = vadd.f32 %v6884, %v7248
    %v7309 = vadd.f32 %v6885, %v7277
    %v7310 = vadd.f32 %v6886, %v7077
    %v7311 = vadd.f32 %v6887, %v7106
    %v7312 = vadd.f32 %v6888, %v7135
    %v7313 = vadd.f32 %v6889, %v7164
    %v7314 = vadd.f32 %v6890, %v7193
    %v7315 = vadd.f32 %v6891, %v7222
    %v7316 = vadd.f32 %v6892, %v7251
    %v7317 = vadd.f32 %v6893, %v7280
    %v7318 = vadd.f32 %v6894, %v7079
    %v7319 = vadd.f32 %v6895, %v7108
    %v7320 = vadd.f32 %v6896, %v7137
    %v7321 = vadd.f32 %v6897, %v7166
    %v7322 = vadd.f32 %v6898, %v7195
    %v7323 = vadd.f32 %v6899, %v7224
    %v7324 = vadd.f32 %v6900, %v7253
    %v7325 = vadd.f32 %v6901, %v7282
    %v7326 = vadd.f32 %v6902, %v7082
    %v7327 = vadd.f32 %v6903, %v7111
    %v7328 = vadd.f32 %v6904, %v7140
    %v7329 = vadd.f32 %v6905, %v7169
    %v7330 = vadd.f32 %v6906, %v7198
    %v7331 = vadd.f32 %v6907, %v7227
    %v7332 = vadd.f32 %v6908, %v7256
    %v7333 = vadd.f32 %v6909, %v7285
    %v7334 = vadd.f32 %v6910, %v7084
    %v7335 = vadd.f32 %v6911, %v7113
    %v7336 = vadd.f32 %v6912, %v7142
    %v7337 = vadd.f32 %v6913, %v7171
    %v7338 = vadd.f32 %v6914, %v7200
    %v7339 = vadd.f32 %v6915, %v7229
    %v7340 = vadd.f32 %v6916, %v7258
    %v7341 = vadd.f32 %v6917, %v7287
    %v7342 = vadd.f32 %v6918, %v7087
    %v7343 = vadd.f32 %v6919, %v7116
    %v7344 = vadd.f32 %v6920, %v7145
    %v7345 = vadd.f32 %v6921, %v7174
    %v7346 = vadd.f32 %v6922, %v7203
    %v7347 = vadd.f32 %v6923, %v7232
    %v7348 = vadd.f32 %v6924, %v7261
    %v7349 = vadd.f32 %v6925, %v7290
    %v7350 = vadd.f32 %v6926, %v7089
    %v7351 = vadd.f32 %v6927, %v7118
    %v7352 = vadd.f32 %v6928, %v7147
    %v7353 = vadd.f32 %v6929, %v7176
    %v7354 = vadd.f32 %v6930, %v7205
    %v7355 = vadd.f32 %v6931, %v7234
    %v7356 = vadd.f32 %v6932, %v7263
    %v7357 = vadd.f32 %v6933, %v7292
    %v7358 = vld [vmem:[%s8] sm:$0xff]
    %v7360 = vperm.slane %v7358, 0
    %v7361 = vperm.slane %v7358, 1
    %v7362 = vperm.slane %v7358, 2
    %v7363 = vperm.slane %v7358, 3
    %v7364 = vperm.slane %v7358, 4
    %v7365 = vperm.slane %v7358, 5
    %v7366 = vperm.slane %v7358, 6
    %v7367 = vperm.slane %v7358, 7
    %v7376 = vadd.f32 %v7294, %v7360
    %v7377 = vadd.f32 %v7295, %v7361
    %v7378 = vadd.f32 %v7296, %v7362
    %v7379 = vadd.f32 %v7297, %v7363
    %v7380 = vadd.f32 %v7298, %v7364
    %v7381 = vadd.f32 %v7299, %v7365
    %v7382 = vadd.f32 %v7300, %v7366
    %v7383 = vadd.f32 %v7301, %v7367
    %v7384 = vadd.f32 %v7302, %v7360
    %v7385 = vadd.f32 %v7303, %v7361
    %v7386 = vadd.f32 %v7304, %v7362
    %v7387 = vadd.f32 %v7305, %v7363
    %v7388 = vadd.f32 %v7306, %v7364
    %v7389 = vadd.f32 %v7307, %v7365
    %v7390 = vadd.f32 %v7308, %v7366
    %v7391 = vadd.f32 %v7309, %v7367
    %v7392 = vadd.f32 %v7310, %v7360
    %v7393 = vadd.f32 %v7311, %v7361
    %v7394 = vadd.f32 %v7312, %v7362
    %v7395 = vadd.f32 %v7313, %v7363
    %v7396 = vadd.f32 %v7314, %v7364
    %v7397 = vadd.f32 %v7315, %v7365
    %v7398 = vadd.f32 %v7316, %v7366
    %v7399 = vadd.f32 %v7317, %v7367
    %v7400 = vadd.f32 %v7318, %v7360
    %v7401 = vadd.f32 %v7319, %v7361
    %v7402 = vadd.f32 %v7320, %v7362
    %v7403 = vadd.f32 %v7321, %v7363
    %v7404 = vadd.f32 %v7322, %v7364
    %v7405 = vadd.f32 %v7323, %v7365
    %v7406 = vadd.f32 %v7324, %v7366
    %v7407 = vadd.f32 %v7325, %v7367
    %v7408 = vadd.f32 %v7326, %v7360
    %v7409 = vadd.f32 %v7327, %v7361
    %v7410 = vadd.f32 %v7328, %v7362
    %v7411 = vadd.f32 %v7329, %v7363
    %v7412 = vadd.f32 %v7330, %v7364
    %v7413 = vadd.f32 %v7331, %v7365
    %v7414 = vadd.f32 %v7332, %v7366
    %v7415 = vadd.f32 %v7333, %v7367
    %v7416 = vadd.f32 %v7334, %v7360
    %v7417 = vadd.f32 %v7335, %v7361
    %v7418 = vadd.f32 %v7336, %v7362
    %v7419 = vadd.f32 %v7337, %v7363
    %v7420 = vadd.f32 %v7338, %v7364
    %v7421 = vadd.f32 %v7339, %v7365
    %v7422 = vadd.f32 %v7340, %v7366
    %v7423 = vadd.f32 %v7341, %v7367
    %v7424 = vadd.f32 %v7342, %v7360
    %v7425 = vadd.f32 %v7343, %v7361
    %v7426 = vadd.f32 %v7344, %v7362
    %v7427 = vadd.f32 %v7345, %v7363
    %v7428 = vadd.f32 %v7346, %v7364
    %v7429 = vadd.f32 %v7347, %v7365
    %v7430 = vadd.f32 %v7348, %v7366
    %v7431 = vadd.f32 %v7349, %v7367
    %v7432 = vadd.f32 %v7350, %v7360
    %v7433 = vadd.f32 %v7351, %v7361
    %v7434 = vadd.f32 %v7352, %v7362
    %v7435 = vadd.f32 %v7353, %v7363
    %v7436 = vadd.f32 %v7354, %v7364
    %v7437 = vadd.f32 %v7355, %v7365
    %v7438 = vadd.f32 %v7356, %v7366
    %v7439 = vadd.f32 %v7357, %v7367
    %v7440 = vmul.f32 %v7380, %v7376
    %v7441 = vmul.f32 %v7381, %v7377
    %v7442 = vmul.f32 %v7382, %v7378
    %v7443 = vmul.f32 %v7383, %v7379
    %v7444 = vmul.f32 %v7388, %v7384
    %v7445 = vmul.f32 %v7389, %v7385
    %v7446 = vmul.f32 %v7390, %v7386
    %v7447 = vmul.f32 %v7391, %v7387
    %v7448 = vmul.f32 %v7396, %v7392
    %v7449 = vmul.f32 %v7397, %v7393
    %v7450 = vmul.f32 %v7398, %v7394
    %v7451 = vmul.f32 %v7399, %v7395
    %v7452 = vmul.f32 %v7404, %v7400
    %v7453 = vmul.f32 %v7405, %v7401
    %v7454 = vmul.f32 %v7406, %v7402
    %v7455 = vmul.f32 %v7407, %v7403
    %v7456 = vmul.f32 %v7412, %v7408
    %v7457 = vmul.f32 %v7413, %v7409
    %v7458 = vmul.f32 %v7414, %v7410
    %v7459 = vmul.f32 %v7415, %v7411
    %v7460 = vmul.f32 %v7420, %v7416
    %v7461 = vmul.f32 %v7421, %v7417
    %v7462 = vmul.f32 %v7422, %v7418
    %v7463 = vmul.f32 %v7423, %v7419
    %v7464 = vmul.f32 %v7428, %v7424
    %v7465 = vmul.f32 %v7429, %v7425
    %v7466 = vmul.f32 %v7430, %v7426
    %v7467 = vmul.f32 %v7431, %v7427
    %v7468 = vmul.f32 %v7436, %v7432
    %v7469 = vmul.f32 %v7437, %v7433
    %v7470 = vmul.f32 %v7438, %v7434
    %v7471 = vmul.f32 %v7439, %v7435
    %v7472 = vld [vmem:[%s9] sm:$0xff]
    %v7473 = vld [vmem:[%s9 + $0x8] sm:$0xff]
    %v7474 = vld [vmem:[%s9 + $0x10] sm:$0xff]
    %v7475 = vld [vmem:[%s9 + $0x18] sm:$0xff]
    %v7476 = vld [vmem:[%s9 + $0x20] sm:$0xff]
    %v7477 = vld [vmem:[%s9 + $0x28] sm:$0xff]
    %v7478 = vld [vmem:[%s9 + $0x30] sm:$0xff]
    %v7479 = vld [vmem:[%s9 + $0x38] sm:$0xff]
    %v7480 = vld [vmem:[%s9 + $0x40] sm:$0xff]
    %v7481 = vld [vmem:[%s9 + $0x48] sm:$0xff]
    %v7482 = vld [vmem:[%s9 + $0x50] sm:$0xff]
    %v7483 = vld [vmem:[%s9 + $0x58] sm:$0xff]
    %v7484 = vld [vmem:[%s9 + $0x60] sm:$0xff]
    %v7485 = vld [vmem:[%s9 + $0x68] sm:$0xff]
    %v7486 = vld [vmem:[%s9 + $0x70] sm:$0xff]
    %v7487 = vld [vmem:[%s9 + $0x78] sm:$0xff]
    %v7488 = vld [vmem:[%s9 + $0x80] sm:$0xff]
    %v7489 = vld [vmem:[%s9 + $0x88] sm:$0xff]
    %v7490 = vld [vmem:[%s9 + $0x90] sm:$0xff]
    %v7491 = vld [vmem:[%s9 + $0x98] sm:$0xff]
    %v7492 = vld [vmem:[%s9 + $0xa0] sm:$0xff]
    %v7493 = vld [vmem:[%s9 + $0xa8] sm:$0xff]
    %v7494 = vld [vmem:[%s9 + $0xb0] sm:$0xff]
    %v7495 = vld [vmem:[%s9 + $0xb8] sm:$0xff]
    %v7496 = vld [vmem:[%s9 + $0xc0] sm:$0xff]
    %v7497 = vld [vmem:[%s9 + $0xc8] sm:$0xff]
    %v7498 = vld [vmem:[%s9 + $0xd0] sm:$0xff]
    %v7499 = vld [vmem:[%s9 + $0xd8] sm:$0xff]
    %v7500 = vld [vmem:[%s9 + $0xe0] sm:$0xff]
    %v7501 = vld [vmem:[%s9 + $0xe8] sm:$0xff]
    %v7502 = vld [vmem:[%s9 + $0xf0] sm:$0xff]
    %v7503 = vld [vmem:[%s9 + $0xf8] sm:$0xff]
    %v7504 = vld [vmem:[%s9 + $0x100] sm:$0xff]
    %v7505 = vld [vmem:[%s9 + $0x108] sm:$0xff]
    %v7506 = vld [vmem:[%s9 + $0x110] sm:$0xff]
    %v7507 = vld [vmem:[%s9 + $0x118] sm:$0xff]
    %v7508 = vld [vmem:[%s9 + $0x120] sm:$0xff]
    %v7509 = vld [vmem:[%s9 + $0x128] sm:$0xff]
    %v7510 = vld [vmem:[%s9 + $0x130] sm:$0xff]
    %v7511 = vld [vmem:[%s9 + $0x138] sm:$0xff]
    %v7512 = vld [vmem:[%s9 + $0x140] sm:$0xff]
    %v7513 = vld [vmem:[%s9 + $0x148] sm:$0xff]
    %v7514 = vld [vmem:[%s9 + $0x150] sm:$0xff]
    %v7515 = vld [vmem:[%s9 + $0x158] sm:$0xff]
    %v7516 = vld [vmem:[%s9 + $0x160] sm:$0xff]
    %v7517 = vld [vmem:[%s9 + $0x168] sm:$0xff]
    %v7518 = vld [vmem:[%s9 + $0x170] sm:$0xff]
    %v7519 = vld [vmem:[%s9 + $0x178] sm:$0xff]
    %v7520 = vld [vmem:[%s9 + $0x180] sm:$0xff]
    %v7521 = vld [vmem:[%s9 + $0x188] sm:$0xff]
    %v7522 = vld [vmem:[%s9 + $0x190] sm:$0xff]
    %v7523 = vld [vmem:[%s9 + $0x198] sm:$0xff]
    %v7524 = vld [vmem:[%s9 + $0x1a0] sm:$0xff]
    %v7525 = vld [vmem:[%s9 + $0x1a8] sm:$0xff]
    %v7526 = vld [vmem:[%s9 + $0x1b0] sm:$0xff]
    %v7527 = vld [vmem:[%s9 + $0x1b8] sm:$0xff]
    %v7528 = vld [vmem:[%s9 + $0x1c0] sm:$0xff]
    %v7529 = vld [vmem:[%s9 + $0x1c8] sm:$0xff]
    %v7530 = vld [vmem:[%s9 + $0x1d0] sm:$0xff]
    %v7531 = vld [vmem:[%s9 + $0x1d8] sm:$0xff]
    %v7532 = vld [vmem:[%s9 + $0x1e0] sm:$0xff]
    %v7533 = vld [vmem:[%s9 + $0x1e8] sm:$0xff]
    %v7534 = vld [vmem:[%s9 + $0x1f0] sm:$0xff]
    %v7535 = vld [vmem:[%s9 + $0x1f8] sm:$0xff]
    %7536 = vmatpush.msra.mxu0 %v7487
    %7537 = vmatpush.msra.mxu0 %v7486
    %7538 = vmatpush.msra.mxu0 %v7485
    %7539 = vmatpush.msra.mxu0 %v7484
    %7540 = vmatpush.msra.mxu0 %v7483
    %7541 = vmatpush.msra.mxu0 %v7482
    %7542 = vmatpush.msra.mxu0 %v7481
    %7543 = vmatpush.msra.mxu0 %v7480
    %7544 = vmatpush.msra.mxu0 %v7479
    %7545 = vmatpush.msra.mxu0 %v7478
    %7546 = vmatpush.msra.mxu0 %v7477
    %7547 = vmatpush.msra.mxu0 %v7476
    %7548 = vmatpush.msra.mxu0 %v7475
    %7549 = vmatpush.msra.mxu0 %v7474
    %7550 = vmatpush.msra.mxu0 %v7473
    %7551 = vmatpush.msra.mxu0 %v7472
    %7552 = vmatmul.f32.gmra.mxu0 %v7440
    %v7553 = vpop.f32.mrf.mxu0
    %v7554 = vadd.f32 0.0, %v7553
    %7555 = vmatmul.f32.gmra.mxu0 %v7444
    %v7556 = vpop.f32.mrf.mxu0
    %v7557 = vadd.f32 0.0, %v7556
    %7558 = vmatmul.f32.gmra.mxu0 %v7448
    %v7559 = vpop.f32.mrf.mxu0
    %v7560 = vadd.f32 0.0, %v7559
    %7561 = vmatmul.f32.gmra.mxu0 %v7452
    %v7562 = vpop.f32.mrf.mxu0
    %v7563 = vadd.f32 0.0, %v7562
    %7564 = vmatmul.f32.gmra.mxu0 %v7456
    %v7565 = vpop.f32.mrf.mxu0
    %v7566 = vadd.f32 0.0, %v7565
    %7567 = vmatmul.f32.gmra.mxu0 %v7460
    %v7568 = vpop.f32.mrf.mxu0
    %v7569 = vadd.f32 0.0, %v7568
    %7570 = vmatmul.f32.gmra.mxu0 %v7464
    %v7571 = vpop.f32.mrf.mxu0
    %v7572 = vadd.f32 0.0, %v7571
    %7573 = vmatmul.f32.gmra.mxu0 %v7468
    %v7574 = vpop.f32.mrf.mxu0
    %v7575 = vadd.f32 0.0, %v7574
    %7576 = vdwg.mxu0
    %7577 = vmatpush.msra.mxu0 %v7503
    %7578 = vmatpush.msra.mxu0 %v7502
    %7579 = vmatpush.msra.mxu0 %v7501
    %7580 = vmatpush.msra.mxu0 %v7500
    %7581 = vmatpush.msra.mxu0 %v7499
    %7582 = vmatpush.msra.mxu0 %v7498
    %7583 = vmatpush.msra.mxu0 %v7497
    %7584 = vmatpush.msra.mxu0 %v7496
    %7585 = vmatpush.msra.mxu0 %v7495
    %7586 = vmatpush.msra.mxu0 %v7494
    %7587 = vmatpush.msra.mxu0 %v7493
    %7588 = vmatpush.msra.mxu0 %v7492
    %7589 = vmatpush.msra.mxu0 %v7491
    %7590 = vmatpush.msra.mxu0 %v7490
    %7591 = vmatpush.msra.mxu0 %v7489
    %7592 = vmatpush.msra.mxu0 %v7488
    %7593 = vmatmul.f32.gmra.mxu0 %v7441
    %v7594 = vpop.f32.mrf.mxu0
    %v7595 = vadd.f32 %v7554, %v7594
    %7596 = vmatmul.f32.gmra.mxu0 %v7445
    %v7597 = vpop.f32.mrf.mxu0
    %v7598 = vadd.f32 %v7557, %v7597
    %7599 = vmatmul.f32.gmra.mxu0 %v7449
    %v7600 = vpop.f32.mrf.mxu0
    %v7601 = vadd.f32 %v7560, %v7600
    %7602 = vmatmul.f32.gmra.mxu0 %v7453
    %v7603 = vpop.f32.mrf.mxu0
    %v7604 = vadd.f32 %v7563, %v7603
    %7605 = vmatmul.f32.gmra.mxu0 %v7457
    %v7606 = vpop.f32.mrf.mxu0
    %v7607 = vadd.f32 %v7566, %v7606
    %7608 = vmatmul.f32.gmra.mxu0 %v7461
    %v7609 = vpop.f32.mrf.mxu0
    %v7610 = vadd.f32 %v7569, %v7609
    %7611 = vmatmul.f32.gmra.mxu0 %v7465
    %v7612 = vpop.f32.mrf.mxu0
    %v7613 = vadd.f32 %v7572, %v7612
    %7614 = vmatmul.f32.gmra.mxu0 %v7469
    %v7615 = vpop.f32.mrf.mxu0
    %v7616 = vadd.f32 %v7575, %v7615
    %7617 = vdwg.mxu0
    %7618 = vmatpush.msra.mxu0 %v7519
    %7619 = vmatpush.msra.mxu0 %v7518
    %7620 = vmatpush.msra.mxu0 %v7517
    %7621 = vmatpush.msra.mxu0 %v7516
    %7622 = vmatpush.msra.mxu0 %v7515
    %7623 = vmatpush.msra.mxu0 %v7514
    %7624 = vmatpush.msra.mxu0 %v7513
    %7625 = vmatpush.msra.mxu0 %v7512
    %7626 = vmatpush.msra.mxu0 %v7511
    %7627 = vmatpush.msra.mxu0 %v7510
    %7628 = vmatpush.msra.mxu0 %v7509
    %7629 = vmatpush.msra.mxu0 %v7508
    %7630 = vmatpush.msra.mxu0 %v7507
    %7631 = vmatpush.msra.mxu0 %v7506
    %7632 = vmatpush.msra.mxu0 %v7505
    %7633 = vmatpush.msra.mxu0 %v7504
    %7634 = vmatmul.f32.gmra.mxu0 %v7442
    %v7635 = vpop.f32.mrf.mxu0
    %v7636 = vadd.f32 %v7595, %v7635
    %7637 = vmatmul.f32.gmra.mxu0 %v7446
    %v7638 = vpop.f32.mrf.mxu0
    %v7639 = vadd.f32 %v7598, %v7638
    %7640 = vmatmul.f32.gmra.mxu0 %v7450
    %v7641 = vpop.f32.mrf.mxu0
    %v7642 = vadd.f32 %v7601, %v7641
    %7643 = vmatmul.f32.gmra.mxu0 %v7454
    %v7644 = vpop.f32.mrf.mxu0
    %v7645 = vadd.f32 %v7604, %v7644
    %7646 = vmatmul.f32.gmra.mxu0 %v7458
    %v7647 = vpop.f32.mrf.mxu0
    %v7648 = vadd.f32 %v7607, %v7647
    %7649 = vmatmul.f32.gmra.mxu0 %v7462
    %v7650 = vpop.f32.mrf.mxu0
    %v7651 = vadd.f32 %v7610, %v7650
    %7652 = vmatmul.f32.gmra.mxu0 %v7466
    %v7653 = vpop.f32.mrf.mxu0
    %v7654 = vadd.f32 %v7613, %v7653
    %7655 = vmatmul.f32.gmra.mxu0 %v7470
    %v7656 = vpop.f32.mrf.mxu0
    %v7657 = vadd.f32 %v7616, %v7656
    %7658 = vdwg.mxu0
    %7659 = vmatpush.msra.mxu0 %v7535
    %7660 = vmatpush.msra.mxu0 %v7534
    %7661 = vmatpush.msra.mxu0 %v7533
    %7662 = vmatpush.msra.mxu0 %v7532
    %7663 = vmatpush.msra.mxu0 %v7531
    %7664 = vmatpush.msra.mxu0 %v7530
    %7665 = vmatpush.msra.mxu0 %v7529
    %7666 = vmatpush.msra.mxu0 %v7528
    %7667 = vmatpush.msra.mxu0 %v7527
    %7668 = vmatpush.msra.mxu0 %v7526
    %7669 = vmatpush.msra.mxu0 %v7525
    %7670 = vmatpush.msra.mxu0 %v7524
    %7671 = vmatpush.msra.mxu0 %v7523
    %7672 = vmatpush.msra.mxu0 %v7522
    %7673 = vmatpush.msra.mxu0 %v7521
    %7674 = vmatpush.msra.mxu0 %v7520
    %7675 = vmatmul.f32.gmra.mxu0 %v7443
    %v7676 = vpop.f32.mrf.mxu0
    %v7677 = vadd.f32 %v7636, %v7676
    %7678 = vmatmul.f32.gmra.mxu0 %v7447
    %v7679 = vpop.f32.mrf.mxu0
    %v7680 = vadd.f32 %v7639, %v7679
    %7681 = vmatmul.f32.gmra.mxu0 %v7451
    %v7682 = vpop.f32.mrf.mxu0
    %v7683 = vadd.f32 %v7642, %v7682
    %7684 = vmatmul.f32.gmra.mxu0 %v7455
    %v7685 = vpop.f32.mrf.mxu0
    %v7686 = vadd.f32 %v7645, %v7685
    %7687 = vmatmul.f32.gmra.mxu0 %v7459
    %v7688 = vpop.f32.mrf.mxu0
    %v7689 = vadd.f32 %v7648, %v7688
    %7690 = vmatmul.f32.gmra.mxu0 %v7463
    %v7691 = vpop.f32.mrf.mxu0
    %v7692 = vadd.f32 %v7651, %v7691
    %7693 = vmatmul.f32.gmra.mxu0 %v7467
    %v7694 = vpop.f32.mrf.mxu0
    %v7695 = vadd.f32 %v7654, %v7694
    %7696 = vmatmul.f32.gmra.mxu0 %v7471
    %v7697 = vpop.f32.mrf.mxu0
    %v7698 = vadd.f32 %v7657, %v7697
    %7699 = vdwg.mxu0
    %v7700 = vxor.u32 %v7677, 2147483648
    %v7701 = vxor.u32 %v7680, 2147483648
    %v7702 = vxor.u32 %v7683, 2147483648
    %v7703 = vxor.u32 %v7686, 2147483648
    %v7704 = vxor.u32 %v7689, 2147483648
    %v7705 = vxor.u32 %v7692, 2147483648
    %v7706 = vxor.u32 %v7695, 2147483648
    %v7707 = vxor.u32 %v7698, 2147483648
    %v7708 = vmul.f32 %v7700, 1.442695
    %v7709 = vpow.pop %v7708
    %v7710 = vmul.f32 %v7701, 1.442695
    %v7711 = vpow.pop %v7710
    %v7712 = vmul.f32 %v7702, 1.442695
    %v7713 = vpow.pop %v7712
    %v7714 = vmul.f32 %v7703, 1.442695
    %v7715 = vpow.pop %v7714
    %v7716 = vmul.f32 %v7704, 1.442695
    %v7717 = vpow.pop %v7716
    %v7718 = vmul.f32 %v7705, 1.442695
    %v7719 = vpow.pop %v7718
    %v7720 = vmul.f32 %v7706, 1.442695
    %v7721 = vpow.pop %v7720
    %v7722 = vmul.f32 %v7707, 1.442695
    %v7723 = vpow.pop %v7722
    %v7724 = vadd.f32 %v7709, 1.0
    %v7725 = vadd.f32 %v7711, 1.0
    %v7726 = vadd.f32 %v7713, 1.0
    %v7727 = vadd.f32 %v7715, 1.0
    %v7728 = vadd.f32 %v7717, 1.0
    %v7729 = vadd.f32 %v7719, 1.0
    %v7730 = vadd.f32 %v7721, 1.0
    %v7731 = vadd.f32 %v7723, 1.0
    %v7732 = vrcp.pop %v7724
    %v7733 = vmul.f32 %v7724, %v7732
    %v7734 = vsub.f32 1.0, %v7733
    %v7735 = vmul.f32 %v7732, %v7734
    %v7736 = vadd.f32 %v7732, %v7735
    %vm7737 = vweird.f32 %v7724
    %vm7738 = vweird.f32 %v7732
    %vm7739 = vmor %vm7737, %vm7738
    %v7740 = vsel %vm7739, %v7732, %v7736
    %v7741 = vand.u32 2147483647, %v7724
    %vm7742 = vcmp.eq.f32.partialorder %v7741, 8.507059e+37
    %v7743 = vand.u32 %v7724, 2147483648
    %v7744 = vor.u32 1.1754944e-38, %v7743
    %v7745 = vsel %vm7742, %v7744, %v7740
    %v7746 = vmul.f32 1.0, %v7745
    %v7747 = vrcp.pop %v7725
    %v7748 = vmul.f32 %v7725, %v7747
    %v7749 = vsub.f32 1.0, %v7748
    %v7750 = vmul.f32 %v7747, %v7749
    %v7751 = vadd.f32 %v7747, %v7750
    %vm7752 = vweird.f32 %v7725
    %vm7753 = vweird.f32 %v7747
    %vm7754 = vmor %vm7752, %vm7753
    %v7755 = vsel %vm7754, %v7747, %v7751
    %v7756 = vand.u32 2147483647, %v7725
    %vm7757 = vcmp.eq.f32.partialorder %v7756, 8.507059e+37
    %v7758 = vand.u32 %v7725, 2147483648
    %v7759 = vor.u32 1.1754944e-38, %v7758
    %v7760 = vsel %vm7757, %v7759, %v7755
    %v7761 = vmul.f32 1.0, %v7760
    %v7762 = vrcp.pop %v7726
    %v7763 = vmul.f32 %v7726, %v7762
    %v7764 = vsub.f32 1.0, %v7763
    %v7765 = vmul.f32 %v7762, %v7764
    %v7766 = vadd.f32 %v7762, %v7765
    %vm7767 = vweird.f32 %v7726
    %vm7768 = vweird.f32 %v7762
    %vm7769 = vmor %vm7767, %vm7768
    %v7770 = vsel %vm7769, %v7762, %v7766
    %v7771 = vand.u32 2147483647, %v7726
    %vm7772 = vcmp.eq.f32.partialorder %v7771, 8.507059e+37
    %v7773 = vand.u32 %v7726, 2147483648
    %v7774 = vor.u32 1.1754944e-38, %v7773
    %v7775 = vsel %vm7772, %v7774, %v7770
    %v7776 = vmul.f32 1.0, %v7775
    %v7777 = vrcp.pop %v7727
    %v7778 = vmul.f32 %v7727, %v7777
    %v7779 = vsub.f32 1.0, %v7778
    %v7780 = vmul.f32 %v7777, %v7779
    %v7781 = vadd.f32 %v7777, %v7780
    %vm7782 = vweird.f32 %v7727
    %vm7783 = vweird.f32 %v7777
    %vm7784 = vmor %vm7782, %vm7783
    %v7785 = vsel %vm7784, %v7777, %v7781
    %v7786 = vand.u32 2147483647, %v7727
    %vm7787 = vcmp.eq.f32.partialorder %v7786, 8.507059e+37
    %v7788 = vand.u32 %v7727, 2147483648
    %v7789 = vor.u32 1.1754944e-38, %v7788
    %v7790 = vsel %vm7787, %v7789, %v7785
    %v7791 = vmul.f32 1.0, %v7790
    %v7792 = vrcp.pop %v7728
    %v7793 = vmul.f32 %v7728, %v7792
    %v7794 = vsub.f32 1.0, %v7793
    %v7795 = vmul.f32 %v7792, %v7794
    %v7796 = vadd.f32 %v7792, %v7795
    %vm7797 = vweird.f32 %v7728
    %vm7798 = vweird.f32 %v7792
    %vm7799 = vmor %vm7797, %vm7798
    %v7800 = vsel %vm7799, %v7792, %v7796
    %v7801 = vand.u32 2147483647, %v7728
    %vm7802 = vcmp.eq.f32.partialorder %v7801, 8.507059e+37
    %v7803 = vand.u32 %v7728, 2147483648
    %v7804 = vor.u32 1.1754944e-38, %v7803
    %v7805 = vsel %vm7802, %v7804, %v7800
    %v7806 = vmul.f32 1.0, %v7805
    %v7807 = vrcp.pop %v7729
    %v7808 = vmul.f32 %v7729, %v7807
    %v7809 = vsub.f32 1.0, %v7808
    %v7810 = vmul.f32 %v7807, %v7809
    %v7811 = vadd.f32 %v7807, %v7810
    %vm7812 = vweird.f32 %v7729
    %vm7813 = vweird.f32 %v7807
    %vm7814 = vmor %vm7812, %vm7813
    %v7815 = vsel %vm7814, %v7807, %v7811
    %v7816 = vand.u32 2147483647, %v7729
    %vm7817 = vcmp.eq.f32.partialorder %v7816, 8.507059e+37
    %v7818 = vand.u32 %v7729, 2147483648
    %v7819 = vor.u32 1.1754944e-38, %v7818
    %v7820 = vsel %vm7817, %v7819, %v7815
    %v7821 = vmul.f32 1.0, %v7820
    %v7822 = vrcp.pop %v7730
    %v7823 = vmul.f32 %v7730, %v7822
    %v7824 = vsub.f32 1.0, %v7823
    %v7825 = vmul.f32 %v7822, %v7824
    %v7826 = vadd.f32 %v7822, %v7825
    %vm7827 = vweird.f32 %v7730
    %vm7828 = vweird.f32 %v7822
    %vm7829 = vmor %vm7827, %vm7828
    %v7830 = vsel %vm7829, %v7822, %v7826
    %v7831 = vand.u32 2147483647, %v7730
    %vm7832 = vcmp.eq.f32.partialorder %v7831, 8.507059e+37
    %v7833 = vand.u32 %v7730, 2147483648
    %v7834 = vor.u32 1.1754944e-38, %v7833
    %v7835 = vsel %vm7832, %v7834, %v7830
    %v7836 = vmul.f32 1.0, %v7835
    %v7837 = vrcp.pop %v7731
    %v7838 = vmul.f32 %v7731, %v7837
    %v7839 = vsub.f32 1.0, %v7838
    %v7840 = vmul.f32 %v7837, %v7839
    %v7841 = vadd.f32 %v7837, %v7840
    %vm7842 = vweird.f32 %v7731
    %vm7843 = vweird.f32 %v7837
    %vm7844 = vmor %vm7842, %vm7843
    %v7845 = vsel %vm7844, %v7837, %v7841
    %v7846 = vand.u32 2147483647, %v7731
    %vm7847 = vcmp.eq.f32.partialorder %v7846, 8.507059e+37
    %v7848 = vand.u32 %v7731, 2147483648
    %v7849 = vor.u32 1.1754944e-38, %v7848
    %v7850 = vsel %vm7847, %v7849, %v7845
    %v7851 = vmul.f32 1.0, %v7850
    %v7852 = vld [vmem:[%s10] sm:$0xff]
    %v7853 = vld [vmem:[%s10 + $0x8] sm:$0xff]
    %v7854 = vld [vmem:[%s10 + $0x10] sm:$0xff]
    %v7855 = vld [vmem:[%s10 + $0x18] sm:$0xff]
    %v7856 = vld [vmem:[%s10 + $0x20] sm:$0x1f]
    %v7857 = vld [vmem:[%s10 + $0x28] sm:$0x1f]
    %v7858 = vld [vmem:[%s10 + $0x30] sm:$0x1f]
    %v7859 = vld [vmem:[%s10 + $0x38] sm:$0x1f]
    %vm7860 = vcmask 105472
    %v7862 = vsel %vm7860, %v7746, 0
    %v7865 = vsel %vm7860, %v7761, 0
    %v7868 = vsel %vm7860, %v7776, 0
    %v7871 = vsel %vm7860, %v7791, 0
    %v7874 = vsel %vm7860, %v7806, 0
    %v7877 = vsel %vm7860, %v7821, 0
    %v7880 = vsel %vm7860, %v7836, 0
    %v7883 = vsel %vm7860, %v7851, 0
    %vm7885 = vcmask 1044480
    %v7887 = vsel %vm7885, %v7856, 0
    %v7890 = vsel %vm7885, %v7857, 0
    %v7893 = vsel %vm7885, %v7858, 0
    %v7896 = vsel %vm7885, %v7859, 0
    %7898 = vmatpush.msra.mxu0 0.0
    %7899 = vmatpush.msra.mxu0 0.0
    %7900 = vmatpush.msra.mxu0 0.0
    %7901 = vmatpush.msra.mxu0 0.0
    %7902 = vmatpush.msra.mxu0 0.0
    %7903 = vmatpush.msra.mxu0 0.0
    %7904 = vmatpush.msra.mxu0 0.0
    %7905 = vmatpush.msra.mxu0 0.0
    %7906 = vmatpush.msra.mxu0 0.0
    %7907 = vmatpush.msra.mxu0 0.0
    %7908 = vmatpush.msra.mxu0 0.0
    %7909 = vmatpush.msra.mxu0 0.0
    %7910 = vmatpush.msra.mxu0 0.0
    %7911 = vmatpush.msra.mxu0 0.0
    %7912 = vmatpush.msra.mxu0 %v7887
    %7913 = vmatpush.msra.mxu0 %v7852
    %7914 = vmatmul.f32.gmra.mxu0 %v7862
    %v7915 = vpop.f32.mrf.mxu0
    %v7916 = vadd.f32 0.0, %v7915
    %7917 = vmatmul.f32.gmra.mxu0 %v7865
    %v7918 = vpop.f32.mrf.mxu0
    %v7919 = vadd.f32 0.0, %v7918
    %7920 = vmatmul.f32.gmra.mxu0 %v7868
    %v7921 = vpop.f32.mrf.mxu0
    %v7922 = vadd.f32 0.0, %v7921
    %7923 = vmatmul.f32.gmra.mxu0 %v7871
    %v7924 = vpop.f32.mrf.mxu0
    %v7925 = vadd.f32 0.0, %v7924
    %7926 = vmatmul.f32.gmra.mxu0 %v7874
    %v7927 = vpop.f32.mrf.mxu0
    %v7928 = vadd.f32 0.0, %v7927
    %7929 = vmatmul.f32.gmra.mxu0 %v7877
    %v7930 = vpop.f32.mrf.mxu0
    %v7931 = vadd.f32 0.0, %v7930
    %7932 = vmatmul.f32.gmra.mxu0 %v7880
    %v7933 = vpop.f32.mrf.mxu0
    %v7934 = vadd.f32 0.0, %v7933
    %7935 = vmatmul.f32.gmra.mxu0 %v7883
    %v7936 = vpop.f32.mrf.mxu0
    %v7937 = vadd.f32 0.0, %v7936
    %7938 = vdwg.mxu0
    %7939 = vmatpush.msra.mxu0 0.0
    %7940 = vmatpush.msra.mxu0 0.0
    %7941 = vmatpush.msra.mxu0 0.0
    %7942 = vmatpush.msra.mxu0 0.0
    %7943 = vmatpush.msra.mxu0 0.0
    %7944 = vmatpush.msra.mxu0 0.0
    %7945 = vmatpush.msra.mxu0 0.0
    %7946 = vmatpush.msra.mxu0 0.0
    %7947 = vmatpush.msra.mxu0 0.0
    %7948 = vmatpush.msra.mxu0 0.0
    %7949 = vmatpush.msra.mxu0 0.0
    %7950 = vmatpush.msra.mxu0 0.0
    %7951 = vmatpush.msra.mxu0 0.0
    %7952 = vmatpush.msra.mxu0 0.0
    %7953 = vmatpush.msra.mxu0 %v7890
    %7954 = vmatpush.msra.mxu0 %v7853
    %7955 = vmatmul.f32.gmra.mxu0 %v7862
    %v7956 = vpop.f32.mrf.mxu0
    %v7957 = vadd.f32 0.0, %v7956
    %7958 = vmatmul.f32.gmra.mxu0 %v7865
    %v7959 = vpop.f32.mrf.mxu0
    %v7960 = vadd.f32 0.0, %v7959
    %7961 = vmatmul.f32.gmra.mxu0 %v7868
    %v7962 = vpop.f32.mrf.mxu0
    %v7963 = vadd.f32 0.0, %v7962
    %7964 = vmatmul.f32.gmra.mxu0 %v7871
    %v7965 = vpop.f32.mrf.mxu0
    %v7966 = vadd.f32 0.0, %v7965
    %7967 = vmatmul.f32.gmra.mxu0 %v7874
    %v7968 = vpop.f32.mrf.mxu0
    %v7969 = vadd.f32 0.0, %v7968
    %7970 = vmatmul.f32.gmra.mxu0 %v7877
    %v7971 = vpop.f32.mrf.mxu0
    %v7972 = vadd.f32 0.0, %v7971
    %7973 = vmatmul.f32.gmra.mxu0 %v7880
    %v7974 = vpop.f32.mrf.mxu0
    %v7975 = vadd.f32 0.0, %v7974
    %7976 = vmatmul.f32.gmra.mxu0 %v7883
    %v7977 = vpop.f32.mrf.mxu0
    %v7978 = vadd.f32 0.0, %v7977
    %7979 = vdwg.mxu0
    %7980 = vmatpush.msra.mxu0 0.0
    %7981 = vmatpush.msra.mxu0 0.0
    %7982 = vmatpush.msra.mxu0 0.0
    %7983 = vmatpush.msra.mxu0 0.0
    %7984 = vmatpush.msra.mxu0 0.0
    %7985 = vmatpush.msra.mxu0 0.0
    %7986 = vmatpush.msra.mxu0 0.0
    %7987 = vmatpush.msra.mxu0 0.0
    %7988 = vmatpush.msra.mxu0 0.0
    %7989 = vmatpush.msra.mxu0 0.0
    %7990 = vmatpush.msra.mxu0 0.0
    %7991 = vmatpush.msra.mxu0 0.0
    %7992 = vmatpush.msra.mxu0 0.0
    %7993 = vmatpush.msra.mxu0 0.0
    %7994 = vmatpush.msra.mxu0 %v7893
    %7995 = vmatpush.msra.mxu0 %v7854
    %7996 = vmatmul.f32.gmra.mxu0 %v7862
    %v7997 = vpop.f32.mrf.mxu0
    %v7998 = vadd.f32 0.0, %v7997
    %7999 = vmatmul.f32.gmra.mxu0 %v7865
    %v8000 = vpop.f32.mrf.mxu0
    %v8001 = vadd.f32 0.0, %v8000
    %8002 = vmatmul.f32.gmra.mxu0 %v7868
    %v8003 = vpop.f32.mrf.mxu0
    %v8004 = vadd.f32 0.0, %v8003
    %8005 = vmatmul.f32.gmra.mxu0 %v7871
    %v8006 = vpop.f32.mrf.mxu0
    %v8007 = vadd.f32 0.0, %v8006
    %8008 = vmatmul.f32.gmra.mxu0 %v7874
    %v8009 = vpop.f32.mrf.mxu0
    %v8010 = vadd.f32 0.0, %v8009
    %8011 = vmatmul.f32.gmra.mxu0 %v7877
    %v8012 = vpop.f32.mrf.mxu0
    %v8013 = vadd.f32 0.0, %v8012
    %8014 = vmatmul.f32.gmra.mxu0 %v7880
    %v8015 = vpop.f32.mrf.mxu0
    %v8016 = vadd.f32 0.0, %v8015
    %8017 = vmatmul.f32.gmra.mxu0 %v7883
    %v8018 = vpop.f32.mrf.mxu0
    %v8019 = vadd.f32 0.0, %v8018
    %8020 = vdwg.mxu0
    %8021 = vmatpush.msra.mxu0 0.0
    %8022 = vmatpush.msra.mxu0 0.0
    %8023 = vmatpush.msra.mxu0 0.0
    %8024 = vmatpush.msra.mxu0 0.0
    %8025 = vmatpush.msra.mxu0 0.0
    %8026 = vmatpush.msra.mxu0 0.0
    %8027 = vmatpush.msra.mxu0 0.0
    %8028 = vmatpush.msra.mxu0 0.0
    %8029 = vmatpush.msra.mxu0 0.0
    %8030 = vmatpush.msra.mxu0 0.0
    %8031 = vmatpush.msra.mxu0 0.0
    %8032 = vmatpush.msra.mxu0 0.0
    %8033 = vmatpush.msra.mxu0 0.0
    %8034 = vmatpush.msra.mxu0 0.0
    %8035 = vmatpush.msra.mxu0 %v7896
    %8036 = vmatpush.msra.mxu0 %v7855
    %8037 = vmatmul.f32.gmra.mxu0 %v7862
    %v8038 = vpop.f32.mrf.mxu0
    %v8039 = vadd.f32 0.0, %v8038
    %8040 = vmatmul.f32.gmra.mxu0 %v7865
    %v8041 = vpop.f32.mrf.mxu0
    %v8042 = vadd.f32 0.0, %v8041
    %8043 = vmatmul.f32.gmra.mxu0 %v7868
    %v8044 = vpop.f32.mrf.mxu0
    %v8045 = vadd.f32 0.0, %v8044
    %8046 = vmatmul.f32.gmra.mxu0 %v7871
    %v8047 = vpop.f32.mrf.mxu0
    %v8048 = vadd.f32 0.0, %v8047
    %8049 = vmatmul.f32.gmra.mxu0 %v7874
    %v8050 = vpop.f32.mrf.mxu0
    %v8051 = vadd.f32 0.0, %v8050
    %8052 = vmatmul.f32.gmra.mxu0 %v7877
    %v8053 = vpop.f32.mrf.mxu0
    %v8054 = vadd.f32 0.0, %v8053
    %8055 = vmatmul.f32.gmra.mxu0 %v7880
    %v8056 = vpop.f32.mrf.mxu0
    %v8057 = vadd.f32 0.0, %v8056
    %8058 = vmatmul.f32.gmra.mxu0 %v7883
    %v8059 = vpop.f32.mrf.mxu0
    %v8060 = vadd.f32 0.0, %v8059
    %8061 = vdwg.mxu0
    %v8062 = vsub.f32 %v7380, %v7376
    %v8063 = vsub.f32 %v7381, %v7377
    %v8064 = vsub.f32 %v7382, %v7378
    %v8065 = vsub.f32 %v7383, %v7379
    %v8066 = vsub.f32 %v7388, %v7384
    %v8067 = vsub.f32 %v7389, %v7385
    %v8068 = vsub.f32 %v7390, %v7386
    %v8069 = vsub.f32 %v7391, %v7387
    %v8070 = vsub.f32 %v7396, %v7392
    %v8071 = vsub.f32 %v7397, %v7393
    %v8072 = vsub.f32 %v7398, %v7394
    %v8073 = vsub.f32 %v7399, %v7395
    %v8074 = vsub.f32 %v7404, %v7400
    %v8075 = vsub.f32 %v7405, %v7401
    %v8076 = vsub.f32 %v7406, %v7402
    %v8077 = vsub.f32 %v7407, %v7403
    %v8078 = vsub.f32 %v7412, %v7408
    %v8079 = vsub.f32 %v7413, %v7409
    %v8080 = vsub.f32 %v7414, %v7410
    %v8081 = vsub.f32 %v7415, %v7411
    %v8082 = vsub.f32 %v7420, %v7416
    %v8083 = vsub.f32 %v7421, %v7417
    %v8084 = vsub.f32 %v7422, %v7418
    %v8085 = vsub.f32 %v7423, %v7419
    %v8086 = vsub.f32 %v7428, %v7424
    %v8087 = vsub.f32 %v7429, %v7425
    %v8088 = vsub.f32 %v7430, %v7426
    %v8089 = vsub.f32 %v7431, %v7427
    %v8090 = vsub.f32 %v7436, %v7432
    %v8091 = vsub.f32 %v7437, %v7433
    %v8092 = vsub.f32 %v7438, %v7434
    %v8093 = vsub.f32 %v7439, %v7435
    %v8094 = vmul.f32 %v7916, %v8062
    %v8095 = vmul.f32 %v7957, %v8063
    %v8096 = vmul.f32 %v7998, %v8064
    %v8097 = vmul.f32 %v8039, %v8065
    %v8098 = vmul.f32 %v7919, %v8066
    %v8099 = vmul.f32 %v7960, %v8067
    %v8100 = vmul.f32 %v8001, %v8068
    %v8101 = vmul.f32 %v8042, %v8069
    %v8102 = vmul.f32 %v7922, %v8070
    %v8103 = vmul.f32 %v7963, %v8071
    %v8104 = vmul.f32 %v8004, %v8072
    %v8105 = vmul.f32 %v8045, %v8073
    %v8106 = vmul.f32 %v7925, %v8074
    %v8107 = vmul.f32 %v7966, %v8075
    %v8108 = vmul.f32 %v8007, %v8076
    %v8109 = vmul.f32 %v8048, %v8077
    %v8110 = vmul.f32 %v7928, %v8078
    %v8111 = vmul.f32 %v7969, %v8079
    %v8112 = vmul.f32 %v8010, %v8080
    %v8113 = vmul.f32 %v8051, %v8081
    %v8114 = vmul.f32 %v7931, %v8082
    %v8115 = vmul.f32 %v7972, %v8083
    %v8116 = vmul.f32 %v8013, %v8084
    %v8117 = vmul.f32 %v8054, %v8085
    %v8118 = vmul.f32 %v7934, %v8086
    %v8119 = vmul.f32 %v7975, %v8087
    %v8120 = vmul.f32 %v8016, %v8088
    %v8121 = vmul.f32 %v8057, %v8089
    %v8122 = vmul.f32 %v7937, %v8090
    %v8123 = vmul.f32 %v7978, %v8091
    %v8124 = vmul.f32 %v8019, %v8092
    %v8125 = vmul.f32 %v8060, %v8093
    %8126 = vst [vmem:[#allocation5] sm:$0xff] %v8094
    %8127 = vst [vmem:[#allocation5 + $0x8] sm:$0xff] %v8095
    %8128 = vst [vmem:[#allocation5 + $0x10] sm:$0xff] %v8096
    %8129 = vst [vmem:[#allocation5 + $0x18] sm:$0xff] %v8097
    %8130 = vst [vmem:[#allocation5 + $0x20] sm:$0xff] %v8098
    %8131 = vst [vmem:[#allocation5 + $0x28] sm:$0xff] %v8099
    %8132 = vst [vmem:[#allocation5 + $0x30] sm:$0xff] %v8100
    %8133 = vst [vmem:[#allocation5 + $0x38] sm:$0xff] %v8101
    %8134 = vst [vmem:[#allocation5 + $0x40] sm:$0xff] %v8102
    %8135 = vst [vmem:[#allocation5 + $0x48] sm:$0xff] %v8103
    %8136 = vst [vmem:[#allocation5 + $0x50] sm:$0xff] %v8104
    %8137 = vst [vmem:[#allocation5 + $0x58] sm:$0xff] %v8105
    %8138 = vst [vmem:[#allocation5 + $0x60] sm:$0xff] %v8106
    %8139 = vst [vmem:[#allocation5 + $0x68] sm:$0xff] %v8107
    %8140 = vst [vmem:[#allocation5 + $0x70] sm:$0xff] %v8108
    %8141 = vst [vmem:[#allocation5 + $0x78] sm:$0xff] %v8109
    %8142 = vst [vmem:[#allocation5 + $0x80] sm:$0xff] %v8110
    %8143 = vst [vmem:[#allocation5 + $0x88] sm:$0xff] %v8111
    %8144 = vst [vmem:[#allocation5 + $0x90] sm:$0xff] %v8112
    %8145 = vst [vmem:[#allocation5 + $0x98] sm:$0xff] %v8113
    %8146 = vst [vmem:[#allocation5 + $0xa0] sm:$0xff] %v8114
    %8147 = vst [vmem:[#allocation5 + $0xa8] sm:$0xff] %v8115
    %8148 = vst [vmem:[#allocation5 + $0xb0] sm:$0xff] %v8116
    %8149 = vst [vmem:[#allocation5 + $0xb8] sm:$0xff] %v8117
    %8150 = vst [vmem:[#allocation5 + $0xc0] sm:$0xff] %v8118
    %8151 = vst [vmem:[#allocation5 + $0xc8] sm:$0xff] %v8119
    %8152 = vst [vmem:[#allocation5 + $0xd0] sm:$0xff] %v8120
    %8153 = vst [vmem:[#allocation5 + $0xd8] sm:$0xff] %v8121
    %8154 = vst [vmem:[#allocation5 + $0xe0] sm:$0xff] %v8122
    %8155 = vst [vmem:[#allocation5 + $0xe8] sm:$0xff] %v8123
    %8156 = vst [vmem:[#allocation5 + $0xf0] sm:$0xff] %v8124
    %8157 = vst [vmem:[#allocation5 + $0xf8] sm:$0xff] %v8125
    // Predicated region
    $region50: #{tpu_custom_call.1} parent=1 // pred_check
      _
    $region51: #{tpu_custom_call.1} parent=1 // pred_check_branch
      %8159 = sbr.rel (0) target = $region53
    $region52: #{tpu_custom_call.1} parent=1 // pred_region
      %8161 = vsyncadd [#allocation4], 0
      %s8162 = sshll.u32 [#allocation5], 4
      %s8163 = int_to_ptr.vmem [resolvable:$true] %s8162
      %s8164 = sshll.u32 %s11, 4
      %s8165 = int_to_ptr.hbm [resolvable:$true] %s8164
      %8170 = dma.vmem_to_hbm [thread:$0]  %s8163, 4096, %s8165, [#allocation4], 512, 512, 32
    $region53: #{tpu_custom_call.1} parent=1 // pred_fallthru
      _
    // Predicated region
    $region54: #{tpu_custom_call.1} parent=1 // pred_check
      _
    $region55: #{tpu_custom_call.1} parent=1 // pred_check_branch
      %8172 = sbr.rel (0) target = $region57
    $region56: #{tpu_custom_call.1} parent=1 // pred_region
      %8174 = dma.done [#allocation4], 4096
    $region57: #{tpu_custom_call.1} parent=1 // pred_fallthru
      _
    %8175 = vsyncpa [#allocation3], 1
    %8176 = vsyncpa [#allocation4], 1

</llo_original>
